<compile_context>
chip_gen: v7x
topology: tpu7x:2x2x1
jax: 0.10.0
libtpu: 0.0.40
codegen_flags: <defaults>
</compile_context>

<pallas_src>
import functools

import jax
import jax.numpy as jnp
from jax.experimental import pallas as pl
from jax.experimental.pallas import tpu as pltpu

_LN_EPS = 1e-5
_W_PER_BLOCK = 11          # weight arrays per fused Swin block


@functools.lru_cache(maxsize=1)
def _tile_cfg():
    """(max rows per grid step, vmem_limit_bytes) per TPU generation."""
    try:
        kind = jax.devices()[0].device_kind.lower()
    except Exception:
        kind = ""
    if "v7" in kind:                     # v7x: 64 MiB VMEM / TensorCore
        return 1024, 32 * 1024 * 1024
    return 2048, 64 * 1024 * 1024        # v5e / v6e: 128 MiB VMEM


# ------------------------- in-kernel building blocks -------------------------

def _layernorm(x, eps):
    mu = jnp.mean(x, axis=-1, keepdims=True)
    xc = x - mu
    var = jnp.mean(xc * xc, axis=-1, keepdims=True)
    return xc * jax.lax.rsqrt(var + eps)


def _attn_sub(x, w_qkv, b_qkv, merge_w, heads, head_dim, eps):
    """LayerNorm(folded) -> qkv -> per-token HxH head-axis softmax ->
    one merge dot (Dh-major permutation + ls_gamma1 folded) -> residual."""
    C = heads * head_dim
    xn = _layernorm(x, eps)
    qkv = jnp.dot(xn, w_qkv, preferred_element_type=jnp.float32) + b_qkv
    outs = []
    for h in range(heads):
        qh = qkv[:, h * head_dim:(h + 1) * head_dim]      # softmax scale pre-folded
        scores = [jnp.sum(qh * qkv[:, C + g * head_dim:C + (g + 1) * head_dim],
                          axis=-1, keepdims=True)
                  for g in range(heads)]
        m = scores[0]
        for s in scores[1:]:
            m = jnp.maximum(m, s)
        exps = [jnp.exp(s - m) for s in scores]
        denom = exps[0]
        for e in exps[1:]:
            denom = denom + e
        inv = pl.reciprocal(denom, approx=True)           # EUP, not VPU divide
        oh = None
        for g in range(heads):
            vg = qkv[:, 2 * C + g * head_dim:2 * C + (g + 1) * head_dim]
            t = (exps[g] * inv) * vg
            oh = t if oh is None else oh + t
        outs.append(oh)
    head_major = jnp.concatenate(outs, axis=-1)           # (tm, C), head-major
    # single MXU dot applies the head-major -> Dh-major interleave + ls_gamma1
    return x + jnp.dot(head_major, merge_w, preferred_element_type=jnp.float32)


def _mlp_sub(x, w_a, b_a, w_b, b_b, w_c, b_c, w_d, b_d, eps):
    """LayerNorm + ResMLP stand-in (all per-channel affines / layer-scales
    folded into 4 matmuls) + ls_gamma2 + residual."""
    xn = _layernorm(x, eps)
    y = jnp.dot(xn, w_a, preferred_element_type=jnp.float32) + b_a
    h = jnp.dot(y, w_b, preferred_element_type=jnp.float32) + b_b
    c0 = 0.7978845608028654              # sqrt(2/pi), tanh-GELU
    h = 0.5 * h * (1.0 + jnp.tanh(c0 * (h + 0.044715 * h * h * h)))
    y = y + jnp.dot(h, w_c, preferred_element_type=jnp.float32) + b_c
    return x + jnp.dot(y, w_d, preferred_element_type=jnp.float32) + b_d


# --------------------------------- kernels ----------------------------------

def _stage_kernel(*refs, depth, heads, head_dim, eps):
    """One fused encoder stage: `depth` Swin blocks (attention + MLP each)
    applied to a row tile of tokens held resident in VMEM."""
    x_ref, o_ref = refs[0], refs[-1]
    wrefs = refs[1:-1]
    x = x_ref[...].astype(jnp.float32)
    for b in range(depth):
        (w_qkv, b_qkv, merge_w,
         w_a, b_a, w_b, b_b,
         w_c, b_c, w_d, b_d) = wrefs[b * _W_PER_BLOCK:(b + 1) * _W_PER_BLOCK]
        x = _attn_sub(x, w_qkv[...], b_qkv[...], merge_w[...], heads, head_dim, eps)
        x = _mlp_sub(x, w_a[...], b_a[...], w_b[...], b_b[...],
                     w_c[...], b_c[...], w_d[...], b_d[...], eps)
    o_ref[...] = x.astype(o_ref.dtype)


def _matmul_bias_kernel(x_ref, w_ref, b_ref, o_ref):
    o_ref[...] = (jnp.dot(x_ref[...].astype(jnp.float32), w_ref[...],
                          preferred_element_type=jnp.float32)
                  + b_ref[...]).astype(o_ref.dtype)


def _head_kernel(x_ref, w1_ref, b1_ref, w2_ref, b2_ref, wh_ref, bh_ref,
                 feat_ref, ab_ref):
    """Fused agg tail: Linear+BN(folded)+ReLU -> Linear -> [head_a | head_b]."""
    h = jnp.dot(x_ref[...], w1_ref[...],
                preferred_element_type=jnp.float32) + b1_ref[...]
    h = jnp.maximum(h, 0.0)
    f = jnp.dot(h, w2_ref[...], preferred_element_type=jnp.float32) + b2_ref[...]
    feat_ref[...] = f
    ab_ref[...] = jnp.dot(f, wh_ref[...],
                          preferred_element_type=jnp.float32) + bh_ref[...]


# ------------------------------ call wrappers --------------------------------

def _row_call(kernel, x2d, consts, out_cols, out_dtype):
    """Row-tiled pallas_call: x tiled over rows ("parallel" -> megacore
    shardable), consts (weights) fully resident with constant block index."""
    tm_max, vmem_bytes = _tile_cfg()
    M, K = x2d.shape
    tm = M if M <= tm_max else tm_max
    Mp = ((M + tm - 1) // tm) * tm
    if Mp != M:                              # zero-pad last partial row tile
        x2d = jnp.pad(x2d, ((0, Mp - M), (0, 0)))
    in_specs = [pl.BlockSpec((tm, K), lambda i: (i, 0))]
    in_specs += [pl.BlockSpec(c.shape, lambda i: (0, 0)) for c in consts]
    out = pl.pallas_call(
        kernel,
        grid=(Mp // tm,),
        in_specs=in_specs,
        out_specs=pl.BlockSpec((tm, out_cols), lambda i: (i, 0)),
        out_shape=jax.ShapeDtypeStruct((Mp, out_cols), out_dtype),
        compiler_params=pltpu.CompilerParams(
            dimension_semantics=("parallel",),
            vmem_limit_bytes=vmem_bytes),
    )(x2d, *consts)
    return out[:M] if Mp != M else out


def stage_forward(tokens_bf16, stage):
    consts = []
    for blk in stage["blocks"]:
        consts += [blk["w_qkv"], blk["b_qkv"], blk["merge_w"],
                   blk["w_a"], blk["b_a"], blk["w_b"], blk["b_b"],
                   blk["w_c"], blk["b_c"], blk["w_d"], blk["b_d"]]
    kern = functools.partial(_stage_kernel, depth=len(stage["blocks"]),
                             heads=stage["heads"], head_dim=stage["head_dim"],
                             eps=_LN_EPS)
    return _row_call(kern, tokens_bf16, consts, tokens_bf16.shape[1], jnp.bfloat16)


def agg_heads(agg_in, p):
    B, K = agg_in.shape
    consts = [p["w1"], p["b1"], p["w2"], p["b2"], p["wh"], p["bh"]]
    n_mid = p["w2"].shape[1]
    n_out = p["wh"].shape[1]
    feat, ab = pl.pallas_call(
        _head_kernel,
        out_shape=(jax.ShapeDtypeStruct((B, n_mid), jnp.float32),
                   jax.ShapeDtypeStruct((B, n_out), jnp.float32)),
        in_specs=[pl.BlockSpec((B, K), lambda: (0, 0))]
                 + [pl.BlockSpec(c.shape, lambda: (0, 0)) for c in consts],
        out_specs=[pl.BlockSpec((B, n_mid), lambda: (0, 0)),
                   pl.BlockSpec((B, n_out), lambda: (0, 0))],
    )(agg_in.astype(jnp.float32), *consts)
    return feat, ab


# ------------------------------ model pieces --------------------------------

def patch_embed(x_ncdhw, w, b):
    """Conv3d(kernel=4, stride=4, pad=0) as patch extraction + Pallas matmul."""
    # TODO(synk): for realistic volumes, fold this transpose into the matmul's
    # BlockSpec index_map over (D/4,H/4,W/4) blocks to avoid one extra
    # full-volume HBM round trip (negligible at this smoke-test size).
    B, Cin, D, H, W = x_ncdhw.shape
    x = x_ncdhw.reshape(B, Cin, D // 4, 4, H // 4, 4, W // 4, 4)
    x = jnp.transpose(x, (0, 2, 4, 6, 1, 3, 5, 7))      # (B,D/4,H/4,W/4,Cin,4,4,4)
    patches = x.reshape(B * (D // 4) * (H // 4) * (W // 4), Cin * 64)
    patches = patches.astype(jnp.bfloat16)               # stream bf16
    out = _row_call(_matmul_bias_kernel, patches, [w, b], w.shape[1], jnp.bfloat16)
    return out, (B, D // 4, H // 4, W // 4, w.shape[1])


def swin_unetr3d_plus_forward(x, fused):
    # NOTE: window partition / reverse is a no-op permutation here (attention
    # is per-token across heads), so tokens stay as one flat (M, C) matrix.
    tokens, (B, D, H, W, C) = patch_embed(x, fused["pe_w"], fused["pe_b"])
    pooled = []
    for stage in fused["stages"]:
        tokens = stage_forward(tokens, stage)            # one fused kernel / stage
        # per-stage spatial mean pool -- plain XLA (too tiny for a kernel)
        pooled.append(jnp.mean(
            tokens.astype(jnp.float32).reshape(B, D * H * W, C), axis=1))
    agg_in = jnp.concatenate(pooled, axis=1)             # (B, E * n_stages)
    feat256, out_ab = agg_heads(agg_in, fused["head"])
    return out_ab[:, 0:1], out_ab[:, 1:2], feat256


# ------------------------------- parameters ---------------------------------

def init_raw_params(key, cfg):
    E = cfg["embed_dim"]
    Cin = cfg["in_channels"]
    depths = cfg["depths"]
    hidden = int(E * cfg["mlp_ratio"])
    keys = iter(jax.random.split(key, 512))

    def dense(shape, scale=0.02):
        return (scale * jax.random.normal(next(keys), shape)).astype(jnp.float32)

    def make_block():
        return dict(
            norm1_g=jnp.ones((E,), jnp.float32),
            norm1_b=jnp.zeros((E,), jnp.float32),
            attn=dict(qkv_w=dense((E, 3 * E)), qkv_b=dense((3 * E,))),
            ls_gamma1=jnp.full((E,), 1e-5, jnp.float32),
            norm2_g=jnp.ones((E,), jnp.float32),
            norm2_b=jnp.zeros((E,), jnp.float32),
            # TODO(synk): ResMLP is not defined in the source file; a standard
            # depth-1 ResMLP (patch-embed 1x1, token-mix over a single patch,
            # channel MLP, affines + layer-scale, head C->C) is used instead.
            mlp=dict(
                pe_w=dense((E, E)), pe_b=dense((E,)),
                aff1_g=jnp.ones((E,), jnp.float32), aff1_b=jnp.zeros((E,), jnp.float32),
                tok_w=jnp.array(1.0, jnp.float32), tok_b=jnp.array(0.0, jnp.float32),
                ls_tok=jnp.full((E,), 0.1, jnp.float32),
                aff2_g=jnp.ones((E,), jnp.float32), aff2_b=jnp.zeros((E,), jnp.float32),
                mlp_w1=dense((E, hidden)), mlp_b1=dense((hidden,)),
                mlp_w2=dense((hidden, E)), mlp_b2=dense((E,)),
                ls_ch=jnp.full((E,), 0.1, jnp.float32),
                aff3_g=jnp.ones((E,), jnp.float32), aff3_b=jnp.zeros((E,), jnp.float32),
                head_w=dense((E, E)), head_b=dense((E,)),
            ),
            ls_gamma2=jnp.full((E,), 1e-5, jnp.float32),
        )

    return dict(
        pe_w=dense((Cin * 64, E)),
        pe_b=dense((E,)),
        stages=[[make_block() for _ in range(d)] for d in depths],
        agg=dict(
            lin1_w=dense((E * len(depths), 512)), lin1_b=dense((512,)),
            bn_g=jnp.ones((512,), jnp.float32), bn_b=jnp.zeros((512,), jnp.float32),
            lin2_w=dense((512, 256)), lin2_b=dense((256,)),
        ),
        head_a_w=dense((256, 1)), head_a_b=dense((1,)),
        head_b_w=dense((256, 1)), head_b_b=dense((1,)),
    )


def fold_params(raw, cfg):
    """Fold LayerNorm affines, per-channel affines, layer-scales, softmax
    scale, head-merge permutation and eval BatchNorm into the matmul weights so
    every Swin block is a handful of matmuls inside one fused stage kernel."""
    E = cfg["embed_dim"]
    stages = []
    for stage_raw, nh in zip(raw["stages"], cfg["num_heads"]):
        hd = E // nh
        scale = float(hd) ** -0.5
        blocks = []
        for blk in stage_raw:
            # ---- attention path ----
            qkv_w, qkv_b = blk["attn"]["qkv_w"], blk["attn"]["qkv_b"]
            w_qkv = blk["norm1_g"][:, None] * qkv_w
            b_qkv = blk["norm1_b"] @ qkv_w + qkv_b
            # fold the 1/sqrt(head_dim) softmax scale into the Q columns
            q_scale = jnp.concatenate([jnp.full((E,), scale, jnp.float32),
                                       jnp.ones((2 * E,), jnp.float32)])
            w_qkv = w_qkv * q_scale[None, :]
            b_qkv = (b_qkv * q_scale).reshape(1, 3 * E)
            # head-major -> Dh-major interleave + ls_gamma1 as one (C,C) matrix
            gamma1 = blk["ls_gamma1"]
            rows = jnp.arange(E)                 # head-major index: h*Dh + d
            h_of, d_of = rows // hd, rows % hd
            cols = d_of * nh + h_of              # reference Dh-major channel layout
            merge_w = jnp.zeros((E, E), jnp.float32).at[rows, cols].set(gamma1[cols])
            # ---- MLP path (ResMLP stand-in, everything folded) ----
            m = blk["mlp"]
            s1 = 1.0 + m["ls_tok"] * m["tok_w"] * m["aff1_g"]
            c1 = m["ls_tok"] * (m["tok_w"] * m["aff1_b"] + m["tok_b"])
            w_a = blk["norm2_g"][:, None] * m["pe_w"] * s1[None, :]
            b_a = (blk["norm2_b"] @ m["pe_w"] + m["pe_b"]) * s1 + c1
            w_b = m["aff2_g"][:, None] * m["mlp_w1"]
            b_b = m["aff2_b"] @ m["mlp_w1"] + m["mlp_b1"]
            w_c = m["mlp_w2"] * m["ls_ch"][None, :]
            b_c = m["mlp_b2"] * m["ls_ch"]
            gamma2 = blk["ls_gamma2"]
            w_d = m["aff3_g"][:, None] * m["head_w"] * gamma2[None, :]
            b_d = (m["aff3_b"] @ m["head_w"] + m["head_b"]) * gamma2
            blocks.append(dict(
                w_qkv=w_qkv, b_qkv=b_qkv, merge_w=merge_w,
                w_a=w_a, b_a=b_a.reshape(1, -1), w_b=w_b, b_b=b_b.reshape(1, -1),
                w_c=w_c, b_c=b_c.reshape(1, -1), w_d=w_d, b_d=b_d.reshape(1, -1)))
        stages.append(dict(heads=nh, head_dim=hd, blocks=blocks))

    agg = raw["agg"]
    # NOTE: BN folded with freshly-initialized running stats (mean 0, var 1);
    # with a trained checkpoint the real running stats must be used here.
    bn_scale = agg["bn_g"] / jnp.sqrt(1.0 + 1e-5)
    w1 = agg["lin1_w"] * bn_scale[None, :]
    b1 = (agg["lin1_b"] * bn_scale + agg["bn_b"]).reshape(1, -1)
    wh = jnp.concatenate([raw["head_a_w"], raw["head_b_w"]], axis=1)   # (256, 2)
    bh = jnp.concatenate([raw["head_a_b"], raw["head_b_b"]]).reshape(1, -1)

    return dict(
        pe_w=raw["pe_w"], pe_b=raw["pe_b"].reshape(1, -1),
        stages=stages,
        head=dict(w1=w1, b1=b1, w2=agg["lin2_w"], b2=agg["lin2_b"].reshape(1, -1),
                  wh=wh, bh=bh),
    )


# ---------------------------------- main -------------------------------------

if __name__ == "__main__":
    # Small config consistent with the module (scaled-down embed_dim/depths).
    cfg = dict(
        in_channels=2,
        embed_dim=32,
        depths=(2, 2),
        num_heads=(2, 4),
        window_size=(2, 2, 2),   # kept for fidelity; attention is per-token so
                                 # partition/reverse is a no-op permutation
        mlp_ratio=2.0,
        input_size=(8, 8, 8),
    )
    key = jax.random.PRNGKey(0)
    kp, kx = jax.random.split(key)
    raw = init_raw_params(kp, cfg)
    fused = fold_params(raw, cfg)

    B = 2
    x = jax.random.normal(
        kx, (B, cfg["in_channels"], *cfg["input_size"]), dtype=jnp.float32
    )

    fwd = jax.jit(lambda inp: swin_unetr3d_plus_forward(inp, fused))
    out_a, out_b, feat256 = fwd(x)
    jax.block_until_ready((out_a, out_b, feat256))

    assert out_a.shape == (B, 1)
    assert out_b.shape == (B, 1)
    assert feat256.shape == (B, 256)
    print("KERNEL_OK")
</pallas_src>

<mosaic_0001>
module attributes {stable_mosaic.version = 11 : i64} {
  func.func @_matmul_bias_kernel(%arg0: i32, %arg1: memref<16x128xbf16, #tpu.memory_space<vmem>>, %arg2: memref<128x32xf32, #tpu.memory_space<vmem>>, %arg3: memref<1x32xf32, #tpu.memory_space<vmem>>, %arg4: memref<16x32xbf16, #tpu.memory_space<vmem>>) attributes {dimension_semantics = [#tpu.dimension_semantics<parallel>], iteration_bounds = array<i64: 1>, scalar_prefetch = 0 : i64, scratch_operands = 0 : i64, tpu.core_type = #tpu.core_type<tc>, window_params = [{transform_indices = @transform_0, window_bounds = array<i64: 16, 128>}, {pipeline_mode = #tpu.pipeline_mode<synchronous>, transform_indices = @transform_1, window_bounds = array<i64: 128, 32>}, {pipeline_mode = #tpu.pipeline_mode<synchronous>, transform_indices = @transform_2, window_bounds = array<i64: 1, 32>}, {transform_indices = @transform_3, window_bounds = array<i64: 16, 32>}]} {
    %c0 = arith.constant 0 : index
    %c0_0 = arith.constant 0 : index
    %0 = vector.load %arg1[%c0, %c0_0] : memref<16x128xbf16, #tpu.memory_space<vmem>>, vector<16x128xbf16>
    %1 = arith.extf %0 : vector<16x128xbf16> to vector<16x128xf32>
    %c0_1 = arith.constant 0 : index
    %c0_2 = arith.constant 0 : index
    %2 = vector.load %arg2[%c0_1, %c0_2] : memref<128x32xf32, #tpu.memory_space<vmem>>, vector<128x32xf32>
    %cst = arith.constant dense<0.000000e+00> : vector<16x32xf32>
    %3 = tpu.matmul %1, %2, %cst {dimension_numbers = #tpu.dot_dimension_numbers<[1], [0], [0], [1], [0, 0, 1, 1], [], []>} : vector<16x128xf32>, vector<128x32xf32>, vector<16x32xf32> -> vector<16x32xf32>
    %c0_3 = arith.constant 0 : index
    %c0_4 = arith.constant 0 : index
    %4 = vector.load %arg3[%c0_3, %c0_4] : memref<1x32xf32, #tpu.memory_space<vmem>>, vector<1x32xf32>
    %5 = vector.broadcast %4 : vector<1x32xf32> to vector<16x32xf32>
    %6 = arith.addf %3, %5 : vector<16x32xf32>
    %7 = arith.truncf %6 : vector<16x32xf32> to vector<16x32xbf16>
    %c0_5 = arith.constant 0 : index
    %c0_6 = arith.constant 0 : index
    %8 = vector.load %arg4[%c0_5, %c0_6] : memref<16x32xbf16, #tpu.memory_space<vmem>>, vector<16x32xbf16>
    tpu.vector_store %arg4[%c0_5, %c0_6], %7 {strides = array<i32>} : memref<16x32xbf16, #tpu.memory_space<vmem>>, vector<16x32xbf16>,
    return
  }
  func.func @transform_0(%arg0: i32) -> (i32, i32) {
    %c0_i32 = arith.constant 0 : i32
    %c0_i32_0 = arith.constant 0 : i32
    return %arg0, %c0_i32 : i32, i32
  }
  func.func @transform_1(%arg0: i32) -> (i32, i32) {
    %c0_i32 = arith.constant 0 : i32
    %c0_i32_0 = arith.constant 0 : i32
    %c0_i32_1 = arith.constant 0 : i32
    return %c0_i32, %c0_i32_0 : i32, i32
  }
  func.func @transform_2(%arg0: i32) -> (i32, i32) {
    %c0_i32 = arith.constant 0 : i32
    %c0_i32_0 = arith.constant 0 : i32
    %c0_i32_1 = arith.constant 0 : i32
    return %c0_i32, %c0_i32_0 : i32, i32
  }
  func.func @transform_3(%arg0: i32) -> (i32, i32) {
    %c0_i32 = arith.constant 0 : i32
    %c0_i32_0 = arith.constant 0 : i32
    return %arg0, %c0_i32 : i32, i32
  }
}

module attributes {stable_mosaic.version = 11 : i64} {
  func.func @_stage_kernel(%arg0: i32, %arg1: memref<16x32xbf16, #tpu.memory_space<vmem>>, %arg2: memref<32x96xf32, #tpu.memory_space<vmem>>, %arg3: memref<1x96xf32, #tpu.memory_space<vmem>>, %arg4: memref<32x32xf32, #tpu.memory_space<vmem>>, %arg5: memref<32x32xf32, #tpu.memory_space<vmem>>, %arg6: memref<1x32xf32, #tpu.memory_space<vmem>>, %arg7: memref<32x64xf32, #tpu.memory_space<vmem>>, %arg8: memref<1x64xf32, #tpu.memory_space<vmem>>, %arg9: memref<64x32xf32, #tpu.memory_space<vmem>>, %arg10: memref<1x32xf32, #tpu.memory_space<vmem>>, %arg11: memref<32x32xf32, #tpu.memory_space<vmem>>, %arg12: memref<1x32xf32, #tpu.memory_space<vmem>>, %arg13: memref<32x96xf32, #tpu.memory_space<vmem>>, %arg14: memref<1x96xf32, #tpu.memory_space<vmem>>, %arg15: memref<32x32xf32, #tpu.memory_space<vmem>>, %arg16: memref<32x32xf32, #tpu.memory_space<vmem>>, %arg17: memref<1x32xf32, #tpu.memory_space<vmem>>, %arg18: memref<32x64xf32, #tpu.memory_space<vmem>>, %arg19: memref<1x64xf32, #tpu.memory_space<vmem>>, %arg20: memref<64x32xf32, #tpu.memory_space<vmem>>, %arg21: memref<1x32xf32, #tpu.memory_space<vmem>>, %arg22: memref<32x32xf32, #tpu.memory_space<vmem>>, %arg23: memref<1x32xf32, #tpu.memory_space<vmem>>, %arg24: memref<16x32xbf16, #tpu.memory_space<vmem>>) attributes {dimension_semantics = [#tpu.dimension_semantics<parallel>], iteration_bounds = array<i64: 1>, scalar_prefetch = 0 : i64, scratch_operands = 0 : i64, tpu.core_type = #tpu.core_type<tc>, window_params = [{transform_indices = @transform_0, window_bounds = array<i64: 16, 32>}, {pipeline_mode = #tpu.pipeline_mode<synchronous>, transform_indices = @transform_1, window_bounds = array<i64: 32, 96>}, {pipeline_mode = #tpu.pipeline_mode<synchronous>, transform_indices = @transform_2, window_bounds = array<i64: 1, 96>}, {pipeline_mode = #tpu.pipeline_mode<synchronous>, transform_indices = @transform_3, window_bounds = array<i64: 32, 32>}, {pipeline_mode = #tpu.pipeline_mode<synchronous>, transform_indices = @transform_4, window_bounds = array<i64: 32, 32>}, {pipeline_mode = #tpu.pipeline_mode<synchronous>, transform_indices = @transform_5, window_bounds = array<i64: 1, 32>}, {pipeline_mode = #tpu.pipeline_mode<synchronous>, transform_indices = @transform_6, window_bounds = array<i64: 32, 64>}, {pipeline_mode = #tpu.pipeline_mode<synchronous>, transform_indices = @transform_7, window_bounds = array<i64: 1, 64>}, {pipeline_mode = #tpu.pipeline_mode<synchronous>, transform_indices = @transform_8, window_bounds = array<i64: 64, 32>}, {pipeline_mode = #tpu.pipeline_mode<synchronous>, transform_indices = @transform_9, window_bounds = array<i64: 1, 32>}, {pipeline_mode = #tpu.pipeline_mode<synchronous>, transform_indices = @transform_10, window_bounds = array<i64: 32, 32>}, {pipeline_mode = #tpu.pipeline_mode<synchronous>, transform_indices = @transform_11, window_bounds = array<i64: 1, 32>}, {pipeline_mode = #tpu.pipeline_mode<synchronous>, transform_indices = @transform_12, window_bounds = array<i64: 32, 96>}, {pipeline_mode = #tpu.pipeline_mode<synchronous>, transform_indices = @transform_13, window_bounds = array<i64: 1, 96>}, {pipeline_mode = #tpu.pipeline_mode<synchronous>, transform_indices = @transform_14, window_bounds = array<i64: 32, 32>}, {pipeline_mode = #tpu.pipeline_mode<synchronous>, transform_indices = @transform_15, window_bounds = array<i64: 32, 32>}, {pipeline_mode = #tpu.pipeline_mode<synchronous>, transform_indices = @transform_16, window_bounds = array<i64: 1, 32>}, {pipeline_mode = #tpu.pipeline_mode<synchronous>, transform_indices = @transform_17, window_bounds = array<i64: 32, 64>}, {pipeline_mode = #tpu.pipeline_mode<synchronous>, transform_indices = @transform_18, window_bounds = array<i64: 1, 64>}, {pipeline_mode = #tpu.pipeline_mode<synchronous>, transform_indices = @transform_19, window_bounds = array<i64: 64, 32>}, {pipeline_mode = #tpu.pipeline_mode<synchronous>, transform_indices = @transform_20, window_bounds = array<i64: 1, 32>}, {pipeline_mode = #tpu.pipeline_mode<synchronous>, transform_indices = @transform_21, window_bounds = array<i64: 32, 32>}, {pipeline_mode = #tpu.pipeline_mode<synchronous>, transform_indices = @transform_22, window_bounds = array<i64: 1, 32>}, {transform_indices = @transform_23, window_bounds = array<i64: 16, 32>}]} {
    %c0 = arith.constant 0 : index
    %c0_0 = arith.constant 0 : index
    %0 = vector.load %arg1[%c0, %c0_0] : memref<16x32xbf16, #tpu.memory_space<vmem>>, vector<16x32xbf16>
    %1 = arith.extf %0 : vector<16x32xbf16> to vector<16x32xf32>
    %c0_1 = arith.constant 0 : index
    %c0_2 = arith.constant 0 : index
    %2 = vector.load %arg2[%c0_1, %c0_2] : memref<32x96xf32, #tpu.memory_space<vmem>>, vector<32x96xf32>
    %c0_3 = arith.constant 0 : index
    %c0_4 = arith.constant 0 : index
    %3 = vector.load %arg3[%c0_3, %c0_4] : memref<1x96xf32, #tpu.memory_space<vmem>>, vector<1x96xf32>
    %c0_5 = arith.constant 0 : index
    %c0_6 = arith.constant 0 : index
    %4 = vector.load %arg4[%c0_5, %c0_6] : memref<32x32xf32, #tpu.memory_space<vmem>>, vector<32x32xf32>
    %cst = arith.constant dense<0.000000e+00> : vector<16xf32>
    %5 = vector.multi_reduction <add>, %1, %cst [1] : vector<16x32xf32> to vector<16xf32>
    %6 = vector.shape_cast %5 : vector<16xf32> to vector<16x1xf32>
    %cst_7 = arith.constant 3.200000e+01 : f32
    %7 = vector.broadcast %cst_7 : f32 to vector<16x1xf32>
    %8 = arith.divf %6, %7 : vector<16x1xf32>
    %9 = vector.broadcast %8 : vector<16x1xf32> to vector<16x32xf32>
    %10 = arith.subf %1, %9 : vector<16x32xf32>
    %11 = arith.mulf %10, %10 : vector<16x32xf32>
    %cst_8 = arith.constant dense<0.000000e+00> : vector<16xf32>
    %12 = vector.multi_reduction <add>, %11, %cst_8 [1] : vector<16x32xf32> to vector<16xf32>
    %13 = vector.shape_cast %12 : vector<16xf32> to vector<16x1xf32>
    %cst_9 = arith.constant 3.200000e+01 : f32
    %14 = vector.broadcast %cst_9 : f32 to vector<16x1xf32>
    %15 = arith.divf %13, %14 : vector<16x1xf32>
    %cst_10 = arith.constant 9.99999974E-6 : f32
    %16 = vector.broadcast %cst_10 : f32 to vector<16x1xf32>
    %17 = arith.addf %15, %16 : vector<16x1xf32>
    %18 = math.rsqrt %17 : vector<16x1xf32>
    %19 = vector.broadcast %18 : vector<16x1xf32> to vector<16x32xf32>
    %20 = arith.mulf %10, %19 : vector<16x32xf32>
    %cst_11 = arith.constant dense<0.000000e+00> : vector<16x96xf32>
    %21 = tpu.matmul %20, %2, %cst_11 {dimension_numbers = #tpu.dot_dimension_numbers<[1], [0], [0], [1], [0, 0, 1, 1], [], []>} : vector<16x32xf32>, vector<32x96xf32>, vector<16x96xf32> -> vector<16x96xf32>
    %22 = vector.broadcast %3 : vector<1x96xf32> to vector<16x96xf32>
    %23 = arith.addf %21, %22 : vector<16x96xf32>
    %24 = vector.extract_strided_slice %23 {offsets = [0, 0], sizes = [16, 16], strides = [1, 1]} : vector<16x96xf32> to vector<16x16xf32>
    %25 = vector.extract_strided_slice %23 {offsets = [0, 32], sizes = [16, 16], strides = [1, 1]} : vector<16x96xf32> to vector<16x16xf32>
    %26 = arith.mulf %24, %25 : vector<16x16xf32>
    %cst_12 = arith.constant dense<0.000000e+00> : vector<16xf32>
    %27 = vector.multi_reduction <add>, %26, %cst_12 [1] : vector<16x16xf32> to vector<16xf32>
    %28 = vector.shape_cast %27 : vector<16xf32> to vector<16x1xf32>
    %29 = vector.extract_strided_slice %23 {offsets = [0, 48], sizes = [16, 16], strides = [1, 1]} : vector<16x96xf32> to vector<16x16xf32>
    %30 = arith.mulf %24, %29 : vector<16x16xf32>
    %cst_13 = arith.constant dense<0.000000e+00> : vector<16xf32>
    %31 = vector.multi_reduction <add>, %30, %cst_13 [1] : vector<16x16xf32> to vector<16xf32>
    %32 = vector.shape_cast %31 : vector<16xf32> to vector<16x1xf32>
    %33 = arith.maximumf %28, %32 : vector<16x1xf32>
    %34 = arith.subf %28, %33 : vector<16x1xf32>
    %35 = math.exp %34 : vector<16x1xf32>
    %36 = arith.subf %32, %33 : vector<16x1xf32>
    %37 = math.exp %36 : vector<16x1xf32>
    %38 = arith.addf %35, %37 : vector<16x1xf32>
    %39 = tpu.reciprocal %38 {approx = true} : vector<16x1xf32> -> vector<16x1xf32>
    %40 = vector.extract_strided_slice %23 {offsets = [0, 64], sizes = [16, 16], strides = [1, 1]} : vector<16x96xf32> to vector<16x16xf32>
    %41 = arith.mulf %35, %39 : vector<16x1xf32>
    %42 = vector.broadcast %41 : vector<16x1xf32> to vector<16x16xf32>
    %43 = arith.mulf %42, %40 : vector<16x16xf32>
    %44 = vector.extract_strided_slice %23 {offsets = [0, 80], sizes = [16, 16], strides = [1, 1]} : vector<16x96xf32> to vector<16x16xf32>
    %45 = arith.mulf %37, %39 : vector<16x1xf32>
    %46 = vector.broadcast %45 : vector<16x1xf32> to vector<16x16xf32>
    %47 = arith.mulf %46, %44 : vector<16x16xf32>
    %48 = arith.addf %43, %47 : vector<16x16xf32>
    %49 = vector.extract_strided_slice %23 {offsets = [0, 16], sizes = [16, 16], strides = [1, 1]} : vector<16x96xf32> to vector<16x16xf32>
    %50 = vector.extract_strided_slice %23 {offsets = [0, 32], sizes = [16, 16], strides = [1, 1]} : vector<16x96xf32> to vector<16x16xf32>
    %51 = arith.mulf %49, %50 : vector<16x16xf32>
    %cst_14 = arith.constant dense<0.000000e+00> : vector<16xf32>
    %52 = vector.multi_reduction <add>, %51, %cst_14 [1] : vector<16x16xf32> to vector<16xf32>
    %53 = vector.shape_cast %52 : vector<16xf32> to vector<16x1xf32>
    %54 = vector.extract_strided_slice %23 {offsets = [0, 48], sizes = [16, 16], strides = [1, 1]} : vector<16x96xf32> to vector<16x16xf32>
    %55 = arith.mulf %49, %54 : vector<16x16xf32>
    %cst_15 = arith.constant dense<0.000000e+00> : vector<16xf32>
    %56 = vector.multi_reduction <add>, %55, %cst_15 [1] : vector<16x16xf32> to vector<16xf32>
    %57 = vector.shape_cast %56 : vector<16xf32> to vector<16x1xf32>
    %58 = arith.maximumf %53, %57 : vector<16x1xf32>
    %59 = arith.subf %53, %58 : vector<16x1xf32>
    %60 = math.exp %59 : vector<16x1xf32>
    %61 = arith.subf %57, %58 : vector<16x1xf32>
    %62 = math.exp %61 : vector<16x1xf32>
    %63 = arith.addf %60, %62 : vector<16x1xf32>
    %64 = tpu.reciprocal %63 {approx = true} : vector<16x1xf32> -> vector<16x1xf32>
    %65 = vector.extract_strided_slice %23 {offsets = [0, 64], sizes = [16, 16], strides = [1, 1]} : vector<16x96xf32> to vector<16x16xf32>
    %66 = arith.mulf %60, %64 : vector<16x1xf32>
    %67 = vector.broadcast %66 : vector<16x1xf32> to vector<16x16xf32>
    %68 = arith.mulf %67, %65 : vector<16x16xf32>
    %69 = vector.extract_strided_slice %23 {offsets = [0, 80], sizes = [16, 16], strides = [1, 1]} : vector<16x96xf32> to vector<16x16xf32>
    %70 = arith.mulf %62, %64 : vector<16x1xf32>
    %71 = vector.broadcast %70 : vector<16x1xf32> to vector<16x16xf32>
    %72 = arith.mulf %71, %69 : vector<16x16xf32>
    %73 = arith.addf %68, %72 : vector<16x16xf32>
    %74 = tpu.concatenate %48, %73 in 1 : vector<16x16xf32>, vector<16x16xf32> -> vector<16x32xf32>
    %cst_16 = arith.constant dense<0.000000e+00> : vector<16x32xf32>
    %75 = tpu.matmul %74, %4, %cst_16 {dimension_numbers = #tpu.dot_dimension_numbers<[1], [0], [0], [1], [0, 0, 1, 1], [], []>} : vector<16x32xf32>, vector<32x32xf32>, vector<16x32xf32> -> vector<16x32xf32>
    %76 = arith.addf %1, %75 : vector<16x32xf32>
    %c0_17 = arith.constant 0 : index
    %c0_18 = arith.constant 0 : index
    %77 = vector.load %arg5[%c0_17, %c0_18] : memref<32x32xf32, #tpu.memory_space<vmem>>, vector<32x32xf32>
    %c0_19 = arith.constant 0 : index
    %c0_20 = arith.constant 0 : index
    %78 = vector.load %arg6[%c0_19, %c0_20] : memref<1x32xf32, #tpu.memory_space<vmem>>, vector<1x32xf32>
    %c0_21 = arith.constant 0 : index
    %c0_22 = arith.constant 0 : index
    %79 = vector.load %arg7[%c0_21, %c0_22] : memref<32x64xf32, #tpu.memory_space<vmem>>, vector<32x64xf32>
    %c0_23 = arith.constant 0 : index
    %c0_24 = arith.constant 0 : index
    %80 = vector.load %arg8[%c0_23, %c0_24] : memref<1x64xf32, #tpu.memory_space<vmem>>, vector<1x64xf32>
    %c0_25 = arith.constant 0 : index
    %c0_26 = arith.constant 0 : index
    %81 = vector.load %arg9[%c0_25, %c0_26] : memref<64x32xf32, #tpu.memory_space<vmem>>, vector<64x32xf32>
    %c0_27 = arith.constant 0 : index
    %c0_28 = arith.constant 0 : index
    %82 = vector.load %arg10[%c0_27, %c0_28] : memref<1x32xf32, #tpu.memory_space<vmem>>, vector<1x32xf32>
    %c0_29 = arith.constant 0 : index
    %c0_30 = arith.constant 0 : index
    %83 = vector.load %arg11[%c0_29, %c0_30] : memref<32x32xf32, #tpu.memory_space<vmem>>, vector<32x32xf32>
    %c0_31 = arith.constant 0 : index
    %c0_32 = arith.constant 0 : index
    %84 = vector.load %arg12[%c0_31, %c0_32] : memref<1x32xf32, #tpu.memory_space<vmem>>, vector<1x32xf32>
    %cst_33 = arith.constant dense<0.000000e+00> : vector<16xf32>
    %85 = vector.multi_reduction <add>, %76, %cst_33 [1] : vector<16x32xf32> to vector<16xf32>
    %86 = vector.shape_cast %85 : vector<16xf32> to vector<16x1xf32>
    %cst_34 = arith.constant 3.200000e+01 : f32
    %87 = vector.broadcast %cst_34 : f32 to vector<16x1xf32>
    %88 = arith.divf %86, %87 : vector<16x1xf32>
    %89 = vector.broadcast %88 : vector<16x1xf32> to vector<16x32xf32>
    %90 = arith.subf %76, %89 : vector<16x32xf32>
    %91 = arith.mulf %90, %90 : vector<16x32xf32>
    %cst_35 = arith.constant dense<0.000000e+00> : vector<16xf32>
    %92 = vector.multi_reduction <add>, %91, %cst_35 [1] : vector<16x32xf32> to vector<16xf32>
    %93 = vector.shape_cast %92 : vector<16xf32> to vector<16x1xf32>
    %cst_36 = arith.constant 3.200000e+01 : f32
    %94 = vector.broadcast %cst_36 : f32 to vector<16x1xf32>
    %95 = arith.divf %93, %94 : vector<16x1xf32>
    %cst_37 = arith.constant 9.99999974E-6 : f32
    %96 = vector.broadcast %cst_37 : f32 to vector<16x1xf32>
    %97 = arith.addf %95, %96 : vector<16x1xf32>
    %98 = math.rsqrt %97 : vector<16x1xf32>
    %99 = vector.broadcast %98 : vector<16x1xf32> to vector<16x32xf32>
    %100 = arith.mulf %90, %99 : vector<16x32xf32>
    %cst_38 = arith.constant dense<0.000000e+00> : vector<16x32xf32>
    %101 = tpu.matmul %100, %77, %cst_38 {dimension_numbers = #tpu.dot_dimension_numbers<[1], [0], [0], [1], [0, 0, 1, 1], [], []>} : vector<16x32xf32>, vector<32x32xf32>, vector<16x32xf32> -> vector<16x32xf32>
    %102 = vector.broadcast %78 : vector<1x32xf32> to vector<16x32xf32>
    %103 = arith.addf %101, %102 : vector<16x32xf32>
    %cst_39 = arith.constant dense<0.000000e+00> : vector<16x64xf32>
    %104 = tpu.matmul %103, %79, %cst_39 {dimension_numbers = #tpu.dot_dimension_numbers<[1], [0], [0], [1], [0, 0, 1, 1], [], []>} : vector<16x32xf32>, vector<32x64xf32>, vector<16x64xf32> -> vector<16x64xf32>
    %105 = vector.broadcast %80 : vector<1x64xf32> to vector<16x64xf32>
    %106 = arith.addf %104, %105 : vector<16x64xf32>
    %cst_40 = arith.constant 5.000000e-01 : f32
    %107 = vector.broadcast %cst_40 : f32 to vector<16x64xf32>
    %108 = arith.mulf %107, %106 : vector<16x64xf32>
    %cst_41 = arith.constant 4.471500e-02 : f32
    %109 = vector.broadcast %cst_41 : f32 to vector<16x64xf32>
    %110 = arith.mulf %109, %106 : vector<16x64xf32>
    %111 = arith.mulf %110, %106 : vector<16x64xf32>
    %112 = arith.mulf %111, %106 : vector<16x64xf32>
    %113 = arith.addf %106, %112 : vector<16x64xf32>
    %cst_42 = arith.constant 0.797884583 : f32
    %114 = vector.broadcast %cst_42 : f32 to vector<16x64xf32>
    %115 = arith.mulf %114, %113 : vector<16x64xf32>
    %116 = math.tanh %115 : vector<16x64xf32>
    %cst_43 = arith.constant 1.000000e+00 : f32
    %117 = vector.broadcast %cst_43 : f32 to vector<16x64xf32>
    %118 = arith.addf %117, %116 : vector<16x64xf32>
    %119 = arith.mulf %108, %118 : vector<16x64xf32>
    %cst_44 = arith.constant dense<0.000000e+00> : vector<16x32xf32>
    %120 = tpu.matmul %119, %81, %cst_44 {dimension_numbers = #tpu.dot_dimension_numbers<[1], [0], [0], [1], [0, 0, 1, 1], [], []>} : vector<16x64xf32>, vector<64x32xf32>, vector<16x32xf32> -> vector<16x32xf32>
    %121 = arith.addf %103, %120 : vector<16x32xf32>
    %122 = vector.broadcast %82 : vector<1x32xf32> to vector<16x32xf32>
    %123 = arith.addf %121, %122 : vector<16x32xf32>
    %cst_45 = arith.constant dense<0.000000e+00> : vector<16x32xf32>
    %124 = tpu.matmul %123, %83, %cst_45 {dimension_numbers = #tpu.dot_dimension_numbers<[1], [0], [0], [1], [0, 0, 1, 1], [], []>} : vector<16x32xf32>, vector<32x32xf32>, vector<16x32xf32> -> vector<16x32xf32>
    %125 = arith.addf %76, %124 : vector<16x32xf32>
    %126 = vector.broadcast %84 : vector<1x32xf32> to vector<16x32xf32>
    %127 = arith.addf %125, %126 : vector<16x32xf32>
    %c0_46 = arith.constant 0 : index
    %c0_47 = arith.constant 0 : index
    %128 = vector.load %arg13[%c0_46, %c0_47] : memref<32x96xf32, #tpu.memory_space<vmem>>, vector<32x96xf32>
    %c0_48 = arith.constant 0 : index
    %c0_49 = arith.constant 0 : index
    %129 = vector.load %arg14[%c0_48, %c0_49] : memref<1x96xf32, #tpu.memory_space<vmem>>, vector<1x96xf32>
    %c0_50 = arith.constant 0 : index
    %c0_51 = arith.constant 0 : index
    %130 = vector.load %arg15[%c0_50, %c0_51] : memref<32x32xf32, #tpu.memory_space<vmem>>, vector<32x32xf32>
    %cst_52 = arith.constant dense<0.000000e+00> : vector<16xf32>
    %131 = vector.multi_reduction <add>, %127, %cst_52 [1] : vector<16x32xf32> to vector<16xf32>
    %132 = vector.shape_cast %131 : vector<16xf32> to vector<16x1xf32>
    %cst_53 = arith.constant 3.200000e+01 : f32
    %133 = vector.broadcast %cst_53 : f32 to vector<16x1xf32>
    %134 = arith.divf %132, %133 : vector<16x1xf32>
    %135 = vector.broadcast %134 : vector<16x1xf32> to vector<16x32xf32>
    %136 = arith.subf %127, %135 : vector<16x32xf32>
    %137 = arith.mulf %136, %136 : vector<16x32xf32>
    %cst_54 = arith.constant dense<0.000000e+00> : vector<16xf32>
    %138 = vector.multi_reduction <add>, %137, %cst_54 [1] : vector<16x32xf32> to vector<16xf32>
    %139 = vector.shape_cast %138 : vector<16xf32> to vector<16x1xf32>
    %cst_55 = arith.constant 3.200000e+01 : f32
    %140 = vector.broadcast %cst_55 : f32 to vector<16x1xf32>
    %141 = arith.divf %139, %140 : vector<16x1xf32>
    %cst_56 = arith.constant 9.99999974E-6 : f32
    %142 = vector.broadcast %cst_56 : f32 to vector<16x1xf32>
    %143 = arith.addf %141, %142 : vector<16x1xf32>
    %144 = math.rsqrt %143 : vector<16x1xf32>
    %145 = vector.broadcast %144 : vector<16x1xf32> to vector<16x32xf32>
    %146 = arith.mulf %136, %145 : vector<16x32xf32>
    %cst_57 = arith.constant dense<0.000000e+00> : vector<16x96xf32>
    %147 = tpu.matmul %146, %128, %cst_57 {dimension_numbers = #tpu.dot_dimension_numbers<[1], [0], [0], [1], [0, 0, 1, 1], [], []>} : vector<16x32xf32>, vector<32x96xf32>, vector<16x96xf32> -> vector<16x96xf32>
    %148 = vector.broadcast %129 : vector<1x96xf32> to vector<16x96xf32>
    %149 = arith.addf %147, %148 : vector<16x96xf32>
    %150 = vector.extract_strided_slice %149 {offsets = [0, 0], sizes = [16, 16], strides = [1, 1]} : vector<16x96xf32> to vector<16x16xf32>
    %151 = vector.extract_strided_slice %149 {offsets = [0, 32], sizes = [16, 16], strides = [1, 1]} : vector<16x96xf32> to vector<16x16xf32>
    %152 = arith.mulf %150, %151 : vector<16x16xf32>
    %cst_58 = arith.constant dense<0.000000e+00> : vector<16xf32>
    %153 = vector.multi_reduction <add>, %152, %cst_58 [1] : vector<16x16xf32> to vector<16xf32>
    %154 = vector.shape_cast %153 : vector<16xf32> to vector<16x1xf32>
    %155 = vector.extract_strided_slice %149 {offsets = [0, 48], sizes = [16, 16], strides = [1, 1]} : vector<16x96xf32> to vector<16x16xf32>
    %156 = arith.mulf %150, %155 : vector<16x16xf32>
    %cst_59 = arith.constant dense<0.000000e+00> : vector<16xf32>
    %157 = vector.multi_reduction <add>, %156, %cst_59 [1] : vector<16x16xf32> to vector<16xf32>
    %158 = vector.shape_cast %157 : vector<16xf32> to vector<16x1xf32>
    %159 = arith.maximumf %154, %158 : vector<16x1xf32>
    %160 = arith.subf %154, %159 : vector<16x1xf32>
    %161 = math.exp %160 : vector<16x1xf32>
    %162 = arith.subf %158, %159 : vector<16x1xf32>
    %163 = math.exp %162 : vector<16x1xf32>
    %164 = arith.addf %161, %163 : vector<16x1xf32>
    %165 = tpu.reciprocal %164 {approx = true} : vector<16x1xf32> -> vector<16x1xf32>
    %166 = vector.extract_strided_slice %149 {offsets = [0, 64], sizes = [16, 16], strides = [1, 1]} : vector<16x96xf32> to vector<16x16xf32>
    %167 = arith.mulf %161, %165 : vector<16x1xf32>
    %168 = vector.broadcast %167 : vector<16x1xf32> to vector<16x16xf32>
    %169 = arith.mulf %168, %166 : vector<16x16xf32>
    %170 = vector.extract_strided_slice %149 {offsets = [0, 80], sizes = [16, 16], strides = [1, 1]} : vector<16x96xf32> to vector<16x16xf32>
    %171 = arith.mulf %163, %165 : vector<16x1xf32>
    %172 = vector.broadcast %171 : vector<16x1xf32> to vector<16x16xf32>
    %173 = arith.mulf %172, %170 : vector<16x16xf32>
    %174 = arith.addf %169, %173 : vector<16x16xf32>
    %175 = vector.extract_strided_slice %149 {offsets = [0, 16], sizes = [16, 16], strides = [1, 1]} : vector<16x96xf32> to vector<16x16xf32>
    %176 = vector.extract_strided_slice %149 {offsets = [0, 32], sizes = [16, 16], strides = [1, 1]} : vector<16x96xf32> to vector<16x16xf32>
    %177 = arith.mulf %175, %176 : vector<16x16xf32>
    %cst_60 = arith.constant dense<0.000000e+00> : vector<16xf32>
    %178 = vector.multi_reduction <add>, %177, %cst_60 [1] : vector<16x16xf32> to vector<16xf32>
    %179 = vector.shape_cast %178 : vector<16xf32> to vector<16x1xf32>
    %180 = vector.extract_strided_slice %149 {offsets = [0, 48], sizes = [16, 16], strides = [1, 1]} : vector<16x96xf32> to vector<16x16xf32>
    %181 = arith.mulf %175, %180 : vector<16x16xf32>
    %cst_61 = arith.constant dense<0.000000e+00> : vector<16xf32>
    %182 = vector.multi_reduction <add>, %181, %cst_61 [1] : vector<16x16xf32> to vector<16xf32>
    %183 = vector.shape_cast %182 : vector<16xf32> to vector<16x1xf32>
    %184 = arith.maximumf %179, %183 : vector<16x1xf32>
    %185 = arith.subf %179, %184 : vector<16x1xf32>
    %186 = math.exp %185 : vector<16x1xf32>
    %187 = arith.subf %183, %184 : vector<16x1xf32>
    %188 = math.exp %187 : vector<16x1xf32>
    %189 = arith.addf %186, %188 : vector<16x1xf32>
    %190 = tpu.reciprocal %189 {approx = true} : vector<16x1xf32> -> vector<16x1xf32>
    %191 = vector.extract_strided_slice %149 {offsets = [0, 64], sizes = [16, 16], strides = [1, 1]} : vector<16x96xf32> to vector<16x16xf32>
    %192 = arith.mulf %186, %190 : vector<16x1xf32>
    %193 = vector.broadcast %192 : vector<16x1xf32> to vector<16x16xf32>
    %194 = arith.mulf %193, %191 : vector<16x16xf32>
    %195 = vector.extract_strided_slice %149 {offsets = [0, 80], sizes = [16, 16], strides = [1, 1]} : vector<16x96xf32> to vector<16x16xf32>
    %196 = arith.mulf %188, %190 : vector<16x1xf32>
    %197 = vector.broadcast %196 : vector<16x1xf32> to vector<16x16xf32>
    %198 = arith.mulf %197, %195 : vector<16x16xf32>
    %199 = arith.addf %194, %198 : vector<16x16xf32>
    %200 = tpu.concatenate %174, %199 in 1 : vector<16x16xf32>, vector<16x16xf32> -> vector<16x32xf32>
    %cst_62 = arith.constant dense<0.000000e+00> : vector<16x32xf32>
    %201 = tpu.matmul %200, %130, %cst_62 {dimension_numbers = #tpu.dot_dimension_numbers<[1], [0], [0], [1], [0, 0, 1, 1], [], []>} : vector<16x32xf32>, vector<32x32xf32>, vector<16x32xf32> -> vector<16x32xf32>
    %202 = arith.addf %127, %201 : vector<16x32xf32>
    %c0_63 = arith.constant 0 : index
    %c0_64 = arith.constant 0 : index
    %203 = vector.load %arg16[%c0_63, %c0_64] : memref<32x32xf32, #tpu.memory_space<vmem>>, vector<32x32xf32>
    %c0_65 = arith.constant 0 : index
    %c0_66 = arith.constant 0 : index
    %204 = vector.load %arg17[%c0_65, %c0_66] : memref<1x32xf32, #tpu.memory_space<vmem>>, vector<1x32xf32>
    %c0_67 = arith.constant 0 : index
    %c0_68 = arith.constant 0 : index
    %205 = vector.load %arg18[%c0_67, %c0_68] : memref<32x64xf32, #tpu.memory_space<vmem>>, vector<32x64xf32>
    %c0_69 = arith.constant 0 : index
    %c0_70 = arith.constant 0 : index
    %206 = vector.load %arg19[%c0_69, %c0_70] : memref<1x64xf32, #tpu.memory_space<vmem>>, vector<1x64xf32>
    %c0_71 = arith.constant 0 : index
    %c0_72 = arith.constant 0 : index
    %207 = vector.load %arg20[%c0_71, %c0_72] : memref<64x32xf32, #tpu.memory_space<vmem>>, vector<64x32xf32>
    %c0_73 = arith.constant 0 : index
    %c0_74 = arith.constant 0 : index
    %208 = vector.load %arg21[%c0_73, %c0_74] : memref<1x32xf32, #tpu.memory_space<vmem>>, vector<1x32xf32>
    %c0_75 = arith.constant 0 : index
    %c0_76 = arith.constant 0 : index
    %209 = vector.load %arg22[%c0_75, %c0_76] : memref<32x32xf32, #tpu.memory_space<vmem>>, vector<32x32xf32>
    %c0_77 = arith.constant 0 : index
    %c0_78 = arith.constant 0 : index
    %210 = vector.load %arg23[%c0_77, %c0_78] : memref<1x32xf32, #tpu.memory_space<vmem>>, vector<1x32xf32>
    %cst_79 = arith.constant dense<0.000000e+00> : vector<16xf32>
    %211 = vector.multi_reduction <add>, %202, %cst_79 [1] : vector<16x32xf32> to vector<16xf32>
    %212 = vector.shape_cast %211 : vector<16xf32> to vector<16x1xf32>
    %cst_80 = arith.constant 3.200000e+01 : f32
    %213 = vector.broadcast %cst_80 : f32 to vector<16x1xf32>
    %214 = arith.divf %212, %213 : vector<16x1xf32>
    %215 = vector.broadcast %214 : vector<16x1xf32> to vector<16x32xf32>
    %216 = arith.subf %202, %215 : vector<16x32xf32>
    %217 = arith.mulf %216, %216 : vector<16x32xf32>
    %cst_81 = arith.constant dense<0.000000e+00> : vector<16xf32>
    %218 = vector.multi_reduction <add>, %217, %cst_81 [1] : vector<16x32xf32> to vector<16xf32>
    %219 = vector.shape_cast %218 : vector<16xf32> to vector<16x1xf32>
    %cst_82 = arith.constant 3.200000e+01 : f32
    %220 = vector.broadcast %cst_82 : f32 to vector<16x1xf32>
    %221 = arith.divf %219, %220 : vector<16x1xf32>
    %cst_83 = arith.constant 9.99999974E-6 : f32
    %222 = vector.broadcast %cst_83 : f32 to vector<16x1xf32>
    %223 = arith.addf %221, %222 : vector<16x1xf32>
    %224 = math.rsqrt %223 : vector<16x1xf32>
    %225 = vector.broadcast %224 : vector<16x1xf32> to vector<16x32xf32>
    %226 = arith.mulf %216, %225 : vector<16x32xf32>
    %cst_84 = arith.constant dense<0.000000e+00> : vector<16x32xf32>
    %227 = tpu.matmul %226, %203, %cst_84 {dimension_numbers = #tpu.dot_dimension_numbers<[1], [0], [0], [1], [0, 0, 1, 1], [], []>} : vector<16x32xf32>, vector<32x32xf32>, vector<16x32xf32> -> vector<16x32xf32>
    %228 = vector.broadcast %204 : vector<1x32xf32> to vector<16x32xf32>
    %229 = arith.addf %227, %228 : vector<16x32xf32>
    %cst_85 = arith.constant dense<0.000000e+00> : vector<16x64xf32>
    %230 = tpu.matmul %229, %205, %cst_85 {dimension_numbers = #tpu.dot_dimension_numbers<[1], [0], [0], [1], [0, 0, 1, 1], [], []>} : vector<16x32xf32>, vector<32x64xf32>, vector<16x64xf32> -> vector<16x64xf32>
    %231 = vector.broadcast %206 : vector<1x64xf32> to vector<16x64xf32>
    %232 = arith.addf %230, %231 : vector<16x64xf32>
    %cst_86 = arith.constant 5.000000e-01 : f32
    %233 = vector.broadcast %cst_86 : f32 to vector<16x64xf32>
    %234 = arith.mulf %233, %232 : vector<16x64xf32>
    %cst_87 = arith.constant 4.471500e-02 : f32
    %235 = vector.broadcast %cst_87 : f32 to vector<16x64xf32>
    %236 = arith.mulf %235, %232 : vector<16x64xf32>
    %237 = arith.mulf %236, %232 : vector<16x64xf32>
    %238 = arith.mulf %237, %232 : vector<16x64xf32>
    %239 = arith.addf %232, %238 : vector<16x64xf32>
    %cst_88 = arith.constant 0.797884583 : f32
    %240 = vector.broadcast %cst_88 : f32 to vector<16x64xf32>
    %241 = arith.mulf %240, %239 : vector<16x64xf32>
    %242 = math.tanh %241 : vector<16x64xf32>
    %cst_89 = arith.constant 1.000000e+00 : f32
    %243 = vector.broadcast %cst_89 : f32 to vector<16x64xf32>
    %244 = arith.addf %243, %242 : vector<16x64xf32>
    %245 = arith.mulf %234, %244 : vector<16x64xf32>
    %cst_90 = arith.constant dense<0.000000e+00> : vector<16x32xf32>
    %246 = tpu.matmul %245, %207, %cst_90 {dimension_numbers = #tpu.dot_dimension_numbers<[1], [0], [0], [1], [0, 0, 1, 1], [], []>} : vector<16x64xf32>, vector<64x32xf32>, vector<16x32xf32> -> vector<16x32xf32>
    %247 = arith.addf %229, %246 : vector<16x32xf32>
    %248 = vector.broadcast %208 : vector<1x32xf32> to vector<16x32xf32>
    %249 = arith.addf %247, %248 : vector<16x32xf32>
    %cst_91 = arith.constant dense<0.000000e+00> : vector<16x32xf32>
    %250 = tpu.matmul %249, %209, %cst_91 {dimension_numbers = #tpu.dot_dimension_numbers<[1], [0], [0], [1], [0, 0, 1, 1], [], []>} : vector<16x32xf32>, vector<32x32xf32>, vector<16x32xf32> -> vector<16x32xf32>
    %251 = arith.addf %202, %250 : vector<16x32xf32>
    %252 = vector.broadcast %210 : vector<1x32xf32> to vector<16x32xf32>
    %253 = arith.addf %251, %252 : vector<16x32xf32>
    %254 = arith.truncf %253 : vector<16x32xf32> to vector<16x32xbf16>
    %c0_92 = arith.constant 0 : index
    %c0_93 = arith.constant 0 : index
    %255 = vector.load %arg24[%c0_92, %c0_93] : memref<16x32xbf16, #tpu.memory_space<vmem>>, vector<16x32xbf16>
    tpu.vector_store %arg24[%c0_92, %c0_93], %254 {strides = array<i32>} : memref<16x32xbf16, #tpu.memory_space<vmem>>, vector<16x32xbf16>,
    return
  }
  func.func @transform_0(%arg0: i32) -> (i32, i32) {
    %c0_i32 = arith.constant 0 : i32
    %c0_i32_0 = arith.constant 0 : i32
    return %arg0, %c0_i32 : i32, i32
  }
  func.func @transform_1(%arg0: i32) -> (i32, i32) {
    %c0_i32 = arith.constant 0 : i32
    %c0_i32_0 = arith.constant 0 : i32
    %c0_i32_1 = arith.constant 0 : i32
    return %c0_i32, %c0_i32_0 : i32, i32
  }
  func.func @transform_2(%arg0: i32) -> (i32, i32) {
    %c0_i32 = arith.constant 0 : i32
    %c0_i32_0 = arith.constant 0 : i32
    %c0_i32_1 = arith.constant 0 : i32
    return %c0_i32, %c0_i32_0 : i32, i32
  }
  func.func @transform_3(%arg0: i32) -> (i32, i32) {
    %c0_i32 = arith.constant 0 : i32
    %c0_i32_0 = arith.constant 0 : i32
    %c0_i32_1 = arith.constant 0 : i32
    return %c0_i32, %c0_i32_0 : i32, i32
  }
  func.func @transform_4(%arg0: i32) -> (i32, i32) {
    %c0_i32 = arith.constant 0 : i32
    %c0_i32_0 = arith.constant 0 : i32
    %c0_i32_1 = arith.constant 0 : i32
    return %c0_i32, %c0_i32_0 : i32, i32
  }
  func.func @transform_5(%arg0: i32) -> (i32, i32) {
    %c0_i32 = arith.constant 0 : i32
    %c0_i32_0 = arith.constant 0 : i32
    %c0_i32_1 = arith.constant 0 : i32
    return %c0_i32, %c0_i32_0 : i32, i32
  }
  func.func @transform_6(%arg0: i32) -> (i32, i32) {
    %c0_i32 = arith.constant 0 : i32
    %c0_i32_0 = arith.constant 0 : i32
    %c0_i32_1 = arith.constant 0 : i32
    return %c0_i32, %c0_i32_0 : i32, i32
  }
  func.func @transform_7(%arg0: i32) -> (i32, i32) {
    %c0_i32 = arith.constant 0 : i32
    %c0_i32_0 = arith.constant 0 : i32
    %c0_i32_1 = arith.constant 0 : i32
    return %c0_i32, %c0_i32_0 : i32, i32
  }
  func.func @transform_8(%arg0: i32) -> (i32, i32) {
    %c0_i32 = arith.constant 0 : i32
    %c0_i32_0 = arith.constant 0 : i32
    %c0_i32_1 = arith.constant 0 : i32
    return %c0_i32, %c0_i32_0 : i32, i32
  }
  func.func @transform_9(%arg0: i32) -> (i32, i32) {
    %c0_i32 = arith.constant 0 : i32
    %c0_i32_0 = arith.constant 0 : i32
    %c0_i32_1 = arith.constant 0 : i32
    return %c0_i32, %c0_i32_0 : i32, i32
  }
  func.func @transform_10(%arg0: i32) -> (i32, i32) {
    %c0_i32 = arith.constant 0 : i32
    %c0_i32_0 = arith.constant 0 : i32
    %c0_i32_1 = arith.constant 0 : i32
    return %c0_i32, %c0_i32_0 : i32, i32
  }
  func.func @transform_11(%arg0: i32) -> (i32, i32) {
    %c0_i32 = arith.constant 0 : i32
    %c0_i32_0 = arith.constant 0 : i32
    %c0_i32_1 = arith.constant 0 : i32
    return %c0_i32, %c0_i32_0 : i32, i32
  }
  func.func @transform_12(%arg0: i32) -> (i32, i32) {
    %c0_i32 = arith.constant 0 : i32
    %c0_i32_0 = arith.constant 0 : i32
    %c0_i32_1 = arith.constant 0 : i32
    return %c0_i32, %c0_i32_0 : i32, i32
  }
  func.func @transform_13(%arg0: i32) -> (i32, i32) {
    %c0_i32 = arith.constant 0 : i32
    %c0_i32_0 = arith.constant 0 : i32
    %c0_i32_1 = arith.constant 0 : i32
    return %c0_i32, %c0_i32_0 : i32, i32
  }
  func.func @transform_14(%arg0: i32) -> (i32, i32) {
    %c0_i32 = arith.constant 0 : i32
    %c0_i32_0 = arith.constant 0 : i32
    %c0_i32_1 = arith.constant 0 : i32
    return %c0_i32, %c0_i32_0 : i32, i32
  }
  func.func @transform_15(%arg0: i32) -> (i32, i32) {
    %c0_i32 = arith.constant 0 : i32
    %c0_i32_0 = arith.constant 0 : i32
    %c0_i32_1 = arith.constant 0 : i32
    return %c0_i32, %c0_i32_0 : i32, i32
  }
  func.func @transform_16(%arg0: i32) -> (i32, i32) {
    %c0_i32 = arith.constant 0 : i32
    %c0_i32_0 = arith.constant 0 : i32
    %c0_i32_1 = arith.constant 0 : i32
    return %c0_i32, %c0_i32_0 : i32, i32
  }
  func.func @transform_17(%arg0: i32) -> (i32, i32) {
    %c0_i32 = arith.constant 0 : i32
    %c0_i32_0 = arith.constant 0 : i32
    %c0_i32_1 = arith.constant 0 : i32
    return %c0_i32, %c0_i32_0 : i32, i32
  }
  func.func @transform_18(%arg0: i32) -> (i32, i32) {
    %c0_i32 = arith.constant 0 : i32
    %c0_i32_0 = arith.constant 0 : i32
    %c0_i32_1 = arith.constant 0 : i32
    return %c0_i32, %c0_i32_0 : i32, i32
  }
  func.func @transform_19(%arg0: i32) -> (i32, i32) {
    %c0_i32 = arith.constant 0 : i32
    %c0_i32_0 = arith.constant 0 : i32
    %c0_i32_1 = arith.constant 0 : i32
    return %c0_i32, %c0_i32_0 : i32, i32
  }
  func.func @transform_20(%arg0: i32) -> (i32, i32) {
    %c0_i32 = arith.constant 0 : i32
    %c0_i32_0 = arith.constant 0 : i32
    %c0_i32_1 = arith.constant 0 : i32
    return %c0_i32, %c0_i32_0 : i32, i32
  }
  func.func @transform_21(%arg0: i32) -> (i32, i32) {
    %c0_i32 = arith.constant 0 : i32
    %c0_i32_0 = arith.constant 0 : i32
    %c0_i32_1 = arith.constant 0 : i32
    return %c0_i32, %c0_i32_0 : i32, i32
  }
  func.func @transform_22(%arg0: i32) -> (i32, i32) {
    %c0_i32 = arith.constant 0 : i32
    %c0_i32_0 = arith.constant 0 : i32
    %c0_i32_1 = arith.constant 0 : i32
    return %c0_i32, %c0_i32_0 : i32, i32
  }
  func.func @transform_23(%arg0: i32) -> (i32, i32) {
    %c0_i32 = arith.constant 0 : i32
    %c0_i32_0 = arith.constant 0 : i32
    return %arg0, %c0_i32 : i32, i32
  }
}

module attributes {stable_mosaic.version = 11 : i64} {
  func.func @_stage_kernel(%arg0: i32, %arg1: memref<16x32xbf16, #tpu.memory_space<vmem>>, %arg2: memref<32x96xf32, #tpu.memory_space<vmem>>, %arg3: memref<1x96xf32, #tpu.memory_space<vmem>>, %arg4: memref<32x32xf32, #tpu.memory_space<vmem>>, %arg5: memref<32x32xf32, #tpu.memory_space<vmem>>, %arg6: memref<1x32xf32, #tpu.memory_space<vmem>>, %arg7: memref<32x64xf32, #tpu.memory_space<vmem>>, %arg8: memref<1x64xf32, #tpu.memory_space<vmem>>, %arg9: memref<64x32xf32, #tpu.memory_space<vmem>>, %arg10: memref<1x32xf32, #tpu.memory_space<vmem>>, %arg11: memref<32x32xf32, #tpu.memory_space<vmem>>, %arg12: memref<1x32xf32, #tpu.memory_space<vmem>>, %arg13: memref<32x96xf32, #tpu.memory_space<vmem>>, %arg14: memref<1x96xf32, #tpu.memory_space<vmem>>, %arg15: memref<32x32xf32, #tpu.memory_space<vmem>>, %arg16: memref<32x32xf32, #tpu.memory_space<vmem>>, %arg17: memref<1x32xf32, #tpu.memory_space<vmem>>, %arg18: memref<32x64xf32, #tpu.memory_space<vmem>>, %arg19: memref<1x64xf32, #tpu.memory_space<vmem>>, %arg20: memref<64x32xf32, #tpu.memory_space<vmem>>, %arg21: memref<1x32xf32, #tpu.memory_space<vmem>>, %arg22: memref<32x32xf32, #tpu.memory_space<vmem>>, %arg23: memref<1x32xf32, #tpu.memory_space<vmem>>, %arg24: memref<16x32xbf16, #tpu.memory_space<vmem>>) attributes {dimension_semantics = [#tpu.dimension_semantics<parallel>], iteration_bounds = array<i64: 1>, scalar_prefetch = 0 : i64, scratch_operands = 0 : i64, tpu.core_type = #tpu.core_type<tc>, window_params = [{transform_indices = @transform_0, window_bounds = array<i64: 16, 32>}, {pipeline_mode = #tpu.pipeline_mode<synchronous>, transform_indices = @transform_1, window_bounds = array<i64: 32, 96>}, {pipeline_mode = #tpu.pipeline_mode<synchronous>, transform_indices = @transform_2, window_bounds = array<i64: 1, 96>}, {pipeline_mode = #tpu.pipeline_mode<synchronous>, transform_indices = @transform_3, window_bounds = array<i64: 32, 32>}, {pipeline_mode = #tpu.pipeline_mode<synchronous>, transform_indices = @transform_4, window_bounds = array<i64: 32, 32>}, {pipeline_mode = #tpu.pipeline_mode<synchronous>, transform_indices = @transform_5, window_bounds = array<i64: 1, 32>}, {pipeline_mode = #tpu.pipeline_mode<synchronous>, transform_indices = @transform_6, window_bounds = array<i64: 32, 64>}, {pipeline_mode = #tpu.pipeline_mode<synchronous>, transform_indices = @transform_7, window_bounds = array<i64: 1, 64>}, {pipeline_mode = #tpu.pipeline_mode<synchronous>, transform_indices = @transform_8, window_bounds = array<i64: 64, 32>}, {pipeline_mode = #tpu.pipeline_mode<synchronous>, transform_indices = @transform_9, window_bounds = array<i64: 1, 32>}, {pipeline_mode = #tpu.pipeline_mode<synchronous>, transform_indices = @transform_10, window_bounds = array<i64: 32, 32>}, {pipeline_mode = #tpu.pipeline_mode<synchronous>, transform_indices = @transform_11, window_bounds = array<i64: 1, 32>}, {pipeline_mode = #tpu.pipeline_mode<synchronous>, transform_indices = @transform_12, window_bounds = array<i64: 32, 96>}, {pipeline_mode = #tpu.pipeline_mode<synchronous>, transform_indices = @transform_13, window_bounds = array<i64: 1, 96>}, {pipeline_mode = #tpu.pipeline_mode<synchronous>, transform_indices = @transform_14, window_bounds = array<i64: 32, 32>}, {pipeline_mode = #tpu.pipeline_mode<synchronous>, transform_indices = @transform_15, window_bounds = array<i64: 32, 32>}, {pipeline_mode = #tpu.pipeline_mode<synchronous>, transform_indices = @transform_16, window_bounds = array<i64: 1, 32>}, {pipeline_mode = #tpu.pipeline_mode<synchronous>, transform_indices = @transform_17, window_bounds = array<i64: 32, 64>}, {pipeline_mode = #tpu.pipeline_mode<synchronous>, transform_indices = @transform_18, window_bounds = array<i64: 1, 64>}, {pipeline_mode = #tpu.pipeline_mode<synchronous>, transform_indices = @transform_19, window_bounds = array<i64: 64, 32>}, {pipeline_mode = #tpu.pipeline_mode<synchronous>, transform_indices = @transform_20, window_bounds = array<i64: 1, 32>}, {pipeline_mode = #tpu.pipeline_mode<synchronous>, transform_indices = @transform_21, window_bounds = array<i64: 32, 32>}, {pipeline_mode = #tpu.pipeline_mode<synchronous>, transform_indices = @transform_22, window_bounds = array<i64: 1, 32>}, {transform_indices = @transform_23, window_bounds = array<i64: 16, 32>}]} {
    %c0 = arith.constant 0 : index
    %c0_0 = arith.constant 0 : index
    %0 = vector.load %arg1[%c0, %c0_0] : memref<16x32xbf16, #tpu.memory_space<vmem>>, vector<16x32xbf16>
    %1 = arith.extf %0 : vector<16x32xbf16> to vector<16x32xf32>
    %c0_1 = arith.constant 0 : index
    %c0_2 = arith.constant 0 : index
    %2 = vector.load %arg2[%c0_1, %c0_2] : memref<32x96xf32, #tpu.memory_space<vmem>>, vector<32x96xf32>
    %c0_3 = arith.constant 0 : index
    %c0_4 = arith.constant 0 : index
    %3 = vector.load %arg3[%c0_3, %c0_4] : memref<1x96xf32, #tpu.memory_space<vmem>>, vector<1x96xf32>
    %c0_5 = arith.constant 0 : index
    %c0_6 = arith.constant 0 : index
    %4 = vector.load %arg4[%c0_5, %c0_6] : memref<32x32xf32, #tpu.memory_space<vmem>>, vector<32x32xf32>
    %cst = arith.constant dense<0.000000e+00> : vector<16xf32>
    %5 = vector.multi_reduction <add>, %1, %cst [1] : vector<16x32xf32> to vector<16xf32>
    %6 = vector.shape_cast %5 : vector<16xf32> to vector<16x1xf32>
    %cst_7 = arith.constant 3.200000e+01 : f32
    %7 = vector.broadcast %cst_7 : f32 to vector<16x1xf32>
    %8 = arith.divf %6, %7 : vector<16x1xf32>
    %9 = vector.broadcast %8 : vector<16x1xf32> to vector<16x32xf32>
    %10 = arith.subf %1, %9 : vector<16x32xf32>
    %11 = arith.mulf %10, %10 : vector<16x32xf32>
    %cst_8 = arith.constant dense<0.000000e+00> : vector<16xf32>
    %12 = vector.multi_reduction <add>, %11, %cst_8 [1] : vector<16x32xf32> to vector<16xf32>
    %13 = vector.shape_cast %12 : vector<16xf32> to vector<16x1xf32>
    %cst_9 = arith.constant 3.200000e+01 : f32
    %14 = vector.broadcast %cst_9 : f32 to vector<16x1xf32>
    %15 = arith.divf %13, %14 : vector<16x1xf32>
    %cst_10 = arith.constant 9.99999974E-6 : f32
    %16 = vector.broadcast %cst_10 : f32 to vector<16x1xf32>
    %17 = arith.addf %15, %16 : vector<16x1xf32>
    %18 = math.rsqrt %17 : vector<16x1xf32>
    %19 = vector.broadcast %18 : vector<16x1xf32> to vector<16x32xf32>
    %20 = arith.mulf %10, %19 : vector<16x32xf32>
    %cst_11 = arith.constant dense<0.000000e+00> : vector<16x96xf32>
    %21 = tpu.matmul %20, %2, %cst_11 {dimension_numbers = #tpu.dot_dimension_numbers<[1], [0], [0], [1], [0, 0, 1, 1], [], []>} : vector<16x32xf32>, vector<32x96xf32>, vector<16x96xf32> -> vector<16x96xf32>
    %22 = vector.broadcast %3 : vector<1x96xf32> to vector<16x96xf32>
    %23 = arith.addf %21, %22 : vector<16x96xf32>
    %24 = vector.extract_strided_slice %23 {offsets = [0, 0], sizes = [16, 8], strides = [1, 1]} : vector<16x96xf32> to vector<16x8xf32>
    %25 = vector.extract_strided_slice %23 {offsets = [0, 32], sizes = [16, 8], strides = [1, 1]} : vector<16x96xf32> to vector<16x8xf32>
    %26 = arith.mulf %24, %25 : vector<16x8xf32>
    %cst_12 = arith.constant dense<0.000000e+00> : vector<16xf32>
    %27 = vector.multi_reduction <add>, %26, %cst_12 [1] : vector<16x8xf32> to vector<16xf32>
    %28 = vector.shape_cast %27 : vector<16xf32> to vector<16x1xf32>
    %29 = vector.extract_strided_slice %23 {offsets = [0, 40], sizes = [16, 8], strides = [1, 1]} : vector<16x96xf32> to vector<16x8xf32>
    %30 = arith.mulf %24, %29 : vector<16x8xf32>
    %cst_13 = arith.constant dense<0.000000e+00> : vector<16xf32>
    %31 = vector.multi_reduction <add>, %30, %cst_13 [1] : vector<16x8xf32> to vector<16xf32>
    %32 = vector.shape_cast %31 : vector<16xf32> to vector<16x1xf32>
    %33 = vector.extract_strided_slice %23 {offsets = [0, 48], sizes = [16, 8], strides = [1, 1]} : vector<16x96xf32> to vector<16x8xf32>
    %34 = arith.mulf %24, %33 : vector<16x8xf32>
    %cst_14 = arith.constant dense<0.000000e+00> : vector<16xf32>
    %35 = vector.multi_reduction <add>, %34, %cst_14 [1] : vector<16x8xf32> to vector<16xf32>
    %36 = vector.shape_cast %35 : vector<16xf32> to vector<16x1xf32>
    %37 = vector.extract_strided_slice %23 {offsets = [0, 56], sizes = [16, 8], strides = [1, 1]} : vector<16x96xf32> to vector<16x8xf32>
    %38 = arith.mulf %24, %37 : vector<16x8xf32>
    %cst_15 = arith.constant dense<0.000000e+00> : vector<16xf32>
    %39 = vector.multi_reduction <add>, %38, %cst_15 [1] : vector<16x8xf32> to vector<16xf32>
    %40 = vector.shape_cast %39 : vector<16xf32> to vector<16x1xf32>
    %41 = arith.maximumf %28, %32 : vector<16x1xf32>
    %42 = arith.maximumf %41, %36 : vector<16x1xf32>
    %43 = arith.maximumf %42, %40 : vector<16x1xf32>
    %44 = arith.subf %28, %43 : vector<16x1xf32>
    %45 = math.exp %44 : vector<16x1xf32>
    %46 = arith.subf %32, %43 : vector<16x1xf32>
    %47 = math.exp %46 : vector<16x1xf32>
    %48 = arith.subf %36, %43 : vector<16x1xf32>
    %49 = math.exp %48 : vector<16x1xf32>
    %50 = arith.subf %40, %43 : vector<16x1xf32>
    %51 = math.exp %50 : vector<16x1xf32>
    %52 = arith.addf %45, %47 : vector<16x1xf32>
    %53 = arith.addf %52, %49 : vector<16x1xf32>
    %54 = arith.addf %53, %51 : vector<16x1xf32>
    %55 = tpu.reciprocal %54 {approx = true} : vector<16x1xf32> -> vector<16x1xf32>
    %56 = vector.extract_strided_slice %23 {offsets = [0, 64], sizes = [16, 8], strides = [1, 1]} : vector<16x96xf32> to vector<16x8xf32>
    %57 = arith.mulf %45, %55 : vector<16x1xf32>
    %58 = vector.broadcast %57 : vector<16x1xf32> to vector<16x8xf32>
    %59 = arith.mulf %58, %56 : vector<16x8xf32>
    %60 = vector.extract_strided_slice %23 {offsets = [0, 72], sizes = [16, 8], strides = [1, 1]} : vector<16x96xf32> to vector<16x8xf32>
    %61 = arith.mulf %47, %55 : vector<16x1xf32>
    %62 = vector.broadcast %61 : vector<16x1xf32> to vector<16x8xf32>
    %63 = arith.mulf %62, %60 : vector<16x8xf32>
    %64 = arith.addf %59, %63 : vector<16x8xf32>
    %65 = vector.extract_strided_slice %23 {offsets = [0, 80], sizes = [16, 8], strides = [1, 1]} : vector<16x96xf32> to vector<16x8xf32>
    %66 = arith.mulf %49, %55 : vector<16x1xf32>
    %67 = vector.broadcast %66 : vector<16x1xf32> to vector<16x8xf32>
    %68 = arith.mulf %67, %65 : vector<16x8xf32>
    %69 = arith.addf %64, %68 : vector<16x8xf32>
    %70 = vector.extract_strided_slice %23 {offsets = [0, 88], sizes = [16, 8], strides = [1, 1]} : vector<16x96xf32> to vector<16x8xf32>
    %71 = arith.mulf %51, %55 : vector<16x1xf32>
    %72 = vector.broadcast %71 : vector<16x1xf32> to vector<16x8xf32>
    %73 = arith.mulf %72, %70 : vector<16x8xf32>
    %74 = arith.addf %69, %73 : vector<16x8xf32>
    %75 = vector.extract_strided_slice %23 {offsets = [0, 8], sizes = [16, 8], strides = [1, 1]} : vector<16x96xf32> to vector<16x8xf32>
    %76 = vector.extract_strided_slice %23 {offsets = [0, 32], sizes = [16, 8], strides = [1, 1]} : vector<16x96xf32> to vector<16x8xf32>
    %77 = arith.mulf %75, %76 : vector<16x8xf32>
    %cst_16 = arith.constant dense<0.000000e+00> : vector<16xf32>
    %78 = vector.multi_reduction <add>, %77, %cst_16 [1] : vector<16x8xf32> to vector<16xf32>
    %79 = vector.shape_cast %78 : vector<16xf32> to vector<16x1xf32>
    %80 = vector.extract_strided_slice %23 {offsets = [0, 40], sizes = [16, 8], strides = [1, 1]} : vector<16x96xf32> to vector<16x8xf32>
    %81 = arith.mulf %75, %80 : vector<16x8xf32>
    %cst_17 = arith.constant dense<0.000000e+00> : vector<16xf32>
    %82 = vector.multi_reduction <add>, %81, %cst_17 [1] : vector<16x8xf32> to vector<16xf32>
    %83 = vector.shape_cast %82 : vector<16xf32> to vector<16x1xf32>
    %84 = vector.extract_strided_slice %23 {offsets = [0, 48], sizes = [16, 8], strides = [1, 1]} : vector<16x96xf32> to vector<16x8xf32>
    %85 = arith.mulf %75, %84 : vector<16x8xf32>
    %cst_18 = arith.constant dense<0.000000e+00> : vector<16xf32>
    %86 = vector.multi_reduction <add>, %85, %cst_18 [1] : vector<16x8xf32> to vector<16xf32>
    %87 = vector.shape_cast %86 : vector<16xf32> to vector<16x1xf32>
    %88 = vector.extract_strided_slice %23 {offsets = [0, 56], sizes = [16, 8], strides = [1, 1]} : vector<16x96xf32> to vector<16x8xf32>
    %89 = arith.mulf %75, %88 : vector<16x8xf32>
    %cst_19 = arith.constant dense<0.000000e+00> : vector<16xf32>
    %90 = vector.multi_reduction <add>, %89, %cst_19 [1] : vector<16x8xf32> to vector<16xf32>
    %91 = vector.shape_cast %90 : vector<16xf32> to vector<16x1xf32>
    %92 = arith.maximumf %79, %83 : vector<16x1xf32>
    %93 = arith.maximumf %92, %87 : vector<16x1xf32>
    %94 = arith.maximumf %93, %91 : vector<16x1xf32>
    %95 = arith.subf %79, %94 : vector<16x1xf32>
    %96 = math.exp %95 : vector<16x1xf32>
    %97 = arith.subf %83, %94 : vector<16x1xf32>
    %98 = math.exp %97 : vector<16x1xf32>
    %99 = arith.subf %87, %94 : vector<16x1xf32>
    %100 = math.exp %99 : vector<16x1xf32>
    %101 = arith.subf %91, %94 : vector<16x1xf32>
    %102 = math.exp %101 : vector<16x1xf32>
    %103 = arith.addf %96, %98 : vector<16x1xf32>
    %104 = arith.addf %103, %100 : vector<16x1xf32>
    %105 = arith.addf %104, %102 : vector<16x1xf32>
    %106 = tpu.reciprocal %105 {approx = true} : vector<16x1xf32> -> vector<16x1xf32>
    %107 = vector.extract_strided_slice %23 {offsets = [0, 64], sizes = [16, 8], strides = [1, 1]} : vector<16x96xf32> to vector<16x8xf32>
    %108 = arith.mulf %96, %106 : vector<16x1xf32>
    %109 = vector.broadcast %108 : vector<16x1xf32> to vector<16x8xf32>
    %110 = arith.mulf %109, %107 : vector<16x8xf32>
    %111 = vector.extract_strided_slice %23 {offsets = [0, 72], sizes = [16, 8], strides = [1, 1]} : vector<16x96xf32> to vector<16x8xf32>
    %112 = arith.mulf %98, %106 : vector<16x1xf32>
    %113 = vector.broadcast %112 : vector<16x1xf32> to vector<16x8xf32>
    %114 = arith.mulf %113, %111 : vector<16x8xf32>
    %115 = arith.addf %110, %114 : vector<16x8xf32>
    %116 = vector.extract_strided_slice %23 {offsets = [0, 80], sizes = [16, 8], strides = [1, 1]} : vector<16x96xf32> to vector<16x8xf32>
    %117 = arith.mulf %100, %106 : vector<16x1xf32>
    %118 = vector.broadcast %117 : vector<16x1xf32> to vector<16x8xf32>
    %119 = arith.mulf %118, %116 : vector<16x8xf32>
    %120 = arith.addf %115, %119 : vector<16x8xf32>
    %121 = vector.extract_strided_slice %23 {offsets = [0, 88], sizes = [16, 8], strides = [1, 1]} : vector<16x96xf32> to vector<16x8xf32>
    %122 = arith.mulf %102, %106 : vector<16x1xf32>
    %123 = vector.broadcast %122 : vector<16x1xf32> to vector<16x8xf32>
    %124 = arith.mulf %123, %121 : vector<16x8xf32>
    %125 = arith.addf %120, %124 : vector<16x8xf32>
    %126 = vector.extract_strided_slice %23 {offsets = [0, 16], sizes = [16, 8], strides = [1, 1]} : vector<16x96xf32> to vector<16x8xf32>
    %127 = vector.extract_strided_slice %23 {offsets = [0, 32], sizes = [16, 8], strides = [1, 1]} : vector<16x96xf32> to vector<16x8xf32>
    %128 = arith.mulf %126, %127 : vector<16x8xf32>
    %cst_20 = arith.constant dense<0.000000e+00> : vector<16xf32>
    %129 = vector.multi_reduction <add>, %128, %cst_20 [1] : vector<16x8xf32> to vector<16xf32>
    %130 = vector.shape_cast %129 : vector<16xf32> to vector<16x1xf32>
    %131 = vector.extract_strided_slice %23 {offsets = [0, 40], sizes = [16, 8], strides = [1, 1]} : vector<16x96xf32> to vector<16x8xf32>
    %132 = arith.mulf %126, %131 : vector<16x8xf32>
    %cst_21 = arith.constant dense<0.000000e+00> : vector<16xf32>
    %133 = vector.multi_reduction <add>, %132, %cst_21 [1] : vector<16x8xf32> to vector<16xf32>
    %134 = vector.shape_cast %133 : vector<16xf32> to vector<16x1xf32>
    %135 = vector.extract_strided_slice %23 {offsets = [0, 48], sizes = [16, 8], strides = [1, 1]} : vector<16x96xf32> to vector<16x8xf32>
    %136 = arith.mulf %126, %135 : vector<16x8xf32>
    %cst_22 = arith.constant dense<0.000000e+00> : vector<16xf32>
    %137 = vector.multi_reduction <add>, %136, %cst_22 [1] : vector<16x8xf32> to vector<16xf32>
    %138 = vector.shape_cast %137 : vector<16xf32> to vector<16x1xf32>
    %139 = vector.extract_strided_slice %23 {offsets = [0, 56], sizes = [16, 8], strides = [1, 1]} : vector<16x96xf32> to vector<16x8xf32>
    %140 = arith.mulf %126, %139 : vector<16x8xf32>
    %cst_23 = arith.constant dense<0.000000e+00> : vector<16xf32>
    %141 = vector.multi_reduction <add>, %140, %cst_23 [1] : vector<16x8xf32> to vector<16xf32>
    %142 = vector.shape_cast %141 : vector<16xf32> to vector<16x1xf32>
    %143 = arith.maximumf %130, %134 : vector<16x1xf32>
    %144 = arith.maximumf %143, %138 : vector<16x1xf32>
    %145 = arith.maximumf %144, %142 : vector<16x1xf32>
    %146 = arith.subf %130, %145 : vector<16x1xf32>
    %147 = math.exp %146 : vector<16x1xf32>
    %148 = arith.subf %134, %145 : vector<16x1xf32>
    %149 = math.exp %148 : vector<16x1xf32>
    %150 = arith.subf %138, %145 : vector<16x1xf32>
    %151 = math.exp %150 : vector<16x1xf32>
    %152 = arith.subf %142, %145 : vector<16x1xf32>
    %153 = math.exp %152 : vector<16x1xf32>
    %154 = arith.addf %147, %149 : vector<16x1xf32>
    %155 = arith.addf %154, %151 : vector<16x1xf32>
    %156 = arith.addf %155, %153 : vector<16x1xf32>
    %157 = tpu.reciprocal %156 {approx = true} : vector<16x1xf32> -> vector<16x1xf32>
    %158 = vector.extract_strided_slice %23 {offsets = [0, 64], sizes = [16, 8], strides = [1, 1]} : vector<16x96xf32> to vector<16x8xf32>
    %159 = arith.mulf %147, %157 : vector<16x1xf32>
    %160 = vector.broadcast %159 : vector<16x1xf32> to vector<16x8xf32>
    %161 = arith.mulf %160, %158 : vector<16x8xf32>
    %162 = vector.extract_strided_slice %23 {offsets = [0, 72], sizes = [16, 8], strides = [1, 1]} : vector<16x96xf32> to vector<16x8xf32>
    %163 = arith.mulf %149, %157 : vector<16x1xf32>
    %164 = vector.broadcast %163 : vector<16x1xf32> to vector<16x8xf32>
    %165 = arith.mulf %164, %162 : vector<16x8xf32>
    %166 = arith.addf %161, %165 : vector<16x8xf32>
    %167 = vector.extract_strided_slice %23 {offsets = [0, 80], sizes = [16, 8], strides = [1, 1]} : vector<16x96xf32> to vector<16x8xf32>
    %168 = arith.mulf %151, %157 : vector<16x1xf32>
    %169 = vector.broadcast %168 : vector<16x1xf32> to vector<16x8xf32>
    %170 = arith.mulf %169, %167 : vector<16x8xf32>
    %171 = arith.addf %166, %170 : vector<16x8xf32>
    %172 = vector.extract_strided_slice %23 {offsets = [0, 88], sizes = [16, 8], strides = [1, 1]} : vector<16x96xf32> to vector<16x8xf32>
    %173 = arith.mulf %153, %157 : vector<16x1xf32>
    %174 = vector.broadcast %173 : vector<16x1xf32> to vector<16x8xf32>
    %175 = arith.mulf %174, %172 : vector<16x8xf32>
    %176 = arith.addf %171, %175 : vector<16x8xf32>
    %177 = vector.extract_strided_slice %23 {offsets = [0, 24], sizes = [16, 8], strides = [1, 1]} : vector<16x96xf32> to vector<16x8xf32>
    %178 = vector.extract_strided_slice %23 {offsets = [0, 32], sizes = [16, 8], strides = [1, 1]} : vector<16x96xf32> to vector<16x8xf32>
    %179 = arith.mulf %177, %178 : vector<16x8xf32>
    %cst_24 = arith.constant dense<0.000000e+00> : vector<16xf32>
    %180 = vector.multi_reduction <add>, %179, %cst_24 [1] : vector<16x8xf32> to vector<16xf32>
    %181 = vector.shape_cast %180 : vector<16xf32> to vector<16x1xf32>
    %182 = vector.extract_strided_slice %23 {offsets = [0, 40], sizes = [16, 8], strides = [1, 1]} : vector<16x96xf32> to vector<16x8xf32>
    %183 = arith.mulf %177, %182 : vector<16x8xf32>
    %cst_25 = arith.constant dense<0.000000e+00> : vector<16xf32>
    %184 = vector.multi_reduction <add>, %183, %cst_25 [1] : vector<16x8xf32> to vector<16xf32>
    %185 = vector.shape_cast %184 : vector<16xf32> to vector<16x1xf32>
    %186 = vector.extract_strided_slice %23 {offsets = [0, 48], sizes = [16, 8], strides = [1, 1]} : vector<16x96xf32> to vector<16x8xf32>
    %187 = arith.mulf %177, %186 : vector<16x8xf32>
    %cst_26 = arith.constant dense<0.000000e+00> : vector<16xf32>
    %188 = vector.multi_reduction <add>, %187, %cst_26 [1] : vector<16x8xf32> to vector<16xf32>
    %189 = vector.shape_cast %188 : vector<16xf32> to vector<16x1xf32>
    %190 = vector.extract_strided_slice %23 {offsets = [0, 56], sizes = [16, 8], strides = [1, 1]} : vector<16x96xf32> to vector<16x8xf32>
    %191 = arith.mulf %177, %190 : vector<16x8xf32>
    %cst_27 = arith.constant dense<0.000000e+00> : vector<16xf32>
    %192 = vector.multi_reduction <add>, %191, %cst_27 [1] : vector<16x8xf32> to vector<16xf32>
    %193 = vector.shape_cast %192 : vector<16xf32> to vector<16x1xf32>
    %194 = arith.maximumf %181, %185 : vector<16x1xf32>
    %195 = arith.maximumf %194, %189 : vector<16x1xf32>
    %196 = arith.maximumf %195, %193 : vector<16x1xf32>
    %197 = arith.subf %181, %196 : vector<16x1xf32>
    %198 = math.exp %197 : vector<16x1xf32>
    %199 = arith.subf %185, %196 : vector<16x1xf32>
    %200 = math.exp %199 : vector<16x1xf32>
    %201 = arith.subf %189, %196 : vector<16x1xf32>
    %202 = math.exp %201 : vector<16x1xf32>
    %203 = arith.subf %193, %196 : vector<16x1xf32>
    %204 = math.exp %203 : vector<16x1xf32>
    %205 = arith.addf %198, %200 : vector<16x1xf32>
    %206 = arith.addf %205, %202 : vector<16x1xf32>
    %207 = arith.addf %206, %204 : vector<16x1xf32>
    %208 = tpu.reciprocal %207 {approx = true} : vector<16x1xf32> -> vector<16x1xf32>
    %209 = vector.extract_strided_slice %23 {offsets = [0, 64], sizes = [16, 8], strides = [1, 1]} : vector<16x96xf32> to vector<16x8xf32>
    %210 = arith.mulf %198, %208 : vector<16x1xf32>
    %211 = vector.broadcast %210 : vector<16x1xf32> to vector<16x8xf32>
    %212 = arith.mulf %211, %209 : vector<16x8xf32>
    %213 = vector.extract_strided_slice %23 {offsets = [0, 72], sizes = [16, 8], strides = [1, 1]} : vector<16x96xf32> to vector<16x8xf32>
    %214 = arith.mulf %200, %208 : vector<16x1xf32>
    %215 = vector.broadcast %214 : vector<16x1xf32> to vector<16x8xf32>
    %216 = arith.mulf %215, %213 : vector<16x8xf32>
    %217 = arith.addf %212, %216 : vector<16x8xf32>
    %218 = vector.extract_strided_slice %23 {offsets = [0, 80], sizes = [16, 8], strides = [1, 1]} : vector<16x96xf32> to vector<16x8xf32>
    %219 = arith.mulf %202, %208 : vector<16x1xf32>
    %220 = vector.broadcast %219 : vector<16x1xf32> to vector<16x8xf32>
    %221 = arith.mulf %220, %218 : vector<16x8xf32>
    %222 = arith.addf %217, %221 : vector<16x8xf32>
    %223 = vector.extract_strided_slice %23 {offsets = [0, 88], sizes = [16, 8], strides = [1, 1]} : vector<16x96xf32> to vector<16x8xf32>
    %224 = arith.mulf %204, %208 : vector<16x1xf32>
    %225 = vector.broadcast %224 : vector<16x1xf32> to vector<16x8xf32>
    %226 = arith.mulf %225, %223 : vector<16x8xf32>
    %227 = arith.addf %222, %226 : vector<16x8xf32>
    %228 = tpu.concatenate %74, %125, %176, %227 in 1 : vector<16x8xf32>, vector<16x8xf32>, vector<16x8xf32>, vector<16x8xf32> -> vector<16x32xf32>
    %cst_28 = arith.constant dense<0.000000e+00> : vector<16x32xf32>
    %229 = tpu.matmul %228, %4, %cst_28 {dimension_numbers = #tpu.dot_dimension_numbers<[1], [0], [0], [1], [0, 0, 1, 1], [], []>} : vector<16x32xf32>, vector<32x32xf32>, vector<16x32xf32> -> vector<16x32xf32>
    %230 = arith.addf %1, %229 : vector<16x32xf32>
    %c0_29 = arith.constant 0 : index
    %c0_30 = arith.constant 0 : index
    %231 = vector.load %arg5[%c0_29, %c0_30] : memref<32x32xf32, #tpu.memory_space<vmem>>, vector<32x32xf32>
    %c0_31 = arith.constant 0 : index
    %c0_32 = arith.constant 0 : index
    %232 = vector.load %arg6[%c0_31, %c0_32] : memref<1x32xf32, #tpu.memory_space<vmem>>, vector<1x32xf32>
    %c0_33 = arith.constant 0 : index
    %c0_34 = arith.constant 0 : index
    %233 = vector.load %arg7[%c0_33, %c0_34] : memref<32x64xf32, #tpu.memory_space<vmem>>, vector<32x64xf32>
    %c0_35 = arith.constant 0 : index
    %c0_36 = arith.constant 0 : index
    %234 = vector.load %arg8[%c0_35, %c0_36] : memref<1x64xf32, #tpu.memory_space<vmem>>, vector<1x64xf32>
    %c0_37 = arith.constant 0 : index
    %c0_38 = arith.constant 0 : index
    %235 = vector.load %arg9[%c0_37, %c0_38] : memref<64x32xf32, #tpu.memory_space<vmem>>, vector<64x32xf32>
    %c0_39 = arith.constant 0 : index
    %c0_40 = arith.constant 0 : index
    %236 = vector.load %arg10[%c0_39, %c0_40] : memref<1x32xf32, #tpu.memory_space<vmem>>, vector<1x32xf32>
    %c0_41 = arith.constant 0 : index
    %c0_42 = arith.constant 0 : index
    %237 = vector.load %arg11[%c0_41, %c0_42] : memref<32x32xf32, #tpu.memory_space<vmem>>, vector<32x32xf32>
    %c0_43 = arith.constant 0 : index
    %c0_44 = arith.constant 0 : index
    %238 = vector.load %arg12[%c0_43, %c0_44] : memref<1x32xf32, #tpu.memory_space<vmem>>, vector<1x32xf32>
    %cst_45 = arith.constant dense<0.000000e+00> : vector<16xf32>
    %239 = vector.multi_reduction <add>, %230, %cst_45 [1] : vector<16x32xf32> to vector<16xf32>
    %240 = vector.shape_cast %239 : vector<16xf32> to vector<16x1xf32>
    %cst_46 = arith.constant 3.200000e+01 : f32
    %241 = vector.broadcast %cst_46 : f32 to vector<16x1xf32>
    %242 = arith.divf %240, %241 : vector<16x1xf32>
    %243 = vector.broadcast %242 : vector<16x1xf32> to vector<16x32xf32>
    %244 = arith.subf %230, %243 : vector<16x32xf32>
    %245 = arith.mulf %244, %244 : vector<16x32xf32>
    %cst_47 = arith.constant dense<0.000000e+00> : vector<16xf32>
    %246 = vector.multi_reduction <add>, %245, %cst_47 [1] : vector<16x32xf32> to vector<16xf32>
    %247 = vector.shape_cast %246 : vector<16xf32> to vector<16x1xf32>
    %cst_48 = arith.constant 3.200000e+01 : f32
    %248 = vector.broadcast %cst_48 : f32 to vector<16x1xf32>
    %249 = arith.divf %247, %248 : vector<16x1xf32>
    %cst_49 = arith.constant 9.99999974E-6 : f32
    %250 = vector.broadcast %cst_49 : f32 to vector<16x1xf32>
    %251 = arith.addf %249, %250 : vector<16x1xf32>
    %252 = math.rsqrt %251 : vector<16x1xf32>
    %253 = vector.broadcast %252 : vector<16x1xf32> to vector<16x32xf32>
    %254 = arith.mulf %244, %253 : vector<16x32xf32>
    %cst_50 = arith.constant dense<0.000000e+00> : vector<16x32xf32>
    %255 = tpu.matmul %254, %231, %cst_50 {dimension_numbers = #tpu.dot_dimension_numbers<[1], [0], [0], [1], [0, 0, 1, 1], [], []>} : vector<16x32xf32>, vector<32x32xf32>, vector<16x32xf32> -> vector<16x32xf32>
    %256 = vector.broadcast %232 : vector<1x32xf32> to vector<16x32xf32>
    %257 = arith.addf %255, %256 : vector<16x32xf32>
    %cst_51 = arith.constant dense<0.000000e+00> : vector<16x64xf32>
    %258 = tpu.matmul %257, %233, %cst_51 {dimension_numbers = #tpu.dot_dimension_numbers<[1], [0], [0], [1], [0, 0, 1, 1], [], []>} : vector<16x32xf32>, vector<32x64xf32>, vector<16x64xf32> -> vector<16x64xf32>
    %259 = vector.broadcast %234 : vector<1x64xf32> to vector<16x64xf32>
    %260 = arith.addf %258, %259 : vector<16x64xf32>
    %cst_52 = arith.constant 5.000000e-01 : f32
    %261 = vector.broadcast %cst_52 : f32 to vector<16x64xf32>
    %262 = arith.mulf %261, %260 : vector<16x64xf32>
    %cst_53 = arith.constant 4.471500e-02 : f32
    %263 = vector.broadcast %cst_53 : f32 to vector<16x64xf32>
    %264 = arith.mulf %263, %260 : vector<16x64xf32>
    %265 = arith.mulf %264, %260 : vector<16x64xf32>
    %266 = arith.mulf %265, %260 : vector<16x64xf32>
    %267 = arith.addf %260, %266 : vector<16x64xf32>
    %cst_54 = arith.constant 0.797884583 : f32
    %268 = vector.broadcast %cst_54 : f32 to vector<16x64xf32>
    %269 = arith.mulf %268, %267 : vector<16x64xf32>
    %270 = math.tanh %269 : vector<16x64xf32>
    %cst_55 = arith.constant 1.000000e+00 : f32
    %271 = vector.broadcast %cst_55 : f32 to vector<16x64xf32>
    %272 = arith.addf %271, %270 : vector<16x64xf32>
    %273 = arith.mulf %262, %272 : vector<16x64xf32>
    %cst_56 = arith.constant dense<0.000000e+00> : vector<16x32xf32>
    %274 = tpu.matmul %273, %235, %cst_56 {dimension_numbers = #tpu.dot_dimension_numbers<[1], [0], [0], [1], [0, 0, 1, 1], [], []>} : vector<16x64xf32>, vector<64x32xf32>, vector<16x32xf32> -> vector<16x32xf32>
    %275 = arith.addf %257, %274 : vector<16x32xf32>
    %276 = vector.broadcast %236 : vector<1x32xf32> to vector<16x32xf32>
    %277 = arith.addf %275, %276 : vector<16x32xf32>
    %cst_57 = arith.constant dense<0.000000e+00> : vector<16x32xf32>
    %278 = tpu.matmul %277, %237, %cst_57 {dimension_numbers = #tpu.dot_dimension_numbers<[1], [0], [0], [1], [0, 0, 1, 1], [], []>} : vector<16x32xf32>, vector<32x32xf32>, vector<16x32xf32> -> vector<16x32xf32>
    %279 = arith.addf %230, %278 : vector<16x32xf32>
    %280 = vector.broadcast %238 : vector<1x32xf32> to vector<16x32xf32>
    %281 = arith.addf %279, %280 : vector<16x32xf32>
    %c0_58 = arith.constant 0 : index
    %c0_59 = arith.constant 0 : index
    %282 = vector.load %arg13[%c0_58, %c0_59] : memref<32x96xf32, #tpu.memory_space<vmem>>, vector<32x96xf32>
    %c0_60 = arith.constant 0 : index
    %c0_61 = arith.constant 0 : index
    %283 = vector.load %arg14[%c0_60, %c0_61] : memref<1x96xf32, #tpu.memory_space<vmem>>, vector<1x96xf32>
    %c0_62 = arith.constant 0 : index
    %c0_63 = arith.constant 0 : index
    %284 = vector.load %arg15[%c0_62, %c0_63] : memref<32x32xf32, #tpu.memory_space<vmem>>, vector<32x32xf32>
    %cst_64 = arith.constant dense<0.000000e+00> : vector<16xf32>
    %285 = vector.multi_reduction <add>, %281, %cst_64 [1] : vector<16x32xf32> to vector<16xf32>
    %286 = vector.shape_cast %285 : vector<16xf32> to vector<16x1xf32>
    %cst_65 = arith.constant 3.200000e+01 : f32
    %287 = vector.broadcast %cst_65 : f32 to vector<16x1xf32>
    %288 = arith.divf %286, %287 : vector<16x1xf32>
    %289 = vector.broadcast %288 : vector<16x1xf32> to vector<16x32xf32>
    %290 = arith.subf %281, %289 : vector<16x32xf32>
    %291 = arith.mulf %290, %290 : vector<16x32xf32>
    %cst_66 = arith.constant dense<0.000000e+00> : vector<16xf32>
    %292 = vector.multi_reduction <add>, %291, %cst_66 [1] : vector<16x32xf32> to vector<16xf32>
    %293 = vector.shape_cast %292 : vector<16xf32> to vector<16x1xf32>
    %cst_67 = arith.constant 3.200000e+01 : f32
    %294 = vector.broadcast %cst_67 : f32 to vector<16x1xf32>
    %295 = arith.divf %293, %294 : vector<16x1xf32>
    %cst_68 = arith.constant 9.99999974E-6 : f32
    %296 = vector.broadcast %cst_68 : f32 to vector<16x1xf32>
    %297 = arith.addf %295, %296 : vector<16x1xf32>
    %298 = math.rsqrt %297 : vector<16x1xf32>
    %299 = vector.broadcast %298 : vector<16x1xf32> to vector<16x32xf32>
    %300 = arith.mulf %290, %299 : vector<16x32xf32>
    %cst_69 = arith.constant dense<0.000000e+00> : vector<16x96xf32>
    %301 = tpu.matmul %300, %282, %cst_69 {dimension_numbers = #tpu.dot_dimension_numbers<[1], [0], [0], [1], [0, 0, 1, 1], [], []>} : vector<16x32xf32>, vector<32x96xf32>, vector<16x96xf32> -> vector<16x96xf32>
    %302 = vector.broadcast %283 : vector<1x96xf32> to vector<16x96xf32>
    %303 = arith.addf %301, %302 : vector<16x96xf32>
    %304 = vector.extract_strided_slice %303 {offsets = [0, 0], sizes = [16, 8], strides = [1, 1]} : vector<16x96xf32> to vector<16x8xf32>
    %305 = vector.extract_strided_slice %303 {offsets = [0, 32], sizes = [16, 8], strides = [1, 1]} : vector<16x96xf32> to vector<16x8xf32>
    %306 = arith.mulf %304, %305 : vector<16x8xf32>
    %cst_70 = arith.constant dense<0.000000e+00> : vector<16xf32>
    %307 = vector.multi_reduction <add>, %306, %cst_70 [1] : vector<16x8xf32> to vector<16xf32>
    %308 = vector.shape_cast %307 : vector<16xf32> to vector<16x1xf32>
    %309 = vector.extract_strided_slice %303 {offsets = [0, 40], sizes = [16, 8], strides = [1, 1]} : vector<16x96xf32> to vector<16x8xf32>
    %310 = arith.mulf %304, %309 : vector<16x8xf32>
    %cst_71 = arith.constant dense<0.000000e+00> : vector<16xf32>
    %311 = vector.multi_reduction <add>, %310, %cst_71 [1] : vector<16x8xf32> to vector<16xf32>
    %312 = vector.shape_cast %311 : vector<16xf32> to vector<16x1xf32>
    %313 = vector.extract_strided_slice %303 {offsets = [0, 48], sizes = [16, 8], strides = [1, 1]} : vector<16x96xf32> to vector<16x8xf32>
    %314 = arith.mulf %304, %313 : vector<16x8xf32>
    %cst_72 = arith.constant dense<0.000000e+00> : vector<16xf32>
    %315 = vector.multi_reduction <add>, %314, %cst_72 [1] : vector<16x8xf32> to vector<16xf32>
    %316 = vector.shape_cast %315 : vector<16xf32> to vector<16x1xf32>
    %317 = vector.extract_strided_slice %303 {offsets = [0, 56], sizes = [16, 8], strides = [1, 1]} : vector<16x96xf32> to vector<16x8xf32>
    %318 = arith.mulf %304, %317 : vector<16x8xf32>
    %cst_73 = arith.constant dense<0.000000e+00> : vector<16xf32>
    %319 = vector.multi_reduction <add>, %318, %cst_73 [1] : vector<16x8xf32> to vector<16xf32>
    %320 = vector.shape_cast %319 : vector<16xf32> to vector<16x1xf32>
    %321 = arith.maximumf %308, %312 : vector<16x1xf32>
    %322 = arith.maximumf %321, %316 : vector<16x1xf32>
    %323 = arith.maximumf %322, %320 : vector<16x1xf32>
    %324 = arith.subf %308, %323 : vector<16x1xf32>
    %325 = math.exp %324 : vector<16x1xf32>
    %326 = arith.subf %312, %323 : vector<16x1xf32>
    %327 = math.exp %326 : vector<16x1xf32>
    %328 = arith.subf %316, %323 : vector<16x1xf32>
    %329 = math.exp %328 : vector<16x1xf32>
    %330 = arith.subf %320, %323 : vector<16x1xf32>
    %331 = math.exp %330 : vector<16x1xf32>
    %332 = arith.addf %325, %327 : vector<16x1xf32>
    %333 = arith.addf %332, %329 : vector<16x1xf32>
    %334 = arith.addf %333, %331 : vector<16x1xf32>
    %335 = tpu.reciprocal %334 {approx = true} : vector<16x1xf32> -> vector<16x1xf32>
    %336 = vector.extract_strided_slice %303 {offsets = [0, 64], sizes = [16, 8], strides = [1, 1]} : vector<16x96xf32> to vector<16x8xf32>
    %337 = arith.mulf %325, %335 : vector<16x1xf32>
    %338 = vector.broadcast %337 : vector<16x1xf32> to vector<16x8xf32>
    %339 = arith.mulf %338, %336 : vector<16x8xf32>
    %340 = vector.extract_strided_slice %303 {offsets = [0, 72], sizes = [16, 8], strides = [1, 1]} : vector<16x96xf32> to vector<16x8xf32>
    %341 = arith.mulf %327, %335 : vector<16x1xf32>
    %342 = vector.broadcast %341 : vector<16x1xf32> to vector<16x8xf32>
    %343 = arith.mulf %342, %340 : vector<16x8xf32>
    %344 = arith.addf %339, %343 : vector<16x8xf32>
    %345 = vector.extract_strided_slice %303 {offsets = [0, 80], sizes = [16, 8], strides = [1, 1]} : vector<16x96xf32> to vector<16x8xf32>
    %346 = arith.mulf %329, %335 : vector<16x1xf32>
    %347 = vector.broadcast %346 : vector<16x1xf32> to vector<16x8xf32>
    %348 = arith.mulf %347, %345 : vector<16x8xf32>
    %349 = arith.addf %344, %348 : vector<16x8xf32>
    %350 = vector.extract_strided_slice %303 {offsets = [0, 88], sizes = [16, 8], strides = [1, 1]} : vector<16x96xf32> to vector<16x8xf32>
    %351 = arith.mulf %331, %335 : vector<16x1xf32>
    %352 = vector.broadcast %351 : vector<16x1xf32> to vector<16x8xf32>
    %353 = arith.mulf %352, %350 : vector<16x8xf32>
    %354 = arith.addf %349, %353 : vector<16x8xf32>
    %355 = vector.extract_strided_slice %303 {offsets = [0, 8], sizes = [16, 8], strides = [1, 1]} : vector<16x96xf32> to vector<16x8xf32>
    %356 = vector.extract_strided_slice %303 {offsets = [0, 32], sizes = [16, 8], strides = [1, 1]} : vector<16x96xf32> to vector<16x8xf32>
    %357 = arith.mulf %355, %356 : vector<16x8xf32>
    %cst_74 = arith.constant dense<0.000000e+00> : vector<16xf32>
    %358 = vector.multi_reduction <add>, %357, %cst_74 [1] : vector<16x8xf32> to vector<16xf32>
    %359 = vector.shape_cast %358 : vector<16xf32> to vector<16x1xf32>
    %360 = vector.extract_strided_slice %303 {offsets = [0, 40], sizes = [16, 8], strides = [1, 1]} : vector<16x96xf32> to vector<16x8xf32>
    %361 = arith.mulf %355, %360 : vector<16x8xf32>
    %cst_75 = arith.constant dense<0.000000e+00> : vector<16xf32>
    %362 = vector.multi_reduction <add>, %361, %cst_75 [1] : vector<16x8xf32> to vector<16xf32>
    %363 = vector.shape_cast %362 : vector<16xf32> to vector<16x1xf32>
    %364 = vector.extract_strided_slice %303 {offsets = [0, 48], sizes = [16, 8], strides = [1, 1]} : vector<16x96xf32> to vector<16x8xf32>
    %365 = arith.mulf %355, %364 : vector<16x8xf32>
    %cst_76 = arith.constant dense<0.000000e+00> : vector<16xf32>
    %366 = vector.multi_reduction <add>, %365, %cst_76 [1] : vector<16x8xf32> to vector<16xf32>
    %367 = vector.shape_cast %366 : vector<16xf32> to vector<16x1xf32>
    %368 = vector.extract_strided_slice %303 {offsets = [0, 56], sizes = [16, 8], strides = [1, 1]} : vector<16x96xf32> to vector<16x8xf32>
    %369 = arith.mulf %355, %368 : vector<16x8xf32>
    %cst_77 = arith.constant dense<0.000000e+00> : vector<16xf32>
    %370 = vector.multi_reduction <add>, %369, %cst_77 [1] : vector<16x8xf32> to vector<16xf32>
    %371 = vector.shape_cast %370 : vector<16xf32> to vector<16x1xf32>
    %372 = arith.maximumf %359, %363 : vector<16x1xf32>
    %373 = arith.maximumf %372, %367 : vector<16x1xf32>
    %374 = arith.maximumf %373, %371 : vector<16x1xf32>
    %375 = arith.subf %359, %374 : vector<16x1xf32>
    %376 = math.exp %375 : vector<16x1xf32>
    %377 = arith.subf %363, %374 : vector<16x1xf32>
    %378 = math.exp %377 : vector<16x1xf32>
    %379 = arith.subf %367, %374 : vector<16x1xf32>
    %380 = math.exp %379 : vector<16x1xf32>
    %381 = arith.subf %371, %374 : vector<16x1xf32>
    %382 = math.exp %381 : vector<16x1xf32>
    %383 = arith.addf %376, %378 : vector<16x1xf32>
    %384 = arith.addf %383, %380 : vector<16x1xf32>
    %385 = arith.addf %384, %382 : vector<16x1xf32>
    %386 = tpu.reciprocal %385 {approx = true} : vector<16x1xf32> -> vector<16x1xf32>
    %387 = vector.extract_strided_slice %303 {offsets = [0, 64], sizes = [16, 8], strides = [1, 1]} : vector<16x96xf32> to vector<16x8xf32>
    %388 = arith.mulf %376, %386 : vector<16x1xf32>
    %389 = vector.broadcast %388 : vector<16x1xf32> to vector<16x8xf32>
    %390 = arith.mulf %389, %387 : vector<16x8xf32>
    %391 = vector.extract_strided_slice %303 {offsets = [0, 72], sizes = [16, 8], strides = [1, 1]} : vector<16x96xf32> to vector<16x8xf32>
    %392 = arith.mulf %378, %386 : vector<16x1xf32>
    %393 = vector.broadcast %392 : vector<16x1xf32> to vector<16x8xf32>
    %394 = arith.mulf %393, %391 : vector<16x8xf32>
    %395 = arith.addf %390, %394 : vector<16x8xf32>
    %396 = vector.extract_strided_slice %303 {offsets = [0, 80], sizes = [16, 8], strides = [1, 1]} : vector<16x96xf32> to vector<16x8xf32>
    %397 = arith.mulf %380, %386 : vector<16x1xf32>
    %398 = vector.broadcast %397 : vector<16x1xf32> to vector<16x8xf32>
    %399 = arith.mulf %398, %396 : vector<16x8xf32>
    %400 = arith.addf %395, %399 : vector<16x8xf32>
    %401 = vector.extract_strided_slice %303 {offsets = [0, 88], sizes = [16, 8], strides = [1, 1]} : vector<16x96xf32> to vector<16x8xf32>
    %402 = arith.mulf %382, %386 : vector<16x1xf32>
    %403 = vector.broadcast %402 : vector<16x1xf32> to vector<16x8xf32>
    %404 = arith.mulf %403, %401 : vector<16x8xf32>
    %405 = arith.addf %400, %404 : vector<16x8xf32>
    %406 = vector.extract_strided_slice %303 {offsets = [0, 16], sizes = [16, 8], strides = [1, 1]} : vector<16x96xf32> to vector<16x8xf32>
    %407 = vector.extract_strided_slice %303 {offsets = [0, 32], sizes = [16, 8], strides = [1, 1]} : vector<16x96xf32> to vector<16x8xf32>
    %408 = arith.mulf %406, %407 : vector<16x8xf32>
    %cst_78 = arith.constant dense<0.000000e+00> : vector<16xf32>
    %409 = vector.multi_reduction <add>, %408, %cst_78 [1] : vector<16x8xf32> to vector<16xf32>
    %410 = vector.shape_cast %409 : vector<16xf32> to vector<16x1xf32>
    %411 = vector.extract_strided_slice %303 {offsets = [0, 40], sizes = [16, 8], strides = [1, 1]} : vector<16x96xf32> to vector<16x8xf32>
    %412 = arith.mulf %406, %411 : vector<16x8xf32>
    %cst_79 = arith.constant dense<0.000000e+00> : vector<16xf32>
    %413 = vector.multi_reduction <add>, %412, %cst_79 [1] : vector<16x8xf32> to vector<16xf32>
    %414 = vector.shape_cast %413 : vector<16xf32> to vector<16x1xf32>
    %415 = vector.extract_strided_slice %303 {offsets = [0, 48], sizes = [16, 8], strides = [1, 1]} : vector<16x96xf32> to vector<16x8xf32>
    %416 = arith.mulf %406, %415 : vector<16x8xf32>
    %cst_80 = arith.constant dense<0.000000e+00> : vector<16xf32>
    %417 = vector.multi_reduction <add>, %416, %cst_80 [1] : vector<16x8xf32> to vector<16xf32>
    %418 = vector.shape_cast %417 : vector<16xf32> to vector<16x1xf32>
    %419 = vector.extract_strided_slice %303 {offsets = [0, 56], sizes = [16, 8], strides = [1, 1]} : vector<16x96xf32> to vector<16x8xf32>
    %420 = arith.mulf %406, %419 : vector<16x8xf32>
    %cst_81 = arith.constant dense<0.000000e+00> : vector<16xf32>
    %421 = vector.multi_reduction <add>, %420, %cst_81 [1] : vector<16x8xf32> to vector<16xf32>
    %422 = vector.shape_cast %421 : vector<16xf32> to vector<16x1xf32>
    %423 = arith.maximumf %410, %414 : vector<16x1xf32>
    %424 = arith.maximumf %423, %418 : vector<16x1xf32>
    %425 = arith.maximumf %424, %422 : vector<16x1xf32>
    %426 = arith.subf %410, %425 : vector<16x1xf32>
    %427 = math.exp %426 : vector<16x1xf32>
    %428 = arith.subf %414, %425 : vector<16x1xf32>
    %429 = math.exp %428 : vector<16x1xf32>
    %430 = arith.subf %418, %425 : vector<16x1xf32>
    %431 = math.exp %430 : vector<16x1xf32>
    %432 = arith.subf %422, %425 : vector<16x1xf32>
    %433 = math.exp %432 : vector<16x1xf32>
    %434 = arith.addf %427, %429 : vector<16x1xf32>
    %435 = arith.addf %434, %431 : vector<16x1xf32>
    %436 = arith.addf %435, %433 : vector<16x1xf32>
    %437 = tpu.reciprocal %436 {approx = true} : vector<16x1xf32> -> vector<16x1xf32>
    %438 = vector.extract_strided_slice %303 {offsets = [0, 64], sizes = [16, 8], strides = [1, 1]} : vector<16x96xf32> to vector<16x8xf32>
    %439 = arith.mulf %427, %437 : vector<16x1xf32>
    %440 = vector.broadcast %439 : vector<16x1xf32> to vector<16x8xf32>
    %441 = arith.mulf %440, %438 : vector<16x8xf32>
    %442 = vector.extract_strided_slice %303 {offsets = [0, 72], sizes = [16, 8], strides = [1, 1]} : vector<16x96xf32> to vector<16x8xf32>
    %443 = arith.mulf %429, %437 : vector<16x1xf32>
    %444 = vector.broadcast %443 : vector<16x1xf32> to vector<16x8xf32>
    %445 = arith.mulf %444, %442 : vector<16x8xf32>
    %446 = arith.addf %441, %445 : vector<16x8xf32>
    %447 = vector.extract_strided_slice %303 {offsets = [0, 80], sizes = [16, 8], strides = [1, 1]} : vector<16x96xf32> to vector<16x8xf32>
    %448 = arith.mulf %431, %437 : vector<16x1xf32>
    %449 = vector.broadcast %448 : vector<16x1xf32> to vector<16x8xf32>
    %450 = arith.mulf %449, %447 : vector<16x8xf32>
    %451 = arith.addf %446, %450 : vector<16x8xf32>
    %452 = vector.extract_strided_slice %303 {offsets = [0, 88], sizes = [16, 8], strides = [1, 1]} : vector<16x96xf32> to vector<16x8xf32>
    %453 = arith.mulf %433, %437 : vector<16x1xf32>
    %454 = vector.broadcast %453 : vector<16x1xf32> to vector<16x8xf32>
    %455 = arith.mulf %454, %452 : vector<16x8xf32>
    %456 = arith.addf %451, %455 : vector<16x8xf32>
    %457 = vector.extract_strided_slice %303 {offsets = [0, 24], sizes = [16, 8], strides = [1, 1]} : vector<16x96xf32> to vector<16x8xf32>
    %458 = vector.extract_strided_slice %303 {offsets = [0, 32], sizes = [16, 8], strides = [1, 1]} : vector<16x96xf32> to vector<16x8xf32>
    %459 = arith.mulf %457, %458 : vector<16x8xf32>
    %cst_82 = arith.constant dense<0.000000e+00> : vector<16xf32>
    %460 = vector.multi_reduction <add>, %459, %cst_82 [1] : vector<16x8xf32> to vector<16xf32>
    %461 = vector.shape_cast %460 : vector<16xf32> to vector<16x1xf32>
    %462 = vector.extract_strided_slice %303 {offsets = [0, 40], sizes = [16, 8], strides = [1, 1]} : vector<16x96xf32> to vector<16x8xf32>
    %463 = arith.mulf %457, %462 : vector<16x8xf32>
    %cst_83 = arith.constant dense<0.000000e+00> : vector<16xf32>
    %464 = vector.multi_reduction <add>, %463, %cst_83 [1] : vector<16x8xf32> to vector<16xf32>
    %465 = vector.shape_cast %464 : vector<16xf32> to vector<16x1xf32>
    %466 = vector.extract_strided_slice %303 {offsets = [0, 48], sizes = [16, 8], strides = [1, 1]} : vector<16x96xf32> to vector<16x8xf32>
    %467 = arith.mulf %457, %466 : vector<16x8xf32>
    %cst_84 = arith.constant dense<0.000000e+00> : vector<16xf32>
    %468 = vector.multi_reduction <add>, %467, %cst_84 [1] : vector<16x8xf32> to vector<16xf32>
    %469 = vector.shape_cast %468 : vector<16xf32> to vector<16x1xf32>
    %470 = vector.extract_strided_slice %303 {offsets = [0, 56], sizes = [16, 8], strides = [1, 1]} : vector<16x96xf32> to vector<16x8xf32>
    %471 = arith.mulf %457, %470 : vector<16x8xf32>
    %cst_85 = arith.constant dense<0.000000e+00> : vector<16xf32>
    %472 = vector.multi_reduction <add>, %471, %cst_85 [1] : vector<16x8xf32> to vector<16xf32>
    %473 = vector.shape_cast %472 : vector<16xf32> to vector<16x1xf32>
    %474 = arith.maximumf %461, %465 : vector<16x1xf32>
    %475 = arith.maximumf %474, %469 : vector<16x1xf32>
    %476 = arith.maximumf %475, %473 : vector<16x1xf32>
    %477 = arith.subf %461, %476 : vector<16x1xf32>
    %478 = math.exp %477 : vector<16x1xf32>
    %479 = arith.subf %465, %476 : vector<16x1xf32>
    %480 = math.exp %479 : vector<16x1xf32>
    %481 = arith.subf %469, %476 : vector<16x1xf32>
    %482 = math.exp %481 : vector<16x1xf32>
    %483 = arith.subf %473, %476 : vector<16x1xf32>
    %484 = math.exp %483 : vector<16x1xf32>
    %485 = arith.addf %478, %480 : vector<16x1xf32>
    %486 = arith.addf %485, %482 : vector<16x1xf32>
    %487 = arith.addf %486, %484 : vector<16x1xf32>
    %488 = tpu.reciprocal %487 {approx = true} : vector<16x1xf32> -> vector<16x1xf32>
    %489 = vector.extract_strided_slice %303 {offsets = [0, 64], sizes = [16, 8], strides = [1, 1]} : vector<16x96xf32> to vector<16x8xf32>
    %490 = arith.mulf %478, %488 : vector<16x1xf32>
    %491 = vector.broadcast %490 : vector<16x1xf32> to vector<16x8xf32>
    %492 = arith.mulf %491, %489 : vector<16x8xf32>
    %493 = vector.extract_strided_slice %303 {offsets = [0, 72], sizes = [16, 8], strides = [1, 1]} : vector<16x96xf32> to vector<16x8xf32>
    %494 = arith.mulf %480, %488 : vector<16x1xf32>
    %495 = vector.broadcast %494 : vector<16x1xf32> to vector<16x8xf32>
    %496 = arith.mulf %495, %493 : vector<16x8xf32>
    %497 = arith.addf %492, %496 : vector<16x8xf32>
    %498 = vector.extract_strided_slice %303 {offsets = [0, 80], sizes = [16, 8], strides = [1, 1]} : vector<16x96xf32> to vector<16x8xf32>
    %499 = arith.mulf %482, %488 : vector<16x1xf32>
    %500 = vector.broadcast %499 : vector<16x1xf32> to vector<16x8xf32>
    %501 = arith.mulf %500, %498 : vector<16x8xf32>
    %502 = arith.addf %497, %501 : vector<16x8xf32>
    %503 = vector.extract_strided_slice %303 {offsets = [0, 88], sizes = [16, 8], strides = [1, 1]} : vector<16x96xf32> to vector<16x8xf32>
    %504 = arith.mulf %484, %488 : vector<16x1xf32>
    %505 = vector.broadcast %504 : vector<16x1xf32> to vector<16x8xf32>
    %506 = arith.mulf %505, %503 : vector<16x8xf32>
    %507 = arith.addf %502, %506 : vector<16x8xf32>
    %508 = tpu.concatenate %354, %405, %456, %507 in 1 : vector<16x8xf32>, vector<16x8xf32>, vector<16x8xf32>, vector<16x8xf32> -> vector<16x32xf32>
    %cst_86 = arith.constant dense<0.000000e+00> : vector<16x32xf32>
    %509 = tpu.matmul %508, %284, %cst_86 {dimension_numbers = #tpu.dot_dimension_numbers<[1], [0], [0], [1], [0, 0, 1, 1], [], []>} : vector<16x32xf32>, vector<32x32xf32>, vector<16x32xf32> -> vector<16x32xf32>
    %510 = arith.addf %281, %509 : vector<16x32xf32>
    %c0_87 = arith.constant 0 : index
    %c0_88 = arith.constant 0 : index
    %511 = vector.load %arg16[%c0_87, %c0_88] : memref<32x32xf32, #tpu.memory_space<vmem>>, vector<32x32xf32>
    %c0_89 = arith.constant 0 : index
    %c0_90 = arith.constant 0 : index
    %512 = vector.load %arg17[%c0_89, %c0_90] : memref<1x32xf32, #tpu.memory_space<vmem>>, vector<1x32xf32>
    %c0_91 = arith.constant 0 : index
    %c0_92 = arith.constant 0 : index
    %513 = vector.load %arg18[%c0_91, %c0_92] : memref<32x64xf32, #tpu.memory_space<vmem>>, vector<32x64xf32>
    %c0_93 = arith.constant 0 : index
    %c0_94 = arith.constant 0 : index
    %514 = vector.load %arg19[%c0_93, %c0_94] : memref<1x64xf32, #tpu.memory_space<vmem>>, vector<1x64xf32>
    %c0_95 = arith.constant 0 : index
    %c0_96 = arith.constant 0 : index
    %515 = vector.load %arg20[%c0_95, %c0_96] : memref<64x32xf32, #tpu.memory_space<vmem>>, vector<64x32xf32>
    %c0_97 = arith.constant 0 : index
    %c0_98 = arith.constant 0 : index
    %516 = vector.load %arg21[%c0_97, %c0_98] : memref<1x32xf32, #tpu.memory_space<vmem>>, vector<1x32xf32>
    %c0_99 = arith.constant 0 : index
    %c0_100 = arith.constant 0 : index
    %517 = vector.load %arg22[%c0_99, %c0_100] : memref<32x32xf32, #tpu.memory_space<vmem>>, vector<32x32xf32>
    %c0_101 = arith.constant 0 : index
    %c0_102 = arith.constant 0 : index
    %518 = vector.load %arg23[%c0_101, %c0_102] : memref<1x32xf32, #tpu.memory_space<vmem>>, vector<1x32xf32>
    %cst_103 = arith.constant dense<0.000000e+00> : vector<16xf32>
    %519 = vector.multi_reduction <add>, %510, %cst_103 [1] : vector<16x32xf32> to vector<16xf32>
    %520 = vector.shape_cast %519 : vector<16xf32> to vector<16x1xf32>
    %cst_104 = arith.constant 3.200000e+01 : f32
    %521 = vector.broadcast %cst_104 : f32 to vector<16x1xf32>
    %522 = arith.divf %520, %521 : vector<16x1xf32>
    %523 = vector.broadcast %522 : vector<16x1xf32> to vector<16x32xf32>
    %524 = arith.subf %510, %523 : vector<16x32xf32>
    %525 = arith.mulf %524, %524 : vector<16x32xf32>
    %cst_105 = arith.constant dense<0.000000e+00> : vector<16xf32>
    %526 = vector.multi_reduction <add>, %525, %cst_105 [1] : vector<16x32xf32> to vector<16xf32>
    %527 = vector.shape_cast %526 : vector<16xf32> to vector<16x1xf32>
    %cst_106 = arith.constant 3.200000e+01 : f32
    %528 = vector.broadcast %cst_106 : f32 to vector<16x1xf32>
    %529 = arith.divf %527, %528 : vector<16x1xf32>
    %cst_107 = arith.constant 9.99999974E-6 : f32
    %530 = vector.broadcast %cst_107 : f32 to vector<16x1xf32>
    %531 = arith.addf %529, %530 : vector<16x1xf32>
    %532 = math.rsqrt %531 : vector<16x1xf32>
    %533 = vector.broadcast %532 : vector<16x1xf32> to vector<16x32xf32>
    %534 = arith.mulf %524, %533 : vector<16x32xf32>
    %cst_108 = arith.constant dense<0.000000e+00> : vector<16x32xf32>
    %535 = tpu.matmul %534, %511, %cst_108 {dimension_numbers = #tpu.dot_dimension_numbers<[1], [0], [0], [1], [0, 0, 1, 1], [], []>} : vector<16x32xf32>, vector<32x32xf32>, vector<16x32xf32> -> vector<16x32xf32>
    %536 = vector.broadcast %512 : vector<1x32xf32> to vector<16x32xf32>
    %537 = arith.addf %535, %536 : vector<16x32xf32>
    %cst_109 = arith.constant dense<0.000000e+00> : vector<16x64xf32>
    %538 = tpu.matmul %537, %513, %cst_109 {dimension_numbers = #tpu.dot_dimension_numbers<[1], [0], [0], [1], [0, 0, 1, 1], [], []>} : vector<16x32xf32>, vector<32x64xf32>, vector<16x64xf32> -> vector<16x64xf32>
    %539 = vector.broadcast %514 : vector<1x64xf32> to vector<16x64xf32>
    %540 = arith.addf %538, %539 : vector<16x64xf32>
    %cst_110 = arith.constant 5.000000e-01 : f32
    %541 = vector.broadcast %cst_110 : f32 to vector<16x64xf32>
    %542 = arith.mulf %541, %540 : vector<16x64xf32>
    %cst_111 = arith.constant 4.471500e-02 : f32
    %543 = vector.broadcast %cst_111 : f32 to vector<16x64xf32>
    %544 = arith.mulf %543, %540 : vector<16x64xf32>
    %545 = arith.mulf %544, %540 : vector<16x64xf32>
    %546 = arith.mulf %545, %540 : vector<16x64xf32>
    %547 = arith.addf %540, %546 : vector<16x64xf32>
    %cst_112 = arith.constant 0.797884583 : f32
    %548 = vector.broadcast %cst_112 : f32 to vector<16x64xf32>
    %549 = arith.mulf %548, %547 : vector<16x64xf32>
    %550 = math.tanh %549 : vector<16x64xf32>
    %cst_113 = arith.constant 1.000000e+00 : f32
    %551 = vector.broadcast %cst_113 : f32 to vector<16x64xf32>
    %552 = arith.addf %551, %550 : vector<16x64xf32>
    %553 = arith.mulf %542, %552 : vector<16x64xf32>
    %cst_114 = arith.constant dense<0.000000e+00> : vector<16x32xf32>
    %554 = tpu.matmul %553, %515, %cst_114 {dimension_numbers = #tpu.dot_dimension_numbers<[1], [0], [0], [1], [0, 0, 1, 1], [], []>} : vector<16x64xf32>, vector<64x32xf32>, vector<16x32xf32> -> vector<16x32xf32>
    %555 = arith.addf %537, %554 : vector<16x32xf32>
    %556 = vector.broadcast %516 : vector<1x32xf32> to vector<16x32xf32>
    %557 = arith.addf %555, %556 : vector<16x32xf32>
    %cst_115 = arith.constant dense<0.000000e+00> : vector<16x32xf32>
    %558 = tpu.matmul %557, %517, %cst_115 {dimension_numbers = #tpu.dot_dimension_numbers<[1], [0], [0], [1], [0, 0, 1, 1], [], []>} : vector<16x32xf32>, vector<32x32xf32>, vector<16x32xf32> -> vector<16x32xf32>
    %559 = arith.addf %510, %558 : vector<16x32xf32>
    %560 = vector.broadcast %518 : vector<1x32xf32> to vector<16x32xf32>
    %561 = arith.addf %559, %560 : vector<16x32xf32>
    %562 = arith.truncf %561 : vector<16x32xf32> to vector<16x32xbf16>
    %c0_116 = arith.constant 0 : index
    %c0_117 = arith.constant 0 : index
    %563 = vector.load %arg24[%c0_116, %c0_117] : memref<16x32xbf16, #tpu.memory_space<vmem>>, vector<16x32xbf16>
    tpu.vector_store %arg24[%c0_116, %c0_117], %562 {strides = array<i32>} : memref<16x32xbf16, #tpu.memory_space<vmem>>, vector<16x32xbf16>,
    return
  }
  func.func @transform_0(%arg0: i32) -> (i32, i32) {
    %c0_i32 = arith.constant 0 : i32
    %c0_i32_0 = arith.constant 0 : i32
    return %arg0, %c0_i32 : i32, i32
  }
  func.func @transform_1(%arg0: i32) -> (i32, i32) {
    %c0_i32 = arith.constant 0 : i32
    %c0_i32_0 = arith.constant 0 : i32
    %c0_i32_1 = arith.constant 0 : i32
    return %c0_i32, %c0_i32_0 : i32, i32
  }
  func.func @transform_2(%arg0: i32) -> (i32, i32) {
    %c0_i32 = arith.constant 0 : i32
    %c0_i32_0 = arith.constant 0 : i32
    %c0_i32_1 = arith.constant 0 : i32
    return %c0_i32, %c0_i32_0 : i32, i32
  }
  func.func @transform_3(%arg0: i32) -> (i32, i32) {
    %c0_i32 = arith.constant 0 : i32
    %c0_i32_0 = arith.constant 0 : i32
    %c0_i32_1 = arith.constant 0 : i32
    return %c0_i32, %c0_i32_0 : i32, i32
  }
  func.func @transform_4(%arg0: i32) -> (i32, i32) {
    %c0_i32 = arith.constant 0 : i32
    %c0_i32_0 = arith.constant 0 : i32
    %c0_i32_1 = arith.constant 0 : i32
    return %c0_i32, %c0_i32_0 : i32, i32
  }
  func.func @transform_5(%arg0: i32) -> (i32, i32) {
    %c0_i32 = arith.constant 0 : i32
    %c0_i32_0 = arith.constant 0 : i32
    %c0_i32_1 = arith.constant 0 : i32
    return %c0_i32, %c0_i32_0 : i32, i32
  }
  func.func @transform_6(%arg0: i32) -> (i32, i32) {
    %c0_i32 = arith.constant 0 : i32
    %c0_i32_0 = arith.constant 0 : i32
    %c0_i32_1 = arith.constant 0 : i32
    return %c0_i32, %c0_i32_0 : i32, i32
  }
  func.func @transform_7(%arg0: i32) -> (i32, i32) {
    %c0_i32 = arith.constant 0 : i32
    %c0_i32_0 = arith.constant 0 : i32
    %c0_i32_1 = arith.constant 0 : i32
    return %c0_i32, %c0_i32_0 : i32, i32
  }
  func.func @transform_8(%arg0: i32) -> (i32, i32) {
    %c0_i32 = arith.constant 0 : i32
    %c0_i32_0 = arith.constant 0 : i32
    %c0_i32_1 = arith.constant 0 : i32
    return %c0_i32, %c0_i32_0 : i32, i32
  }
  func.func @transform_9(%arg0: i32) -> (i32, i32) {
    %c0_i32 = arith.constant 0 : i32
    %c0_i32_0 = arith.constant 0 : i32
    %c0_i32_1 = arith.constant 0 : i32
    return %c0_i32, %c0_i32_0 : i32, i32
  }
  func.func @transform_10(%arg0: i32) -> (i32, i32) {
    %c0_i32 = arith.constant 0 : i32
    %c0_i32_0 = arith.constant 0 : i32
    %c0_i32_1 = arith.constant 0 : i32
    return %c0_i32, %c0_i32_0 : i32, i32
  }
  func.func @transform_11(%arg0: i32) -> (i32, i32) {
    %c0_i32 = arith.constant 0 : i32
    %c0_i32_0 = arith.constant 0 : i32
    %c0_i32_1 = arith.constant 0 : i32
    return %c0_i32, %c0_i32_0 : i32, i32
  }
  func.func @transform_12(%arg0: i32) -> (i32, i32) {
    %c0_i32 = arith.constant 0 : i32
    %c0_i32_0 = arith.constant 0 : i32
    %c0_i32_1 = arith.constant 0 : i32
    return %c0_i32, %c0_i32_0 : i32, i32
  }
  func.func @transform_13(%arg0: i32) -> (i32, i32) {
    %c0_i32 = arith.constant 0 : i32
    %c0_i32_0 = arith.constant 0 : i32
    %c0_i32_1 = arith.constant 0 : i32
    return %c0_i32, %c0_i32_0 : i32, i32
  }
  func.func @transform_14(%arg0: i32) -> (i32, i32) {
    %c0_i32 = arith.constant 0 : i32
    %c0_i32_0 = arith.constant 0 : i32
    %c0_i32_1 = arith.constant 0 : i32
    return %c0_i32, %c0_i32_0 : i32, i32
  }
  func.func @transform_15(%arg0: i32) -> (i32, i32) {
    %c0_i32 = arith.constant 0 : i32
    %c0_i32_0 = arith.constant 0 : i32
    %c0_i32_1 = arith.constant 0 : i32
    return %c0_i32, %c0_i32_0 : i32, i32
  }
  func.func @transform_16(%arg0: i32) -> (i32, i32) {
    %c0_i32 = arith.constant 0 : i32
    %c0_i32_0 = arith.constant 0 : i32
    %c0_i32_1 = arith.constant 0 : i32
    return %c0_i32, %c0_i32_0 : i32, i32
  }
  func.func @transform_17(%arg0: i32) -> (i32, i32) {
    %c0_i32 = arith.constant 0 : i32
    %c0_i32_0 = arith.constant 0 : i32
    %c0_i32_1 = arith.constant 0 : i32
    return %c0_i32, %c0_i32_0 : i32, i32
  }
  func.func @transform_18(%arg0: i32) -> (i32, i32) {
    %c0_i32 = arith.constant 0 : i32
    %c0_i32_0 = arith.constant 0 : i32
    %c0_i32_1 = arith.constant 0 : i32
    return %c0_i32, %c0_i32_0 : i32, i32
  }
  func.func @transform_19(%arg0: i32) -> (i32, i32) {
    %c0_i32 = arith.constant 0 : i32
    %c0_i32_0 = arith.constant 0 : i32
    %c0_i32_1 = arith.constant 0 : i32
    return %c0_i32, %c0_i32_0 : i32, i32
  }
  func.func @transform_20(%arg0: i32) -> (i32, i32) {
    %c0_i32 = arith.constant 0 : i32
    %c0_i32_0 = arith.constant 0 : i32
    %c0_i32_1 = arith.constant 0 : i32
    return %c0_i32, %c0_i32_0 : i32, i32
  }
  func.func @transform_21(%arg0: i32) -> (i32, i32) {
    %c0_i32 = arith.constant 0 : i32
    %c0_i32_0 = arith.constant 0 : i32
    %c0_i32_1 = arith.constant 0 : i32
    return %c0_i32, %c0_i32_0 : i32, i32
  }
  func.func @transform_22(%arg0: i32) -> (i32, i32) {
    %c0_i32 = arith.constant 0 : i32
    %c0_i32_0 = arith.constant 0 : i32
    %c0_i32_1 = arith.constant 0 : i32
    return %c0_i32, %c0_i32_0 : i32, i32
  }
  func.func @transform_23(%arg0: i32) -> (i32, i32) {
    %c0_i32 = arith.constant 0 : i32
    %c0_i32_0 = arith.constant 0 : i32
    return %arg0, %c0_i32 : i32, i32
  }
}

module attributes {stable_mosaic.version = 11 : i64} {
  func.func @_head_kernel(%arg0: memref<2x64xf32, #tpu.memory_space<vmem>>, %arg1: memref<64x512xf32, #tpu.memory_space<vmem>>, %arg2: memref<1x512xf32, #tpu.memory_space<vmem>>, %arg3: memref<512x256xf32, #tpu.memory_space<vmem>>, %arg4: memref<1x256xf32, #tpu.memory_space<vmem>>, %arg5: memref<256x2xf32, #tpu.memory_space<vmem>>, %arg6: memref<1x2xf32, #tpu.memory_space<vmem>>, %arg7: memref<2x256xf32, #tpu.memory_space<vmem>>, %arg8: memref<2x2xf32, #tpu.memory_space<vmem>>) attributes {dimension_semantics = [], scalar_prefetch = 0 : i64, scratch_operands = 0 : i64, tpu.core_type = #tpu.core_type<tc>} {
    %c0 = arith.constant 0 : index
    %c0_0 = arith.constant 0 : index
    %0 = vector.load %arg0[%c0, %c0_0] : memref<2x64xf32, #tpu.memory_space<vmem>>, vector<2x64xf32>
    %c0_1 = arith.constant 0 : index
    %c0_2 = arith.constant 0 : index
    %1 = vector.load %arg1[%c0_1, %c0_2] : memref<64x512xf32, #tpu.memory_space<vmem>>, vector<64x512xf32>
    %cst = arith.constant dense<0.000000e+00> : vector<2x512xf32>
    %2 = tpu.matmul %0, %1, %cst {dimension_numbers = #tpu.dot_dimension_numbers<[1], [0], [0], [1], [0, 0, 1, 1], [], []>} : vector<2x64xf32>, vector<64x512xf32>, vector<2x512xf32> -> vector<2x512xf32>
    %c0_3 = arith.constant 0 : index
    %c0_4 = arith.constant 0 : index
    %3 = vector.load %arg2[%c0_3, %c0_4] : memref<1x512xf32, #tpu.memory_space<vmem>>, vector<1x512xf32>
    %4 = vector.broadcast %3 : vector<1x512xf32> to vector<2x512xf32>
    %5 = arith.addf %2, %4 : vector<2x512xf32>
    %cst_5 = arith.constant 0.000000e+00 : f32
    %6 = vector.broadcast %cst_5 : f32 to vector<2x512xf32>
    %7 = arith.maximumf %5, %6 : vector<2x512xf32>
    %c0_6 = arith.constant 0 : index
    %c0_7 = arith.constant 0 : index
    %8 = vector.load %arg3[%c0_6, %c0_7] : memref<512x256xf32, #tpu.memory_space<vmem>>, vector<512x256xf32>
    %cst_8 = arith.constant dense<0.000000e+00> : vector<2x256xf32>
    %9 = tpu.matmul %7, %8, %cst_8 {dimension_numbers = #tpu.dot_dimension_numbers<[1], [0], [0], [1], [0, 0, 1, 1], [], []>} : vector<2x512xf32>, vector<512x256xf32>, vector<2x256xf32> -> vector<2x256xf32>
    %c0_9 = arith.constant 0 : index
    %c0_10 = arith.constant 0 : index
    %10 = vector.load %arg4[%c0_9, %c0_10] : memref<1x256xf32, #tpu.memory_space<vmem>>, vector<1x256xf32>
    %11 = vector.broadcast %10 : vector<1x256xf32> to vector<2x256xf32>
    %12 = arith.addf %9, %11 : vector<2x256xf32>
    %c0_11 = arith.constant 0 : index
    %c0_12 = arith.constant 0 : index
    %13 = vector.load %arg7[%c0_11, %c0_12] : memref<2x256xf32, #tpu.memory_space<vmem>>, vector<2x256xf32>
    tpu.vector_store %arg7[%c0_11, %c0_12], %12 {strides = array<i32>} : memref<2x256xf32, #tpu.memory_space<vmem>>, vector<2x256xf32>,
    %c0_13 = arith.constant 0 : index
    %c0_14 = arith.constant 0 : index
    %14 = vector.load %arg5[%c0_13, %c0_14] : memref<256x2xf32, #tpu.memory_space<vmem>>, vector<256x2xf32>
    %cst_15 = arith.constant dense<0.000000e+00> : vector<2x2xf32>
    %15 = tpu.matmul %12, %14, %cst_15 {dimension_numbers = #tpu.dot_dimension_numbers<[1], [0], [0], [1], [0, 0, 1, 1], [], []>} : vector<2x256xf32>, vector<256x2xf32>, vector<2x2xf32> -> vector<2x2xf32>
    %c0_16 = arith.constant 0 : index
    %c0_17 = arith.constant 0 : index
    %16 = vector.load %arg6[%c0_16, %c0_17] : memref<1x2xf32, #tpu.memory_space<vmem>>, vector<1x2xf32>
    %17 = vector.broadcast %16 : vector<1x2xf32> to vector<2x2xf32>
    %18 = arith.addf %15, %17 : vector<2x2xf32>
    %c0_18 = arith.constant 0 : index
    %c0_19 = arith.constant 0 : index
    %19 = vector.load %arg8[%c0_18, %c0_19] : memref<2x2xf32, #tpu.memory_space<vmem>>, vector<2x2xf32>
    tpu.vector_store %arg8[%c0_18, %c0_19], %18 {strides = array<i32>} : memref<2x2xf32, #tpu.memory_space<vmem>>, vector<2x2xf32>,
    return
  }
}

</mosaic_0001>

<llo_original>
// kernel: _lambda_.4
$region0: #{_lambda_.4}
  #allocation0 [shape = 'u32[]', space=smem, size = 0x4, offset = 0x4, fixed_abs, tag = 'smem constant byte address 0x4 - core index']
  #allocation1 [shape = 'u32[144,128]{1,0:T(1,128)}', space=vmem, size = 0x12000, scoped, tag = 'internal scratch']
  %s0 = inlined_call_operand.hbm [shape: bf16[16,128], index: 0, kind: input, shape index: {}]
  %s1 = inlined_call_operand.hbm [shape: f32[128,32], index: 1, kind: input, shape index: {}]
  %s2 = inlined_call_operand.hbm [shape: f32[1,32], index: 2, kind: input, shape index: {}]
  %s3 = inlined_call_operand.hbm [shape: bf16[16,32], index: 3, kind: output, shape index: {}]
  %s4 = sld [smem:[#allocation0]]
  $region34: #{_lambda_.4} parent=0
    _
  %s6 = ssub.s32 1, %s4
  %s7 = scalar_select 0, %s6, %s4
  $region1: #{_lambda_.4} parent=0
    #allocation2 [shape = 'u8[4096]{0}', space=vmem, size = 0x1000, scoped, tag = 'input window, operand 0, single buffered']
    #allocation3 [shape = 's32[1]{0}', space=sflag, size = 0x4, scoped, tag = 'scoped memory for _lambda_.4']
    #allocation4 [shape = 's32[1]{0}', space=sflag, size = 0x4, scoped, tag = 'scoped memory for _lambda_.4']
    #allocation5 [shape = 'u8[65536]{0}', space=vmem, size = 0x10000, scoped, tag = 'input window, operand 1, single buffered']
    #allocation6 [shape = 's32[1]{0}', space=sflag, size = 0x4, scoped, tag = 'scoped memory for _lambda_.4']
    #allocation7 [shape = 'u8[512]{0}', space=vmem, size = 0x400, scoped, tag = 'input window, operand 2, single buffered']
    #allocation8 [shape = 'u8[4096]{0}', space=vmem, size = 0x1000, scoped, tag = 'output window, operand 0, single buffered']
    %8 = vsyncpa [#allocation3], 0
    %9 = vsyncpa [#allocation6], 0
    %10 = vsyncpa [#allocation4], 0
    // Predicated region
    $region2: #{_lambda_.4} parent=1 // pred_check
      _
    $region3: #{_lambda_.4} parent=1 // pred_check_branch
      %12 = sbr.rel (0) target = $region5
    $region4: #{_lambda_.4} parent=1 // pred_region
      %s14 = ssub.s32 128, 128
      %15 = vsyncadd [#allocation3], %s14
      %s16 = sshll.u32 [#allocation2], 4
      %s17 = int_to_ptr.vmem [resolvable:$true] %s16
      %22 = dma.hbm_to_vmem [thread:$0]  %s0, 128, %s17, [#allocation3], 64, 64, 4
    $region5: #{_lambda_.4} parent=1 // pred_fallthru
      _
    // Predicated region
    $region6: #{_lambda_.4} parent=1 // pred_check
      _
    $region7: #{_lambda_.4} parent=1 // pred_check_branch
      %24 = sbr.rel (0) target = $region9
    $region8: #{_lambda_.4} parent=1 // pred_region
      %s26 = ssub.s32 2048, 2048
      %27 = vsyncadd [#allocation6], %s26
      %s28 = sshll.u32 [#allocation5], 4
      %s29 = int_to_ptr.vmem [resolvable:$true] %s28
      %34 = dma.hbm_to_vmem [thread:$0]  %s1, 2048, %s29, [#allocation6], 128, 128, 8
    $region9: #{_lambda_.4} parent=1 // pred_fallthru
      _
    // Predicated region
    $region10: #{_lambda_.4} parent=1 // pred_check
      _
    $region11: #{_lambda_.4} parent=1 // pred_check_branch
      %36 = sbr.rel (0) target = $region13
    $region12: #{_lambda_.4} parent=1 // pred_region
      %s38 = ssub.s32 16, 16
      %39 = vsyncadd [#allocation6], %s38
      %s41 = sshll.u32 [#allocation7], 4
      %s42 = int_to_ptr.vmem [resolvable:$true] %s41
      %44 = dma.hbm_to_vmem [thread:$0]  %s2, 16, %s42, [#allocation6]
    $region13: #{_lambda_.4} parent=1 // pred_fallthru
      _
    // Predicated region
    $region14: #{_lambda_.4} parent=1 // pred_check
      _
    $region15: #{_lambda_.4} parent=1 // pred_check_branch
      %46 = sbr.rel (0) target = $region17
    $region16: #{_lambda_.4} parent=1 // pred_region
      %47 = dma.done [#allocation3], 128
    $region17: #{_lambda_.4} parent=1 // pred_fallthru
      _
    // Predicated region
    $region18: #{_lambda_.4} parent=1 // pred_check
      _
    $region19: #{_lambda_.4} parent=1 // pred_check_branch
      %49 = sbr.rel (0) target = $region21
    $region20: #{_lambda_.4} parent=1 // pred_region
      %50 = dma.done [#allocation6], 2048
    $region21: #{_lambda_.4} parent=1 // pred_fallthru
      _
    // Predicated region
    $region22: #{_lambda_.4} parent=1 // pred_check
      _
    $region23: #{_lambda_.4} parent=1 // pred_check_branch
      %52 = sbr.rel (0) target = $region25
    $region24: #{_lambda_.4} parent=1 // pred_region
      %53 = dma.done [#allocation6], 16
    $region25: #{_lambda_.4} parent=1 // pred_fallthru
      _
    %v54 = vld [vmem:[#allocation2] sm:$0xf]
    %v55 = vld [vmem:[#allocation2 + $0x4] sm:$0xf]
    %v56 = vunpack.c.l.bf16 %v54
    %v57 = vunpack.c.l.bf16 %v55
    %v58 = vld [vmem:[#allocation5] sm:$0xff]
    %v59 = vld [vmem:[#allocation5 + $0x8] sm:$0xff]
    %v60 = vld [vmem:[#allocation5 + $0x10] sm:$0xff]
    %v61 = vld [vmem:[#allocation5 + $0x18] sm:$0xff]
    %v62 = vld [vmem:[#allocation5 + $0x20] sm:$0xff]
    %v63 = vld [vmem:[#allocation5 + $0x28] sm:$0xff]
    %v64 = vld [vmem:[#allocation5 + $0x30] sm:$0xff]
    %v65 = vld [vmem:[#allocation5 + $0x38] sm:$0xff]
    %v66 = vld [vmem:[#allocation5 + $0x40] sm:$0xff]
    %v67 = vld [vmem:[#allocation5 + $0x48] sm:$0xff]
    %v68 = vld [vmem:[#allocation5 + $0x50] sm:$0xff]
    %v69 = vld [vmem:[#allocation5 + $0x58] sm:$0xff]
    %v70 = vld [vmem:[#allocation5 + $0x60] sm:$0xff]
    %v71 = vld [vmem:[#allocation5 + $0x68] sm:$0xff]
    %v72 = vld [vmem:[#allocation5 + $0x70] sm:$0xff]
    %v73 = vld [vmem:[#allocation5 + $0x78] sm:$0xff]
    %v74 = vld [vmem:[#allocation7] sm:$0x1]
    %v76 = vlaneseq
    %v77 = vshrl.u32 %v76, 7
    %v78 = vsub.s32 0, %v77
    %v79 = vrot.slane %v74, %v78
    %81 = vmatprep.subr.mxu0 0.0
    %82 = vmatpush1.msra.mxu0 %v58
    %83 = vmatprep.subr.mxu0 0.0
    %84 = vmatpush1.msra.mxu0 %v59
    %85 = vmatprep.subr.mxu0 0.0
    %86 = vmatpush1.msra.mxu0 %v60
    %87 = vmatprep.subr.mxu0 0.0
    %88 = vmatpush1.msra.mxu0 %v61
    %89 = vmatprep.subr.mxu0 0.0
    %90 = vmatpush1.msra.mxu0 %v62
    %91 = vmatprep.subr.mxu0 0.0
    %92 = vmatpush1.msra.mxu0 %v63
    %93 = vmatprep.subr.mxu0 0.0
    %94 = vmatpush1.msra.mxu0 %v64
    %95 = vmatprep.subr.mxu0 0.0
    %96 = vmatpush1.msra.mxu0 %v65
    %97 = vmatprep.subr.mxu0 0.0
    %98 = vmatpush1.msra.mxu0 %v66
    %99 = vmatprep.subr.mxu0 0.0
    %100 = vmatpush1.msra.mxu0 %v67
    %101 = vmatprep.subr.mxu0 0.0
    %102 = vmatpush1.msra.mxu0 %v68
    %103 = vmatprep.subr.mxu0 0.0
    %104 = vmatpush1.msra.mxu0 %v69
    %105 = vmatprep.subr.mxu0 0.0
    %106 = vmatpush1.msra.mxu0 %v70
    %107 = vmatprep.subr.mxu0 0.0
    %108 = vmatpush1.msra.mxu0 %v71
    %109 = vmatprep.subr.mxu0 0.0
    %110 = vmatpush1.msra.mxu0 %v72
    %111 = vmatprep.subr.mxu0 0.0
    %112 = vmatpush1.msra.mxu0 %v73
    %113 = vmatprep.subr.mxu0 0.0
    %114 = vmatpush1.msra.mxu0 0.0
    %115 = vmatprep.subr.mxu0 0.0
    %116 = vmatpush1.msra.mxu0 0.0
    %117 = vmatprep.subr.mxu0 0.0
    %118 = vmatpush1.msra.mxu0 0.0
    %119 = vmatprep.subr.mxu0 0.0
    %120 = vmatpush1.msra.mxu0 0.0
    %121 = vmatprep.subr.mxu0 0.0
    %122 = vmatpush1.msra.mxu0 0.0
    %123 = vmatprep.subr.mxu0 0.0
    %124 = vmatpush1.msra.mxu0 0.0
    %125 = vmatprep.subr.mxu0 0.0
    %126 = vmatpush1.msra.mxu0 0.0
    %127 = vmatprep.subr.mxu0 0.0
    %128 = vmatpush1.msra.mxu0 0.0
    %129 = vmatprep.subr.mxu0 0.0
    %130 = vmatpush1.msra.mxu0 0.0
    %131 = vmatprep.subr.mxu0 0.0
    %132 = vmatpush1.msra.mxu0 0.0
    %133 = vmatprep.subr.mxu0 0.0
    %134 = vmatpush1.msra.mxu0 0.0
    %135 = vmatprep.subr.mxu0 0.0
    %136 = vmatpush1.msra.mxu0 0.0
    %137 = vmatprep.subr.mxu0 0.0
    %138 = vmatpush1.msra.mxu0 0.0
    %139 = vmatprep.subr.mxu0 0.0
    %140 = vmatpush1.msra.mxu0 0.0
    %141 = vmatprep.subr.mxu0 0.0
    %142 = vmatpush1.msra.mxu0 0.0
    %143 = vmatprep.subr.mxu0 0.0
    %144 = vmatpush1.msra.mxu0 0.0
    %145 = vmatprep.mubr.f32.mxu0 0.0
    %146 = vmatmul.mubr.f32.gmra.mrb[0].mxu0 %v56
    %v147 = vpop.f32.mrb[0].mxu0
    %v148 = vadd.f32 %v79, %v147
    %v149 = vpop.f32.mrb[0].mxu0
    %150 = vmatprep.mubr.f32.mxu0 0.0
    %151 = vmatmul.mubr.f32.gmra.mrb[0].mxu0 %v57
    %v152 = vpop.f32.mrb[0].mxu0
    %v153 = vadd.f32 %v79, %v152
    %v154 = vpop.f32.mrb[0].mxu0
    %155 = vdwg.mxu0
    %v156 = vpack.c.bf16 %v153, %v148
    %v158 = vunpack.c.l.b16 %v156
    %v159 = vunpack.c.h.b16 %v156
    %v160 = vpack.c.b16 %v158, %v158
    %v161 = vpack.c.b16 %v159, %v159
    %vm164 = vcmask 257024
    %165 = vst.msk [vmem:[#allocation8] sm:$0xf] %vm164, %v160
    %166 = vst.msk [vmem:[#allocation8 + $0x4] sm:$0xf] %vm164, %v161
    // Predicated region
    $region26: #{_lambda_.4} parent=1 // pred_check
      _
    $region27: #{_lambda_.4} parent=1 // pred_check_branch
      %168 = sbr.rel (0) target = $region29
    $region28: #{_lambda_.4} parent=1 // pred_region
      %s170 = ssub.s32 128, 128
      %171 = vsyncadd [#allocation4], %s170
      %s172 = sshll.u32 [#allocation8], 4
      %s173 = int_to_ptr.vmem [resolvable:$true] %s172
      %178 = dma.vmem_to_hbm [thread:$0]  %s173, 128, %s3, [#allocation4], 64, 64, 4
    $region29: #{_lambda_.4} parent=1 // pred_fallthru
      _
    // Predicated region
    $region30: #{_lambda_.4} parent=1 // pred_check
      _
    $region31: #{_lambda_.4} parent=1 // pred_check_branch
      %180 = sbr.rel (0) target = $region33
    $region32: #{_lambda_.4} parent=1 // pred_region
      %181 = dma.done [#allocation4], 128
    $region33: #{_lambda_.4} parent=1 // pred_fallthru
      _
    %182 = vsyncpa [#allocation3], 1
    %183 = vsyncpa [#allocation6], 1
    %184 = vsyncpa [#allocation4], 1

// kernel: _lambda_.5
$region0: #{_lambda_.5}
  #allocation0 [shape = 'u32[]', space=smem, size = 0x4, offset = 0x4, fixed_abs, tag = 'smem constant byte address 0x4 - core index']
  #allocation1 [shape = 'u32[144,128]{1,0:T(1,128)}', space=vmem, size = 0x12000, scoped, tag = 'internal scratch']
  %s0 = inlined_call_operand.hbm [shape: bf16[16,32], index: 0, kind: input, shape index: {}]
  %s1 = inlined_call_operand.hbm [shape: f32[32,96], index: 1, kind: input, shape index: {}]
  %s2 = inlined_call_operand.hbm [shape: f32[1,96], index: 2, kind: input, shape index: {}]
  %s3 = inlined_call_operand.hbm [shape: f32[32,32], index: 3, kind: input, shape index: {}, may-alias: {3,14}]
  %s4 = inlined_call_operand.hbm [shape: f32[32,32], index: 4, kind: input, shape index: {}]
  %s5 = inlined_call_operand.hbm [shape: f32[1,32], index: 5, kind: input, shape index: {}]
  %s6 = inlined_call_operand.hbm [shape: f32[32,64], index: 6, kind: input, shape index: {}]
  %s7 = inlined_call_operand.hbm [shape: f32[1,64], index: 7, kind: input, shape index: {}]
  %s8 = inlined_call_operand.hbm [shape: f32[64,32], index: 8, kind: input, shape index: {}]
  %s9 = inlined_call_operand.hbm [shape: f32[1,32], index: 9, kind: input, shape index: {}]
  %s10 = inlined_call_operand.hbm [shape: f32[32,32], index: 10, kind: input, shape index: {}]
  %s11 = inlined_call_operand.hbm [shape: f32[1,32], index: 11, kind: input, shape index: {}]
  %s12 = inlined_call_operand.hbm [shape: f32[32,96], index: 12, kind: input, shape index: {}]
  %s13 = inlined_call_operand.hbm [shape: f32[1,96], index: 13, kind: input, shape index: {}]
  %s14 = inlined_call_operand.hbm [shape: f32[32,32], index: 14, kind: input, shape index: {}, may-alias: {3,14}]
  %s15 = inlined_call_operand.hbm [shape: f32[32,32], index: 15, kind: input, shape index: {}]
  %s16 = inlined_call_operand.hbm [shape: f32[1,32], index: 16, kind: input, shape index: {}]
  %s17 = inlined_call_operand.hbm [shape: f32[32,64], index: 17, kind: input, shape index: {}]
  %s18 = inlined_call_operand.hbm [shape: f32[1,64], index: 18, kind: input, shape index: {}]
  %s19 = inlined_call_operand.hbm [shape: f32[64,32], index: 19, kind: input, shape index: {}]
  %s20 = inlined_call_operand.hbm [shape: f32[1,32], index: 20, kind: input, shape index: {}]
  %s21 = inlined_call_operand.hbm [shape: f32[32,32], index: 21, kind: input, shape index: {}]
  %s22 = inlined_call_operand.hbm [shape: f32[1,32], index: 22, kind: input, shape index: {}]
  %s23 = inlined_call_operand.hbm [shape: bf16[16,32], index: 23, kind: output, shape index: {}]
  %s24 = sld [smem:[#allocation0]]
  $region194: #{_lambda_.5} parent=0
    _
  %s26 = ssub.s32 1, %s24
  %s27 = scalar_select 0, %s26, %s24
  $region1: #{_lambda_.5} parent=0
    #allocation2 [shape = 'u8[4096]{0}', space=vmem, size = 0x1000, scoped, tag = 'input window, operand 0, single buffered']
    #allocation3 [shape = 's32[1]{0}', space=sflag, size = 0x4, scoped, tag = 'scoped memory for _lambda_.5']
    #allocation4 [shape = 's32[1]{0}', space=sflag, size = 0x4, scoped, tag = 'scoped memory for _lambda_.5']
    #allocation5 [shape = 'u8[16384]{0}', space=vmem, size = 0x4000, scoped, tag = 'input window, operand 1, single buffered']
    #allocation6 [shape = 's32[1]{0}', space=sflag, size = 0x4, scoped, tag = 'scoped memory for _lambda_.5']
    #allocation7 [shape = 'u8[512]{0}', space=vmem, size = 0x400, scoped, tag = 'input window, operand 2, single buffered']
    #allocation8 [shape = 'u8[16384]{0}', space=vmem, size = 0x4000, scoped, tag = 'input window, operand 3, single buffered']
    #allocation9 [shape = 's32[1]{0}', space=sflag, size = 0x4, scoped, tag = 'scoped memory for _lambda_.5']
    #allocation10 [shape = 'u8[16384]{0}', space=vmem, size = 0x4000, scoped, tag = 'input window, operand 4, single buffered']
    #allocation11 [shape = 'u8[512]{0}', space=vmem, size = 0x400, scoped, tag = 'input window, operand 5, single buffered']
    #allocation12 [shape = 's32[1]{0}', space=sflag, size = 0x4, scoped, tag = 'scoped memory for _lambda_.5']
    #allocation13 [shape = 'u8[16384]{0}', space=vmem, size = 0x4000, scoped, tag = 'input window, operand 6, single buffered']
    #allocation14 [shape = 'u8[512]{0}', space=vmem, size = 0x400, scoped, tag = 'input window, operand 7, single buffered']
    #allocation15 [shape = 's32[1]{0}', space=sflag, size = 0x4, scoped, tag = 'scoped memory for _lambda_.5']
    #allocation16 [shape = 'u8[32768]{0}', space=vmem, size = 0x8000, scoped, tag = 'input window, operand 8, single buffered']
    #allocation17 [shape = 'u8[512]{0}', space=vmem, size = 0x400, scoped, tag = 'input window, operand 9, single buffered']
    #allocation18 [shape = 's32[1]{0}', space=sflag, size = 0x4, scoped, tag = 'scoped memory for _lambda_.5']
    #allocation19 [shape = 'u8[16384]{0}', space=vmem, size = 0x4000, scoped, tag = 'input window, operand 10, single buffered']
    #allocation20 [shape = 'u8[512]{0}', space=vmem, size = 0x400, scoped, tag = 'input window, operand 11, single buffered']
    #allocation21 [shape = 's32[1]{0}', space=sflag, size = 0x4, scoped, tag = 'scoped memory for _lambda_.5']
    #allocation22 [shape = 'u8[16384]{0}', space=vmem, size = 0x4000, scoped, tag = 'input window, operand 12, single buffered']
    #allocation23 [shape = 'u8[512]{0}', space=vmem, size = 0x400, scoped, tag = 'input window, operand 13, single buffered']
    #allocation24 [shape = 's32[1]{0}', space=sflag, size = 0x4, scoped, tag = 'scoped memory for _lambda_.5']
    #allocation25 [shape = 'u8[16384]{0}', space=vmem, size = 0x4000, scoped, tag = 'input window, operand 14, single buffered']
    #allocation26 [shape = 'u8[16384]{0}', space=vmem, size = 0x4000, scoped, tag = 'input window, operand 15, single buffered']
    #allocation27 [shape = 's32[1]{0}', space=sflag, size = 0x4, scoped, tag = 'scoped memory for _lambda_.5']
    #allocation28 [shape = 'u8[512]{0}', space=vmem, size = 0x400, scoped, tag = 'input window, operand 16, single buffered']
    #allocation29 [shape = 'u8[16384]{0}', space=vmem, size = 0x4000, scoped, tag = 'input window, operand 17, single buffered']
    #allocation30 [shape = 's32[1]{0}', space=sflag, size = 0x4, scoped, tag = 'scoped memory for _lambda_.5']
    #allocation31 [shape = 'u8[512]{0}', space=vmem, size = 0x400, scoped, tag = 'input window, operand 18, single buffered']
    #allocation32 [shape = 'u8[32768]{0}', space=vmem, size = 0x8000, scoped, tag = 'input window, operand 19, single buffered']
    #allocation33 [shape = 's32[1]{0}', space=sflag, size = 0x4, scoped, tag = 'scoped memory for _lambda_.5']
    #allocation34 [shape = 'u8[512]{0}', space=vmem, size = 0x400, scoped, tag = 'input window, operand 20, single buffered']
    #allocation35 [shape = 'u8[16384]{0}', space=vmem, size = 0x4000, scoped, tag = 'input window, operand 21, single buffered']
    #allocation36 [shape = 's32[1]{0}', space=sflag, size = 0x4, scoped, tag = 'scoped memory for _lambda_.5']
    #allocation37 [shape = 'u8[512]{0}', space=vmem, size = 0x400, scoped, tag = 'input window, operand 22, single buffered']
    #allocation38 [shape = 'u8[4096]{0}', space=vmem, size = 0x1000, scoped, tag = 'output window, operand 0, single buffered']
    %28 = vsyncpa [#allocation3], 0
    %29 = vsyncpa [#allocation6], 0
    %30 = vsyncpa [#allocation9], 0
    %31 = vsyncpa [#allocation12], 0
    %32 = vsyncpa [#allocation15], 0
    %33 = vsyncpa [#allocation18], 0
    %34 = vsyncpa [#allocation21], 0
    %35 = vsyncpa [#allocation24], 0
    %36 = vsyncpa [#allocation27], 0
    %37 = vsyncpa [#allocation30], 0
    %38 = vsyncpa [#allocation33], 0
    %39 = vsyncpa [#allocation36], 0
    %40 = vsyncpa [#allocation4], 0
    // Predicated region
    $region2: #{_lambda_.5} parent=1 // pred_check
      _
    $region3: #{_lambda_.5} parent=1 // pred_check_branch
      %42 = sbr.rel (0) target = $region5
    $region4: #{_lambda_.5} parent=1 // pred_region
      %s44 = ssub.s32 128, 128
      %45 = vsyncadd [#allocation3], %s44
      %s46 = sshll.u32 [#allocation2], 4
      %s47 = int_to_ptr.vmem [resolvable:$true] %s46
      %52 = dma.hbm_to_vmem [thread:$0]  %s0, 128, %s47, [#allocation3], 64, 64, 4
    $region5: #{_lambda_.5} parent=1 // pred_fallthru
      _
    // Predicated region
    $region6: #{_lambda_.5} parent=1 // pred_check
      _
    $region7: #{_lambda_.5} parent=1 // pred_check_branch
      %54 = sbr.rel (0) target = $region9
    $region8: #{_lambda_.5} parent=1 // pred_region
      %s56 = ssub.s32 512, 512
      %57 = vsyncadd [#allocation6], %s56
      %s58 = sshll.u32 [#allocation5], 4
      %s59 = int_to_ptr.vmem [resolvable:$true] %s58
      %64 = dma.hbm_to_vmem [thread:$0]  %s1, 512, %s59, [#allocation6], 128, 128, 8
    $region9: #{_lambda_.5} parent=1 // pred_fallthru
      _
    // Predicated region
    $region10: #{_lambda_.5} parent=1 // pred_check
      _
    $region11: #{_lambda_.5} parent=1 // pred_check_branch
      %66 = sbr.rel (0) target = $region13
    $region12: #{_lambda_.5} parent=1 // pred_region
      %s68 = ssub.s32 16, 16
      %69 = vsyncadd [#allocation6], %s68
      %s71 = sshll.u32 [#allocation7], 4
      %s72 = int_to_ptr.vmem [resolvable:$true] %s71
      %74 = dma.hbm_to_vmem [thread:$0]  %s2, 16, %s72, [#allocation6]
    $region13: #{_lambda_.5} parent=1 // pred_fallthru
      _
    // Predicated region
    $region14: #{_lambda_.5} parent=1 // pred_check
      _
    $region15: #{_lambda_.5} parent=1 // pred_check_branch
      %76 = sbr.rel (0) target = $region17
    $region16: #{_lambda_.5} parent=1 // pred_region
      %s78 = ssub.s32 512, 512
      %79 = vsyncadd [#allocation9], %s78
      %s80 = sshll.u32 [#allocation8], 4
      %s81 = int_to_ptr.vmem [resolvable:$true] %s80
      %86 = dma.hbm_to_vmem [thread:$0]  %s3, 512, %s81, [#allocation9], 128, 128, 8
    $region17: #{_lambda_.5} parent=1 // pred_fallthru
      _
    // Predicated region
    $region18: #{_lambda_.5} parent=1 // pred_check
      _
    $region19: #{_lambda_.5} parent=1 // pred_check_branch
      %88 = sbr.rel (0) target = $region21
    $region20: #{_lambda_.5} parent=1 // pred_region
      %s90 = ssub.s32 512, 512
      %91 = vsyncadd [#allocation9], %s90
      %s92 = sshll.u32 [#allocation10], 4
      %s93 = int_to_ptr.vmem [resolvable:$true] %s92
      %98 = dma.hbm_to_vmem [thread:$0]  %s4, 512, %s93, [#allocation9], 128, 128, 8
    $region21: #{_lambda_.5} parent=1 // pred_fallthru
      _
    // Predicated region
    $region22: #{_lambda_.5} parent=1 // pred_check
      _
    $region23: #{_lambda_.5} parent=1 // pred_check_branch
      %100 = sbr.rel (0) target = $region25
    $region24: #{_lambda_.5} parent=1 // pred_region
      %s102 = ssub.s32 16, 16
      %103 = vsyncadd [#allocation12], %s102
      %s105 = sshll.u32 [#allocation11], 4
      %s106 = int_to_ptr.vmem [resolvable:$true] %s105
      %108 = dma.hbm_to_vmem [thread:$0]  %s5, 16, %s106, [#allocation12]
    $region25: #{_lambda_.5} parent=1 // pred_fallthru
      _
    // Predicated region
    $region26: #{_lambda_.5} parent=1 // pred_check
      _
    $region27: #{_lambda_.5} parent=1 // pred_check_branch
      %110 = sbr.rel (0) target = $region29
    $region28: #{_lambda_.5} parent=1 // pred_region
      %s112 = ssub.s32 512, 512
      %113 = vsyncadd [#allocation12], %s112
      %s114 = sshll.u32 [#allocation13], 4
      %s115 = int_to_ptr.vmem [resolvable:$true] %s114
      %120 = dma.hbm_to_vmem [thread:$0]  %s6, 512, %s115, [#allocation12], 128, 128, 8
    $region29: #{_lambda_.5} parent=1 // pred_fallthru
      _
    // Predicated region
    $region30: #{_lambda_.5} parent=1 // pred_check
      _
    $region31: #{_lambda_.5} parent=1 // pred_check_branch
      %122 = sbr.rel (0) target = $region33
    $region32: #{_lambda_.5} parent=1 // pred_region
      %s124 = ssub.s32 16, 16
      %125 = vsyncadd [#allocation15], %s124
      %s127 = sshll.u32 [#allocation14], 4
      %s128 = int_to_ptr.vmem [resolvable:$true] %s127
      %130 = dma.hbm_to_vmem [thread:$0]  %s7, 16, %s128, [#allocation15]
    $region33: #{_lambda_.5} parent=1 // pred_fallthru
      _
    // Predicated region
    $region34: #{_lambda_.5} parent=1 // pred_check
      _
    $region35: #{_lambda_.5} parent=1 // pred_check_branch
      %132 = sbr.rel (0) target = $region37
    $region36: #{_lambda_.5} parent=1 // pred_region
      %s134 = ssub.s32 1024, 1024
      %135 = vsyncadd [#allocation15], %s134
      %s136 = sshll.u32 [#allocation16], 4
      %s137 = int_to_ptr.vmem [resolvable:$true] %s136
      %142 = dma.hbm_to_vmem [thread:$0]  %s8, 1024, %s137, [#allocation15], 128, 128, 8
    $region37: #{_lambda_.5} parent=1 // pred_fallthru
      _
    // Predicated region
    $region38: #{_lambda_.5} parent=1 // pred_check
      _
    $region39: #{_lambda_.5} parent=1 // pred_check_branch
      %144 = sbr.rel (0) target = $region41
    $region40: #{_lambda_.5} parent=1 // pred_region
      %s146 = ssub.s32 16, 16
      %147 = vsyncadd [#allocation18], %s146
      %s149 = sshll.u32 [#allocation17], 4
      %s150 = int_to_ptr.vmem [resolvable:$true] %s149
      %152 = dma.hbm_to_vmem [thread:$0]  %s9, 16, %s150, [#allocation18]
    $region41: #{_lambda_.5} parent=1 // pred_fallthru
      _
    // Predicated region
    $region42: #{_lambda_.5} parent=1 // pred_check
      _
    $region43: #{_lambda_.5} parent=1 // pred_check_branch
      %154 = sbr.rel (0) target = $region45
    $region44: #{_lambda_.5} parent=1 // pred_region
      %s156 = ssub.s32 512, 512
      %157 = vsyncadd [#allocation18], %s156
      %s158 = sshll.u32 [#allocation19], 4
      %s159 = int_to_ptr.vmem [resolvable:$true] %s158
      %164 = dma.hbm_to_vmem [thread:$0]  %s10, 512, %s159, [#allocation18], 128, 128, 8
    $region45: #{_lambda_.5} parent=1 // pred_fallthru
      _
    // Predicated region
    $region46: #{_lambda_.5} parent=1 // pred_check
      _
    $region47: #{_lambda_.5} parent=1 // pred_check_branch
      %166 = sbr.rel (0) target = $region49
    $region48: #{_lambda_.5} parent=1 // pred_region
      %s168 = ssub.s32 16, 16
      %169 = vsyncadd [#allocation21], %s168
      %s171 = sshll.u32 [#allocation20], 4
      %s172 = int_to_ptr.vmem [resolvable:$true] %s171
      %174 = dma.hbm_to_vmem [thread:$0]  %s11, 16, %s172, [#allocation21]
    $region49: #{_lambda_.5} parent=1 // pred_fallthru
      _
    // Predicated region
    $region50: #{_lambda_.5} parent=1 // pred_check
      _
    $region51: #{_lambda_.5} parent=1 // pred_check_branch
      %176 = sbr.rel (0) target = $region53
    $region52: #{_lambda_.5} parent=1 // pred_region
      %s178 = ssub.s32 512, 512
      %179 = vsyncadd [#allocation21], %s178
      %s180 = sshll.u32 [#allocation22], 4
      %s181 = int_to_ptr.vmem [resolvable:$true] %s180
      %186 = dma.hbm_to_vmem [thread:$0]  %s12, 512, %s181, [#allocation21], 128, 128, 8
    $region53: #{_lambda_.5} parent=1 // pred_fallthru
      _
    // Predicated region
    $region54: #{_lambda_.5} parent=1 // pred_check
      _
    $region55: #{_lambda_.5} parent=1 // pred_check_branch
      %188 = sbr.rel (0) target = $region57
    $region56: #{_lambda_.5} parent=1 // pred_region
      %s190 = ssub.s32 16, 16
      %191 = vsyncadd [#allocation24], %s190
      %s193 = sshll.u32 [#allocation23], 4
      %s194 = int_to_ptr.vmem [resolvable:$true] %s193
      %196 = dma.hbm_to_vmem [thread:$0]  %s13, 16, %s194, [#allocation24]
    $region57: #{_lambda_.5} parent=1 // pred_fallthru
      _
    // Predicated region
    $region58: #{_lambda_.5} parent=1 // pred_check
      _
    $region59: #{_lambda_.5} parent=1 // pred_check_branch
      %198 = sbr.rel (0) target = $region61
    $region60: #{_lambda_.5} parent=1 // pred_region
      %s200 = ssub.s32 512, 512
      %201 = vsyncadd [#allocation24], %s200
      %s202 = sshll.u32 [#allocation25], 4
      %s203 = int_to_ptr.vmem [resolvable:$true] %s202
      %208 = dma.hbm_to_vmem [thread:$0]  %s14, 512, %s203, [#allocation24], 128, 128, 8
    $region61: #{_lambda_.5} parent=1 // pred_fallthru
      _
    // Predicated region
    $region62: #{_lambda_.5} parent=1 // pred_check
      _
    $region63: #{_lambda_.5} parent=1 // pred_check_branch
      %210 = sbr.rel (0) target = $region65
    $region64: #{_lambda_.5} parent=1 // pred_region
      %s212 = ssub.s32 512, 512
      %213 = vsyncadd [#allocation27], %s212
      %s214 = sshll.u32 [#allocation26], 4
      %s215 = int_to_ptr.vmem [resolvable:$true] %s214
      %220 = dma.hbm_to_vmem [thread:$0]  %s15, 512, %s215, [#allocation27], 128, 128, 8
    $region65: #{_lambda_.5} parent=1 // pred_fallthru
      _
    // Predicated region
    $region66: #{_lambda_.5} parent=1 // pred_check
      _
    $region67: #{_lambda_.5} parent=1 // pred_check_branch
      %222 = sbr.rel (0) target = $region69
    $region68: #{_lambda_.5} parent=1 // pred_region
      %s224 = ssub.s32 16, 16
      %225 = vsyncadd [#allocation27], %s224
      %s227 = sshll.u32 [#allocation28], 4
      %s228 = int_to_ptr.vmem [resolvable:$true] %s227
      %230 = dma.hbm_to_vmem [thread:$0]  %s16, 16, %s228, [#allocation27]
    $region69: #{_lambda_.5} parent=1 // pred_fallthru
      _
    // Predicated region
    $region70: #{_lambda_.5} parent=1 // pred_check
      _
    $region71: #{_lambda_.5} parent=1 // pred_check_branch
      %232 = sbr.rel (0) target = $region73
    $region72: #{_lambda_.5} parent=1 // pred_region
      %s234 = ssub.s32 512, 512
      %235 = vsyncadd [#allocation30], %s234
      %s236 = sshll.u32 [#allocation29], 4
      %s237 = int_to_ptr.vmem [resolvable:$true] %s236
      %242 = dma.hbm_to_vmem [thread:$0]  %s17, 512, %s237, [#allocation30], 128, 128, 8
    $region73: #{_lambda_.5} parent=1 // pred_fallthru
      _
    // Predicated region
    $region74: #{_lambda_.5} parent=1 // pred_check
      _
    $region75: #{_lambda_.5} parent=1 // pred_check_branch
      %244 = sbr.rel (0) target = $region77
    $region76: #{_lambda_.5} parent=1 // pred_region
      %s246 = ssub.s32 16, 16
      %247 = vsyncadd [#allocation30], %s246
      %s249 = sshll.u32 [#allocation31], 4
      %s250 = int_to_ptr.vmem [resolvable:$true] %s249
      %252 = dma.hbm_to_vmem [thread:$0]  %s18, 16, %s250, [#allocation30]
    $region77: #{_lambda_.5} parent=1 // pred_fallthru
      _
    // Predicated region
    $region78: #{_lambda_.5} parent=1 // pred_check
      _
    $region79: #{_lambda_.5} parent=1 // pred_check_branch
      %254 = sbr.rel (0) target = $region81
    $region80: #{_lambda_.5} parent=1 // pred_region
      %s256 = ssub.s32 1024, 1024
      %257 = vsyncadd [#allocation33], %s256
      %s258 = sshll.u32 [#allocation32], 4
      %s259 = int_to_ptr.vmem [resolvable:$true] %s258
      %264 = dma.hbm_to_vmem [thread:$0]  %s19, 1024, %s259, [#allocation33], 128, 128, 8
    $region81: #{_lambda_.5} parent=1 // pred_fallthru
      _
    // Predicated region
    $region82: #{_lambda_.5} parent=1 // pred_check
      _
    $region83: #{_lambda_.5} parent=1 // pred_check_branch
      %266 = sbr.rel (0) target = $region85
    $region84: #{_lambda_.5} parent=1 // pred_region
      %s268 = ssub.s32 16, 16
      %269 = vsyncadd [#allocation33], %s268
      %s271 = sshll.u32 [#allocation34], 4
      %s272 = int_to_ptr.vmem [resolvable:$true] %s271
      %274 = dma.hbm_to_vmem [thread:$0]  %s20, 16, %s272, [#allocation33]
    $region85: #{_lambda_.5} parent=1 // pred_fallthru
      _
    // Predicated region
    $region86: #{_lambda_.5} parent=1 // pred_check
      _
    $region87: #{_lambda_.5} parent=1 // pred_check_branch
      %276 = sbr.rel (0) target = $region89
    $region88: #{_lambda_.5} parent=1 // pred_region
      %s278 = ssub.s32 512, 512
      %279 = vsyncadd [#allocation36], %s278
      %s280 = sshll.u32 [#allocation35], 4
      %s281 = int_to_ptr.vmem [resolvable:$true] %s280
      %286 = dma.hbm_to_vmem [thread:$0]  %s21, 512, %s281, [#allocation36], 128, 128, 8
    $region89: #{_lambda_.5} parent=1 // pred_fallthru
      _
    // Predicated region
    $region90: #{_lambda_.5} parent=1 // pred_check
      _
    $region91: #{_lambda_.5} parent=1 // pred_check_branch
      %288 = sbr.rel (0) target = $region93
    $region92: #{_lambda_.5} parent=1 // pred_region
      %s290 = ssub.s32 16, 16
      %291 = vsyncadd [#allocation36], %s290
      %s293 = sshll.u32 [#allocation37], 4
      %s294 = int_to_ptr.vmem [resolvable:$true] %s293
      %296 = dma.hbm_to_vmem [thread:$0]  %s22, 16, %s294, [#allocation36]
    $region93: #{_lambda_.5} parent=1 // pred_fallthru
      _
    // Predicated region
    $region94: #{_lambda_.5} parent=1 // pred_check
      _
    $region95: #{_lambda_.5} parent=1 // pred_check_branch
      %298 = sbr.rel (0) target = $region97
    $region96: #{_lambda_.5} parent=1 // pred_region
      %299 = dma.done [#allocation3], 128
    $region97: #{_lambda_.5} parent=1 // pred_fallthru
      _
    // Predicated region
    $region98: #{_lambda_.5} parent=1 // pred_check
      _
    $region99: #{_lambda_.5} parent=1 // pred_check_branch
      %301 = sbr.rel (0) target = $region101
    $region100: #{_lambda_.5} parent=1 // pred_region
      %302 = dma.done [#allocation6], 512
    $region101: #{_lambda_.5} parent=1 // pred_fallthru
      _
    // Predicated region
    $region102: #{_lambda_.5} parent=1 // pred_check
      _
    $region103: #{_lambda_.5} parent=1 // pred_check_branch
      %304 = sbr.rel (0) target = $region105
    $region104: #{_lambda_.5} parent=1 // pred_region
      %305 = dma.done [#allocation6], 16
    $region105: #{_lambda_.5} parent=1 // pred_fallthru
      _
    // Predicated region
    $region106: #{_lambda_.5} parent=1 // pred_check
      _
    $region107: #{_lambda_.5} parent=1 // pred_check_branch
      %307 = sbr.rel (0) target = $region109
    $region108: #{_lambda_.5} parent=1 // pred_region
      %308 = dma.done [#allocation9], 512
    $region109: #{_lambda_.5} parent=1 // pred_fallthru
      _
    // Predicated region
    $region110: #{_lambda_.5} parent=1 // pred_check
      _
    $region111: #{_lambda_.5} parent=1 // pred_check_branch
      %310 = sbr.rel (0) target = $region113
    $region112: #{_lambda_.5} parent=1 // pred_region
      %311 = dma.done [#allocation9], 512
    $region113: #{_lambda_.5} parent=1 // pred_fallthru
      _
    // Predicated region
    $region114: #{_lambda_.5} parent=1 // pred_check
      _
    $region115: #{_lambda_.5} parent=1 // pred_check_branch
      %313 = sbr.rel (0) target = $region117
    $region116: #{_lambda_.5} parent=1 // pred_region
      %314 = dma.done [#allocation12], 16
    $region117: #{_lambda_.5} parent=1 // pred_fallthru
      _
    // Predicated region
    $region118: #{_lambda_.5} parent=1 // pred_check
      _
    $region119: #{_lambda_.5} parent=1 // pred_check_branch
      %316 = sbr.rel (0) target = $region121
    $region120: #{_lambda_.5} parent=1 // pred_region
      %317 = dma.done [#allocation12], 512
    $region121: #{_lambda_.5} parent=1 // pred_fallthru
      _
    // Predicated region
    $region122: #{_lambda_.5} parent=1 // pred_check
      _
    $region123: #{_lambda_.5} parent=1 // pred_check_branch
      %319 = sbr.rel (0) target = $region125
    $region124: #{_lambda_.5} parent=1 // pred_region
      %320 = dma.done [#allocation15], 16
    $region125: #{_lambda_.5} parent=1 // pred_fallthru
      _
    // Predicated region
    $region126: #{_lambda_.5} parent=1 // pred_check
      _
    $region127: #{_lambda_.5} parent=1 // pred_check_branch
      %322 = sbr.rel (0) target = $region129
    $region128: #{_lambda_.5} parent=1 // pred_region
      %323 = dma.done [#allocation15], 1024
    $region129: #{_lambda_.5} parent=1 // pred_fallthru
      _
    // Predicated region
    $region130: #{_lambda_.5} parent=1 // pred_check
      _
    $region131: #{_lambda_.5} parent=1 // pred_check_branch
      %325 = sbr.rel (0) target = $region133
    $region132: #{_lambda_.5} parent=1 // pred_region
      %326 = dma.done [#allocation18], 16
    $region133: #{_lambda_.5} parent=1 // pred_fallthru
      _
    // Predicated region
    $region134: #{_lambda_.5} parent=1 // pred_check
      _
    $region135: #{_lambda_.5} parent=1 // pred_check_branch
      %328 = sbr.rel (0) target = $region137
    $region136: #{_lambda_.5} parent=1 // pred_region
      %329 = dma.done [#allocation18], 512
    $region137: #{_lambda_.5} parent=1 // pred_fallthru
      _
    // Predicated region
    $region138: #{_lambda_.5} parent=1 // pred_check
      _
    $region139: #{_lambda_.5} parent=1 // pred_check_branch
      %331 = sbr.rel (0) target = $region141
    $region140: #{_lambda_.5} parent=1 // pred_region
      %332 = dma.done [#allocation21], 16
    $region141: #{_lambda_.5} parent=1 // pred_fallthru
      _
    // Predicated region
    $region142: #{_lambda_.5} parent=1 // pred_check
      _
    $region143: #{_lambda_.5} parent=1 // pred_check_branch
      %334 = sbr.rel (0) target = $region145
    $region144: #{_lambda_.5} parent=1 // pred_region
      %335 = dma.done [#allocation21], 512
    $region145: #{_lambda_.5} parent=1 // pred_fallthru
      _
    // Predicated region
    $region146: #{_lambda_.5} parent=1 // pred_check
      _
    $region147: #{_lambda_.5} parent=1 // pred_check_branch
      %337 = sbr.rel (0) target = $region149
    $region148: #{_lambda_.5} parent=1 // pred_region
      %338 = dma.done [#allocation24], 16
    $region149: #{_lambda_.5} parent=1 // pred_fallthru
      _
    // Predicated region
    $region150: #{_lambda_.5} parent=1 // pred_check
      _
    $region151: #{_lambda_.5} parent=1 // pred_check_branch
      %340 = sbr.rel (0) target = $region153
    $region152: #{_lambda_.5} parent=1 // pred_region
      %341 = dma.done [#allocation24], 512
    $region153: #{_lambda_.5} parent=1 // pred_fallthru
      _
    // Predicated region
    $region154: #{_lambda_.5} parent=1 // pred_check
      _
    $region155: #{_lambda_.5} parent=1 // pred_check_branch
      %343 = sbr.rel (0) target = $region157
    $region156: #{_lambda_.5} parent=1 // pred_region
      %344 = dma.done [#allocation27], 512
    $region157: #{_lambda_.5} parent=1 // pred_fallthru
      _
    // Predicated region
    $region158: #{_lambda_.5} parent=1 // pred_check
      _
    $region159: #{_lambda_.5} parent=1 // pred_check_branch
      %346 = sbr.rel (0) target = $region161
    $region160: #{_lambda_.5} parent=1 // pred_region
      %347 = dma.done [#allocation27], 16
    $region161: #{_lambda_.5} parent=1 // pred_fallthru
      _
    // Predicated region
    $region162: #{_lambda_.5} parent=1 // pred_check
      _
    $region163: #{_lambda_.5} parent=1 // pred_check_branch
      %349 = sbr.rel (0) target = $region165
    $region164: #{_lambda_.5} parent=1 // pred_region
      %350 = dma.done [#allocation30], 512
    $region165: #{_lambda_.5} parent=1 // pred_fallthru
      _
    // Predicated region
    $region166: #{_lambda_.5} parent=1 // pred_check
      _
    $region167: #{_lambda_.5} parent=1 // pred_check_branch
      %352 = sbr.rel (0) target = $region169
    $region168: #{_lambda_.5} parent=1 // pred_region
      %353 = dma.done [#allocation30], 16
    $region169: #{_lambda_.5} parent=1 // pred_fallthru
      _
    // Predicated region
    $region170: #{_lambda_.5} parent=1 // pred_check
      _
    $region171: #{_lambda_.5} parent=1 // pred_check_branch
      %355 = sbr.rel (0) target = $region173
    $region172: #{_lambda_.5} parent=1 // pred_region
      %356 = dma.done [#allocation33], 1024
    $region173: #{_lambda_.5} parent=1 // pred_fallthru
      _
    // Predicated region
    $region174: #{_lambda_.5} parent=1 // pred_check
      _
    $region175: #{_lambda_.5} parent=1 // pred_check_branch
      %358 = sbr.rel (0) target = $region177
    $region176: #{_lambda_.5} parent=1 // pred_region
      %359 = dma.done [#allocation33], 16
    $region177: #{_lambda_.5} parent=1 // pred_fallthru
      _
    // Predicated region
    $region178: #{_lambda_.5} parent=1 // pred_check
      _
    $region179: #{_lambda_.5} parent=1 // pred_check_branch
      %361 = sbr.rel (0) target = $region181
    $region180: #{_lambda_.5} parent=1 // pred_region
      %362 = dma.done [#allocation36], 512
    $region181: #{_lambda_.5} parent=1 // pred_fallthru
      _
    // Predicated region
    $region182: #{_lambda_.5} parent=1 // pred_check
      _
    $region183: #{_lambda_.5} parent=1 // pred_check_branch
      %364 = sbr.rel (0) target = $region185
    $region184: #{_lambda_.5} parent=1 // pred_region
      %365 = dma.done [#allocation36], 16
    $region185: #{_lambda_.5} parent=1 // pred_fallthru
      _
    %v366 = vld [vmem:[#allocation2] sm:$0xf]
    %v367 = vld [vmem:[#allocation2 + $0x4] sm:$0xf]
    %v368 = vunpack.c.l.bf16 %v366
    %v369 = vunpack.c.l.bf16 %v367
    %v370 = vld [vmem:[#allocation5] sm:$0xff]
    %v371 = vld [vmem:[#allocation5 + $0x8] sm:$0xff]
    %v372 = vld [vmem:[#allocation5 + $0x10] sm:$0xff]
    %v373 = vld [vmem:[#allocation5 + $0x18] sm:$0xff]
    %v374 = vld [vmem:[#allocation7] sm:$0x1]
    %v375 = vld [vmem:[#allocation8] sm:$0xff]
    %v376 = vld [vmem:[#allocation8 + $0x8] sm:$0xff]
    %v377 = vld [vmem:[#allocation8 + $0x10] sm:$0xff]
    %v378 = vld [vmem:[#allocation8 + $0x18] sm:$0xff]
    %vm379 = vcmask 261120
    %v380 = vsel %vm379, %v368, 0.0
    %381 = vadd.xlane.f32.xlu0 %v380
    %v382 = vpop.xlane.xlu0 %381
    %v383 = vsel %vm379, %v369, 0.0
    %384 = vadd.xlane.f32.xlu0 %v383
    %v385 = vpop.xlane.xlu0 %384
    %v386 = vrcp.pop 32.0
    %v387 = vmul.f32 %v382, %v386
    %v388 = vmul.f32 %v385, %v386
    %v389 = vsub.f32 %v368, %v387
    %v390 = vsub.f32 %v369, %v388
    %v391 = vmul.f32 %v389, %v389
    %v392 = vmul.f32 %v390, %v390
    %v393 = vsel %vm379, %v391, 0.0
    %394 = vadd.xlane.f32.xlu0 %v393
    %v395 = vpop.xlane.xlu0 %394
    %v396 = vsel %vm379, %v392, 0.0
    %397 = vadd.xlane.f32.xlu0 %v396
    %v398 = vpop.xlane.xlu0 %397
    %v399 = vmul.f32 %v395, %v386
    %v400 = vmul.f32 %v398, %v386
    %v401 = vadd.f32 %v399, 1e-05
    %v402 = vadd.f32 %v400, 1e-05
    %v403 = vrsqrt.pop %v401
    %v404 = vrsqrt.pop %v402
    %v405 = vmul.f32 %v389, %v403
    %v406 = vmul.f32 %v390, %v404
    %v408 = vlaneseq
    %v409 = vshrl.u32 %v408, 7
    %v410 = vsub.s32 0, %v409
    %v411 = vrot.slane %v374, %v410
    %v414 = vsel %vm379, %v405, 0
    %v417 = vsel %vm379, %v406, 0
    %419 = vmatprep.subr.mxu0 0.0
    %420 = vmatpush1.msra.mxu0 %v370
    %421 = vmatprep.subr.mxu0 0.0
    %422 = vmatpush1.msra.mxu0 %v371
    %423 = vmatprep.subr.mxu0 0.0
    %424 = vmatpush1.msra.mxu0 %v372
    %425 = vmatprep.subr.mxu0 0.0
    %426 = vmatpush1.msra.mxu0 %v373
    %427 = vmatprep.subr.mxu0 0.0
    %428 = vmatpush1.msra.mxu0 0.0
    %429 = vmatprep.subr.mxu0 0.0
    %430 = vmatpush1.msra.mxu0 0.0
    %431 = vmatprep.subr.mxu0 0.0
    %432 = vmatpush1.msra.mxu0 0.0
    %433 = vmatprep.subr.mxu0 0.0
    %434 = vmatpush1.msra.mxu0 0.0
    %435 = vmatprep.subr.mxu0 0.0
    %436 = vmatpush1.msra.mxu0 0.0
    %437 = vmatprep.subr.mxu0 0.0
    %438 = vmatpush1.msra.mxu0 0.0
    %439 = vmatprep.subr.mxu0 0.0
    %440 = vmatpush1.msra.mxu0 0.0
    %441 = vmatprep.subr.mxu0 0.0
    %442 = vmatpush1.msra.mxu0 0.0
    %443 = vmatprep.subr.mxu0 0.0
    %444 = vmatpush1.msra.mxu0 0.0
    %445 = vmatprep.subr.mxu0 0.0
    %446 = vmatpush1.msra.mxu0 0.0
    %447 = vmatprep.subr.mxu0 0.0
    %448 = vmatpush1.msra.mxu0 0.0
    %449 = vmatprep.subr.mxu0 0.0
    %450 = vmatpush1.msra.mxu0 0.0
    %451 = vmatprep.subr.mxu0 0.0
    %452 = vmatpush1.msra.mxu0 0.0
    %453 = vmatprep.subr.mxu0 0.0
    %454 = vmatpush1.msra.mxu0 0.0
    %455 = vmatprep.subr.mxu0 0.0
    %456 = vmatpush1.msra.mxu0 0.0
    %457 = vmatprep.subr.mxu0 0.0
    %458 = vmatpush1.msra.mxu0 0.0
    %459 = vmatprep.subr.mxu0 0.0
    %460 = vmatpush1.msra.mxu0 0.0
    %461 = vmatprep.subr.mxu0 0.0
    %462 = vmatpush1.msra.mxu0 0.0
    %463 = vmatprep.subr.mxu0 0.0
    %464 = vmatpush1.msra.mxu0 0.0
    %465 = vmatprep.subr.mxu0 0.0
    %466 = vmatpush1.msra.mxu0 0.0
    %467 = vmatprep.subr.mxu0 0.0
    %468 = vmatpush1.msra.mxu0 0.0
    %469 = vmatprep.subr.mxu0 0.0
    %470 = vmatpush1.msra.mxu0 0.0
    %471 = vmatprep.subr.mxu0 0.0
    %472 = vmatpush1.msra.mxu0 0.0
    %473 = vmatprep.subr.mxu0 0.0
    %474 = vmatpush1.msra.mxu0 0.0
    %475 = vmatprep.subr.mxu0 0.0
    %476 = vmatpush1.msra.mxu0 0.0
    %477 = vmatprep.subr.mxu0 0.0
    %478 = vmatpush1.msra.mxu0 0.0
    %479 = vmatprep.subr.mxu0 0.0
    %480 = vmatpush1.msra.mxu0 0.0
    %481 = vmatprep.subr.mxu0 0.0
    %482 = vmatpush1.msra.mxu0 0.0
    %483 = vmatprep.mubr.f32.mxu0 0.0
    %484 = vmatmul.mubr.f32.gmra.mrb[0].mxu0 %v414
    %v485 = vpop.f32.mrb[0].mxu0
    %v486 = vadd.f32 %v411, %v485
    %v487 = vpop.f32.mrb[0].mxu0
    %488 = vmatprep.mubr.f32.mxu0 0.0
    %489 = vmatmul.mubr.f32.gmra.mrb[0].mxu0 %v417
    %v490 = vpop.f32.mrb[0].mxu0
    %v491 = vadd.f32 %v411, %v490
    %v492 = vpop.f32.mrb[0].mxu0
    %493 = vdwg.mxu0
    %496 = vrot.lane.b32.xlu0 %v486, 96
    %v497 = vpop.permute.xlu0 %496
    %498 = vrot.lane.b32.xlu0 %v491, 96
    %v499 = vpop.permute.xlu0 %498
    %v502 = vmul.f32 %v486, %v497
    %v503 = vmul.f32 %v491, %v499
    %vm504 = vcmask 130048
    %v505 = vsel %vm504, %v502, 0.0
    %506 = vadd.xlane.f32.xlu0 %v505
    %v507 = vpop.xlane.xlu0 %506
    %v508 = vsel %vm504, %v503, 0.0
    %509 = vadd.xlane.f32.xlu0 %v508
    %v510 = vpop.xlane.xlu0 %509
    %511 = vrot.lane.b32.xlu0 %v486, 80
    %v512 = vpop.permute.xlu0 %511
    %513 = vrot.lane.b32.xlu0 %v491, 80
    %v514 = vpop.permute.xlu0 %513
    %v517 = vmul.f32 %v486, %v512
    %v518 = vmul.f32 %v491, %v514
    %v519 = vsel %vm504, %v517, 0.0
    %520 = vadd.xlane.f32.xlu0 %v519
    %v521 = vpop.xlane.xlu0 %520
    %v522 = vsel %vm504, %v518, 0.0
    %523 = vadd.xlane.f32.xlu0 %v522
    %v524 = vpop.xlane.xlu0 %523
    %v525 = vmax.f32 %v507, %v521
    %v526 = vmax.f32 %v510, %v524
    %v527 = vsub.f32 %v507, %v525
    %v528 = vsub.f32 %v510, %v526
    %v529 = vmul.f32 %v527, 1.442695
    %v530 = vpow.pop %v529
    %v531 = vmul.f32 %v528, 1.442695
    %v532 = vpow.pop %v531
    %v533 = vsub.f32 %v521, %v525
    %v534 = vsub.f32 %v524, %v526
    %v535 = vmul.f32 %v533, 1.442695
    %v536 = vpow.pop %v535
    %v537 = vmul.f32 %v534, 1.442695
    %v538 = vpow.pop %v537
    %v539 = vadd.f32 %v530, %v536
    %v540 = vadd.f32 %v532, %v538
    %v541 = vrcp.pop %v539
    %v542 = vrcp.pop %v540
    %v543 = vmul.f32 %v530, %v541
    %v544 = vmul.f32 %v532, %v542
    %v545 = vmul.f32 %v543, %v486
    %v546 = vmul.f32 %v544, %v491
    %v547 = vmul.f32 %v536, %v541
    %v548 = vmul.f32 %v538, %v542
    %v549 = vmul.f32 %v547, %v486
    %v550 = vmul.f32 %v548, %v491
    %553 = vrot.lane.b32.xlu0 %v549, 112
    %v554 = vpop.permute.xlu0 %553
    %555 = vrot.lane.b32.xlu0 %v550, 112
    %v556 = vpop.permute.xlu0 %555
    %v559 = vadd.f32 %v545, %v554
    %v560 = vadd.f32 %v546, %v556
    %561 = vrot.lane.b32.xlu0 %v486, 112
    %v562 = vpop.permute.xlu0 %561
    %563 = vrot.lane.b32.xlu0 %v491, 112
    %v564 = vpop.permute.xlu0 %563
    %v567 = vmul.f32 %v486, %v562
    %v568 = vmul.f32 %v491, %v564
    %571 = vrot.lane.b32.xlu0 %v567, 112
    %v572 = vpop.permute.xlu0 %571
    %573 = vrot.lane.b32.xlu0 %v568, 112
    %v574 = vpop.permute.xlu0 %573
    %v577 = vsel %vm504, %v572, 0.0
    %578 = vadd.xlane.f32.xlu0 %v577
    %v579 = vpop.xlane.xlu0 %578
    %v580 = vsel %vm504, %v574, 0.0
    %581 = vadd.xlane.f32.xlu0 %v580
    %v582 = vpop.xlane.xlu0 %581
    %585 = vrot.lane.b32.xlu0 %v502, 112
    %v586 = vpop.permute.xlu0 %585
    %587 = vrot.lane.b32.xlu0 %v503, 112
    %v588 = vpop.permute.xlu0 %587
    %v591 = vsel %vm504, %v586, 0.0
    %592 = vadd.xlane.f32.xlu0 %v591
    %v593 = vpop.xlane.xlu0 %592
    %v594 = vsel %vm504, %v588, 0.0
    %595 = vadd.xlane.f32.xlu0 %v594
    %v596 = vpop.xlane.xlu0 %595
    %v597 = vmax.f32 %v579, %v593
    %v598 = vmax.f32 %v582, %v596
    %v599 = vsub.f32 %v579, %v597
    %v600 = vsub.f32 %v582, %v598
    %v601 = vmul.f32 %v599, 1.442695
    %v602 = vpow.pop %v601
    %v603 = vmul.f32 %v600, 1.442695
    %v604 = vpow.pop %v603
    %v605 = vsub.f32 %v593, %v597
    %v606 = vsub.f32 %v596, %v598
    %v607 = vmul.f32 %v605, 1.442695
    %v608 = vpow.pop %v607
    %v609 = vmul.f32 %v606, 1.442695
    %v610 = vpow.pop %v609
    %v611 = vadd.f32 %v602, %v608
    %v612 = vadd.f32 %v604, %v610
    %v613 = vrcp.pop %v611
    %v614 = vrcp.pop %v612
    %v615 = vmul.f32 %v602, %v613
    %v616 = vmul.f32 %v604, %v614
    %v617 = vmul.f32 %v615, %v486
    %v618 = vmul.f32 %v616, %v491
    %v619 = vmul.f32 %v608, %v613
    %v620 = vmul.f32 %v610, %v614
    %v621 = vmul.f32 %v619, %v486
    %v622 = vmul.f32 %v620, %v491
    %625 = vrot.lane.b32.xlu0 %v621, 112
    %v626 = vpop.permute.xlu0 %625
    %627 = vrot.lane.b32.xlu0 %v622, 112
    %v628 = vpop.permute.xlu0 %627
    %v631 = vadd.f32 %v617, %v626
    %v632 = vadd.f32 %v618, %v628
    %635 = vrot.lane.b32.xlu0 %v559, 64
    %v636 = vpop.permute.xlu0 %635
    %637 = vrot.lane.b32.xlu0 %v560, 64
    %v638 = vpop.permute.xlu0 %637
    %643 = vrot.lane.b32.xlu0 %v631, 80
    %v644 = vpop.permute.xlu0 %643
    %645 = vrot.lane.b32.xlu0 %v632, 80
    %v646 = vpop.permute.xlu0 %645
    %v649 = vsel %vm504, %v636, %v644
    %v650 = vsel %vm504, %v638, %v646
    %v652 = vsel %vm379, %v649, 0
    %v655 = vsel %vm379, %v650, 0
    %657 = vmatprep.subr.mxu0 0.0
    %658 = vmatpush1.msra.mxu0 %v375
    %659 = vmatprep.subr.mxu0 0.0
    %660 = vmatpush1.msra.mxu0 %v376
    %661 = vmatprep.subr.mxu0 0.0
    %662 = vmatpush1.msra.mxu0 %v377
    %663 = vmatprep.subr.mxu0 0.0
    %664 = vmatpush1.msra.mxu0 %v378
    %665 = vmatprep.subr.mxu0 0.0
    %666 = vmatpush1.msra.mxu0 0.0
    %667 = vmatprep.subr.mxu0 0.0
    %668 = vmatpush1.msra.mxu0 0.0
    %669 = vmatprep.subr.mxu0 0.0
    %670 = vmatpush1.msra.mxu0 0.0
    %671 = vmatprep.subr.mxu0 0.0
    %672 = vmatpush1.msra.mxu0 0.0
    %673 = vmatprep.subr.mxu0 0.0
    %674 = vmatpush1.msra.mxu0 0.0
    %675 = vmatprep.subr.mxu0 0.0
    %676 = vmatpush1.msra.mxu0 0.0
    %677 = vmatprep.subr.mxu0 0.0
    %678 = vmatpush1.msra.mxu0 0.0
    %679 = vmatprep.subr.mxu0 0.0
    %680 = vmatpush1.msra.mxu0 0.0
    %681 = vmatprep.subr.mxu0 0.0
    %682 = vmatpush1.msra.mxu0 0.0
    %683 = vmatprep.subr.mxu0 0.0
    %684 = vmatpush1.msra.mxu0 0.0
    %685 = vmatprep.subr.mxu0 0.0
    %686 = vmatpush1.msra.mxu0 0.0
    %687 = vmatprep.subr.mxu0 0.0
    %688 = vmatpush1.msra.mxu0 0.0
    %689 = vmatprep.subr.mxu0 0.0
    %690 = vmatpush1.msra.mxu0 0.0
    %691 = vmatprep.subr.mxu0 0.0
    %692 = vmatpush1.msra.mxu0 0.0
    %693 = vmatprep.subr.mxu0 0.0
    %694 = vmatpush1.msra.mxu0 0.0
    %695 = vmatprep.subr.mxu0 0.0
    %696 = vmatpush1.msra.mxu0 0.0
    %697 = vmatprep.subr.mxu0 0.0
    %698 = vmatpush1.msra.mxu0 0.0
    %699 = vmatprep.subr.mxu0 0.0
    %700 = vmatpush1.msra.mxu0 0.0
    %701 = vmatprep.subr.mxu0 0.0
    %702 = vmatpush1.msra.mxu0 0.0
    %703 = vmatprep.subr.mxu0 0.0
    %704 = vmatpush1.msra.mxu0 0.0
    %705 = vmatprep.subr.mxu0 0.0
    %706 = vmatpush1.msra.mxu0 0.0
    %707 = vmatprep.subr.mxu0 0.0
    %708 = vmatpush1.msra.mxu0 0.0
    %709 = vmatprep.subr.mxu0 0.0
    %710 = vmatpush1.msra.mxu0 0.0
    %711 = vmatprep.subr.mxu0 0.0
    %712 = vmatpush1.msra.mxu0 0.0
    %713 = vmatprep.subr.mxu0 0.0
    %714 = vmatpush1.msra.mxu0 0.0
    %715 = vmatprep.subr.mxu0 0.0
    %716 = vmatpush1.msra.mxu0 0.0
    %717 = vmatprep.subr.mxu0 0.0
    %718 = vmatpush1.msra.mxu0 0.0
    %719 = vmatprep.subr.mxu0 0.0
    %720 = vmatpush1.msra.mxu0 0.0
    %721 = vmatprep.mubr.f32.mxu0 0.0
    %722 = vmatmul.mubr.f32.gmra.mrb[0].mxu0 %v652
    %v723 = vpop.f32.mrb[0].mxu0
    %v724 = vadd.f32 0.0, %v723
    %v725 = vpop.f32.mrb[0].mxu0
    %726 = vmatprep.mubr.f32.mxu0 0.0
    %727 = vmatmul.mubr.f32.gmra.mrb[0].mxu0 %v655
    %v728 = vpop.f32.mrb[0].mxu0
    %v729 = vadd.f32 0.0, %v728
    %v730 = vpop.f32.mrb[0].mxu0
    %731 = vdwg.mxu0
    %v732 = vadd.f32 %v368, %v724
    %v733 = vadd.f32 %v369, %v729
    %v734 = vld [vmem:[#allocation10] sm:$0xff]
    %v735 = vld [vmem:[#allocation10 + $0x8] sm:$0xff]
    %v736 = vld [vmem:[#allocation10 + $0x10] sm:$0xff]
    %v737 = vld [vmem:[#allocation10 + $0x18] sm:$0xff]
    %v738 = vld [vmem:[#allocation11] sm:$0x1]
    %v739 = vld [vmem:[#allocation13] sm:$0xff]
    %v740 = vld [vmem:[#allocation13 + $0x8] sm:$0xff]
    %v741 = vld [vmem:[#allocation13 + $0x10] sm:$0xff]
    %v742 = vld [vmem:[#allocation13 + $0x18] sm:$0xff]
    %v743 = vld [vmem:[#allocation14] sm:$0x1]
    %v744 = vld [vmem:[#allocation16] sm:$0xff]
    %v745 = vld [vmem:[#allocation16 + $0x8] sm:$0xff]
    %v746 = vld [vmem:[#allocation16 + $0x10] sm:$0xff]
    %v747 = vld [vmem:[#allocation16 + $0x18] sm:$0xff]
    %v748 = vld [vmem:[#allocation16 + $0x20] sm:$0xff]
    %v749 = vld [vmem:[#allocation16 + $0x28] sm:$0xff]
    %v750 = vld [vmem:[#allocation16 + $0x30] sm:$0xff]
    %v751 = vld [vmem:[#allocation16 + $0x38] sm:$0xff]
    %v752 = vld [vmem:[#allocation17] sm:$0x1]
    %v753 = vld [vmem:[#allocation19] sm:$0xff]
    %v754 = vld [vmem:[#allocation19 + $0x8] sm:$0xff]
    %v755 = vld [vmem:[#allocation19 + $0x10] sm:$0xff]
    %v756 = vld [vmem:[#allocation19 + $0x18] sm:$0xff]
    %v757 = vld [vmem:[#allocation20] sm:$0x1]
    %v758 = vsel %vm379, %v732, 0.0
    %759 = vadd.xlane.f32.xlu0 %v758
    %v760 = vpop.xlane.xlu0 %759
    %v761 = vsel %vm379, %v733, 0.0
    %762 = vadd.xlane.f32.xlu0 %v761
    %v763 = vpop.xlane.xlu0 %762
    %v764 = vmul.f32 %v760, %v386
    %v765 = vmul.f32 %v763, %v386
    %v766 = vsub.f32 %v732, %v764
    %v767 = vsub.f32 %v733, %v765
    %v768 = vmul.f32 %v766, %v766
    %v769 = vmul.f32 %v767, %v767
    %v770 = vsel %vm379, %v768, 0.0
    %771 = vadd.xlane.f32.xlu0 %v770
    %v772 = vpop.xlane.xlu0 %771
    %v773 = vsel %vm379, %v769, 0.0
    %774 = vadd.xlane.f32.xlu0 %v773
    %v775 = vpop.xlane.xlu0 %774
    %v776 = vmul.f32 %v772, %v386
    %v777 = vmul.f32 %v775, %v386
    %v778 = vadd.f32 %v776, 1e-05
    %v779 = vadd.f32 %v777, 1e-05
    %v780 = vrsqrt.pop %v778
    %v781 = vrsqrt.pop %v779
    %v782 = vmul.f32 %v766, %v780
    %v783 = vmul.f32 %v767, %v781
    %v785 = vlaneseq
    %v786 = vshrl.u32 %v785, 7
    %v787 = vsub.s32 0, %v786
    %v788 = vrot.slane %v738, %v787
    %v791 = vsel %vm379, %v782, 0
    %v794 = vsel %vm379, %v783, 0
    %796 = vmatprep.subr.mxu0 0.0
    %797 = vmatpush1.msra.mxu0 %v734
    %798 = vmatprep.subr.mxu0 0.0
    %799 = vmatpush1.msra.mxu0 %v735
    %800 = vmatprep.subr.mxu0 0.0
    %801 = vmatpush1.msra.mxu0 %v736
    %802 = vmatprep.subr.mxu0 0.0
    %803 = vmatpush1.msra.mxu0 %v737
    %804 = vmatprep.subr.mxu0 0.0
    %805 = vmatpush1.msra.mxu0 0.0
    %806 = vmatprep.subr.mxu0 0.0
    %807 = vmatpush1.msra.mxu0 0.0
    %808 = vmatprep.subr.mxu0 0.0
    %809 = vmatpush1.msra.mxu0 0.0
    %810 = vmatprep.subr.mxu0 0.0
    %811 = vmatpush1.msra.mxu0 0.0
    %812 = vmatprep.subr.mxu0 0.0
    %813 = vmatpush1.msra.mxu0 0.0
    %814 = vmatprep.subr.mxu0 0.0
    %815 = vmatpush1.msra.mxu0 0.0
    %816 = vmatprep.subr.mxu0 0.0
    %817 = vmatpush1.msra.mxu0 0.0
    %818 = vmatprep.subr.mxu0 0.0
    %819 = vmatpush1.msra.mxu0 0.0
    %820 = vmatprep.subr.mxu0 0.0
    %821 = vmatpush1.msra.mxu0 0.0
    %822 = vmatprep.subr.mxu0 0.0
    %823 = vmatpush1.msra.mxu0 0.0
    %824 = vmatprep.subr.mxu0 0.0
    %825 = vmatpush1.msra.mxu0 0.0
    %826 = vmatprep.subr.mxu0 0.0
    %827 = vmatpush1.msra.mxu0 0.0
    %828 = vmatprep.subr.mxu0 0.0
    %829 = vmatpush1.msra.mxu0 0.0
    %830 = vmatprep.subr.mxu0 0.0
    %831 = vmatpush1.msra.mxu0 0.0
    %832 = vmatprep.subr.mxu0 0.0
    %833 = vmatpush1.msra.mxu0 0.0
    %834 = vmatprep.subr.mxu0 0.0
    %835 = vmatpush1.msra.mxu0 0.0
    %836 = vmatprep.subr.mxu0 0.0
    %837 = vmatpush1.msra.mxu0 0.0
    %838 = vmatprep.subr.mxu0 0.0
    %839 = vmatpush1.msra.mxu0 0.0
    %840 = vmatprep.subr.mxu0 0.0
    %841 = vmatpush1.msra.mxu0 0.0
    %842 = vmatprep.subr.mxu0 0.0
    %843 = vmatpush1.msra.mxu0 0.0
    %844 = vmatprep.subr.mxu0 0.0
    %845 = vmatpush1.msra.mxu0 0.0
    %846 = vmatprep.subr.mxu0 0.0
    %847 = vmatpush1.msra.mxu0 0.0
    %848 = vmatprep.subr.mxu0 0.0
    %849 = vmatpush1.msra.mxu0 0.0
    %850 = vmatprep.subr.mxu0 0.0
    %851 = vmatpush1.msra.mxu0 0.0
    %852 = vmatprep.subr.mxu0 0.0
    %853 = vmatpush1.msra.mxu0 0.0
    %854 = vmatprep.subr.mxu0 0.0
    %855 = vmatpush1.msra.mxu0 0.0
    %856 = vmatprep.subr.mxu0 0.0
    %857 = vmatpush1.msra.mxu0 0.0
    %858 = vmatprep.subr.mxu0 0.0
    %859 = vmatpush1.msra.mxu0 0.0
    %860 = vmatprep.mubr.f32.mxu0 0.0
    %861 = vmatmul.mubr.f32.gmra.mrb[0].mxu0 %v791
    %v862 = vpop.f32.mrb[0].mxu0
    %v863 = vadd.f32 %v788, %v862
    %v864 = vpop.f32.mrb[0].mxu0
    %865 = vmatprep.mubr.f32.mxu0 0.0
    %866 = vmatmul.mubr.f32.gmra.mrb[0].mxu0 %v794
    %v867 = vpop.f32.mrb[0].mxu0
    %v868 = vadd.f32 %v788, %v867
    %v869 = vpop.f32.mrb[0].mxu0
    %870 = vdwg.mxu0
    %v872 = vlaneseq
    %v873 = vshrl.u32 %v872, 7
    %v874 = vsub.s32 0, %v873
    %v875 = vrot.slane %v743, %v874
    %v878 = vsel %vm379, %v863, 0
    %v881 = vsel %vm379, %v868, 0
    %883 = vmatprep.subr.mxu0 0.0
    %884 = vmatpush1.msra.mxu0 %v739
    %885 = vmatprep.subr.mxu0 0.0
    %886 = vmatpush1.msra.mxu0 %v740
    %887 = vmatprep.subr.mxu0 0.0
    %888 = vmatpush1.msra.mxu0 %v741
    %889 = vmatprep.subr.mxu0 0.0
    %890 = vmatpush1.msra.mxu0 %v742
    %891 = vmatprep.subr.mxu0 0.0
    %892 = vmatpush1.msra.mxu0 0.0
    %893 = vmatprep.subr.mxu0 0.0
    %894 = vmatpush1.msra.mxu0 0.0
    %895 = vmatprep.subr.mxu0 0.0
    %896 = vmatpush1.msra.mxu0 0.0
    %897 = vmatprep.subr.mxu0 0.0
    %898 = vmatpush1.msra.mxu0 0.0
    %899 = vmatprep.subr.mxu0 0.0
    %900 = vmatpush1.msra.mxu0 0.0
    %901 = vmatprep.subr.mxu0 0.0
    %902 = vmatpush1.msra.mxu0 0.0
    %903 = vmatprep.subr.mxu0 0.0
    %904 = vmatpush1.msra.mxu0 0.0
    %905 = vmatprep.subr.mxu0 0.0
    %906 = vmatpush1.msra.mxu0 0.0
    %907 = vmatprep.subr.mxu0 0.0
    %908 = vmatpush1.msra.mxu0 0.0
    %909 = vmatprep.subr.mxu0 0.0
    %910 = vmatpush1.msra.mxu0 0.0
    %911 = vmatprep.subr.mxu0 0.0
    %912 = vmatpush1.msra.mxu0 0.0
    %913 = vmatprep.subr.mxu0 0.0
    %914 = vmatpush1.msra.mxu0 0.0
    %915 = vmatprep.subr.mxu0 0.0
    %916 = vmatpush1.msra.mxu0 0.0
    %917 = vmatprep.subr.mxu0 0.0
    %918 = vmatpush1.msra.mxu0 0.0
    %919 = vmatprep.subr.mxu0 0.0
    %920 = vmatpush1.msra.mxu0 0.0
    %921 = vmatprep.subr.mxu0 0.0
    %922 = vmatpush1.msra.mxu0 0.0
    %923 = vmatprep.subr.mxu0 0.0
    %924 = vmatpush1.msra.mxu0 0.0
    %925 = vmatprep.subr.mxu0 0.0
    %926 = vmatpush1.msra.mxu0 0.0
    %927 = vmatprep.subr.mxu0 0.0
    %928 = vmatpush1.msra.mxu0 0.0
    %929 = vmatprep.subr.mxu0 0.0
    %930 = vmatpush1.msra.mxu0 0.0
    %931 = vmatprep.subr.mxu0 0.0
    %932 = vmatpush1.msra.mxu0 0.0
    %933 = vmatprep.subr.mxu0 0.0
    %934 = vmatpush1.msra.mxu0 0.0
    %935 = vmatprep.subr.mxu0 0.0
    %936 = vmatpush1.msra.mxu0 0.0
    %937 = vmatprep.subr.mxu0 0.0
    %938 = vmatpush1.msra.mxu0 0.0
    %939 = vmatprep.subr.mxu0 0.0
    %940 = vmatpush1.msra.mxu0 0.0
    %941 = vmatprep.subr.mxu0 0.0
    %942 = vmatpush1.msra.mxu0 0.0
    %943 = vmatprep.subr.mxu0 0.0
    %944 = vmatpush1.msra.mxu0 0.0
    %945 = vmatprep.subr.mxu0 0.0
    %946 = vmatpush1.msra.mxu0 0.0
    %947 = vmatprep.mubr.f32.mxu0 0.0
    %948 = vmatmul.mubr.f32.gmra.mrb[0].mxu0 %v878
    %v949 = vpop.f32.mrb[0].mxu0
    %v950 = vadd.f32 %v875, %v949
    %v951 = vpop.f32.mrb[0].mxu0
    %952 = vmatprep.mubr.f32.mxu0 0.0
    %953 = vmatmul.mubr.f32.gmra.mrb[0].mxu0 %v881
    %v954 = vpop.f32.mrb[0].mxu0
    %v955 = vadd.f32 %v875, %v954
    %v956 = vpop.f32.mrb[0].mxu0
    %957 = vdwg.mxu0
    %v958 = vmul.f32 %v950, 0.5
    %v959 = vmul.f32 %v955, 0.5
    %v960 = vmul.f32 %v950, 0.044715
    %v961 = vmul.f32 %v955, 0.044715
    %v962 = vmul.f32 %v960, %v950
    %v963 = vmul.f32 %v961, %v955
    %v964 = vmul.f32 %v962, %v950
    %v965 = vmul.f32 %v963, %v955
    %v966 = vadd.f32 %v950, %v964
    %v967 = vadd.f32 %v955, %v965
    %v968 = vmul.f32 %v966, 0.7978846
    %v969 = vmul.f32 %v967, 0.7978846
    %v970 = vtanh.pop %v968
    %v971 = vtanh.pop %v969
    %v972 = vadd.f32 %v970, 1.0
    %v973 = vadd.f32 %v971, 1.0
    %v974 = vmul.f32 %v958, %v972
    %v975 = vmul.f32 %v959, %v973
    %vm976 = vcmask 523264
    %v978 = vsel %vm976, %v974, 0
    %v981 = vsel %vm976, %v975, 0
    %983 = vmatprep.subr.mxu0 0.0
    %984 = vmatpush1.msra.mxu0 %v744
    %985 = vmatprep.subr.mxu0 0.0
    %986 = vmatpush1.msra.mxu0 %v745
    %987 = vmatprep.subr.mxu0 0.0
    %988 = vmatpush1.msra.mxu0 %v746
    %989 = vmatprep.subr.mxu0 0.0
    %990 = vmatpush1.msra.mxu0 %v747
    %991 = vmatprep.subr.mxu0 0.0
    %992 = vmatpush1.msra.mxu0 %v748
    %993 = vmatprep.subr.mxu0 0.0
    %994 = vmatpush1.msra.mxu0 %v749
    %995 = vmatprep.subr.mxu0 0.0
    %996 = vmatpush1.msra.mxu0 %v750
    %997 = vmatprep.subr.mxu0 0.0
    %998 = vmatpush1.msra.mxu0 %v751
    %999 = vmatprep.subr.mxu0 0.0
    %1000 = vmatpush1.msra.mxu0 0.0
    %1001 = vmatprep.subr.mxu0 0.0
    %1002 = vmatpush1.msra.mxu0 0.0
    %1003 = vmatprep.subr.mxu0 0.0
    %1004 = vmatpush1.msra.mxu0 0.0
    %1005 = vmatprep.subr.mxu0 0.0
    %1006 = vmatpush1.msra.mxu0 0.0
    %1007 = vmatprep.subr.mxu0 0.0
    %1008 = vmatpush1.msra.mxu0 0.0
    %1009 = vmatprep.subr.mxu0 0.0
    %1010 = vmatpush1.msra.mxu0 0.0
    %1011 = vmatprep.subr.mxu0 0.0
    %1012 = vmatpush1.msra.mxu0 0.0
    %1013 = vmatprep.subr.mxu0 0.0
    %1014 = vmatpush1.msra.mxu0 0.0
    %1015 = vmatprep.subr.mxu0 0.0
    %1016 = vmatpush1.msra.mxu0 0.0
    %1017 = vmatprep.subr.mxu0 0.0
    %1018 = vmatpush1.msra.mxu0 0.0
    %1019 = vmatprep.subr.mxu0 0.0
    %1020 = vmatpush1.msra.mxu0 0.0
    %1021 = vmatprep.subr.mxu0 0.0
    %1022 = vmatpush1.msra.mxu0 0.0
    %1023 = vmatprep.subr.mxu0 0.0
    %1024 = vmatpush1.msra.mxu0 0.0
    %1025 = vmatprep.subr.mxu0 0.0
    %1026 = vmatpush1.msra.mxu0 0.0
    %1027 = vmatprep.subr.mxu0 0.0
    %1028 = vmatpush1.msra.mxu0 0.0
    %1029 = vmatprep.subr.mxu0 0.0
    %1030 = vmatpush1.msra.mxu0 0.0
    %1031 = vmatprep.subr.mxu0 0.0
    %1032 = vmatpush1.msra.mxu0 0.0
    %1033 = vmatprep.subr.mxu0 0.0
    %1034 = vmatpush1.msra.mxu0 0.0
    %1035 = vmatprep.subr.mxu0 0.0
    %1036 = vmatpush1.msra.mxu0 0.0
    %1037 = vmatprep.subr.mxu0 0.0
    %1038 = vmatpush1.msra.mxu0 0.0
    %1039 = vmatprep.subr.mxu0 0.0
    %1040 = vmatpush1.msra.mxu0 0.0
    %1041 = vmatprep.subr.mxu0 0.0
    %1042 = vmatpush1.msra.mxu0 0.0
    %1043 = vmatprep.subr.mxu0 0.0
    %1044 = vmatpush1.msra.mxu0 0.0
    %1045 = vmatprep.subr.mxu0 0.0
    %1046 = vmatpush1.msra.mxu0 0.0
    %1047 = vmatprep.mubr.f32.mxu0 0.0
    %1048 = vmatmul.mubr.f32.gmra.mrb[0].mxu0 %v978
    %v1049 = vpop.f32.mrb[0].mxu0
    %v1050 = vadd.f32 0.0, %v1049
    %v1051 = vpop.f32.mrb[0].mxu0
    %1052 = vmatprep.mubr.f32.mxu0 0.0
    %1053 = vmatmul.mubr.f32.gmra.mrb[0].mxu0 %v981
    %v1054 = vpop.f32.mrb[0].mxu0
    %v1055 = vadd.f32 0.0, %v1054
    %v1056 = vpop.f32.mrb[0].mxu0
    %1057 = vdwg.mxu0
    %v1058 = vadd.f32 %v863, %v1050
    %v1059 = vadd.f32 %v868, %v1055
    %v1061 = vlaneseq
    %v1062 = vshrl.u32 %v1061, 7
    %v1063 = vsub.s32 0, %v1062
    %v1064 = vrot.slane %v752, %v1063
    %v1066 = vadd.f32 %v1058, %v1064
    %v1067 = vadd.f32 %v1059, %v1064
    %v1069 = vsel %vm379, %v1066, 0
    %v1072 = vsel %vm379, %v1067, 0
    %1074 = vmatprep.subr.mxu0 0.0
    %1075 = vmatpush1.msra.mxu0 %v753
    %1076 = vmatprep.subr.mxu0 0.0
    %1077 = vmatpush1.msra.mxu0 %v754
    %1078 = vmatprep.subr.mxu0 0.0
    %1079 = vmatpush1.msra.mxu0 %v755
    %1080 = vmatprep.subr.mxu0 0.0
    %1081 = vmatpush1.msra.mxu0 %v756
    %1082 = vmatprep.subr.mxu0 0.0
    %1083 = vmatpush1.msra.mxu0 0.0
    %1084 = vmatprep.subr.mxu0 0.0
    %1085 = vmatpush1.msra.mxu0 0.0
    %1086 = vmatprep.subr.mxu0 0.0
    %1087 = vmatpush1.msra.mxu0 0.0
    %1088 = vmatprep.subr.mxu0 0.0
    %1089 = vmatpush1.msra.mxu0 0.0
    %1090 = vmatprep.subr.mxu0 0.0
    %1091 = vmatpush1.msra.mxu0 0.0
    %1092 = vmatprep.subr.mxu0 0.0
    %1093 = vmatpush1.msra.mxu0 0.0
    %1094 = vmatprep.subr.mxu0 0.0
    %1095 = vmatpush1.msra.mxu0 0.0
    %1096 = vmatprep.subr.mxu0 0.0
    %1097 = vmatpush1.msra.mxu0 0.0
    %1098 = vmatprep.subr.mxu0 0.0
    %1099 = vmatpush1.msra.mxu0 0.0
    %1100 = vmatprep.subr.mxu0 0.0
    %1101 = vmatpush1.msra.mxu0 0.0
    %1102 = vmatprep.subr.mxu0 0.0
    %1103 = vmatpush1.msra.mxu0 0.0
    %1104 = vmatprep.subr.mxu0 0.0
    %1105 = vmatpush1.msra.mxu0 0.0
    %1106 = vmatprep.subr.mxu0 0.0
    %1107 = vmatpush1.msra.mxu0 0.0
    %1108 = vmatprep.subr.mxu0 0.0
    %1109 = vmatpush1.msra.mxu0 0.0
    %1110 = vmatprep.subr.mxu0 0.0
    %1111 = vmatpush1.msra.mxu0 0.0
    %1112 = vmatprep.subr.mxu0 0.0
    %1113 = vmatpush1.msra.mxu0 0.0
    %1114 = vmatprep.subr.mxu0 0.0
    %1115 = vmatpush1.msra.mxu0 0.0
    %1116 = vmatprep.subr.mxu0 0.0
    %1117 = vmatpush1.msra.mxu0 0.0
    %1118 = vmatprep.subr.mxu0 0.0
    %1119 = vmatpush1.msra.mxu0 0.0
    %1120 = vmatprep.subr.mxu0 0.0
    %1121 = vmatpush1.msra.mxu0 0.0
    %1122 = vmatprep.subr.mxu0 0.0
    %1123 = vmatpush1.msra.mxu0 0.0
    %1124 = vmatprep.subr.mxu0 0.0
    %1125 = vmatpush1.msra.mxu0 0.0
    %1126 = vmatprep.subr.mxu0 0.0
    %1127 = vmatpush1.msra.mxu0 0.0
    %1128 = vmatprep.subr.mxu0 0.0
    %1129 = vmatpush1.msra.mxu0 0.0
    %1130 = vmatprep.subr.mxu0 0.0
    %1131 = vmatpush1.msra.mxu0 0.0
    %1132 = vmatprep.subr.mxu0 0.0
    %1133 = vmatpush1.msra.mxu0 0.0
    %1134 = vmatprep.subr.mxu0 0.0
    %1135 = vmatpush1.msra.mxu0 0.0
    %1136 = vmatprep.subr.mxu0 0.0
    %1137 = vmatpush1.msra.mxu0 0.0
    %1138 = vmatprep.mubr.f32.mxu0 0.0
    %1139 = vmatmul.mubr.f32.gmra.mrb[0].mxu0 %v1069
    %v1140 = vpop.f32.mrb[0].mxu0
    %v1141 = vadd.f32 0.0, %v1140
    %v1142 = vpop.f32.mrb[0].mxu0
    %1143 = vmatprep.mubr.f32.mxu0 0.0
    %1144 = vmatmul.mubr.f32.gmra.mrb[0].mxu0 %v1072
    %v1145 = vpop.f32.mrb[0].mxu0
    %v1146 = vadd.f32 0.0, %v1145
    %v1147 = vpop.f32.mrb[0].mxu0
    %1148 = vdwg.mxu0
    %v1149 = vadd.f32 %v732, %v1141
    %v1150 = vadd.f32 %v733, %v1146
    %v1152 = vlaneseq
    %v1153 = vshrl.u32 %v1152, 7
    %v1154 = vsub.s32 0, %v1153
    %v1155 = vrot.slane %v757, %v1154
    %v1157 = vadd.f32 %v1149, %v1155
    %v1158 = vadd.f32 %v1150, %v1155
    %v1159 = vld [vmem:[#allocation22] sm:$0xff]
    %v1160 = vld [vmem:[#allocation22 + $0x8] sm:$0xff]
    %v1161 = vld [vmem:[#allocation22 + $0x10] sm:$0xff]
    %v1162 = vld [vmem:[#allocation22 + $0x18] sm:$0xff]
    %v1163 = vld [vmem:[#allocation23] sm:$0x1]
    %v1164 = vld [vmem:[#allocation25] sm:$0xff]
    %v1165 = vld [vmem:[#allocation25 + $0x8] sm:$0xff]
    %v1166 = vld [vmem:[#allocation25 + $0x10] sm:$0xff]
    %v1167 = vld [vmem:[#allocation25 + $0x18] sm:$0xff]
    %v1168 = vsel %vm379, %v1157, 0.0
    %1169 = vadd.xlane.f32.xlu0 %v1168
    %v1170 = vpop.xlane.xlu0 %1169
    %v1171 = vsel %vm379, %v1158, 0.0
    %1172 = vadd.xlane.f32.xlu0 %v1171
    %v1173 = vpop.xlane.xlu0 %1172
    %v1174 = vmul.f32 %v1170, %v386
    %v1175 = vmul.f32 %v1173, %v386
    %v1176 = vsub.f32 %v1157, %v1174
    %v1177 = vsub.f32 %v1158, %v1175
    %v1178 = vmul.f32 %v1176, %v1176
    %v1179 = vmul.f32 %v1177, %v1177
    %v1180 = vsel %vm379, %v1178, 0.0
    %1181 = vadd.xlane.f32.xlu0 %v1180
    %v1182 = vpop.xlane.xlu0 %1181
    %v1183 = vsel %vm379, %v1179, 0.0
    %1184 = vadd.xlane.f32.xlu0 %v1183
    %v1185 = vpop.xlane.xlu0 %1184
    %v1186 = vmul.f32 %v1182, %v386
    %v1187 = vmul.f32 %v1185, %v386
    %v1188 = vadd.f32 %v1186, 1e-05
    %v1189 = vadd.f32 %v1187, 1e-05
    %v1190 = vrsqrt.pop %v1188
    %v1191 = vrsqrt.pop %v1189
    %v1192 = vmul.f32 %v1176, %v1190
    %v1193 = vmul.f32 %v1177, %v1191
    %v1195 = vlaneseq
    %v1196 = vshrl.u32 %v1195, 7
    %v1197 = vsub.s32 0, %v1196
    %v1198 = vrot.slane %v1163, %v1197
    %v1201 = vsel %vm379, %v1192, 0
    %v1204 = vsel %vm379, %v1193, 0
    %1206 = vmatprep.subr.mxu0 0.0
    %1207 = vmatpush1.msra.mxu0 %v1159
    %1208 = vmatprep.subr.mxu0 0.0
    %1209 = vmatpush1.msra.mxu0 %v1160
    %1210 = vmatprep.subr.mxu0 0.0
    %1211 = vmatpush1.msra.mxu0 %v1161
    %1212 = vmatprep.subr.mxu0 0.0
    %1213 = vmatpush1.msra.mxu0 %v1162
    %1214 = vmatprep.subr.mxu0 0.0
    %1215 = vmatpush1.msra.mxu0 0.0
    %1216 = vmatprep.subr.mxu0 0.0
    %1217 = vmatpush1.msra.mxu0 0.0
    %1218 = vmatprep.subr.mxu0 0.0
    %1219 = vmatpush1.msra.mxu0 0.0
    %1220 = vmatprep.subr.mxu0 0.0
    %1221 = vmatpush1.msra.mxu0 0.0
    %1222 = vmatprep.subr.mxu0 0.0
    %1223 = vmatpush1.msra.mxu0 0.0
    %1224 = vmatprep.subr.mxu0 0.0
    %1225 = vmatpush1.msra.mxu0 0.0
    %1226 = vmatprep.subr.mxu0 0.0
    %1227 = vmatpush1.msra.mxu0 0.0
    %1228 = vmatprep.subr.mxu0 0.0
    %1229 = vmatpush1.msra.mxu0 0.0
    %1230 = vmatprep.subr.mxu0 0.0
    %1231 = vmatpush1.msra.mxu0 0.0
    %1232 = vmatprep.subr.mxu0 0.0
    %1233 = vmatpush1.msra.mxu0 0.0
    %1234 = vmatprep.subr.mxu0 0.0
    %1235 = vmatpush1.msra.mxu0 0.0
    %1236 = vmatprep.subr.mxu0 0.0
    %1237 = vmatpush1.msra.mxu0 0.0
    %1238 = vmatprep.subr.mxu0 0.0
    %1239 = vmatpush1.msra.mxu0 0.0
    %1240 = vmatprep.subr.mxu0 0.0
    %1241 = vmatpush1.msra.mxu0 0.0
    %1242 = vmatprep.subr.mxu0 0.0
    %1243 = vmatpush1.msra.mxu0 0.0
    %1244 = vmatprep.subr.mxu0 0.0
    %1245 = vmatpush1.msra.mxu0 0.0
    %1246 = vmatprep.subr.mxu0 0.0
    %1247 = vmatpush1.msra.mxu0 0.0
    %1248 = vmatprep.subr.mxu0 0.0
    %1249 = vmatpush1.msra.mxu0 0.0
    %1250 = vmatprep.subr.mxu0 0.0
    %1251 = vmatpush1.msra.mxu0 0.0
    %1252 = vmatprep.subr.mxu0 0.0
    %1253 = vmatpush1.msra.mxu0 0.0
    %1254 = vmatprep.subr.mxu0 0.0
    %1255 = vmatpush1.msra.mxu0 0.0
    %1256 = vmatprep.subr.mxu0 0.0
    %1257 = vmatpush1.msra.mxu0 0.0
    %1258 = vmatprep.subr.mxu0 0.0
    %1259 = vmatpush1.msra.mxu0 0.0
    %1260 = vmatprep.subr.mxu0 0.0
    %1261 = vmatpush1.msra.mxu0 0.0
    %1262 = vmatprep.subr.mxu0 0.0
    %1263 = vmatpush1.msra.mxu0 0.0
    %1264 = vmatprep.subr.mxu0 0.0
    %1265 = vmatpush1.msra.mxu0 0.0
    %1266 = vmatprep.subr.mxu0 0.0
    %1267 = vmatpush1.msra.mxu0 0.0
    %1268 = vmatprep.subr.mxu0 0.0
    %1269 = vmatpush1.msra.mxu0 0.0
    %1270 = vmatprep.mubr.f32.mxu0 0.0
    %1271 = vmatmul.mubr.f32.gmra.mrb[0].mxu0 %v1201
    %v1272 = vpop.f32.mrb[0].mxu0
    %v1273 = vadd.f32 %v1198, %v1272
    %v1274 = vpop.f32.mrb[0].mxu0
    %1275 = vmatprep.mubr.f32.mxu0 0.0
    %1276 = vmatmul.mubr.f32.gmra.mrb[0].mxu0 %v1204
    %v1277 = vpop.f32.mrb[0].mxu0
    %v1278 = vadd.f32 %v1198, %v1277
    %v1279 = vpop.f32.mrb[0].mxu0
    %1280 = vdwg.mxu0
    %1283 = vrot.lane.b32.xlu0 %v1273, 96
    %v1284 = vpop.permute.xlu0 %1283
    %1285 = vrot.lane.b32.xlu0 %v1278, 96
    %v1286 = vpop.permute.xlu0 %1285
    %v1289 = vmul.f32 %v1273, %v1284
    %v1290 = vmul.f32 %v1278, %v1286
    %v1291 = vsel %vm504, %v1289, 0.0
    %1292 = vadd.xlane.f32.xlu0 %v1291
    %v1293 = vpop.xlane.xlu0 %1292
    %v1294 = vsel %vm504, %v1290, 0.0
    %1295 = vadd.xlane.f32.xlu0 %v1294
    %v1296 = vpop.xlane.xlu0 %1295
    %1297 = vrot.lane.b32.xlu0 %v1273, 80
    %v1298 = vpop.permute.xlu0 %1297
    %1299 = vrot.lane.b32.xlu0 %v1278, 80
    %v1300 = vpop.permute.xlu0 %1299
    %v1303 = vmul.f32 %v1273, %v1298
    %v1304 = vmul.f32 %v1278, %v1300
    %v1305 = vsel %vm504, %v1303, 0.0
    %1306 = vadd.xlane.f32.xlu0 %v1305
    %v1307 = vpop.xlane.xlu0 %1306
    %v1308 = vsel %vm504, %v1304, 0.0
    %1309 = vadd.xlane.f32.xlu0 %v1308
    %v1310 = vpop.xlane.xlu0 %1309
    %v1311 = vmax.f32 %v1293, %v1307
    %v1312 = vmax.f32 %v1296, %v1310
    %v1313 = vsub.f32 %v1293, %v1311
    %v1314 = vsub.f32 %v1296, %v1312
    %v1315 = vmul.f32 %v1313, 1.442695
    %v1316 = vpow.pop %v1315
    %v1317 = vmul.f32 %v1314, 1.442695
    %v1318 = vpow.pop %v1317
    %v1319 = vsub.f32 %v1307, %v1311
    %v1320 = vsub.f32 %v1310, %v1312
    %v1321 = vmul.f32 %v1319, 1.442695
    %v1322 = vpow.pop %v1321
    %v1323 = vmul.f32 %v1320, 1.442695
    %v1324 = vpow.pop %v1323
    %v1325 = vadd.f32 %v1316, %v1322
    %v1326 = vadd.f32 %v1318, %v1324
    %v1327 = vrcp.pop %v1325
    %v1328 = vrcp.pop %v1326
    %v1329 = vmul.f32 %v1316, %v1327
    %v1330 = vmul.f32 %v1318, %v1328
    %v1331 = vmul.f32 %v1329, %v1273
    %v1332 = vmul.f32 %v1330, %v1278
    %v1333 = vmul.f32 %v1322, %v1327
    %v1334 = vmul.f32 %v1324, %v1328
    %v1335 = vmul.f32 %v1333, %v1273
    %v1336 = vmul.f32 %v1334, %v1278
    %1339 = vrot.lane.b32.xlu0 %v1335, 112
    %v1340 = vpop.permute.xlu0 %1339
    %1341 = vrot.lane.b32.xlu0 %v1336, 112
    %v1342 = vpop.permute.xlu0 %1341
    %v1345 = vadd.f32 %v1331, %v1340
    %v1346 = vadd.f32 %v1332, %v1342
    %1347 = vrot.lane.b32.xlu0 %v1273, 112
    %v1348 = vpop.permute.xlu0 %1347
    %1349 = vrot.lane.b32.xlu0 %v1278, 112
    %v1350 = vpop.permute.xlu0 %1349
    %v1353 = vmul.f32 %v1273, %v1348
    %v1354 = vmul.f32 %v1278, %v1350
    %1357 = vrot.lane.b32.xlu0 %v1353, 112
    %v1358 = vpop.permute.xlu0 %1357
    %1359 = vrot.lane.b32.xlu0 %v1354, 112
    %v1360 = vpop.permute.xlu0 %1359
    %v1363 = vsel %vm504, %v1358, 0.0
    %1364 = vadd.xlane.f32.xlu0 %v1363
    %v1365 = vpop.xlane.xlu0 %1364
    %v1366 = vsel %vm504, %v1360, 0.0
    %1367 = vadd.xlane.f32.xlu0 %v1366
    %v1368 = vpop.xlane.xlu0 %1367
    %1371 = vrot.lane.b32.xlu0 %v1289, 112
    %v1372 = vpop.permute.xlu0 %1371
    %1373 = vrot.lane.b32.xlu0 %v1290, 112
    %v1374 = vpop.permute.xlu0 %1373
    %v1377 = vsel %vm504, %v1372, 0.0
    %1378 = vadd.xlane.f32.xlu0 %v1377
    %v1379 = vpop.xlane.xlu0 %1378
    %v1380 = vsel %vm504, %v1374, 0.0
    %1381 = vadd.xlane.f32.xlu0 %v1380
    %v1382 = vpop.xlane.xlu0 %1381
    %v1383 = vmax.f32 %v1365, %v1379
    %v1384 = vmax.f32 %v1368, %v1382
    %v1385 = vsub.f32 %v1365, %v1383
    %v1386 = vsub.f32 %v1368, %v1384
    %v1387 = vmul.f32 %v1385, 1.442695
    %v1388 = vpow.pop %v1387
    %v1389 = vmul.f32 %v1386, 1.442695
    %v1390 = vpow.pop %v1389
    %v1391 = vsub.f32 %v1379, %v1383
    %v1392 = vsub.f32 %v1382, %v1384
    %v1393 = vmul.f32 %v1391, 1.442695
    %v1394 = vpow.pop %v1393
    %v1395 = vmul.f32 %v1392, 1.442695
    %v1396 = vpow.pop %v1395
    %v1397 = vadd.f32 %v1388, %v1394
    %v1398 = vadd.f32 %v1390, %v1396
    %v1399 = vrcp.pop %v1397
    %v1400 = vrcp.pop %v1398
    %v1401 = vmul.f32 %v1388, %v1399
    %v1402 = vmul.f32 %v1390, %v1400
    %v1403 = vmul.f32 %v1401, %v1273
    %v1404 = vmul.f32 %v1402, %v1278
    %v1405 = vmul.f32 %v1394, %v1399
    %v1406 = vmul.f32 %v1396, %v1400
    %v1407 = vmul.f32 %v1405, %v1273
    %v1408 = vmul.f32 %v1406, %v1278
    %1411 = vrot.lane.b32.xlu0 %v1407, 112
    %v1412 = vpop.permute.xlu0 %1411
    %1413 = vrot.lane.b32.xlu0 %v1408, 112
    %v1414 = vpop.permute.xlu0 %1413
    %v1417 = vadd.f32 %v1403, %v1412
    %v1418 = vadd.f32 %v1404, %v1414
    %1421 = vrot.lane.b32.xlu0 %v1345, 64
    %v1422 = vpop.permute.xlu0 %1421
    %1423 = vrot.lane.b32.xlu0 %v1346, 64
    %v1424 = vpop.permute.xlu0 %1423
    %1429 = vrot.lane.b32.xlu0 %v1417, 80
    %v1430 = vpop.permute.xlu0 %1429
    %1431 = vrot.lane.b32.xlu0 %v1418, 80
    %v1432 = vpop.permute.xlu0 %1431
    %v1435 = vsel %vm504, %v1422, %v1430
    %v1436 = vsel %vm504, %v1424, %v1432
    %v1438 = vsel %vm379, %v1435, 0
    %v1441 = vsel %vm379, %v1436, 0
    %1443 = vmatprep.subr.mxu0 0.0
    %1444 = vmatpush1.msra.mxu0 %v1164
    %1445 = vmatprep.subr.mxu0 0.0
    %1446 = vmatpush1.msra.mxu0 %v1165
    %1447 = vmatprep.subr.mxu0 0.0
    %1448 = vmatpush1.msra.mxu0 %v1166
    %1449 = vmatprep.subr.mxu0 0.0
    %1450 = vmatpush1.msra.mxu0 %v1167
    %1451 = vmatprep.subr.mxu0 0.0
    %1452 = vmatpush1.msra.mxu0 0.0
    %1453 = vmatprep.subr.mxu0 0.0
    %1454 = vmatpush1.msra.mxu0 0.0
    %1455 = vmatprep.subr.mxu0 0.0
    %1456 = vmatpush1.msra.mxu0 0.0
    %1457 = vmatprep.subr.mxu0 0.0
    %1458 = vmatpush1.msra.mxu0 0.0
    %1459 = vmatprep.subr.mxu0 0.0
    %1460 = vmatpush1.msra.mxu0 0.0
    %1461 = vmatprep.subr.mxu0 0.0
    %1462 = vmatpush1.msra.mxu0 0.0
    %1463 = vmatprep.subr.mxu0 0.0
    %1464 = vmatpush1.msra.mxu0 0.0
    %1465 = vmatprep.subr.mxu0 0.0
    %1466 = vmatpush1.msra.mxu0 0.0
    %1467 = vmatprep.subr.mxu0 0.0
    %1468 = vmatpush1.msra.mxu0 0.0
    %1469 = vmatprep.subr.mxu0 0.0
    %1470 = vmatpush1.msra.mxu0 0.0
    %1471 = vmatprep.subr.mxu0 0.0
    %1472 = vmatpush1.msra.mxu0 0.0
    %1473 = vmatprep.subr.mxu0 0.0
    %1474 = vmatpush1.msra.mxu0 0.0
    %1475 = vmatprep.subr.mxu0 0.0
    %1476 = vmatpush1.msra.mxu0 0.0
    %1477 = vmatprep.subr.mxu0 0.0
    %1478 = vmatpush1.msra.mxu0 0.0
    %1479 = vmatprep.subr.mxu0 0.0
    %1480 = vmatpush1.msra.mxu0 0.0
    %1481 = vmatprep.subr.mxu0 0.0
    %1482 = vmatpush1.msra.mxu0 0.0
    %1483 = vmatprep.subr.mxu0 0.0
    %1484 = vmatpush1.msra.mxu0 0.0
    %1485 = vmatprep.subr.mxu0 0.0
    %1486 = vmatpush1.msra.mxu0 0.0
    %1487 = vmatprep.subr.mxu0 0.0
    %1488 = vmatpush1.msra.mxu0 0.0
    %1489 = vmatprep.subr.mxu0 0.0
    %1490 = vmatpush1.msra.mxu0 0.0
    %1491 = vmatprep.subr.mxu0 0.0
    %1492 = vmatpush1.msra.mxu0 0.0
    %1493 = vmatprep.subr.mxu0 0.0
    %1494 = vmatpush1.msra.mxu0 0.0
    %1495 = vmatprep.subr.mxu0 0.0
    %1496 = vmatpush1.msra.mxu0 0.0
    %1497 = vmatprep.subr.mxu0 0.0
    %1498 = vmatpush1.msra.mxu0 0.0
    %1499 = vmatprep.subr.mxu0 0.0
    %1500 = vmatpush1.msra.mxu0 0.0
    %1501 = vmatprep.subr.mxu0 0.0
    %1502 = vmatpush1.msra.mxu0 0.0
    %1503 = vmatprep.subr.mxu0 0.0
    %1504 = vmatpush1.msra.mxu0 0.0
    %1505 = vmatprep.subr.mxu0 0.0
    %1506 = vmatpush1.msra.mxu0 0.0
    %1507 = vmatprep.mubr.f32.mxu0 0.0
    %1508 = vmatmul.mubr.f32.gmra.mrb[0].mxu0 %v1438
    %v1509 = vpop.f32.mrb[0].mxu0
    %v1510 = vadd.f32 0.0, %v1509
    %v1511 = vpop.f32.mrb[0].mxu0
    %1512 = vmatprep.mubr.f32.mxu0 0.0
    %1513 = vmatmul.mubr.f32.gmra.mrb[0].mxu0 %v1441
    %v1514 = vpop.f32.mrb[0].mxu0
    %v1515 = vadd.f32 0.0, %v1514
    %v1516 = vpop.f32.mrb[0].mxu0
    %1517 = vdwg.mxu0
    %v1518 = vadd.f32 %v1157, %v1510
    %v1519 = vadd.f32 %v1158, %v1515
    %v1520 = vld [vmem:[#allocation26] sm:$0xff]
    %v1521 = vld [vmem:[#allocation26 + $0x8] sm:$0xff]
    %v1522 = vld [vmem:[#allocation26 + $0x10] sm:$0xff]
    %v1523 = vld [vmem:[#allocation26 + $0x18] sm:$0xff]
    %v1524 = vld [vmem:[#allocation28] sm:$0x1]
    %v1525 = vld [vmem:[#allocation29] sm:$0xff]
    %v1526 = vld [vmem:[#allocation29 + $0x8] sm:$0xff]
    %v1527 = vld [vmem:[#allocation29 + $0x10] sm:$0xff]
    %v1528 = vld [vmem:[#allocation29 + $0x18] sm:$0xff]
    %v1529 = vld [vmem:[#allocation31] sm:$0x1]
    %v1530 = vld [vmem:[#allocation32] sm:$0xff]
    %v1531 = vld [vmem:[#allocation32 + $0x8] sm:$0xff]
    %v1532 = vld [vmem:[#allocation32 + $0x10] sm:$0xff]
    %v1533 = vld [vmem:[#allocation32 + $0x18] sm:$0xff]
    %v1534 = vld [vmem:[#allocation32 + $0x20] sm:$0xff]
    %v1535 = vld [vmem:[#allocation32 + $0x28] sm:$0xff]
    %v1536 = vld [vmem:[#allocation32 + $0x30] sm:$0xff]
    %v1537 = vld [vmem:[#allocation32 + $0x38] sm:$0xff]
    %v1538 = vld [vmem:[#allocation34] sm:$0x1]
    %v1539 = vld [vmem:[#allocation35] sm:$0xff]
    %v1540 = vld [vmem:[#allocation35 + $0x8] sm:$0xff]
    %v1541 = vld [vmem:[#allocation35 + $0x10] sm:$0xff]
    %v1542 = vld [vmem:[#allocation35 + $0x18] sm:$0xff]
    %v1543 = vld [vmem:[#allocation37] sm:$0x1]
    %v1544 = vsel %vm379, %v1518, 0.0
    %1545 = vadd.xlane.f32.xlu0 %v1544
    %v1546 = vpop.xlane.xlu0 %1545
    %v1547 = vsel %vm379, %v1519, 0.0
    %1548 = vadd.xlane.f32.xlu0 %v1547
    %v1549 = vpop.xlane.xlu0 %1548
    %v1550 = vmul.f32 %v1546, %v386
    %v1551 = vmul.f32 %v1549, %v386
    %v1552 = vsub.f32 %v1518, %v1550
    %v1553 = vsub.f32 %v1519, %v1551
    %v1554 = vmul.f32 %v1552, %v1552
    %v1555 = vmul.f32 %v1553, %v1553
    %v1556 = vsel %vm379, %v1554, 0.0
    %1557 = vadd.xlane.f32.xlu0 %v1556
    %v1558 = vpop.xlane.xlu0 %1557
    %v1559 = vsel %vm379, %v1555, 0.0
    %1560 = vadd.xlane.f32.xlu0 %v1559
    %v1561 = vpop.xlane.xlu0 %1560
    %v1562 = vmul.f32 %v1558, %v386
    %v1563 = vmul.f32 %v1561, %v386
    %v1564 = vadd.f32 %v1562, 1e-05
    %v1565 = vadd.f32 %v1563, 1e-05
    %v1566 = vrsqrt.pop %v1564
    %v1567 = vrsqrt.pop %v1565
    %v1568 = vmul.f32 %v1552, %v1566
    %v1569 = vmul.f32 %v1553, %v1567
    %v1571 = vlaneseq
    %v1572 = vshrl.u32 %v1571, 7
    %v1573 = vsub.s32 0, %v1572
    %v1574 = vrot.slane %v1524, %v1573
    %v1577 = vsel %vm379, %v1568, 0
    %v1580 = vsel %vm379, %v1569, 0
    %1582 = vmatprep.subr.mxu0 0.0
    %1583 = vmatpush1.msra.mxu0 %v1520
    %1584 = vmatprep.subr.mxu0 0.0
    %1585 = vmatpush1.msra.mxu0 %v1521
    %1586 = vmatprep.subr.mxu0 0.0
    %1587 = vmatpush1.msra.mxu0 %v1522
    %1588 = vmatprep.subr.mxu0 0.0
    %1589 = vmatpush1.msra.mxu0 %v1523
    %1590 = vmatprep.subr.mxu0 0.0
    %1591 = vmatpush1.msra.mxu0 0.0
    %1592 = vmatprep.subr.mxu0 0.0
    %1593 = vmatpush1.msra.mxu0 0.0
    %1594 = vmatprep.subr.mxu0 0.0
    %1595 = vmatpush1.msra.mxu0 0.0
    %1596 = vmatprep.subr.mxu0 0.0
    %1597 = vmatpush1.msra.mxu0 0.0
    %1598 = vmatprep.subr.mxu0 0.0
    %1599 = vmatpush1.msra.mxu0 0.0
    %1600 = vmatprep.subr.mxu0 0.0
    %1601 = vmatpush1.msra.mxu0 0.0
    %1602 = vmatprep.subr.mxu0 0.0
    %1603 = vmatpush1.msra.mxu0 0.0
    %1604 = vmatprep.subr.mxu0 0.0
    %1605 = vmatpush1.msra.mxu0 0.0
    %1606 = vmatprep.subr.mxu0 0.0
    %1607 = vmatpush1.msra.mxu0 0.0
    %1608 = vmatprep.subr.mxu0 0.0
    %1609 = vmatpush1.msra.mxu0 0.0
    %1610 = vmatprep.subr.mxu0 0.0
    %1611 = vmatpush1.msra.mxu0 0.0
    %1612 = vmatprep.subr.mxu0 0.0
    %1613 = vmatpush1.msra.mxu0 0.0
    %1614 = vmatprep.subr.mxu0 0.0
    %1615 = vmatpush1.msra.mxu0 0.0
    %1616 = vmatprep.subr.mxu0 0.0
    %1617 = vmatpush1.msra.mxu0 0.0
    %1618 = vmatprep.subr.mxu0 0.0
    %1619 = vmatpush1.msra.mxu0 0.0
    %1620 = vmatprep.subr.mxu0 0.0
    %1621 = vmatpush1.msra.mxu0 0.0
    %1622 = vmatprep.subr.mxu0 0.0
    %1623 = vmatpush1.msra.mxu0 0.0
    %1624 = vmatprep.subr.mxu0 0.0
    %1625 = vmatpush1.msra.mxu0 0.0
    %1626 = vmatprep.subr.mxu0 0.0
    %1627 = vmatpush1.msra.mxu0 0.0
    %1628 = vmatprep.subr.mxu0 0.0
    %1629 = vmatpush1.msra.mxu0 0.0
    %1630 = vmatprep.subr.mxu0 0.0
    %1631 = vmatpush1.msra.mxu0 0.0
    %1632 = vmatprep.subr.mxu0 0.0
    %1633 = vmatpush1.msra.mxu0 0.0
    %1634 = vmatprep.subr.mxu0 0.0
    %1635 = vmatpush1.msra.mxu0 0.0
    %1636 = vmatprep.subr.mxu0 0.0
    %1637 = vmatpush1.msra.mxu0 0.0
    %1638 = vmatprep.subr.mxu0 0.0
    %1639 = vmatpush1.msra.mxu0 0.0
    %1640 = vmatprep.subr.mxu0 0.0
    %1641 = vmatpush1.msra.mxu0 0.0
    %1642 = vmatprep.subr.mxu0 0.0
    %1643 = vmatpush1.msra.mxu0 0.0
    %1644 = vmatprep.subr.mxu0 0.0
    %1645 = vmatpush1.msra.mxu0 0.0
    %1646 = vmatprep.mubr.f32.mxu0 0.0
    %1647 = vmatmul.mubr.f32.gmra.mrb[0].mxu0 %v1577
    %v1648 = vpop.f32.mrb[0].mxu0
    %v1649 = vadd.f32 %v1574, %v1648
    %v1650 = vpop.f32.mrb[0].mxu0
    %1651 = vmatprep.mubr.f32.mxu0 0.0
    %1652 = vmatmul.mubr.f32.gmra.mrb[0].mxu0 %v1580
    %v1653 = vpop.f32.mrb[0].mxu0
    %v1654 = vadd.f32 %v1574, %v1653
    %v1655 = vpop.f32.mrb[0].mxu0
    %1656 = vdwg.mxu0
    %v1658 = vlaneseq
    %v1659 = vshrl.u32 %v1658, 7
    %v1660 = vsub.s32 0, %v1659
    %v1661 = vrot.slane %v1529, %v1660
    %v1664 = vsel %vm379, %v1649, 0
    %v1667 = vsel %vm379, %v1654, 0
    %1669 = vmatprep.subr.mxu0 0.0
    %1670 = vmatpush1.msra.mxu0 %v1525
    %1671 = vmatprep.subr.mxu0 0.0
    %1672 = vmatpush1.msra.mxu0 %v1526
    %1673 = vmatprep.subr.mxu0 0.0
    %1674 = vmatpush1.msra.mxu0 %v1527
    %1675 = vmatprep.subr.mxu0 0.0
    %1676 = vmatpush1.msra.mxu0 %v1528
    %1677 = vmatprep.subr.mxu0 0.0
    %1678 = vmatpush1.msra.mxu0 0.0
    %1679 = vmatprep.subr.mxu0 0.0
    %1680 = vmatpush1.msra.mxu0 0.0
    %1681 = vmatprep.subr.mxu0 0.0
    %1682 = vmatpush1.msra.mxu0 0.0
    %1683 = vmatprep.subr.mxu0 0.0
    %1684 = vmatpush1.msra.mxu0 0.0
    %1685 = vmatprep.subr.mxu0 0.0
    %1686 = vmatpush1.msra.mxu0 0.0
    %1687 = vmatprep.subr.mxu0 0.0
    %1688 = vmatpush1.msra.mxu0 0.0
    %1689 = vmatprep.subr.mxu0 0.0
    %1690 = vmatpush1.msra.mxu0 0.0
    %1691 = vmatprep.subr.mxu0 0.0
    %1692 = vmatpush1.msra.mxu0 0.0
    %1693 = vmatprep.subr.mxu0 0.0
    %1694 = vmatpush1.msra.mxu0 0.0
    %1695 = vmatprep.subr.mxu0 0.0
    %1696 = vmatpush1.msra.mxu0 0.0
    %1697 = vmatprep.subr.mxu0 0.0
    %1698 = vmatpush1.msra.mxu0 0.0
    %1699 = vmatprep.subr.mxu0 0.0
    %1700 = vmatpush1.msra.mxu0 0.0
    %1701 = vmatprep.subr.mxu0 0.0
    %1702 = vmatpush1.msra.mxu0 0.0
    %1703 = vmatprep.subr.mxu0 0.0
    %1704 = vmatpush1.msra.mxu0 0.0
    %1705 = vmatprep.subr.mxu0 0.0
    %1706 = vmatpush1.msra.mxu0 0.0
    %1707 = vmatprep.subr.mxu0 0.0
    %1708 = vmatpush1.msra.mxu0 0.0
    %1709 = vmatprep.subr.mxu0 0.0
    %1710 = vmatpush1.msra.mxu0 0.0
    %1711 = vmatprep.subr.mxu0 0.0
    %1712 = vmatpush1.msra.mxu0 0.0
    %1713 = vmatprep.subr.mxu0 0.0
    %1714 = vmatpush1.msra.mxu0 0.0
    %1715 = vmatprep.subr.mxu0 0.0
    %1716 = vmatpush1.msra.mxu0 0.0
    %1717 = vmatprep.subr.mxu0 0.0
    %1718 = vmatpush1.msra.mxu0 0.0
    %1719 = vmatprep.subr.mxu0 0.0
    %1720 = vmatpush1.msra.mxu0 0.0
    %1721 = vmatprep.subr.mxu0 0.0
    %1722 = vmatpush1.msra.mxu0 0.0
    %1723 = vmatprep.subr.mxu0 0.0
    %1724 = vmatpush1.msra.mxu0 0.0
    %1725 = vmatprep.subr.mxu0 0.0
    %1726 = vmatpush1.msra.mxu0 0.0
    %1727 = vmatprep.subr.mxu0 0.0
    %1728 = vmatpush1.msra.mxu0 0.0
    %1729 = vmatprep.subr.mxu0 0.0
    %1730 = vmatpush1.msra.mxu0 0.0
    %1731 = vmatprep.subr.mxu0 0.0
    %1732 = vmatpush1.msra.mxu0 0.0
    %1733 = vmatprep.mubr.f32.mxu0 0.0
    %1734 = vmatmul.mubr.f32.gmra.mrb[0].mxu0 %v1664
    %v1735 = vpop.f32.mrb[0].mxu0
    %v1736 = vadd.f32 %v1661, %v1735
    %v1737 = vpop.f32.mrb[0].mxu0
    %1738 = vmatprep.mubr.f32.mxu0 0.0
    %1739 = vmatmul.mubr.f32.gmra.mrb[0].mxu0 %v1667
    %v1740 = vpop.f32.mrb[0].mxu0
    %v1741 = vadd.f32 %v1661, %v1740
    %v1742 = vpop.f32.mrb[0].mxu0
    %1743 = vdwg.mxu0
    %v1744 = vmul.f32 %v1736, 0.5
    %v1745 = vmul.f32 %v1741, 0.5
    %v1746 = vmul.f32 %v1736, 0.044715
    %v1747 = vmul.f32 %v1741, 0.044715
    %v1748 = vmul.f32 %v1746, %v1736
    %v1749 = vmul.f32 %v1747, %v1741
    %v1750 = vmul.f32 %v1748, %v1736
    %v1751 = vmul.f32 %v1749, %v1741
    %v1752 = vadd.f32 %v1736, %v1750
    %v1753 = vadd.f32 %v1741, %v1751
    %v1754 = vmul.f32 %v1752, 0.7978846
    %v1755 = vmul.f32 %v1753, 0.7978846
    %v1756 = vtanh.pop %v1754
    %v1757 = vtanh.pop %v1755
    %v1758 = vadd.f32 %v1756, 1.0
    %v1759 = vadd.f32 %v1757, 1.0
    %v1760 = vmul.f32 %v1744, %v1758
    %v1761 = vmul.f32 %v1745, %v1759
    %v1763 = vsel %vm976, %v1760, 0
    %v1766 = vsel %vm976, %v1761, 0
    %1768 = vmatprep.subr.mxu0 0.0
    %1769 = vmatpush1.msra.mxu0 %v1530
    %1770 = vmatprep.subr.mxu0 0.0
    %1771 = vmatpush1.msra.mxu0 %v1531
    %1772 = vmatprep.subr.mxu0 0.0
    %1773 = vmatpush1.msra.mxu0 %v1532
    %1774 = vmatprep.subr.mxu0 0.0
    %1775 = vmatpush1.msra.mxu0 %v1533
    %1776 = vmatprep.subr.mxu0 0.0
    %1777 = vmatpush1.msra.mxu0 %v1534
    %1778 = vmatprep.subr.mxu0 0.0
    %1779 = vmatpush1.msra.mxu0 %v1535
    %1780 = vmatprep.subr.mxu0 0.0
    %1781 = vmatpush1.msra.mxu0 %v1536
    %1782 = vmatprep.subr.mxu0 0.0
    %1783 = vmatpush1.msra.mxu0 %v1537
    %1784 = vmatprep.subr.mxu0 0.0
    %1785 = vmatpush1.msra.mxu0 0.0
    %1786 = vmatprep.subr.mxu0 0.0
    %1787 = vmatpush1.msra.mxu0 0.0
    %1788 = vmatprep.subr.mxu0 0.0
    %1789 = vmatpush1.msra.mxu0 0.0
    %1790 = vmatprep.subr.mxu0 0.0
    %1791 = vmatpush1.msra.mxu0 0.0
    %1792 = vmatprep.subr.mxu0 0.0
    %1793 = vmatpush1.msra.mxu0 0.0
    %1794 = vmatprep.subr.mxu0 0.0
    %1795 = vmatpush1.msra.mxu0 0.0
    %1796 = vmatprep.subr.mxu0 0.0
    %1797 = vmatpush1.msra.mxu0 0.0
    %1798 = vmatprep.subr.mxu0 0.0
    %1799 = vmatpush1.msra.mxu0 0.0
    %1800 = vmatprep.subr.mxu0 0.0
    %1801 = vmatpush1.msra.mxu0 0.0
    %1802 = vmatprep.subr.mxu0 0.0
    %1803 = vmatpush1.msra.mxu0 0.0
    %1804 = vmatprep.subr.mxu0 0.0
    %1805 = vmatpush1.msra.mxu0 0.0
    %1806 = vmatprep.subr.mxu0 0.0
    %1807 = vmatpush1.msra.mxu0 0.0
    %1808 = vmatprep.subr.mxu0 0.0
    %1809 = vmatpush1.msra.mxu0 0.0
    %1810 = vmatprep.subr.mxu0 0.0
    %1811 = vmatpush1.msra.mxu0 0.0
    %1812 = vmatprep.subr.mxu0 0.0
    %1813 = vmatpush1.msra.mxu0 0.0
    %1814 = vmatprep.subr.mxu0 0.0
    %1815 = vmatpush1.msra.mxu0 0.0
    %1816 = vmatprep.subr.mxu0 0.0
    %1817 = vmatpush1.msra.mxu0 0.0
    %1818 = vmatprep.subr.mxu0 0.0
    %1819 = vmatpush1.msra.mxu0 0.0
    %1820 = vmatprep.subr.mxu0 0.0
    %1821 = vmatpush1.msra.mxu0 0.0
    %1822 = vmatprep.subr.mxu0 0.0
    %1823 = vmatpush1.msra.mxu0 0.0
    %1824 = vmatprep.subr.mxu0 0.0
    %1825 = vmatpush1.msra.mxu0 0.0
    %1826 = vmatprep.subr.mxu0 0.0
    %1827 = vmatpush1.msra.mxu0 0.0
    %1828 = vmatprep.subr.mxu0 0.0
    %1829 = vmatpush1.msra.mxu0 0.0
    %1830 = vmatprep.subr.mxu0 0.0
    %1831 = vmatpush1.msra.mxu0 0.0
    %1832 = vmatprep.mubr.f32.mxu0 0.0
    %1833 = vmatmul.mubr.f32.gmra.mrb[0].mxu0 %v1763
    %v1834 = vpop.f32.mrb[0].mxu0
    %v1835 = vadd.f32 0.0, %v1834
    %v1836 = vpop.f32.mrb[0].mxu0
    %1837 = vmatprep.mubr.f32.mxu0 0.0
    %1838 = vmatmul.mubr.f32.gmra.mrb[0].mxu0 %v1766
    %v1839 = vpop.f32.mrb[0].mxu0
    %v1840 = vadd.f32 0.0, %v1839
    %v1841 = vpop.f32.mrb[0].mxu0
    %1842 = vdwg.mxu0
    %v1843 = vadd.f32 %v1649, %v1835
    %v1844 = vadd.f32 %v1654, %v1840
    %v1846 = vlaneseq
    %v1847 = vshrl.u32 %v1846, 7
    %v1848 = vsub.s32 0, %v1847
    %v1849 = vrot.slane %v1538, %v1848
    %v1851 = vadd.f32 %v1843, %v1849
    %v1852 = vadd.f32 %v1844, %v1849
    %v1854 = vsel %vm379, %v1851, 0
    %v1857 = vsel %vm379, %v1852, 0
    %1859 = vmatprep.subr.mxu0 0.0
    %1860 = vmatpush1.msra.mxu0 %v1539
    %1861 = vmatprep.subr.mxu0 0.0
    %1862 = vmatpush1.msra.mxu0 %v1540
    %1863 = vmatprep.subr.mxu0 0.0
    %1864 = vmatpush1.msra.mxu0 %v1541
    %1865 = vmatprep.subr.mxu0 0.0
    %1866 = vmatpush1.msra.mxu0 %v1542
    %1867 = vmatprep.subr.mxu0 0.0
    %1868 = vmatpush1.msra.mxu0 0.0
    %1869 = vmatprep.subr.mxu0 0.0
    %1870 = vmatpush1.msra.mxu0 0.0
    %1871 = vmatprep.subr.mxu0 0.0
    %1872 = vmatpush1.msra.mxu0 0.0
    %1873 = vmatprep.subr.mxu0 0.0
    %1874 = vmatpush1.msra.mxu0 0.0
    %1875 = vmatprep.subr.mxu0 0.0
    %1876 = vmatpush1.msra.mxu0 0.0
    %1877 = vmatprep.subr.mxu0 0.0
    %1878 = vmatpush1.msra.mxu0 0.0
    %1879 = vmatprep.subr.mxu0 0.0
    %1880 = vmatpush1.msra.mxu0 0.0
    %1881 = vmatprep.subr.mxu0 0.0
    %1882 = vmatpush1.msra.mxu0 0.0
    %1883 = vmatprep.subr.mxu0 0.0
    %1884 = vmatpush1.msra.mxu0 0.0
    %1885 = vmatprep.subr.mxu0 0.0
    %1886 = vmatpush1.msra.mxu0 0.0
    %1887 = vmatprep.subr.mxu0 0.0
    %1888 = vmatpush1.msra.mxu0 0.0
    %1889 = vmatprep.subr.mxu0 0.0
    %1890 = vmatpush1.msra.mxu0 0.0
    %1891 = vmatprep.subr.mxu0 0.0
    %1892 = vmatpush1.msra.mxu0 0.0
    %1893 = vmatprep.subr.mxu0 0.0
    %1894 = vmatpush1.msra.mxu0 0.0
    %1895 = vmatprep.subr.mxu0 0.0
    %1896 = vmatpush1.msra.mxu0 0.0
    %1897 = vmatprep.subr.mxu0 0.0
    %1898 = vmatpush1.msra.mxu0 0.0
    %1899 = vmatprep.subr.mxu0 0.0
    %1900 = vmatpush1.msra.mxu0 0.0
    %1901 = vmatprep.subr.mxu0 0.0
    %1902 = vmatpush1.msra.mxu0 0.0
    %1903 = vmatprep.subr.mxu0 0.0
    %1904 = vmatpush1.msra.mxu0 0.0
    %1905 = vmatprep.subr.mxu0 0.0
    %1906 = vmatpush1.msra.mxu0 0.0
    %1907 = vmatprep.subr.mxu0 0.0
    %1908 = vmatpush1.msra.mxu0 0.0
    %1909 = vmatprep.subr.mxu0 0.0
    %1910 = vmatpush1.msra.mxu0 0.0
    %1911 = vmatprep.subr.mxu0 0.0
    %1912 = vmatpush1.msra.mxu0 0.0
    %1913 = vmatprep.subr.mxu0 0.0
    %1914 = vmatpush1.msra.mxu0 0.0
    %1915 = vmatprep.subr.mxu0 0.0
    %1916 = vmatpush1.msra.mxu0 0.0
    %1917 = vmatprep.subr.mxu0 0.0
    %1918 = vmatpush1.msra.mxu0 0.0
    %1919 = vmatprep.subr.mxu0 0.0
    %1920 = vmatpush1.msra.mxu0 0.0
    %1921 = vmatprep.subr.mxu0 0.0
    %1922 = vmatpush1.msra.mxu0 0.0
    %1923 = vmatprep.mubr.f32.mxu0 0.0
    %1924 = vmatmul.mubr.f32.gmra.mrb[0].mxu0 %v1854
    %v1925 = vpop.f32.mrb[0].mxu0
    %v1926 = vadd.f32 0.0, %v1925
    %v1927 = vpop.f32.mrb[0].mxu0
    %1928 = vmatprep.mubr.f32.mxu0 0.0
    %1929 = vmatmul.mubr.f32.gmra.mrb[0].mxu0 %v1857
    %v1930 = vpop.f32.mrb[0].mxu0
    %v1931 = vadd.f32 0.0, %v1930
    %v1932 = vpop.f32.mrb[0].mxu0
    %1933 = vdwg.mxu0
    %v1934 = vadd.f32 %v1518, %v1926
    %v1935 = vadd.f32 %v1519, %v1931
    %v1937 = vlaneseq
    %v1938 = vshrl.u32 %v1937, 7
    %v1939 = vsub.s32 0, %v1938
    %v1940 = vrot.slane %v1543, %v1939
    %v1942 = vadd.f32 %v1934, %v1940
    %v1943 = vadd.f32 %v1935, %v1940
    %v1944 = vpack.c.bf16 %v1943, %v1942
    %v1946 = vunpack.c.l.b16 %v1944
    %v1947 = vunpack.c.h.b16 %v1944
    %v1948 = vpack.c.b16 %v1946, %v1946
    %v1949 = vpack.c.b16 %v1947, %v1947
    %vm1952 = vcmask 257024
    %1953 = vst.msk [vmem:[#allocation38] sm:$0xf] %vm1952, %v1948
    %1954 = vst.msk [vmem:[#allocation38 + $0x4] sm:$0xf] %vm1952, %v1949
    // Predicated region
    $region186: #{_lambda_.5} parent=1 // pred_check
      _
    $region187: #{_lambda_.5} parent=1 // pred_check_branch
      %1956 = sbr.rel (0) target = $region189
    $region188: #{_lambda_.5} parent=1 // pred_region
      %s1958 = ssub.s32 128, 128
      %1959 = vsyncadd [#allocation4], %s1958
      %s1960 = sshll.u32 [#allocation38], 4
      %s1961 = int_to_ptr.vmem [resolvable:$true] %s1960
      %1966 = dma.vmem_to_hbm [thread:$0]  %s1961, 128, %s23, [#allocation4], 64, 64, 4
    $region189: #{_lambda_.5} parent=1 // pred_fallthru
      _
    // Predicated region
    $region190: #{_lambda_.5} parent=1 // pred_check
      _
    $region191: #{_lambda_.5} parent=1 // pred_check_branch
      %1968 = sbr.rel (0) target = $region193
    $region192: #{_lambda_.5} parent=1 // pred_region
      %1969 = dma.done [#allocation4], 128
    $region193: #{_lambda_.5} parent=1 // pred_fallthru
      _
    %1970 = vsyncpa [#allocation3], 1
    %1971 = vsyncpa [#allocation6], 1
    %1972 = vsyncpa [#allocation9], 1
    %1973 = vsyncpa [#allocation12], 1
    %1974 = vsyncpa [#allocation15], 1
    %1975 = vsyncpa [#allocation18], 1
    %1976 = vsyncpa [#allocation21], 1
    %1977 = vsyncpa [#allocation24], 1
    %1978 = vsyncpa [#allocation27], 1
    %1979 = vsyncpa [#allocation30], 1
    %1980 = vsyncpa [#allocation33], 1
    %1981 = vsyncpa [#allocation36], 1
    %1982 = vsyncpa [#allocation4], 1

// kernel: _lambda_.7
$region0: #{_lambda_.7}
  #allocation0 [shape = 'u32[]', space=smem, size = 0x4, offset = 0x4, fixed_abs, tag = 'smem constant byte address 0x4 - core index']
  #allocation1 [shape = 'u32[144,128]{1,0:T(1,128)}', space=vmem, size = 0x12000, scoped, tag = 'internal scratch']
  %s0 = inlined_call_operand.vmem [shape: f32[2,64], index: 0, kind: input, shape index: {}]
  %s1 = inlined_call_operand.hbm [shape: f32[64,512], index: 1, kind: input, shape index: {}]
  %s2 = inlined_call_operand.vmem [shape: f32[1,512], index: 2, kind: input, shape index: {}]
  %s3 = inlined_call_operand.hbm [shape: f32[512,256], index: 3, kind: input, shape index: {}]
  %s4 = inlined_call_operand.vmem [shape: f32[1,256], index: 4, kind: input, shape index: {}]
  %s5 = inlined_call_operand.hbm [shape: f32[256,2], index: 5, kind: input, shape index: {}]
  %s6 = inlined_call_operand.vmem [shape: f32[1,2], index: 6, kind: input, shape index: {}]
  %s7 = inlined_call_operand.hbm [shape: f32[2,256], index: 7, kind: output, shape index: {0}]
  %s8 = inlined_call_operand.vmem [shape: f32[2,2], index: 8, kind: output, shape index: {1}]
  %9 = xla_tuple %s7, %s8
  %s10 = sld [smem:[#allocation0]]
  $region58: #{_lambda_.7} parent=0
    _
  %s12 = ssub.s32 1, %s10
  %s13 = scalar_select 0, %s12, %s10
  $region1: #{_lambda_.7} parent=0
    #allocation2 [shape = 'u8[131072]{0}', space=vmem, size = 0x20000, scoped, tag = 'input window, operand 1, single buffered']
    #allocation3 [shape = 's32[1]{0}', space=sflag, size = 0x4, scoped, tag = 'scoped memory for _lambda_.7']
    #allocation4 [shape = 's32[1]{0}', space=sflag, size = 0x4, scoped, tag = 'scoped memory for _lambda_.7']
    #allocation5 [shape = 'u8[524288]{0}', space=vmem, size = 0x80000, scoped, tag = 'input window, operand 3, single buffered']
    #allocation6 [shape = 's32[1]{0}', space=sflag, size = 0x4, scoped, tag = 'scoped memory for _lambda_.7']
    #allocation7 [shape = 'u8[131072]{0}', space=vmem, size = 0x20000, scoped, tag = 'input window, operand 5, single buffered']
    #allocation8 [shape = 'u8[2048]{0}', space=vmem, size = 0x800, scoped, tag = 'output window, operand 0, single buffered']
    %14 = vsyncpa [#allocation3], 0
    %15 = vsyncpa [#allocation6], 0
    %16 = vsyncpa [#allocation4], 0
    // Predicated region
    $region2: #{_lambda_.7} parent=1 // pred_check
      _
    $region3: #{_lambda_.7} parent=1 // pred_check_branch
      %18 = sbr.rel (0) target = $region5
    $region4: #{_lambda_.7} parent=1 // pred_region
      _
    $region5: #{_lambda_.7} parent=1 // pred_fallthru
      _
    // Predicated region
    $region6: #{_lambda_.7} parent=1 // pred_check
      _
    $region7: #{_lambda_.7} parent=1 // pred_check_branch
      %20 = sbr.rel (0) target = $region9
    $region8: #{_lambda_.7} parent=1 // pred_region
      %s22 = ssub.s32 4096, 4096
      %23 = vsyncadd [#allocation3], %s22
      %s24 = sshll.u32 [#allocation2], 4
      %s25 = int_to_ptr.vmem [resolvable:$true] %s24
      %30 = dma.hbm_to_vmem [thread:$0]  %s1, 4096, %s25, [#allocation3], 512, 512, 32
    $region9: #{_lambda_.7} parent=1 // pred_fallthru
      _
    // Predicated region
    $region10: #{_lambda_.7} parent=1 // pred_check
      _
    $region11: #{_lambda_.7} parent=1 // pred_check_branch
      %32 = sbr.rel (0) target = $region13
    $region12: #{_lambda_.7} parent=1 // pred_region
      _
    $region13: #{_lambda_.7} parent=1 // pred_fallthru
      _
    // Predicated region
    $region14: #{_lambda_.7} parent=1 // pred_check
      _
    $region15: #{_lambda_.7} parent=1 // pred_check_branch
      %34 = sbr.rel (0) target = $region17
    $region16: #{_lambda_.7} parent=1 // pred_region
      %s36 = ssub.s32 16384, 16384
      %37 = vsyncadd [#allocation6], %s36
      %s38 = sshll.u32 [#allocation5], 4
      %s39 = int_to_ptr.vmem [resolvable:$true] %s38
      %44 = dma.hbm_to_vmem [thread:$0]  %s3, 16384, %s39, [#allocation6], 256, 256, 16
    $region17: #{_lambda_.7} parent=1 // pred_fallthru
      _
    // Predicated region
    $region18: #{_lambda_.7} parent=1 // pred_check
      _
    $region19: #{_lambda_.7} parent=1 // pred_check_branch
      %46 = sbr.rel (0) target = $region21
    $region20: #{_lambda_.7} parent=1 // pred_region
      _
    $region21: #{_lambda_.7} parent=1 // pred_fallthru
      _
    // Predicated region
    $region22: #{_lambda_.7} parent=1 // pred_check
      _
    $region23: #{_lambda_.7} parent=1 // pred_check_branch
      %48 = sbr.rel (0) target = $region25
    $region24: #{_lambda_.7} parent=1 // pred_region
      %s50 = ssub.s32 4096, 4096
      %51 = vsyncadd [#allocation6], %s50
      %s52 = sshll.u32 [#allocation7], 4
      %s53 = int_to_ptr.vmem [resolvable:$true] %s52
      %58 = dma.hbm_to_vmem [thread:$0]  %s5, 4096, %s53, [#allocation6], 128, 128, 8
    $region25: #{_lambda_.7} parent=1 // pred_fallthru
      _
    // Predicated region
    $region26: #{_lambda_.7} parent=1 // pred_check
      _
    $region27: #{_lambda_.7} parent=1 // pred_check_branch
      %60 = sbr.rel (0) target = $region29
    $region28: #{_lambda_.7} parent=1 // pred_region
      _
    $region29: #{_lambda_.7} parent=1 // pred_fallthru
      _
    // Predicated region
    $region30: #{_lambda_.7} parent=1 // pred_check
      _
    $region31: #{_lambda_.7} parent=1 // pred_check_branch
      %62 = sbr.rel (0) target = $region33
    $region32: #{_lambda_.7} parent=1 // pred_region
      %63 = dma.done [#allocation3], 4096
    $region33: #{_lambda_.7} parent=1 // pred_fallthru
      _
    // Predicated region
    $region34: #{_lambda_.7} parent=1 // pred_check
      _
    $region35: #{_lambda_.7} parent=1 // pred_check_branch
      %65 = sbr.rel (0) target = $region37
    $region36: #{_lambda_.7} parent=1 // pred_region
      %66 = dma.done [#allocation6], 16384
    $region37: #{_lambda_.7} parent=1 // pred_fallthru
      _
    // Predicated region
    $region38: #{_lambda_.7} parent=1 // pred_check
      _
    $region39: #{_lambda_.7} parent=1 // pred_check_branch
      %68 = sbr.rel (0) target = $region41
    $region40: #{_lambda_.7} parent=1 // pred_region
      %69 = dma.done [#allocation6], 4096
    $region41: #{_lambda_.7} parent=1 // pred_fallthru
      _
    %v70 = vld [vmem:[%s0] sm:$0x3]
    %v71 = vld [vmem:[#allocation2] sm:$0xff]
    %v72 = vld [vmem:[#allocation2 + $0x8] sm:$0xff]
    %v73 = vld [vmem:[#allocation2 + $0x10] sm:$0xff]
    %v74 = vld [vmem:[#allocation2 + $0x18] sm:$0xff]
    %v75 = vld [vmem:[#allocation2 + $0x20] sm:$0xff]
    %v76 = vld [vmem:[#allocation2 + $0x28] sm:$0xff]
    %v77 = vld [vmem:[#allocation2 + $0x30] sm:$0xff]
    %v78 = vld [vmem:[#allocation2 + $0x38] sm:$0xff]
    %v79 = vld [vmem:[#allocation2 + $0x40] sm:$0xff]
    %v80 = vld [vmem:[#allocation2 + $0x48] sm:$0xff]
    %v81 = vld [vmem:[#allocation2 + $0x50] sm:$0xff]
    %v82 = vld [vmem:[#allocation2 + $0x58] sm:$0xff]
    %v83 = vld [vmem:[#allocation2 + $0x60] sm:$0xff]
    %v84 = vld [vmem:[#allocation2 + $0x68] sm:$0xff]
    %v85 = vld [vmem:[#allocation2 + $0x70] sm:$0xff]
    %v86 = vld [vmem:[#allocation2 + $0x78] sm:$0xff]
    %v87 = vld [vmem:[#allocation2 + $0x80] sm:$0xff]
    %v88 = vld [vmem:[#allocation2 + $0x88] sm:$0xff]
    %v89 = vld [vmem:[#allocation2 + $0x90] sm:$0xff]
    %v90 = vld [vmem:[#allocation2 + $0x98] sm:$0xff]
    %v91 = vld [vmem:[#allocation2 + $0xa0] sm:$0xff]
    %v92 = vld [vmem:[#allocation2 + $0xa8] sm:$0xff]
    %v93 = vld [vmem:[#allocation2 + $0xb0] sm:$0xff]
    %v94 = vld [vmem:[#allocation2 + $0xb8] sm:$0xff]
    %v95 = vld [vmem:[#allocation2 + $0xc0] sm:$0xff]
    %v96 = vld [vmem:[#allocation2 + $0xc8] sm:$0xff]
    %v97 = vld [vmem:[#allocation2 + $0xd0] sm:$0xff]
    %v98 = vld [vmem:[#allocation2 + $0xd8] sm:$0xff]
    %v99 = vld [vmem:[#allocation2 + $0xe0] sm:$0xff]
    %v100 = vld [vmem:[#allocation2 + $0xe8] sm:$0xff]
    %v101 = vld [vmem:[#allocation2 + $0xf0] sm:$0xff]
    %v102 = vld [vmem:[#allocation2 + $0xf8] sm:$0xff]
    %v103 = vld [vmem:[%s2] sm:$0xf]
    %v105 = vlaneseq
    %v106 = vshrl.u32 %v105, 7
    %v107 = vsub.s32 0, %v106
    %v108 = vrot.slane %v103, %v107
    %v109 = vlaneseq
    %v110 = vshrl.u32 %v109, 7
    %v111 = vsub.s32 1, %v110
    %v112 = vrot.slane %v103, %v111
    %v113 = vlaneseq
    %v114 = vshrl.u32 %v113, 7
    %v115 = vsub.s32 2, %v114
    %v116 = vrot.slane %v103, %v115
    %v117 = vlaneseq
    %v118 = vshrl.u32 %v117, 7
    %v119 = vsub.s32 3, %v118
    %v120 = vrot.slane %v103, %v119
    %vm125 = vcmask 523264
    %v127 = vsel %vm125, %v70, 0
    %129 = vmatprep.subr.mxu0 %v72
    %130 = vmatpush1.msra.mxu0 %v71
    %131 = vmatprep.subr.mxu0 %v76
    %132 = vmatpush1.msra.mxu0 %v75
    %133 = vmatprep.subr.mxu0 %v80
    %134 = vmatpush1.msra.mxu0 %v79
    %135 = vmatprep.subr.mxu0 %v84
    %136 = vmatpush1.msra.mxu0 %v83
    %137 = vmatprep.subr.mxu0 %v88
    %138 = vmatpush1.msra.mxu0 %v87
    %139 = vmatprep.subr.mxu0 %v92
    %140 = vmatpush1.msra.mxu0 %v91
    %141 = vmatprep.subr.mxu0 %v96
    %142 = vmatpush1.msra.mxu0 %v95
    %143 = vmatprep.subr.mxu0 %v100
    %144 = vmatpush1.msra.mxu0 %v99
    %145 = vmatprep.subr.mxu0 0.0
    %146 = vmatpush1.msra.mxu0 0.0
    %147 = vmatprep.subr.mxu0 0.0
    %148 = vmatpush1.msra.mxu0 0.0
    %149 = vmatprep.subr.mxu0 0.0
    %150 = vmatpush1.msra.mxu0 0.0
    %151 = vmatprep.subr.mxu0 0.0
    %152 = vmatpush1.msra.mxu0 0.0
    %153 = vmatprep.subr.mxu0 0.0
    %154 = vmatpush1.msra.mxu0 0.0
    %155 = vmatprep.subr.mxu0 0.0
    %156 = vmatpush1.msra.mxu0 0.0
    %157 = vmatprep.subr.mxu0 0.0
    %158 = vmatpush1.msra.mxu0 0.0
    %159 = vmatprep.subr.mxu0 0.0
    %160 = vmatpush1.msra.mxu0 0.0
    %161 = vmatprep.subr.mxu0 0.0
    %162 = vmatpush1.msra.mxu0 0.0
    %163 = vmatprep.subr.mxu0 0.0
    %164 = vmatpush1.msra.mxu0 0.0
    %165 = vmatprep.subr.mxu0 0.0
    %166 = vmatpush1.msra.mxu0 0.0
    %167 = vmatprep.subr.mxu0 0.0
    %168 = vmatpush1.msra.mxu0 0.0
    %169 = vmatprep.subr.mxu0 0.0
    %170 = vmatpush1.msra.mxu0 0.0
    %171 = vmatprep.subr.mxu0 0.0
    %172 = vmatpush1.msra.mxu0 0.0
    %173 = vmatprep.subr.mxu0 0.0
    %174 = vmatpush1.msra.mxu0 0.0
    %175 = vmatprep.subr.mxu0 0.0
    %176 = vmatpush1.msra.mxu0 0.0
    %177 = vmatprep.subr.mxu0 0.0
    %178 = vmatpush1.msra.mxu0 0.0
    %179 = vmatprep.subr.mxu0 0.0
    %180 = vmatpush1.msra.mxu0 0.0
    %181 = vmatprep.subr.mxu0 0.0
    %182 = vmatpush1.msra.mxu0 0.0
    %183 = vmatprep.subr.mxu0 0.0
    %184 = vmatpush1.msra.mxu0 0.0
    %185 = vmatprep.subr.mxu0 0.0
    %186 = vmatpush1.msra.mxu0 0.0
    %187 = vmatprep.subr.mxu0 0.0
    %188 = vmatpush1.msra.mxu0 0.0
    %189 = vmatprep.subr.mxu0 0.0
    %190 = vmatpush1.msra.mxu0 0.0
    %191 = vmatprep.subr.mxu0 0.0
    %192 = vmatpush1.msra.mxu0 0.0
    %193 = vmatprep.mubr.f32.mxu0 0.0
    %194 = vmatmul.mubr.f32.gmra.mrb[0].mxu0 %v127
    %v195 = vpop.f32.mrb[0].mxu0
    %v196 = vadd.f32 %v108, %v195
    %v197 = vpop.f32.mrb[0].mxu0
    %v198 = vadd.f32 %v112, %v197
    %199 = vdwg.mxu0
    %200 = vmatprep.subr.mxu0 %v74
    %201 = vmatpush1.msra.mxu0 %v73
    %202 = vmatprep.subr.mxu0 %v78
    %203 = vmatpush1.msra.mxu0 %v77
    %204 = vmatprep.subr.mxu0 %v82
    %205 = vmatpush1.msra.mxu0 %v81
    %206 = vmatprep.subr.mxu0 %v86
    %207 = vmatpush1.msra.mxu0 %v85
    %208 = vmatprep.subr.mxu0 %v90
    %209 = vmatpush1.msra.mxu0 %v89
    %210 = vmatprep.subr.mxu0 %v94
    %211 = vmatpush1.msra.mxu0 %v93
    %212 = vmatprep.subr.mxu0 %v98
    %213 = vmatpush1.msra.mxu0 %v97
    %214 = vmatprep.subr.mxu0 %v102
    %215 = vmatpush1.msra.mxu0 %v101
    %216 = vmatprep.subr.mxu0 0.0
    %217 = vmatpush1.msra.mxu0 0.0
    %218 = vmatprep.subr.mxu0 0.0
    %219 = vmatpush1.msra.mxu0 0.0
    %220 = vmatprep.subr.mxu0 0.0
    %221 = vmatpush1.msra.mxu0 0.0
    %222 = vmatprep.subr.mxu0 0.0
    %223 = vmatpush1.msra.mxu0 0.0
    %224 = vmatprep.subr.mxu0 0.0
    %225 = vmatpush1.msra.mxu0 0.0
    %226 = vmatprep.subr.mxu0 0.0
    %227 = vmatpush1.msra.mxu0 0.0
    %228 = vmatprep.subr.mxu0 0.0
    %229 = vmatpush1.msra.mxu0 0.0
    %230 = vmatprep.subr.mxu0 0.0
    %231 = vmatpush1.msra.mxu0 0.0
    %232 = vmatprep.subr.mxu0 0.0
    %233 = vmatpush1.msra.mxu0 0.0
    %234 = vmatprep.subr.mxu0 0.0
    %235 = vmatpush1.msra.mxu0 0.0
    %236 = vmatprep.subr.mxu0 0.0
    %237 = vmatpush1.msra.mxu0 0.0
    %238 = vmatprep.subr.mxu0 0.0
    %239 = vmatpush1.msra.mxu0 0.0
    %240 = vmatprep.subr.mxu0 0.0
    %241 = vmatpush1.msra.mxu0 0.0
    %242 = vmatprep.subr.mxu0 0.0
    %243 = vmatpush1.msra.mxu0 0.0
    %244 = vmatprep.subr.mxu0 0.0
    %245 = vmatpush1.msra.mxu0 0.0
    %246 = vmatprep.subr.mxu0 0.0
    %247 = vmatpush1.msra.mxu0 0.0
    %248 = vmatprep.subr.mxu0 0.0
    %249 = vmatpush1.msra.mxu0 0.0
    %250 = vmatprep.subr.mxu0 0.0
    %251 = vmatpush1.msra.mxu0 0.0
    %252 = vmatprep.subr.mxu0 0.0
    %253 = vmatpush1.msra.mxu0 0.0
    %254 = vmatprep.subr.mxu0 0.0
    %255 = vmatpush1.msra.mxu0 0.0
    %256 = vmatprep.subr.mxu0 0.0
    %257 = vmatpush1.msra.mxu0 0.0
    %258 = vmatprep.subr.mxu0 0.0
    %259 = vmatpush1.msra.mxu0 0.0
    %260 = vmatprep.subr.mxu0 0.0
    %261 = vmatpush1.msra.mxu0 0.0
    %262 = vmatprep.subr.mxu0 0.0
    %263 = vmatpush1.msra.mxu0 0.0
    %264 = vmatprep.mubr.f32.mxu0 0.0
    %265 = vmatmul.mubr.f32.gmra.mrb[0].mxu0 %v127
    %v266 = vpop.f32.mrb[0].mxu0
    %v267 = vadd.f32 %v116, %v266
    %v268 = vpop.f32.mrb[0].mxu0
    %v269 = vadd.f32 %v120, %v268
    %270 = vdwg.mxu0
    %v271 = vmax.f32 %v196, 0.0
    %v272 = vmax.f32 %v198, 0.0
    %v273 = vmax.f32 %v267, 0.0
    %v274 = vmax.f32 %v269, 0.0
    %v275 = vld [vmem:[#allocation5] sm:$0xff]
    %v276 = vld [vmem:[#allocation5 + $0x8] sm:$0xff]
    %v277 = vld [vmem:[#allocation5 + $0x10] sm:$0xff]
    %v278 = vld [vmem:[#allocation5 + $0x18] sm:$0xff]
    %v279 = vld [vmem:[#allocation5 + $0x20] sm:$0xff]
    %v280 = vld [vmem:[#allocation5 + $0x28] sm:$0xff]
    %v281 = vld [vmem:[#allocation5 + $0x30] sm:$0xff]
    %v282 = vld [vmem:[#allocation5 + $0x38] sm:$0xff]
    %v283 = vld [vmem:[#allocation5 + $0x40] sm:$0xff]
    %v284 = vld [vmem:[#allocation5 + $0x48] sm:$0xff]
    %v285 = vld [vmem:[#allocation5 + $0x50] sm:$0xff]
    %v286 = vld [vmem:[#allocation5 + $0x58] sm:$0xff]
    %v287 = vld [vmem:[#allocation5 + $0x60] sm:$0xff]
    %v288 = vld [vmem:[#allocation5 + $0x68] sm:$0xff]
    %v289 = vld [vmem:[#allocation5 + $0x70] sm:$0xff]
    %v290 = vld [vmem:[#allocation5 + $0x78] sm:$0xff]
    %v291 = vld [vmem:[#allocation5 + $0x80] sm:$0xff]
    %v292 = vld [vmem:[#allocation5 + $0x88] sm:$0xff]
    %v293 = vld [vmem:[#allocation5 + $0x90] sm:$0xff]
    %v294 = vld [vmem:[#allocation5 + $0x98] sm:$0xff]
    %v295 = vld [vmem:[#allocation5 + $0xa0] sm:$0xff]
    %v296 = vld [vmem:[#allocation5 + $0xa8] sm:$0xff]
    %v297 = vld [vmem:[#allocation5 + $0xb0] sm:$0xff]
    %v298 = vld [vmem:[#allocation5 + $0xb8] sm:$0xff]
    %v299 = vld [vmem:[#allocation5 + $0xc0] sm:$0xff]
    %v300 = vld [vmem:[#allocation5 + $0xc8] sm:$0xff]
    %v301 = vld [vmem:[#allocation5 + $0xd0] sm:$0xff]
    %v302 = vld [vmem:[#allocation5 + $0xd8] sm:$0xff]
    %v303 = vld [vmem:[#allocation5 + $0xe0] sm:$0xff]
    %v304 = vld [vmem:[#allocation5 + $0xe8] sm:$0xff]
    %v305 = vld [vmem:[#allocation5 + $0xf0] sm:$0xff]
    %v306 = vld [vmem:[#allocation5 + $0xf8] sm:$0xff]
    %v307 = vld [vmem:[#allocation5 + $0x100] sm:$0xff]
    %v308 = vld [vmem:[#allocation5 + $0x108] sm:$0xff]
    %v309 = vld [vmem:[#allocation5 + $0x110] sm:$0xff]
    %v310 = vld [vmem:[#allocation5 + $0x118] sm:$0xff]
    %v311 = vld [vmem:[#allocation5 + $0x120] sm:$0xff]
    %v312 = vld [vmem:[#allocation5 + $0x128] sm:$0xff]
    %v313 = vld [vmem:[#allocation5 + $0x130] sm:$0xff]
    %v314 = vld [vmem:[#allocation5 + $0x138] sm:$0xff]
    %v315 = vld [vmem:[#allocation5 + $0x140] sm:$0xff]
    %v316 = vld [vmem:[#allocation5 + $0x148] sm:$0xff]
    %v317 = vld [vmem:[#allocation5 + $0x150] sm:$0xff]
    %v318 = vld [vmem:[#allocation5 + $0x158] sm:$0xff]
    %v319 = vld [vmem:[#allocation5 + $0x160] sm:$0xff]
    %v320 = vld [vmem:[#allocation5 + $0x168] sm:$0xff]
    %v321 = vld [vmem:[#allocation5 + $0x170] sm:$0xff]
    %v322 = vld [vmem:[#allocation5 + $0x178] sm:$0xff]
    %v323 = vld [vmem:[#allocation5 + $0x180] sm:$0xff]
    %v324 = vld [vmem:[#allocation5 + $0x188] sm:$0xff]
    %v325 = vld [vmem:[#allocation5 + $0x190] sm:$0xff]
    %v326 = vld [vmem:[#allocation5 + $0x198] sm:$0xff]
    %v327 = vld [vmem:[#allocation5 + $0x1a0] sm:$0xff]
    %v328 = vld [vmem:[#allocation5 + $0x1a8] sm:$0xff]
    %v329 = vld [vmem:[#allocation5 + $0x1b0] sm:$0xff]
    %v330 = vld [vmem:[#allocation5 + $0x1b8] sm:$0xff]
    %v331 = vld [vmem:[#allocation5 + $0x1c0] sm:$0xff]
    %v332 = vld [vmem:[#allocation5 + $0x1c8] sm:$0xff]
    %v333 = vld [vmem:[#allocation5 + $0x1d0] sm:$0xff]
    %v334 = vld [vmem:[#allocation5 + $0x1d8] sm:$0xff]
    %v335 = vld [vmem:[#allocation5 + $0x1e0] sm:$0xff]
    %v336 = vld [vmem:[#allocation5 + $0x1e8] sm:$0xff]
    %v337 = vld [vmem:[#allocation5 + $0x1f0] sm:$0xff]
    %v338 = vld [vmem:[#allocation5 + $0x1f8] sm:$0xff]
    %v339 = vld [vmem:[#allocation5 + $0x200] sm:$0xff]
    %v340 = vld [vmem:[#allocation5 + $0x208] sm:$0xff]
    %v341 = vld [vmem:[#allocation5 + $0x210] sm:$0xff]
    %v342 = vld [vmem:[#allocation5 + $0x218] sm:$0xff]
    %v343 = vld [vmem:[#allocation5 + $0x220] sm:$0xff]
    %v344 = vld [vmem:[#allocation5 + $0x228] sm:$0xff]
    %v345 = vld [vmem:[#allocation5 + $0x230] sm:$0xff]
    %v346 = vld [vmem:[#allocation5 + $0x238] sm:$0xff]
    %v347 = vld [vmem:[#allocation5 + $0x240] sm:$0xff]
    %v348 = vld [vmem:[#allocation5 + $0x248] sm:$0xff]
    %v349 = vld [vmem:[#allocation5 + $0x250] sm:$0xff]
    %v350 = vld [vmem:[#allocation5 + $0x258] sm:$0xff]
    %v351 = vld [vmem:[#allocation5 + $0x260] sm:$0xff]
    %v352 = vld [vmem:[#allocation5 + $0x268] sm:$0xff]
    %v353 = vld [vmem:[#allocation5 + $0x270] sm:$0xff]
    %v354 = vld [vmem:[#allocation5 + $0x278] sm:$0xff]
    %v355 = vld [vmem:[#allocation5 + $0x280] sm:$0xff]
    %v356 = vld [vmem:[#allocation5 + $0x288] sm:$0xff]
    %v357 = vld [vmem:[#allocation5 + $0x290] sm:$0xff]
    %v358 = vld [vmem:[#allocation5 + $0x298] sm:$0xff]
    %v359 = vld [vmem:[#allocation5 + $0x2a0] sm:$0xff]
    %v360 = vld [vmem:[#allocation5 + $0x2a8] sm:$0xff]
    %v361 = vld [vmem:[#allocation5 + $0x2b0] sm:$0xff]
    %v362 = vld [vmem:[#allocation5 + $0x2b8] sm:$0xff]
    %v363 = vld [vmem:[#allocation5 + $0x2c0] sm:$0xff]
    %v364 = vld [vmem:[#allocation5 + $0x2c8] sm:$0xff]
    %v365 = vld [vmem:[#allocation5 + $0x2d0] sm:$0xff]
    %v366 = vld [vmem:[#allocation5 + $0x2d8] sm:$0xff]
    %v367 = vld [vmem:[#allocation5 + $0x2e0] sm:$0xff]
    %v368 = vld [vmem:[#allocation5 + $0x2e8] sm:$0xff]
    %v369 = vld [vmem:[#allocation5 + $0x2f0] sm:$0xff]
    %v370 = vld [vmem:[#allocation5 + $0x2f8] sm:$0xff]
    %v371 = vld [vmem:[#allocation5 + $0x300] sm:$0xff]
    %v372 = vld [vmem:[#allocation5 + $0x308] sm:$0xff]
    %v373 = vld [vmem:[#allocation5 + $0x310] sm:$0xff]
    %v374 = vld [vmem:[#allocation5 + $0x318] sm:$0xff]
    %v375 = vld [vmem:[#allocation5 + $0x320] sm:$0xff]
    %v376 = vld [vmem:[#allocation5 + $0x328] sm:$0xff]
    %v377 = vld [vmem:[#allocation5 + $0x330] sm:$0xff]
    %v378 = vld [vmem:[#allocation5 + $0x338] sm:$0xff]
    %v379 = vld [vmem:[#allocation5 + $0x340] sm:$0xff]
    %v380 = vld [vmem:[#allocation5 + $0x348] sm:$0xff]
    %v381 = vld [vmem:[#allocation5 + $0x350] sm:$0xff]
    %v382 = vld [vmem:[#allocation5 + $0x358] sm:$0xff]
    %v383 = vld [vmem:[#allocation5 + $0x360] sm:$0xff]
    %v384 = vld [vmem:[#allocation5 + $0x368] sm:$0xff]
    %v385 = vld [vmem:[#allocation5 + $0x370] sm:$0xff]
    %v386 = vld [vmem:[#allocation5 + $0x378] sm:$0xff]
    %v387 = vld [vmem:[#allocation5 + $0x380] sm:$0xff]
    %v388 = vld [vmem:[#allocation5 + $0x388] sm:$0xff]
    %v389 = vld [vmem:[#allocation5 + $0x390] sm:$0xff]
    %v390 = vld [vmem:[#allocation5 + $0x398] sm:$0xff]
    %v391 = vld [vmem:[#allocation5 + $0x3a0] sm:$0xff]
    %v392 = vld [vmem:[#allocation5 + $0x3a8] sm:$0xff]
    %v393 = vld [vmem:[#allocation5 + $0x3b0] sm:$0xff]
    %v394 = vld [vmem:[#allocation5 + $0x3b8] sm:$0xff]
    %v395 = vld [vmem:[#allocation5 + $0x3c0] sm:$0xff]
    %v396 = vld [vmem:[#allocation5 + $0x3c8] sm:$0xff]
    %v397 = vld [vmem:[#allocation5 + $0x3d0] sm:$0xff]
    %v398 = vld [vmem:[#allocation5 + $0x3d8] sm:$0xff]
    %v399 = vld [vmem:[#allocation5 + $0x3e0] sm:$0xff]
    %v400 = vld [vmem:[#allocation5 + $0x3e8] sm:$0xff]
    %v401 = vld [vmem:[#allocation5 + $0x3f0] sm:$0xff]
    %v402 = vld [vmem:[#allocation5 + $0x3f8] sm:$0xff]
    %v403 = vld [vmem:[%s4] sm:$0x3]
    %v405 = vlaneseq
    %v406 = vshrl.u32 %v405, 7
    %v407 = vsub.s32 0, %v406
    %v408 = vrot.slane %v403, %v407
    %v409 = vlaneseq
    %v410 = vshrl.u32 %v409, 7
    %v411 = vsub.s32 1, %v410
    %v412 = vrot.slane %v403, %v411
    %415 = vmatprep.subr.mxu0 %v276
    %416 = vmatpush1.msra.mxu0 %v275
    %417 = vmatprep.subr.mxu0 %v278
    %418 = vmatpush1.msra.mxu0 %v277
    %419 = vmatprep.subr.mxu0 %v280
    %420 = vmatpush1.msra.mxu0 %v279
    %421 = vmatprep.subr.mxu0 %v282
    %422 = vmatpush1.msra.mxu0 %v281
    %423 = vmatprep.subr.mxu0 %v284
    %424 = vmatpush1.msra.mxu0 %v283
    %425 = vmatprep.subr.mxu0 %v286
    %426 = vmatpush1.msra.mxu0 %v285
    %427 = vmatprep.subr.mxu0 %v288
    %428 = vmatpush1.msra.mxu0 %v287
    %429 = vmatprep.subr.mxu0 %v290
    %430 = vmatpush1.msra.mxu0 %v289
    %431 = vmatprep.subr.mxu0 %v292
    %432 = vmatpush1.msra.mxu0 %v291
    %433 = vmatprep.subr.mxu0 %v294
    %434 = vmatpush1.msra.mxu0 %v293
    %435 = vmatprep.subr.mxu0 %v296
    %436 = vmatpush1.msra.mxu0 %v295
    %437 = vmatprep.subr.mxu0 %v298
    %438 = vmatpush1.msra.mxu0 %v297
    %439 = vmatprep.subr.mxu0 %v300
    %440 = vmatpush1.msra.mxu0 %v299
    %441 = vmatprep.subr.mxu0 %v302
    %442 = vmatpush1.msra.mxu0 %v301
    %443 = vmatprep.subr.mxu0 %v304
    %444 = vmatpush1.msra.mxu0 %v303
    %445 = vmatprep.subr.mxu0 %v306
    %446 = vmatpush1.msra.mxu0 %v305
    %447 = vmatprep.subr.mxu0 %v308
    %448 = vmatpush1.msra.mxu0 %v307
    %449 = vmatprep.subr.mxu0 %v310
    %450 = vmatpush1.msra.mxu0 %v309
    %451 = vmatprep.subr.mxu0 %v312
    %452 = vmatpush1.msra.mxu0 %v311
    %453 = vmatprep.subr.mxu0 %v314
    %454 = vmatpush1.msra.mxu0 %v313
    %455 = vmatprep.subr.mxu0 %v316
    %456 = vmatpush1.msra.mxu0 %v315
    %457 = vmatprep.subr.mxu0 %v318
    %458 = vmatpush1.msra.mxu0 %v317
    %459 = vmatprep.subr.mxu0 %v320
    %460 = vmatpush1.msra.mxu0 %v319
    %461 = vmatprep.subr.mxu0 %v322
    %462 = vmatpush1.msra.mxu0 %v321
    %463 = vmatprep.subr.mxu0 %v324
    %464 = vmatpush1.msra.mxu0 %v323
    %465 = vmatprep.subr.mxu0 %v326
    %466 = vmatpush1.msra.mxu0 %v325
    %467 = vmatprep.subr.mxu0 %v328
    %468 = vmatpush1.msra.mxu0 %v327
    %469 = vmatprep.subr.mxu0 %v330
    %470 = vmatpush1.msra.mxu0 %v329
    %471 = vmatprep.subr.mxu0 %v332
    %472 = vmatpush1.msra.mxu0 %v331
    %473 = vmatprep.subr.mxu0 %v334
    %474 = vmatpush1.msra.mxu0 %v333
    %475 = vmatprep.subr.mxu0 %v336
    %476 = vmatpush1.msra.mxu0 %v335
    %477 = vmatprep.subr.mxu0 %v338
    %478 = vmatpush1.msra.mxu0 %v337
    %479 = vmatprep.mubr.f32.mxu0 %v272
    %480 = vmatmul.mubr.f32.gmra.mrb[0].mxu0 %v271
    %v481 = vpop.f32.mrb[0].mxu0
    %v482 = vadd.f32 %v408, %v481
    %v483 = vpop.f32.mrb[0].mxu0
    %v484 = vadd.f32 %v412, %v483
    %485 = vdwg.mxu0
    %486 = vmatprep.subr.mxu0 %v340
    %487 = vmatpush1.msra.mxu0 %v339
    %488 = vmatprep.subr.mxu0 %v342
    %489 = vmatpush1.msra.mxu0 %v341
    %490 = vmatprep.subr.mxu0 %v344
    %491 = vmatpush1.msra.mxu0 %v343
    %492 = vmatprep.subr.mxu0 %v346
    %493 = vmatpush1.msra.mxu0 %v345
    %494 = vmatprep.subr.mxu0 %v348
    %495 = vmatpush1.msra.mxu0 %v347
    %496 = vmatprep.subr.mxu0 %v350
    %497 = vmatpush1.msra.mxu0 %v349
    %498 = vmatprep.subr.mxu0 %v352
    %499 = vmatpush1.msra.mxu0 %v351
    %500 = vmatprep.subr.mxu0 %v354
    %501 = vmatpush1.msra.mxu0 %v353
    %502 = vmatprep.subr.mxu0 %v356
    %503 = vmatpush1.msra.mxu0 %v355
    %504 = vmatprep.subr.mxu0 %v358
    %505 = vmatpush1.msra.mxu0 %v357
    %506 = vmatprep.subr.mxu0 %v360
    %507 = vmatpush1.msra.mxu0 %v359
    %508 = vmatprep.subr.mxu0 %v362
    %509 = vmatpush1.msra.mxu0 %v361
    %510 = vmatprep.subr.mxu0 %v364
    %511 = vmatpush1.msra.mxu0 %v363
    %512 = vmatprep.subr.mxu0 %v366
    %513 = vmatpush1.msra.mxu0 %v365
    %514 = vmatprep.subr.mxu0 %v368
    %515 = vmatpush1.msra.mxu0 %v367
    %516 = vmatprep.subr.mxu0 %v370
    %517 = vmatpush1.msra.mxu0 %v369
    %518 = vmatprep.subr.mxu0 %v372
    %519 = vmatpush1.msra.mxu0 %v371
    %520 = vmatprep.subr.mxu0 %v374
    %521 = vmatpush1.msra.mxu0 %v373
    %522 = vmatprep.subr.mxu0 %v376
    %523 = vmatpush1.msra.mxu0 %v375
    %524 = vmatprep.subr.mxu0 %v378
    %525 = vmatpush1.msra.mxu0 %v377
    %526 = vmatprep.subr.mxu0 %v380
    %527 = vmatpush1.msra.mxu0 %v379
    %528 = vmatprep.subr.mxu0 %v382
    %529 = vmatpush1.msra.mxu0 %v381
    %530 = vmatprep.subr.mxu0 %v384
    %531 = vmatpush1.msra.mxu0 %v383
    %532 = vmatprep.subr.mxu0 %v386
    %533 = vmatpush1.msra.mxu0 %v385
    %534 = vmatprep.subr.mxu0 %v388
    %535 = vmatpush1.msra.mxu0 %v387
    %536 = vmatprep.subr.mxu0 %v390
    %537 = vmatpush1.msra.mxu0 %v389
    %538 = vmatprep.subr.mxu0 %v392
    %539 = vmatpush1.msra.mxu0 %v391
    %540 = vmatprep.subr.mxu0 %v394
    %541 = vmatpush1.msra.mxu0 %v393
    %542 = vmatprep.subr.mxu0 %v396
    %543 = vmatpush1.msra.mxu0 %v395
    %544 = vmatprep.subr.mxu0 %v398
    %545 = vmatpush1.msra.mxu0 %v397
    %546 = vmatprep.subr.mxu0 %v400
    %547 = vmatpush1.msra.mxu0 %v399
    %548 = vmatprep.subr.mxu0 %v402
    %549 = vmatpush1.msra.mxu0 %v401
    %550 = vmatprep.mubr.f32.mxu0 %v274
    %551 = vmatmul.mubr.f32.gmra.mrb[0].mxu0 %v273
    %v552 = vpop.f32.mrb[0].mxu0
    %v553 = vadd.f32 %v482, %v552
    %v554 = vpop.f32.mrb[0].mxu0
    %v555 = vadd.f32 %v484, %v554
    %556 = vdwg.mxu0
    %v559 = vcombine.low %v553, %v555
    %v561 = vunpack.c.l.s4 1983009808
    %v562 = vunpack.c.0.s8 %v561
    %v563 = vlaneseq
    %v564 = vshrl.u32 %v563, 7
    %v565 = vsub.s32 %v562, %v564
    %v566 = vrot.slane %v559, %v565
    %568 = vst [vmem:[#allocation8] sm:$0xf] %v566
    %v569 = vld [vmem:[#allocation7] sm:$0xff]
    %v570 = vld [vmem:[#allocation7 + $0x8] sm:$0xff]
    %v571 = vld [vmem:[#allocation7 + $0x10] sm:$0xff]
    %v572 = vld [vmem:[#allocation7 + $0x18] sm:$0xff]
    %v573 = vld [vmem:[#allocation7 + $0x20] sm:$0xff]
    %v574 = vld [vmem:[#allocation7 + $0x28] sm:$0xff]
    %v575 = vld [vmem:[#allocation7 + $0x30] sm:$0xff]
    %v576 = vld [vmem:[#allocation7 + $0x38] sm:$0xff]
    %v577 = vld [vmem:[#allocation7 + $0x40] sm:$0xff]
    %v578 = vld [vmem:[#allocation7 + $0x48] sm:$0xff]
    %v579 = vld [vmem:[#allocation7 + $0x50] sm:$0xff]
    %v580 = vld [vmem:[#allocation7 + $0x58] sm:$0xff]
    %v581 = vld [vmem:[#allocation7 + $0x60] sm:$0xff]
    %v582 = vld [vmem:[#allocation7 + $0x68] sm:$0xff]
    %v583 = vld [vmem:[#allocation7 + $0x70] sm:$0xff]
    %v584 = vld [vmem:[#allocation7 + $0x78] sm:$0xff]
    %v585 = vld [vmem:[#allocation7 + $0x80] sm:$0xff]
    %v586 = vld [vmem:[#allocation7 + $0x88] sm:$0xff]
    %v587 = vld [vmem:[#allocation7 + $0x90] sm:$0xff]
    %v588 = vld [vmem:[#allocation7 + $0x98] sm:$0xff]
    %v589 = vld [vmem:[#allocation7 + $0xa0] sm:$0xff]
    %v590 = vld [vmem:[#allocation7 + $0xa8] sm:$0xff]
    %v591 = vld [vmem:[#allocation7 + $0xb0] sm:$0xff]
    %v592 = vld [vmem:[#allocation7 + $0xb8] sm:$0xff]
    %v593 = vld [vmem:[#allocation7 + $0xc0] sm:$0xff]
    %v594 = vld [vmem:[#allocation7 + $0xc8] sm:$0xff]
    %v595 = vld [vmem:[#allocation7 + $0xd0] sm:$0xff]
    %v596 = vld [vmem:[#allocation7 + $0xd8] sm:$0xff]
    %v597 = vld [vmem:[#allocation7 + $0xe0] sm:$0xff]
    %v598 = vld [vmem:[#allocation7 + $0xe8] sm:$0xff]
    %v599 = vld [vmem:[#allocation7 + $0xf0] sm:$0xff]
    %v600 = vld [vmem:[#allocation7 + $0xf8] sm:$0xff]
    %v601 = vld [vmem:[%s6] sm:$0x1]
    %v603 = vlaneseq
    %v604 = vshrl.u32 %v603, 7
    %v605 = vsub.s32 0, %v604
    %v606 = vrot.slane %v601, %v605
    %608 = vmatprep.subr.mxu0 0.0
    %609 = vmatpush1.msra.mxu0 %v569
    %610 = vmatprep.subr.mxu0 0.0
    %611 = vmatpush1.msra.mxu0 %v570
    %612 = vmatprep.subr.mxu0 0.0
    %613 = vmatpush1.msra.mxu0 %v571
    %614 = vmatprep.subr.mxu0 0.0
    %615 = vmatpush1.msra.mxu0 %v572
    %616 = vmatprep.subr.mxu0 0.0
    %617 = vmatpush1.msra.mxu0 %v573
    %618 = vmatprep.subr.mxu0 0.0
    %619 = vmatpush1.msra.mxu0 %v574
    %620 = vmatprep.subr.mxu0 0.0
    %621 = vmatpush1.msra.mxu0 %v575
    %622 = vmatprep.subr.mxu0 0.0
    %623 = vmatpush1.msra.mxu0 %v576
    %624 = vmatprep.subr.mxu0 0.0
    %625 = vmatpush1.msra.mxu0 %v577
    %626 = vmatprep.subr.mxu0 0.0
    %627 = vmatpush1.msra.mxu0 %v578
    %628 = vmatprep.subr.mxu0 0.0
    %629 = vmatpush1.msra.mxu0 %v579
    %630 = vmatprep.subr.mxu0 0.0
    %631 = vmatpush1.msra.mxu0 %v580
    %632 = vmatprep.subr.mxu0 0.0
    %633 = vmatpush1.msra.mxu0 %v581
    %634 = vmatprep.subr.mxu0 0.0
    %635 = vmatpush1.msra.mxu0 %v582
    %636 = vmatprep.subr.mxu0 0.0
    %637 = vmatpush1.msra.mxu0 %v583
    %638 = vmatprep.subr.mxu0 0.0
    %639 = vmatpush1.msra.mxu0 %v584
    %640 = vmatprep.subr.mxu0 0.0
    %641 = vmatpush1.msra.mxu0 %v585
    %642 = vmatprep.subr.mxu0 0.0
    %643 = vmatpush1.msra.mxu0 %v586
    %644 = vmatprep.subr.mxu0 0.0
    %645 = vmatpush1.msra.mxu0 %v587
    %646 = vmatprep.subr.mxu0 0.0
    %647 = vmatpush1.msra.mxu0 %v588
    %648 = vmatprep.subr.mxu0 0.0
    %649 = vmatpush1.msra.mxu0 %v589
    %650 = vmatprep.subr.mxu0 0.0
    %651 = vmatpush1.msra.mxu0 %v590
    %652 = vmatprep.subr.mxu0 0.0
    %653 = vmatpush1.msra.mxu0 %v591
    %654 = vmatprep.subr.mxu0 0.0
    %655 = vmatpush1.msra.mxu0 %v592
    %656 = vmatprep.subr.mxu0 0.0
    %657 = vmatpush1.msra.mxu0 %v593
    %658 = vmatprep.subr.mxu0 0.0
    %659 = vmatpush1.msra.mxu0 %v594
    %660 = vmatprep.subr.mxu0 0.0
    %661 = vmatpush1.msra.mxu0 %v595
    %662 = vmatprep.subr.mxu0 0.0
    %663 = vmatpush1.msra.mxu0 %v596
    %664 = vmatprep.subr.mxu0 0.0
    %665 = vmatpush1.msra.mxu0 %v597
    %666 = vmatprep.subr.mxu0 0.0
    %667 = vmatpush1.msra.mxu0 %v598
    %668 = vmatprep.subr.mxu0 0.0
    %669 = vmatpush1.msra.mxu0 %v599
    %670 = vmatprep.subr.mxu0 0.0
    %671 = vmatpush1.msra.mxu0 %v600
    %672 = vmatprep.mubr.f32.mxu0 %v555
    %673 = vmatmul.mubr.f32.gmra.mrb[0].mxu0 %v553
    %v674 = vpop.f32.mrb[0].mxu0
    %v675 = vadd.f32 %v606, %v674
    %v676 = vpop.f32.mrb[0].mxu0
    %677 = vdwg.mxu0
    %vm678 = vcmask 9216
    %679 = vst.msk [vmem:[%s8] sm:$0x3] %vm678, %v675
    // Predicated region
    $region42: #{_lambda_.7} parent=1 // pred_check
      _
    $region43: #{_lambda_.7} parent=1 // pred_check_branch
      %681 = sbr.rel (0) target = $region45
    $region44: #{_lambda_.7} parent=1 // pred_region
      %s683 = ssub.s32 64, 64
      %684 = vsyncadd [#allocation4], %s683
      %s686 = sshll.u32 [#allocation8], 4
      %s687 = int_to_ptr.vmem [resolvable:$true] %s686
      %689 = dma.vmem_to_hbm [thread:$0]  %s687, 64, %s7, [#allocation4]
    $region45: #{_lambda_.7} parent=1 // pred_fallthru
      _
    // Predicated region
    $region46: #{_lambda_.7} parent=1 // pred_check
      _
    $region47: #{_lambda_.7} parent=1 // pred_check_branch
      %691 = sbr.rel (0) target = $region49
    $region48: #{_lambda_.7} parent=1 // pred_region
      _
    $region49: #{_lambda_.7} parent=1 // pred_fallthru
      _
    // Predicated region
    $region50: #{_lambda_.7} parent=1 // pred_check
      _
    $region51: #{_lambda_.7} parent=1 // pred_check_branch
      %693 = sbr.rel (0) target = $region53
    $region52: #{_lambda_.7} parent=1 // pred_region
      %694 = dma.done [#allocation4], 64
    $region53: #{_lambda_.7} parent=1 // pred_fallthru
      _
    // Predicated region
    $region54: #{_lambda_.7} parent=1 // pred_check
      _
    $region55: #{_lambda_.7} parent=1 // pred_check_branch
      %696 = sbr.rel (0) target = $region57
    $region56: #{_lambda_.7} parent=1 // pred_region
      _
    $region57: #{_lambda_.7} parent=1 // pred_fallthru
      _
    %697 = vsyncpa [#allocation3], 1
    %698 = vsyncpa [#allocation6], 1
    %699 = vsyncpa [#allocation4], 1

// kernel: _lambda_.6
$region0: #{_lambda_.6}
  #allocation0 [shape = 'u32[]', space=smem, size = 0x4, offset = 0x4, fixed_abs, tag = 'smem constant byte address 0x4 - core index']
  #allocation1 [shape = 'u32[144,128]{1,0:T(1,128)}', space=vmem, size = 0x12000, scoped, tag = 'internal scratch']
  %s0 = inlined_call_operand.hbm [shape: bf16[16,32], index: 0, kind: input, shape index: {}]
  %s1 = inlined_call_operand.hbm [shape: f32[32,96], index: 1, kind: input, shape index: {}]
  %s2 = inlined_call_operand.hbm [shape: f32[1,96], index: 2, kind: input, shape index: {}]
  %s3 = inlined_call_operand.hbm [shape: f32[32,32], index: 3, kind: input, shape index: {}, may-alias: {3,14}]
  %s4 = inlined_call_operand.hbm [shape: f32[32,32], index: 4, kind: input, shape index: {}]
  %s5 = inlined_call_operand.hbm [shape: f32[1,32], index: 5, kind: input, shape index: {}]
  %s6 = inlined_call_operand.hbm [shape: f32[32,64], index: 6, kind: input, shape index: {}]
  %s7 = inlined_call_operand.hbm [shape: f32[1,64], index: 7, kind: input, shape index: {}]
  %s8 = inlined_call_operand.hbm [shape: f32[64,32], index: 8, kind: input, shape index: {}]
  %s9 = inlined_call_operand.hbm [shape: f32[1,32], index: 9, kind: input, shape index: {}]
  %s10 = inlined_call_operand.hbm [shape: f32[32,32], index: 10, kind: input, shape index: {}]
  %s11 = inlined_call_operand.hbm [shape: f32[1,32], index: 11, kind: input, shape index: {}]
  %s12 = inlined_call_operand.hbm [shape: f32[32,96], index: 12, kind: input, shape index: {}]
  %s13 = inlined_call_operand.hbm [shape: f32[1,96], index: 13, kind: input, shape index: {}]
  %s14 = inlined_call_operand.hbm [shape: f32[32,32], index: 14, kind: input, shape index: {}, may-alias: {3,14}]
  %s15 = inlined_call_operand.hbm [shape: f32[32,32], index: 15, kind: input, shape index: {}]
  %s16 = inlined_call_operand.hbm [shape: f32[1,32], index: 16, kind: input, shape index: {}]
  %s17 = inlined_call_operand.hbm [shape: f32[32,64], index: 17, kind: input, shape index: {}]
  %s18 = inlined_call_operand.hbm [shape: f32[1,64], index: 18, kind: input, shape index: {}]
  %s19 = inlined_call_operand.hbm [shape: f32[64,32], index: 19, kind: input, shape index: {}]
  %s20 = inlined_call_operand.hbm [shape: f32[1,32], index: 20, kind: input, shape index: {}]
  %s21 = inlined_call_operand.hbm [shape: f32[32,32], index: 21, kind: input, shape index: {}]
  %s22 = inlined_call_operand.hbm [shape: f32[1,32], index: 22, kind: input, shape index: {}]
  %s23 = inlined_call_operand.hbm [shape: bf16[16,32], index: 23, kind: output, shape index: {}]
  %s24 = sld [smem:[#allocation0]]
  $region194: #{_lambda_.6} parent=0
    _
  %s26 = ssub.s32 1, %s24
  %s27 = scalar_select 0, %s26, %s24
  $region1: #{_lambda_.6} parent=0
    #allocation2 [shape = 'u8[4096]{0}', space=vmem, size = 0x1000, scoped, tag = 'input window, operand 0, single buffered']
    #allocation3 [shape = 's32[1]{0}', space=sflag, size = 0x4, scoped, tag = 'scoped memory for _lambda_.6']
    #allocation4 [shape = 's32[1]{0}', space=sflag, size = 0x4, scoped, tag = 'scoped memory for _lambda_.6']
    #allocation5 [shape = 'u8[16384]{0}', space=vmem, size = 0x4000, scoped, tag = 'input window, operand 1, single buffered']
    #allocation6 [shape = 's32[1]{0}', space=sflag, size = 0x4, scoped, tag = 'scoped memory for _lambda_.6']
    #allocation7 [shape = 'u8[512]{0}', space=vmem, size = 0x400, scoped, tag = 'input window, operand 2, single buffered']
    #allocation8 [shape = 'u8[16384]{0}', space=vmem, size = 0x4000, scoped, tag = 'input window, operand 3, single buffered']
    #allocation9 [shape = 's32[1]{0}', space=sflag, size = 0x4, scoped, tag = 'scoped memory for _lambda_.6']
    #allocation10 [shape = 'u8[16384]{0}', space=vmem, size = 0x4000, scoped, tag = 'input window, operand 4, single buffered']
    #allocation11 [shape = 'u8[512]{0}', space=vmem, size = 0x400, scoped, tag = 'input window, operand 5, single buffered']
    #allocation12 [shape = 's32[1]{0}', space=sflag, size = 0x4, scoped, tag = 'scoped memory for _lambda_.6']
    #allocation13 [shape = 'u8[16384]{0}', space=vmem, size = 0x4000, scoped, tag = 'input window, operand 6, single buffered']
    #allocation14 [shape = 'u8[512]{0}', space=vmem, size = 0x400, scoped, tag = 'input window, operand 7, single buffered']
    #allocation15 [shape = 's32[1]{0}', space=sflag, size = 0x4, scoped, tag = 'scoped memory for _lambda_.6']
    #allocation16 [shape = 'u8[32768]{0}', space=vmem, size = 0x8000, scoped, tag = 'input window, operand 8, single buffered']
    #allocation17 [shape = 'u8[512]{0}', space=vmem, size = 0x400, scoped, tag = 'input window, operand 9, single buffered']
    #allocation18 [shape = 's32[1]{0}', space=sflag, size = 0x4, scoped, tag = 'scoped memory for _lambda_.6']
    #allocation19 [shape = 'u8[16384]{0}', space=vmem, size = 0x4000, scoped, tag = 'input window, operand 10, single buffered']
    #allocation20 [shape = 'u8[512]{0}', space=vmem, size = 0x400, scoped, tag = 'input window, operand 11, single buffered']
    #allocation21 [shape = 's32[1]{0}', space=sflag, size = 0x4, scoped, tag = 'scoped memory for _lambda_.6']
    #allocation22 [shape = 'u8[16384]{0}', space=vmem, size = 0x4000, scoped, tag = 'input window, operand 12, single buffered']
    #allocation23 [shape = 'u8[512]{0}', space=vmem, size = 0x400, scoped, tag = 'input window, operand 13, single buffered']
    #allocation24 [shape = 's32[1]{0}', space=sflag, size = 0x4, scoped, tag = 'scoped memory for _lambda_.6']
    #allocation25 [shape = 'u8[16384]{0}', space=vmem, size = 0x4000, scoped, tag = 'input window, operand 14, single buffered']
    #allocation26 [shape = 'u8[16384]{0}', space=vmem, size = 0x4000, scoped, tag = 'input window, operand 15, single buffered']
    #allocation27 [shape = 's32[1]{0}', space=sflag, size = 0x4, scoped, tag = 'scoped memory for _lambda_.6']
    #allocation28 [shape = 'u8[512]{0}', space=vmem, size = 0x400, scoped, tag = 'input window, operand 16, single buffered']
    #allocation29 [shape = 'u8[16384]{0}', space=vmem, size = 0x4000, scoped, tag = 'input window, operand 17, single buffered']
    #allocation30 [shape = 's32[1]{0}', space=sflag, size = 0x4, scoped, tag = 'scoped memory for _lambda_.6']
    #allocation31 [shape = 'u8[512]{0}', space=vmem, size = 0x400, scoped, tag = 'input window, operand 18, single buffered']
    #allocation32 [shape = 'u8[32768]{0}', space=vmem, size = 0x8000, scoped, tag = 'input window, operand 19, single buffered']
    #allocation33 [shape = 's32[1]{0}', space=sflag, size = 0x4, scoped, tag = 'scoped memory for _lambda_.6']
    #allocation34 [shape = 'u8[512]{0}', space=vmem, size = 0x400, scoped, tag = 'input window, operand 20, single buffered']
    #allocation35 [shape = 'u8[16384]{0}', space=vmem, size = 0x4000, scoped, tag = 'input window, operand 21, single buffered']
    #allocation36 [shape = 's32[1]{0}', space=sflag, size = 0x4, scoped, tag = 'scoped memory for _lambda_.6']
    #allocation37 [shape = 'u8[512]{0}', space=vmem, size = 0x400, scoped, tag = 'input window, operand 22, single buffered']
    #allocation38 [shape = 'u8[4096]{0}', space=vmem, size = 0x1000, scoped, tag = 'output window, operand 0, single buffered']
    %28 = vsyncpa [#allocation3], 0
    %29 = vsyncpa [#allocation6], 0
    %30 = vsyncpa [#allocation9], 0
    %31 = vsyncpa [#allocation12], 0
    %32 = vsyncpa [#allocation15], 0
    %33 = vsyncpa [#allocation18], 0
    %34 = vsyncpa [#allocation21], 0
    %35 = vsyncpa [#allocation24], 0
    %36 = vsyncpa [#allocation27], 0
    %37 = vsyncpa [#allocation30], 0
    %38 = vsyncpa [#allocation33], 0
    %39 = vsyncpa [#allocation36], 0
    %40 = vsyncpa [#allocation4], 0
    // Predicated region
    $region2: #{_lambda_.6} parent=1 // pred_check
      _
    $region3: #{_lambda_.6} parent=1 // pred_check_branch
      %42 = sbr.rel (0) target = $region5
    $region4: #{_lambda_.6} parent=1 // pred_region
      %s44 = ssub.s32 128, 128
      %45 = vsyncadd [#allocation3], %s44
      %s46 = sshll.u32 [#allocation2], 4
      %s47 = int_to_ptr.vmem [resolvable:$true] %s46
      %52 = dma.hbm_to_vmem [thread:$0]  %s0, 128, %s47, [#allocation3], 64, 64, 4
    $region5: #{_lambda_.6} parent=1 // pred_fallthru
      _
    // Predicated region
    $region6: #{_lambda_.6} parent=1 // pred_check
      _
    $region7: #{_lambda_.6} parent=1 // pred_check_branch
      %54 = sbr.rel (0) target = $region9
    $region8: #{_lambda_.6} parent=1 // pred_region
      %s56 = ssub.s32 512, 512
      %57 = vsyncadd [#allocation6], %s56
      %s58 = sshll.u32 [#allocation5], 4
      %s59 = int_to_ptr.vmem [resolvable:$true] %s58
      %64 = dma.hbm_to_vmem [thread:$0]  %s1, 512, %s59, [#allocation6], 128, 128, 8
    $region9: #{_lambda_.6} parent=1 // pred_fallthru
      _
    // Predicated region
    $region10: #{_lambda_.6} parent=1 // pred_check
      _
    $region11: #{_lambda_.6} parent=1 // pred_check_branch
      %66 = sbr.rel (0) target = $region13
    $region12: #{_lambda_.6} parent=1 // pred_region
      %s68 = ssub.s32 16, 16
      %69 = vsyncadd [#allocation6], %s68
      %s71 = sshll.u32 [#allocation7], 4
      %s72 = int_to_ptr.vmem [resolvable:$true] %s71
      %74 = dma.hbm_to_vmem [thread:$0]  %s2, 16, %s72, [#allocation6]
    $region13: #{_lambda_.6} parent=1 // pred_fallthru
      _
    // Predicated region
    $region14: #{_lambda_.6} parent=1 // pred_check
      _
    $region15: #{_lambda_.6} parent=1 // pred_check_branch
      %76 = sbr.rel (0) target = $region17
    $region16: #{_lambda_.6} parent=1 // pred_region
      %s78 = ssub.s32 512, 512
      %79 = vsyncadd [#allocation9], %s78
      %s80 = sshll.u32 [#allocation8], 4
      %s81 = int_to_ptr.vmem [resolvable:$true] %s80
      %86 = dma.hbm_to_vmem [thread:$0]  %s3, 512, %s81, [#allocation9], 128, 128, 8
    $region17: #{_lambda_.6} parent=1 // pred_fallthru
      _
    // Predicated region
    $region18: #{_lambda_.6} parent=1 // pred_check
      _
    $region19: #{_lambda_.6} parent=1 // pred_check_branch
      %88 = sbr.rel (0) target = $region21
    $region20: #{_lambda_.6} parent=1 // pred_region
      %s90 = ssub.s32 512, 512
      %91 = vsyncadd [#allocation9], %s90
      %s92 = sshll.u32 [#allocation10], 4
      %s93 = int_to_ptr.vmem [resolvable:$true] %s92
      %98 = dma.hbm_to_vmem [thread:$0]  %s4, 512, %s93, [#allocation9], 128, 128, 8
    $region21: #{_lambda_.6} parent=1 // pred_fallthru
      _
    // Predicated region
    $region22: #{_lambda_.6} parent=1 // pred_check
      _
    $region23: #{_lambda_.6} parent=1 // pred_check_branch
      %100 = sbr.rel (0) target = $region25
    $region24: #{_lambda_.6} parent=1 // pred_region
      %s102 = ssub.s32 16, 16
      %103 = vsyncadd [#allocation12], %s102
      %s105 = sshll.u32 [#allocation11], 4
      %s106 = int_to_ptr.vmem [resolvable:$true] %s105
      %108 = dma.hbm_to_vmem [thread:$0]  %s5, 16, %s106, [#allocation12]
    $region25: #{_lambda_.6} parent=1 // pred_fallthru
      _
    // Predicated region
    $region26: #{_lambda_.6} parent=1 // pred_check
      _
    $region27: #{_lambda_.6} parent=1 // pred_check_branch
      %110 = sbr.rel (0) target = $region29
    $region28: #{_lambda_.6} parent=1 // pred_region
      %s112 = ssub.s32 512, 512
      %113 = vsyncadd [#allocation12], %s112
      %s114 = sshll.u32 [#allocation13], 4
      %s115 = int_to_ptr.vmem [resolvable:$true] %s114
      %120 = dma.hbm_to_vmem [thread:$0]  %s6, 512, %s115, [#allocation12], 128, 128, 8
    $region29: #{_lambda_.6} parent=1 // pred_fallthru
      _
    // Predicated region
    $region30: #{_lambda_.6} parent=1 // pred_check
      _
    $region31: #{_lambda_.6} parent=1 // pred_check_branch
      %122 = sbr.rel (0) target = $region33
    $region32: #{_lambda_.6} parent=1 // pred_region
      %s124 = ssub.s32 16, 16
      %125 = vsyncadd [#allocation15], %s124
      %s127 = sshll.u32 [#allocation14], 4
      %s128 = int_to_ptr.vmem [resolvable:$true] %s127
      %130 = dma.hbm_to_vmem [thread:$0]  %s7, 16, %s128, [#allocation15]
    $region33: #{_lambda_.6} parent=1 // pred_fallthru
      _
    // Predicated region
    $region34: #{_lambda_.6} parent=1 // pred_check
      _
    $region35: #{_lambda_.6} parent=1 // pred_check_branch
      %132 = sbr.rel (0) target = $region37
    $region36: #{_lambda_.6} parent=1 // pred_region
      %s134 = ssub.s32 1024, 1024
      %135 = vsyncadd [#allocation15], %s134
      %s136 = sshll.u32 [#allocation16], 4
      %s137 = int_to_ptr.vmem [resolvable:$true] %s136
      %142 = dma.hbm_to_vmem [thread:$0]  %s8, 1024, %s137, [#allocation15], 128, 128, 8
    $region37: #{_lambda_.6} parent=1 // pred_fallthru
      _
    // Predicated region
    $region38: #{_lambda_.6} parent=1 // pred_check
      _
    $region39: #{_lambda_.6} parent=1 // pred_check_branch
      %144 = sbr.rel (0) target = $region41
    $region40: #{_lambda_.6} parent=1 // pred_region
      %s146 = ssub.s32 16, 16
      %147 = vsyncadd [#allocation18], %s146
      %s149 = sshll.u32 [#allocation17], 4
      %s150 = int_to_ptr.vmem [resolvable:$true] %s149
      %152 = dma.hbm_to_vmem [thread:$0]  %s9, 16, %s150, [#allocation18]
    $region41: #{_lambda_.6} parent=1 // pred_fallthru
      _
    // Predicated region
    $region42: #{_lambda_.6} parent=1 // pred_check
      _
    $region43: #{_lambda_.6} parent=1 // pred_check_branch
      %154 = sbr.rel (0) target = $region45
    $region44: #{_lambda_.6} parent=1 // pred_region
      %s156 = ssub.s32 512, 512
      %157 = vsyncadd [#allocation18], %s156
      %s158 = sshll.u32 [#allocation19], 4
      %s159 = int_to_ptr.vmem [resolvable:$true] %s158
      %164 = dma.hbm_to_vmem [thread:$0]  %s10, 512, %s159, [#allocation18], 128, 128, 8
    $region45: #{_lambda_.6} parent=1 // pred_fallthru
      _
    // Predicated region
    $region46: #{_lambda_.6} parent=1 // pred_check
      _
    $region47: #{_lambda_.6} parent=1 // pred_check_branch
      %166 = sbr.rel (0) target = $region49
    $region48: #{_lambda_.6} parent=1 // pred_region
      %s168 = ssub.s32 16, 16
      %169 = vsyncadd [#allocation21], %s168
      %s171 = sshll.u32 [#allocation20], 4
      %s172 = int_to_ptr.vmem [resolvable:$true] %s171
      %174 = dma.hbm_to_vmem [thread:$0]  %s11, 16, %s172, [#allocation21]
    $region49: #{_lambda_.6} parent=1 // pred_fallthru
      _
    // Predicated region
    $region50: #{_lambda_.6} parent=1 // pred_check
      _
    $region51: #{_lambda_.6} parent=1 // pred_check_branch
      %176 = sbr.rel (0) target = $region53
    $region52: #{_lambda_.6} parent=1 // pred_region
      %s178 = ssub.s32 512, 512
      %179 = vsyncadd [#allocation21], %s178
      %s180 = sshll.u32 [#allocation22], 4
      %s181 = int_to_ptr.vmem [resolvable:$true] %s180
      %186 = dma.hbm_to_vmem [thread:$0]  %s12, 512, %s181, [#allocation21], 128, 128, 8
    $region53: #{_lambda_.6} parent=1 // pred_fallthru
      _
    // Predicated region
    $region54: #{_lambda_.6} parent=1 // pred_check
      _
    $region55: #{_lambda_.6} parent=1 // pred_check_branch
      %188 = sbr.rel (0) target = $region57
    $region56: #{_lambda_.6} parent=1 // pred_region
      %s190 = ssub.s32 16, 16
      %191 = vsyncadd [#allocation24], %s190
      %s193 = sshll.u32 [#allocation23], 4
      %s194 = int_to_ptr.vmem [resolvable:$true] %s193
      %196 = dma.hbm_to_vmem [thread:$0]  %s13, 16, %s194, [#allocation24]
    $region57: #{_lambda_.6} parent=1 // pred_fallthru
      _
    // Predicated region
    $region58: #{_lambda_.6} parent=1 // pred_check
      _
    $region59: #{_lambda_.6} parent=1 // pred_check_branch
      %198 = sbr.rel (0) target = $region61
    $region60: #{_lambda_.6} parent=1 // pred_region
      %s200 = ssub.s32 512, 512
      %201 = vsyncadd [#allocation24], %s200
      %s202 = sshll.u32 [#allocation25], 4
      %s203 = int_to_ptr.vmem [resolvable:$true] %s202
      %208 = dma.hbm_to_vmem [thread:$0]  %s14, 512, %s203, [#allocation24], 128, 128, 8
    $region61: #{_lambda_.6} parent=1 // pred_fallthru
      _
    // Predicated region
    $region62: #{_lambda_.6} parent=1 // pred_check
      _
    $region63: #{_lambda_.6} parent=1 // pred_check_branch
      %210 = sbr.rel (0) target = $region65
    $region64: #{_lambda_.6} parent=1 // pred_region
      %s212 = ssub.s32 512, 512
      %213 = vsyncadd [#allocation27], %s212
      %s214 = sshll.u32 [#allocation26], 4
      %s215 = int_to_ptr.vmem [resolvable:$true] %s214
      %220 = dma.hbm_to_vmem [thread:$0]  %s15, 512, %s215, [#allocation27], 128, 128, 8
    $region65: #{_lambda_.6} parent=1 // pred_fallthru
      _
    // Predicated region
    $region66: #{_lambda_.6} parent=1 // pred_check
      _
    $region67: #{_lambda_.6} parent=1 // pred_check_branch
      %222 = sbr.rel (0) target = $region69
    $region68: #{_lambda_.6} parent=1 // pred_region
      %s224 = ssub.s32 16, 16
      %225 = vsyncadd [#allocation27], %s224
      %s227 = sshll.u32 [#allocation28], 4
      %s228 = int_to_ptr.vmem [resolvable:$true] %s227
      %230 = dma.hbm_to_vmem [thread:$0]  %s16, 16, %s228, [#allocation27]
    $region69: #{_lambda_.6} parent=1 // pred_fallthru
      _
    // Predicated region
    $region70: #{_lambda_.6} parent=1 // pred_check
      _
    $region71: #{_lambda_.6} parent=1 // pred_check_branch
      %232 = sbr.rel (0) target = $region73
    $region72: #{_lambda_.6} parent=1 // pred_region
      %s234 = ssub.s32 512, 512
      %235 = vsyncadd [#allocation30], %s234
      %s236 = sshll.u32 [#allocation29], 4
      %s237 = int_to_ptr.vmem [resolvable:$true] %s236
      %242 = dma.hbm_to_vmem [thread:$0]  %s17, 512, %s237, [#allocation30], 128, 128, 8
    $region73: #{_lambda_.6} parent=1 // pred_fallthru
      _
    // Predicated region
    $region74: #{_lambda_.6} parent=1 // pred_check
      _
    $region75: #{_lambda_.6} parent=1 // pred_check_branch
      %244 = sbr.rel (0) target = $region77
    $region76: #{_lambda_.6} parent=1 // pred_region
      %s246 = ssub.s32 16, 16
      %247 = vsyncadd [#allocation30], %s246
      %s249 = sshll.u32 [#allocation31], 4
      %s250 = int_to_ptr.vmem [resolvable:$true] %s249
      %252 = dma.hbm_to_vmem [thread:$0]  %s18, 16, %s250, [#allocation30]
    $region77: #{_lambda_.6} parent=1 // pred_fallthru
      _
    // Predicated region
    $region78: #{_lambda_.6} parent=1 // pred_check
      _
    $region79: #{_lambda_.6} parent=1 // pred_check_branch
      %254 = sbr.rel (0) target = $region81
    $region80: #{_lambda_.6} parent=1 // pred_region
      %s256 = ssub.s32 1024, 1024
      %257 = vsyncadd [#allocation33], %s256
      %s258 = sshll.u32 [#allocation32], 4
      %s259 = int_to_ptr.vmem [resolvable:$true] %s258
      %264 = dma.hbm_to_vmem [thread:$0]  %s19, 1024, %s259, [#allocation33], 128, 128, 8
    $region81: #{_lambda_.6} parent=1 // pred_fallthru
      _
    // Predicated region
    $region82: #{_lambda_.6} parent=1 // pred_check
      _
    $region83: #{_lambda_.6} parent=1 // pred_check_branch
      %266 = sbr.rel (0) target = $region85
    $region84: #{_lambda_.6} parent=1 // pred_region
      %s268 = ssub.s32 16, 16
      %269 = vsyncadd [#allocation33], %s268
      %s271 = sshll.u32 [#allocation34], 4
      %s272 = int_to_ptr.vmem [resolvable:$true] %s271
      %274 = dma.hbm_to_vmem [thread:$0]  %s20, 16, %s272, [#allocation33]
    $region85: #{_lambda_.6} parent=1 // pred_fallthru
      _
    // Predicated region
    $region86: #{_lambda_.6} parent=1 // pred_check
      _
    $region87: #{_lambda_.6} parent=1 // pred_check_branch
      %276 = sbr.rel (0) target = $region89
    $region88: #{_lambda_.6} parent=1 // pred_region
      %s278 = ssub.s32 512, 512
      %279 = vsyncadd [#allocation36], %s278
      %s280 = sshll.u32 [#allocation35], 4
      %s281 = int_to_ptr.vmem [resolvable:$true] %s280
      %286 = dma.hbm_to_vmem [thread:$0]  %s21, 512, %s281, [#allocation36], 128, 128, 8
    $region89: #{_lambda_.6} parent=1 // pred_fallthru
      _
    // Predicated region
    $region90: #{_lambda_.6} parent=1 // pred_check
      _
    $region91: #{_lambda_.6} parent=1 // pred_check_branch
      %288 = sbr.rel (0) target = $region93
    $region92: #{_lambda_.6} parent=1 // pred_region
      %s290 = ssub.s32 16, 16
      %291 = vsyncadd [#allocation36], %s290
      %s293 = sshll.u32 [#allocation37], 4
      %s294 = int_to_ptr.vmem [resolvable:$true] %s293
      %296 = dma.hbm_to_vmem [thread:$0]  %s22, 16, %s294, [#allocation36]
    $region93: #{_lambda_.6} parent=1 // pred_fallthru
      _
    // Predicated region
    $region94: #{_lambda_.6} parent=1 // pred_check
      _
    $region95: #{_lambda_.6} parent=1 // pred_check_branch
      %298 = sbr.rel (0) target = $region97
    $region96: #{_lambda_.6} parent=1 // pred_region
      %299 = dma.done [#allocation3], 128
    $region97: #{_lambda_.6} parent=1 // pred_fallthru
      _
    // Predicated region
    $region98: #{_lambda_.6} parent=1 // pred_check
      _
    $region99: #{_lambda_.6} parent=1 // pred_check_branch
      %301 = sbr.rel (0) target = $region101
    $region100: #{_lambda_.6} parent=1 // pred_region
      %302 = dma.done [#allocation6], 512
    $region101: #{_lambda_.6} parent=1 // pred_fallthru
      _
    // Predicated region
    $region102: #{_lambda_.6} parent=1 // pred_check
      _
    $region103: #{_lambda_.6} parent=1 // pred_check_branch
      %304 = sbr.rel (0) target = $region105
    $region104: #{_lambda_.6} parent=1 // pred_region
      %305 = dma.done [#allocation6], 16
    $region105: #{_lambda_.6} parent=1 // pred_fallthru
      _
    // Predicated region
    $region106: #{_lambda_.6} parent=1 // pred_check
      _
    $region107: #{_lambda_.6} parent=1 // pred_check_branch
      %307 = sbr.rel (0) target = $region109
    $region108: #{_lambda_.6} parent=1 // pred_region
      %308 = dma.done [#allocation9], 512
    $region109: #{_lambda_.6} parent=1 // pred_fallthru
      _
    // Predicated region
    $region110: #{_lambda_.6} parent=1 // pred_check
      _
    $region111: #{_lambda_.6} parent=1 // pred_check_branch
      %310 = sbr.rel (0) target = $region113
    $region112: #{_lambda_.6} parent=1 // pred_region
      %311 = dma.done [#allocation9], 512
    $region113: #{_lambda_.6} parent=1 // pred_fallthru
      _
    // Predicated region
    $region114: #{_lambda_.6} parent=1 // pred_check
      _
    $region115: #{_lambda_.6} parent=1 // pred_check_branch
      %313 = sbr.rel (0) target = $region117
    $region116: #{_lambda_.6} parent=1 // pred_region
      %314 = dma.done [#allocation12], 16
    $region117: #{_lambda_.6} parent=1 // pred_fallthru
      _
    // Predicated region
    $region118: #{_lambda_.6} parent=1 // pred_check
      _
    $region119: #{_lambda_.6} parent=1 // pred_check_branch
      %316 = sbr.rel (0) target = $region121
    $region120: #{_lambda_.6} parent=1 // pred_region
      %317 = dma.done [#allocation12], 512
    $region121: #{_lambda_.6} parent=1 // pred_fallthru
      _
    // Predicated region
    $region122: #{_lambda_.6} parent=1 // pred_check
      _
    $region123: #{_lambda_.6} parent=1 // pred_check_branch
      %319 = sbr.rel (0) target = $region125
    $region124: #{_lambda_.6} parent=1 // pred_region
      %320 = dma.done [#allocation15], 16
    $region125: #{_lambda_.6} parent=1 // pred_fallthru
      _
    // Predicated region
    $region126: #{_lambda_.6} parent=1 // pred_check
      _
    $region127: #{_lambda_.6} parent=1 // pred_check_branch
      %322 = sbr.rel (0) target = $region129
    $region128: #{_lambda_.6} parent=1 // pred_region
      %323 = dma.done [#allocation15], 1024
    $region129: #{_lambda_.6} parent=1 // pred_fallthru
      _
    // Predicated region
    $region130: #{_lambda_.6} parent=1 // pred_check
      _
    $region131: #{_lambda_.6} parent=1 // pred_check_branch
      %325 = sbr.rel (0) target = $region133
    $region132: #{_lambda_.6} parent=1 // pred_region
      %326 = dma.done [#allocation18], 16
    $region133: #{_lambda_.6} parent=1 // pred_fallthru
      _
    // Predicated region
    $region134: #{_lambda_.6} parent=1 // pred_check
      _
    $region135: #{_lambda_.6} parent=1 // pred_check_branch
      %328 = sbr.rel (0) target = $region137
    $region136: #{_lambda_.6} parent=1 // pred_region
      %329 = dma.done [#allocation18], 512
    $region137: #{_lambda_.6} parent=1 // pred_fallthru
      _
    // Predicated region
    $region138: #{_lambda_.6} parent=1 // pred_check
      _
    $region139: #{_lambda_.6} parent=1 // pred_check_branch
      %331 = sbr.rel (0) target = $region141
    $region140: #{_lambda_.6} parent=1 // pred_region
      %332 = dma.done [#allocation21], 16
    $region141: #{_lambda_.6} parent=1 // pred_fallthru
      _
    // Predicated region
    $region142: #{_lambda_.6} parent=1 // pred_check
      _
    $region143: #{_lambda_.6} parent=1 // pred_check_branch
      %334 = sbr.rel (0) target = $region145
    $region144: #{_lambda_.6} parent=1 // pred_region
      %335 = dma.done [#allocation21], 512
    $region145: #{_lambda_.6} parent=1 // pred_fallthru
      _
    // Predicated region
    $region146: #{_lambda_.6} parent=1 // pred_check
      _
    $region147: #{_lambda_.6} parent=1 // pred_check_branch
      %337 = sbr.rel (0) target = $region149
    $region148: #{_lambda_.6} parent=1 // pred_region
      %338 = dma.done [#allocation24], 16
    $region149: #{_lambda_.6} parent=1 // pred_fallthru
      _
    // Predicated region
    $region150: #{_lambda_.6} parent=1 // pred_check
      _
    $region151: #{_lambda_.6} parent=1 // pred_check_branch
      %340 = sbr.rel (0) target = $region153
    $region152: #{_lambda_.6} parent=1 // pred_region
      %341 = dma.done [#allocation24], 512
    $region153: #{_lambda_.6} parent=1 // pred_fallthru
      _
    // Predicated region
    $region154: #{_lambda_.6} parent=1 // pred_check
      _
    $region155: #{_lambda_.6} parent=1 // pred_check_branch
      %343 = sbr.rel (0) target = $region157
    $region156: #{_lambda_.6} parent=1 // pred_region
      %344 = dma.done [#allocation27], 512
    $region157: #{_lambda_.6} parent=1 // pred_fallthru
      _
    // Predicated region
    $region158: #{_lambda_.6} parent=1 // pred_check
      _
    $region159: #{_lambda_.6} parent=1 // pred_check_branch
      %346 = sbr.rel (0) target = $region161
    $region160: #{_lambda_.6} parent=1 // pred_region
      %347 = dma.done [#allocation27], 16
    $region161: #{_lambda_.6} parent=1 // pred_fallthru
      _
    // Predicated region
    $region162: #{_lambda_.6} parent=1 // pred_check
      _
    $region163: #{_lambda_.6} parent=1 // pred_check_branch
      %349 = sbr.rel (0) target = $region165
    $region164: #{_lambda_.6} parent=1 // pred_region
      %350 = dma.done [#allocation30], 512
    $region165: #{_lambda_.6} parent=1 // pred_fallthru
      _
    // Predicated region
    $region166: #{_lambda_.6} parent=1 // pred_check
      _
    $region167: #{_lambda_.6} parent=1 // pred_check_branch
      %352 = sbr.rel (0) target = $region169
    $region168: #{_lambda_.6} parent=1 // pred_region
      %353 = dma.done [#allocation30], 16
    $region169: #{_lambda_.6} parent=1 // pred_fallthru
      _
    // Predicated region
    $region170: #{_lambda_.6} parent=1 // pred_check
      _
    $region171: #{_lambda_.6} parent=1 // pred_check_branch
      %355 = sbr.rel (0) target = $region173
    $region172: #{_lambda_.6} parent=1 // pred_region
      %356 = dma.done [#allocation33], 1024
    $region173: #{_lambda_.6} parent=1 // pred_fallthru
      _
    // Predicated region
    $region174: #{_lambda_.6} parent=1 // pred_check
      _
    $region175: #{_lambda_.6} parent=1 // pred_check_branch
      %358 = sbr.rel (0) target = $region177
    $region176: #{_lambda_.6} parent=1 // pred_region
      %359 = dma.done [#allocation33], 16
    $region177: #{_lambda_.6} parent=1 // pred_fallthru
      _
    // Predicated region
    $region178: #{_lambda_.6} parent=1 // pred_check
      _
    $region179: #{_lambda_.6} parent=1 // pred_check_branch
      %361 = sbr.rel (0) target = $region181
    $region180: #{_lambda_.6} parent=1 // pred_region
      %362 = dma.done [#allocation36], 512
    $region181: #{_lambda_.6} parent=1 // pred_fallthru
      _
    // Predicated region
    $region182: #{_lambda_.6} parent=1 // pred_check
      _
    $region183: #{_lambda_.6} parent=1 // pred_check_branch
      %364 = sbr.rel (0) target = $region185
    $region184: #{_lambda_.6} parent=1 // pred_region
      %365 = dma.done [#allocation36], 16
    $region185: #{_lambda_.6} parent=1 // pred_fallthru
      _
    %v366 = vld [vmem:[#allocation2] sm:$0xf]
    %v367 = vld [vmem:[#allocation2 + $0x4] sm:$0xf]
    %v368 = vunpack.c.l.bf16 %v366
    %v369 = vunpack.c.l.bf16 %v367
    %v370 = vld [vmem:[#allocation5] sm:$0xff]
    %v371 = vld [vmem:[#allocation5 + $0x8] sm:$0xff]
    %v372 = vld [vmem:[#allocation5 + $0x10] sm:$0xff]
    %v373 = vld [vmem:[#allocation5 + $0x18] sm:$0xff]
    %v374 = vld [vmem:[#allocation7] sm:$0x1]
    %v375 = vld [vmem:[#allocation8] sm:$0xff]
    %v376 = vld [vmem:[#allocation8 + $0x8] sm:$0xff]
    %v377 = vld [vmem:[#allocation8 + $0x10] sm:$0xff]
    %v378 = vld [vmem:[#allocation8 + $0x18] sm:$0xff]
    %vm379 = vcmask 261120
    %v380 = vsel %vm379, %v368, 0.0
    %381 = vadd.xlane.f32.xlu0 %v380
    %v382 = vpop.xlane.xlu0 %381
    %v383 = vsel %vm379, %v369, 0.0
    %384 = vadd.xlane.f32.xlu0 %v383
    %v385 = vpop.xlane.xlu0 %384
    %v386 = vrcp.pop 32.0
    %v387 = vmul.f32 %v382, %v386
    %v388 = vmul.f32 %v385, %v386
    %v389 = vsub.f32 %v368, %v387
    %v390 = vsub.f32 %v369, %v388
    %v391 = vmul.f32 %v389, %v389
    %v392 = vmul.f32 %v390, %v390
    %v393 = vsel %vm379, %v391, 0.0
    %394 = vadd.xlane.f32.xlu0 %v393
    %v395 = vpop.xlane.xlu0 %394
    %v396 = vsel %vm379, %v392, 0.0
    %397 = vadd.xlane.f32.xlu0 %v396
    %v398 = vpop.xlane.xlu0 %397
    %v399 = vmul.f32 %v395, %v386
    %v400 = vmul.f32 %v398, %v386
    %v401 = vadd.f32 %v399, 1e-05
    %v402 = vadd.f32 %v400, 1e-05
    %v403 = vrsqrt.pop %v401
    %v404 = vrsqrt.pop %v402
    %v405 = vmul.f32 %v389, %v403
    %v406 = vmul.f32 %v390, %v404
    %v408 = vlaneseq
    %v409 = vshrl.u32 %v408, 7
    %v410 = vsub.s32 0, %v409
    %v411 = vrot.slane %v374, %v410
    %v414 = vsel %vm379, %v405, 0
    %v417 = vsel %vm379, %v406, 0
    %419 = vmatprep.subr.mxu0 0.0
    %420 = vmatpush1.msra.mxu0 %v370
    %421 = vmatprep.subr.mxu0 0.0
    %422 = vmatpush1.msra.mxu0 %v371
    %423 = vmatprep.subr.mxu0 0.0
    %424 = vmatpush1.msra.mxu0 %v372
    %425 = vmatprep.subr.mxu0 0.0
    %426 = vmatpush1.msra.mxu0 %v373
    %427 = vmatprep.subr.mxu0 0.0
    %428 = vmatpush1.msra.mxu0 0.0
    %429 = vmatprep.subr.mxu0 0.0
    %430 = vmatpush1.msra.mxu0 0.0
    %431 = vmatprep.subr.mxu0 0.0
    %432 = vmatpush1.msra.mxu0 0.0
    %433 = vmatprep.subr.mxu0 0.0
    %434 = vmatpush1.msra.mxu0 0.0
    %435 = vmatprep.subr.mxu0 0.0
    %436 = vmatpush1.msra.mxu0 0.0
    %437 = vmatprep.subr.mxu0 0.0
    %438 = vmatpush1.msra.mxu0 0.0
    %439 = vmatprep.subr.mxu0 0.0
    %440 = vmatpush1.msra.mxu0 0.0
    %441 = vmatprep.subr.mxu0 0.0
    %442 = vmatpush1.msra.mxu0 0.0
    %443 = vmatprep.subr.mxu0 0.0
    %444 = vmatpush1.msra.mxu0 0.0
    %445 = vmatprep.subr.mxu0 0.0
    %446 = vmatpush1.msra.mxu0 0.0
    %447 = vmatprep.subr.mxu0 0.0
    %448 = vmatpush1.msra.mxu0 0.0
    %449 = vmatprep.subr.mxu0 0.0
    %450 = vmatpush1.msra.mxu0 0.0
    %451 = vmatprep.subr.mxu0 0.0
    %452 = vmatpush1.msra.mxu0 0.0
    %453 = vmatprep.subr.mxu0 0.0
    %454 = vmatpush1.msra.mxu0 0.0
    %455 = vmatprep.subr.mxu0 0.0
    %456 = vmatpush1.msra.mxu0 0.0
    %457 = vmatprep.subr.mxu0 0.0
    %458 = vmatpush1.msra.mxu0 0.0
    %459 = vmatprep.subr.mxu0 0.0
    %460 = vmatpush1.msra.mxu0 0.0
    %461 = vmatprep.subr.mxu0 0.0
    %462 = vmatpush1.msra.mxu0 0.0
    %463 = vmatprep.subr.mxu0 0.0
    %464 = vmatpush1.msra.mxu0 0.0
    %465 = vmatprep.subr.mxu0 0.0
    %466 = vmatpush1.msra.mxu0 0.0
    %467 = vmatprep.subr.mxu0 0.0
    %468 = vmatpush1.msra.mxu0 0.0
    %469 = vmatprep.subr.mxu0 0.0
    %470 = vmatpush1.msra.mxu0 0.0
    %471 = vmatprep.subr.mxu0 0.0
    %472 = vmatpush1.msra.mxu0 0.0
    %473 = vmatprep.subr.mxu0 0.0
    %474 = vmatpush1.msra.mxu0 0.0
    %475 = vmatprep.subr.mxu0 0.0
    %476 = vmatpush1.msra.mxu0 0.0
    %477 = vmatprep.subr.mxu0 0.0
    %478 = vmatpush1.msra.mxu0 0.0
    %479 = vmatprep.subr.mxu0 0.0
    %480 = vmatpush1.msra.mxu0 0.0
    %481 = vmatprep.subr.mxu0 0.0
    %482 = vmatpush1.msra.mxu0 0.0
    %483 = vmatprep.mubr.f32.mxu0 0.0
    %484 = vmatmul.mubr.f32.gmra.mrb[0].mxu0 %v414
    %v485 = vpop.f32.mrb[0].mxu0
    %v486 = vadd.f32 %v411, %v485
    %v487 = vpop.f32.mrb[0].mxu0
    %488 = vmatprep.mubr.f32.mxu0 0.0
    %489 = vmatmul.mubr.f32.gmra.mrb[0].mxu0 %v417
    %v490 = vpop.f32.mrb[0].mxu0
    %v491 = vadd.f32 %v411, %v490
    %v492 = vpop.f32.mrb[0].mxu0
    %493 = vdwg.mxu0
    %496 = vrot.lane.b32.xlu0 %v486, 96
    %v497 = vpop.permute.xlu0 %496
    %498 = vrot.lane.b32.xlu0 %v491, 96
    %v499 = vpop.permute.xlu0 %498
    %v502 = vmul.f32 %v486, %v497
    %v503 = vmul.f32 %v491, %v499
    %vm504 = vcmask 64512
    %v505 = vsel %vm504, %v502, 0.0
    %506 = vadd.xlane.f32.xlu0 %v505
    %v507 = vpop.xlane.xlu0 %506
    %v508 = vsel %vm504, %v503, 0.0
    %509 = vadd.xlane.f32.xlu0 %v508
    %v510 = vpop.xlane.xlu0 %509
    %511 = vrot.lane.b32.xlu0 %v486, 88
    %v512 = vpop.permute.xlu0 %511
    %513 = vrot.lane.b32.xlu0 %v491, 88
    %v514 = vpop.permute.xlu0 %513
    %v517 = vmul.f32 %v486, %v512
    %v518 = vmul.f32 %v491, %v514
    %v519 = vsel %vm504, %v517, 0.0
    %520 = vadd.xlane.f32.xlu0 %v519
    %v521 = vpop.xlane.xlu0 %520
    %v522 = vsel %vm504, %v518, 0.0
    %523 = vadd.xlane.f32.xlu0 %v522
    %v524 = vpop.xlane.xlu0 %523
    %525 = vrot.lane.b32.xlu0 %v486, 80
    %v526 = vpop.permute.xlu0 %525
    %527 = vrot.lane.b32.xlu0 %v491, 80
    %v528 = vpop.permute.xlu0 %527
    %v531 = vmul.f32 %v486, %v526
    %v532 = vmul.f32 %v491, %v528
    %v533 = vsel %vm504, %v531, 0.0
    %534 = vadd.xlane.f32.xlu0 %v533
    %v535 = vpop.xlane.xlu0 %534
    %v536 = vsel %vm504, %v532, 0.0
    %537 = vadd.xlane.f32.xlu0 %v536
    %v538 = vpop.xlane.xlu0 %537
    %539 = vrot.lane.b32.xlu0 %v486, 72
    %v540 = vpop.permute.xlu0 %539
    %541 = vrot.lane.b32.xlu0 %v491, 72
    %v542 = vpop.permute.xlu0 %541
    %v545 = vmul.f32 %v486, %v540
    %v546 = vmul.f32 %v491, %v542
    %v547 = vsel %vm504, %v545, 0.0
    %548 = vadd.xlane.f32.xlu0 %v547
    %v549 = vpop.xlane.xlu0 %548
    %v550 = vsel %vm504, %v546, 0.0
    %551 = vadd.xlane.f32.xlu0 %v550
    %v552 = vpop.xlane.xlu0 %551
    %v553 = vmax.f32 %v507, %v521
    %v554 = vmax.f32 %v510, %v524
    %v555 = vmax.f32 %v553, %v535
    %v556 = vmax.f32 %v554, %v538
    %v557 = vmax.f32 %v555, %v549
    %v558 = vmax.f32 %v556, %v552
    %v559 = vsub.f32 %v507, %v557
    %v560 = vsub.f32 %v510, %v558
    %v561 = vmul.f32 %v559, 1.442695
    %v562 = vpow.pop %v561
    %v563 = vmul.f32 %v560, 1.442695
    %v564 = vpow.pop %v563
    %v565 = vsub.f32 %v521, %v557
    %v566 = vsub.f32 %v524, %v558
    %v567 = vmul.f32 %v565, 1.442695
    %v568 = vpow.pop %v567
    %v569 = vmul.f32 %v566, 1.442695
    %v570 = vpow.pop %v569
    %v571 = vsub.f32 %v535, %v557
    %v572 = vsub.f32 %v538, %v558
    %v573 = vmul.f32 %v571, 1.442695
    %v574 = vpow.pop %v573
    %v575 = vmul.f32 %v572, 1.442695
    %v576 = vpow.pop %v575
    %v577 = vsub.f32 %v549, %v557
    %v578 = vsub.f32 %v552, %v558
    %v579 = vmul.f32 %v577, 1.442695
    %v580 = vpow.pop %v579
    %v581 = vmul.f32 %v578, 1.442695
    %v582 = vpow.pop %v581
    %v583 = vadd.f32 %v562, %v568
    %v584 = vadd.f32 %v564, %v570
    %v585 = vadd.f32 %v583, %v574
    %v586 = vadd.f32 %v584, %v576
    %v587 = vadd.f32 %v585, %v580
    %v588 = vadd.f32 %v586, %v582
    %v589 = vrcp.pop %v587
    %v590 = vrcp.pop %v588
    %v591 = vmul.f32 %v562, %v589
    %v592 = vmul.f32 %v564, %v590
    %v593 = vmul.f32 %v591, %v486
    %v594 = vmul.f32 %v592, %v491
    %v595 = vmul.f32 %v568, %v589
    %v596 = vmul.f32 %v570, %v590
    %v597 = vmul.f32 %v595, %v486
    %v598 = vmul.f32 %v596, %v491
    %601 = vrot.lane.b32.xlu0 %v597, 120
    %v602 = vpop.permute.xlu0 %601
    %603 = vrot.lane.b32.xlu0 %v598, 120
    %v604 = vpop.permute.xlu0 %603
    %v607 = vadd.f32 %v593, %v602
    %v608 = vadd.f32 %v594, %v604
    %v609 = vmul.f32 %v574, %v589
    %v610 = vmul.f32 %v576, %v590
    %v611 = vmul.f32 %v609, %v486
    %v612 = vmul.f32 %v610, %v491
    %615 = vrot.lane.b32.xlu0 %v611, 112
    %v616 = vpop.permute.xlu0 %615
    %617 = vrot.lane.b32.xlu0 %v612, 112
    %v618 = vpop.permute.xlu0 %617
    %v621 = vadd.f32 %v607, %v616
    %v622 = vadd.f32 %v608, %v618
    %v623 = vmul.f32 %v580, %v589
    %v624 = vmul.f32 %v582, %v590
    %v625 = vmul.f32 %v623, %v486
    %v626 = vmul.f32 %v624, %v491
    %629 = vrot.lane.b32.xlu0 %v625, 104
    %v630 = vpop.permute.xlu0 %629
    %631 = vrot.lane.b32.xlu0 %v626, 104
    %v632 = vpop.permute.xlu0 %631
    %v635 = vadd.f32 %v621, %v630
    %v636 = vadd.f32 %v622, %v632
    %637 = vrot.lane.b32.xlu0 %v486, 104
    %v638 = vpop.permute.xlu0 %637
    %639 = vrot.lane.b32.xlu0 %v491, 104
    %v640 = vpop.permute.xlu0 %639
    %v643 = vmul.f32 %v486, %v638
    %v644 = vmul.f32 %v491, %v640
    %647 = vrot.lane.b32.xlu0 %v643, 120
    %v648 = vpop.permute.xlu0 %647
    %649 = vrot.lane.b32.xlu0 %v644, 120
    %v650 = vpop.permute.xlu0 %649
    %v653 = vsel %vm504, %v648, 0.0
    %654 = vadd.xlane.f32.xlu0 %v653
    %v655 = vpop.xlane.xlu0 %654
    %v656 = vsel %vm504, %v650, 0.0
    %657 = vadd.xlane.f32.xlu0 %v656
    %v658 = vpop.xlane.xlu0 %657
    %661 = vrot.lane.b32.xlu0 %v502, 120
    %v662 = vpop.permute.xlu0 %661
    %663 = vrot.lane.b32.xlu0 %v503, 120
    %v664 = vpop.permute.xlu0 %663
    %v667 = vsel %vm504, %v662, 0.0
    %668 = vadd.xlane.f32.xlu0 %v667
    %v669 = vpop.xlane.xlu0 %668
    %v670 = vsel %vm504, %v664, 0.0
    %671 = vadd.xlane.f32.xlu0 %v670
    %v672 = vpop.xlane.xlu0 %671
    %675 = vrot.lane.b32.xlu0 %v517, 120
    %v676 = vpop.permute.xlu0 %675
    %677 = vrot.lane.b32.xlu0 %v518, 120
    %v678 = vpop.permute.xlu0 %677
    %v681 = vsel %vm504, %v676, 0.0
    %682 = vadd.xlane.f32.xlu0 %v681
    %v683 = vpop.xlane.xlu0 %682
    %v684 = vsel %vm504, %v678, 0.0
    %685 = vadd.xlane.f32.xlu0 %v684
    %v686 = vpop.xlane.xlu0 %685
    %689 = vrot.lane.b32.xlu0 %v531, 120
    %v690 = vpop.permute.xlu0 %689
    %691 = vrot.lane.b32.xlu0 %v532, 120
    %v692 = vpop.permute.xlu0 %691
    %v695 = vsel %vm504, %v690, 0.0
    %696 = vadd.xlane.f32.xlu0 %v695
    %v697 = vpop.xlane.xlu0 %696
    %v698 = vsel %vm504, %v692, 0.0
    %699 = vadd.xlane.f32.xlu0 %v698
    %v700 = vpop.xlane.xlu0 %699
    %v701 = vmax.f32 %v655, %v669
    %v702 = vmax.f32 %v658, %v672
    %v703 = vmax.f32 %v701, %v683
    %v704 = vmax.f32 %v702, %v686
    %v705 = vmax.f32 %v703, %v697
    %v706 = vmax.f32 %v704, %v700
    %v707 = vsub.f32 %v655, %v705
    %v708 = vsub.f32 %v658, %v706
    %v709 = vmul.f32 %v707, 1.442695
    %v710 = vpow.pop %v709
    %v711 = vmul.f32 %v708, 1.442695
    %v712 = vpow.pop %v711
    %v713 = vsub.f32 %v669, %v705
    %v714 = vsub.f32 %v672, %v706
    %v715 = vmul.f32 %v713, 1.442695
    %v716 = vpow.pop %v715
    %v717 = vmul.f32 %v714, 1.442695
    %v718 = vpow.pop %v717
    %v719 = vsub.f32 %v683, %v705
    %v720 = vsub.f32 %v686, %v706
    %v721 = vmul.f32 %v719, 1.442695
    %v722 = vpow.pop %v721
    %v723 = vmul.f32 %v720, 1.442695
    %v724 = vpow.pop %v723
    %v725 = vsub.f32 %v697, %v705
    %v726 = vsub.f32 %v700, %v706
    %v727 = vmul.f32 %v725, 1.442695
    %v728 = vpow.pop %v727
    %v729 = vmul.f32 %v726, 1.442695
    %v730 = vpow.pop %v729
    %v731 = vadd.f32 %v710, %v716
    %v732 = vadd.f32 %v712, %v718
    %v733 = vadd.f32 %v731, %v722
    %v734 = vadd.f32 %v732, %v724
    %v735 = vadd.f32 %v733, %v728
    %v736 = vadd.f32 %v734, %v730
    %v737 = vrcp.pop %v735
    %v738 = vrcp.pop %v736
    %v739 = vmul.f32 %v710, %v737
    %v740 = vmul.f32 %v712, %v738
    %v741 = vmul.f32 %v739, %v486
    %v742 = vmul.f32 %v740, %v491
    %v743 = vmul.f32 %v716, %v737
    %v744 = vmul.f32 %v718, %v738
    %v745 = vmul.f32 %v743, %v486
    %v746 = vmul.f32 %v744, %v491
    %749 = vrot.lane.b32.xlu0 %v745, 120
    %v750 = vpop.permute.xlu0 %749
    %751 = vrot.lane.b32.xlu0 %v746, 120
    %v752 = vpop.permute.xlu0 %751
    %v755 = vadd.f32 %v741, %v750
    %v756 = vadd.f32 %v742, %v752
    %v757 = vmul.f32 %v722, %v737
    %v758 = vmul.f32 %v724, %v738
    %v759 = vmul.f32 %v757, %v486
    %v760 = vmul.f32 %v758, %v491
    %763 = vrot.lane.b32.xlu0 %v759, 112
    %v764 = vpop.permute.xlu0 %763
    %765 = vrot.lane.b32.xlu0 %v760, 112
    %v766 = vpop.permute.xlu0 %765
    %v769 = vadd.f32 %v755, %v764
    %v770 = vadd.f32 %v756, %v766
    %v771 = vmul.f32 %v728, %v737
    %v772 = vmul.f32 %v730, %v738
    %v773 = vmul.f32 %v771, %v486
    %v774 = vmul.f32 %v772, %v491
    %777 = vrot.lane.b32.xlu0 %v773, 104
    %v778 = vpop.permute.xlu0 %777
    %779 = vrot.lane.b32.xlu0 %v774, 104
    %v780 = vpop.permute.xlu0 %779
    %v783 = vadd.f32 %v769, %v778
    %v784 = vadd.f32 %v770, %v780
    %785 = vrot.lane.b32.xlu0 %v486, 112
    %v786 = vpop.permute.xlu0 %785
    %787 = vrot.lane.b32.xlu0 %v491, 112
    %v788 = vpop.permute.xlu0 %787
    %v791 = vmul.f32 %v486, %v786
    %v792 = vmul.f32 %v491, %v788
    %795 = vrot.lane.b32.xlu0 %v791, 112
    %v796 = vpop.permute.xlu0 %795
    %797 = vrot.lane.b32.xlu0 %v792, 112
    %v798 = vpop.permute.xlu0 %797
    %v801 = vsel %vm504, %v796, 0.0
    %802 = vadd.xlane.f32.xlu0 %v801
    %v803 = vpop.xlane.xlu0 %802
    %v804 = vsel %vm504, %v798, 0.0
    %805 = vadd.xlane.f32.xlu0 %v804
    %v806 = vpop.xlane.xlu0 %805
    %807 = vrot.lane.b32.xlu0 %v643, 112
    %v808 = vpop.permute.xlu0 %807
    %809 = vrot.lane.b32.xlu0 %v644, 112
    %v810 = vpop.permute.xlu0 %809
    %v813 = vsel %vm504, %v808, 0.0
    %814 = vadd.xlane.f32.xlu0 %v813
    %v815 = vpop.xlane.xlu0 %814
    %v816 = vsel %vm504, %v810, 0.0
    %817 = vadd.xlane.f32.xlu0 %v816
    %v818 = vpop.xlane.xlu0 %817
    %819 = vrot.lane.b32.xlu0 %v502, 112
    %v820 = vpop.permute.xlu0 %819
    %821 = vrot.lane.b32.xlu0 %v503, 112
    %v822 = vpop.permute.xlu0 %821
    %v825 = vsel %vm504, %v820, 0.0
    %826 = vadd.xlane.f32.xlu0 %v825
    %v827 = vpop.xlane.xlu0 %826
    %v828 = vsel %vm504, %v822, 0.0
    %829 = vadd.xlane.f32.xlu0 %v828
    %v830 = vpop.xlane.xlu0 %829
    %831 = vrot.lane.b32.xlu0 %v517, 112
    %v832 = vpop.permute.xlu0 %831
    %833 = vrot.lane.b32.xlu0 %v518, 112
    %v834 = vpop.permute.xlu0 %833
    %v837 = vsel %vm504, %v832, 0.0
    %838 = vadd.xlane.f32.xlu0 %v837
    %v839 = vpop.xlane.xlu0 %838
    %v840 = vsel %vm504, %v834, 0.0
    %841 = vadd.xlane.f32.xlu0 %v840
    %v842 = vpop.xlane.xlu0 %841
    %v843 = vmax.f32 %v803, %v815
    %v844 = vmax.f32 %v806, %v818
    %v845 = vmax.f32 %v843, %v827
    %v846 = vmax.f32 %v844, %v830
    %v847 = vmax.f32 %v845, %v839
    %v848 = vmax.f32 %v846, %v842
    %v849 = vsub.f32 %v803, %v847
    %v850 = vsub.f32 %v806, %v848
    %v851 = vmul.f32 %v849, 1.442695
    %v852 = vpow.pop %v851
    %v853 = vmul.f32 %v850, 1.442695
    %v854 = vpow.pop %v853
    %v855 = vsub.f32 %v815, %v847
    %v856 = vsub.f32 %v818, %v848
    %v857 = vmul.f32 %v855, 1.442695
    %v858 = vpow.pop %v857
    %v859 = vmul.f32 %v856, 1.442695
    %v860 = vpow.pop %v859
    %v861 = vsub.f32 %v827, %v847
    %v862 = vsub.f32 %v830, %v848
    %v863 = vmul.f32 %v861, 1.442695
    %v864 = vpow.pop %v863
    %v865 = vmul.f32 %v862, 1.442695
    %v866 = vpow.pop %v865
    %v867 = vsub.f32 %v839, %v847
    %v868 = vsub.f32 %v842, %v848
    %v869 = vmul.f32 %v867, 1.442695
    %v870 = vpow.pop %v869
    %v871 = vmul.f32 %v868, 1.442695
    %v872 = vpow.pop %v871
    %v873 = vadd.f32 %v852, %v858
    %v874 = vadd.f32 %v854, %v860
    %v875 = vadd.f32 %v873, %v864
    %v876 = vadd.f32 %v874, %v866
    %v877 = vadd.f32 %v875, %v870
    %v878 = vadd.f32 %v876, %v872
    %v879 = vrcp.pop %v877
    %v880 = vrcp.pop %v878
    %v881 = vmul.f32 %v852, %v879
    %v882 = vmul.f32 %v854, %v880
    %v883 = vmul.f32 %v881, %v486
    %v884 = vmul.f32 %v882, %v491
    %v885 = vmul.f32 %v858, %v879
    %v886 = vmul.f32 %v860, %v880
    %v887 = vmul.f32 %v885, %v486
    %v888 = vmul.f32 %v886, %v491
    %891 = vrot.lane.b32.xlu0 %v887, 120
    %v892 = vpop.permute.xlu0 %891
    %893 = vrot.lane.b32.xlu0 %v888, 120
    %v894 = vpop.permute.xlu0 %893
    %v897 = vadd.f32 %v883, %v892
    %v898 = vadd.f32 %v884, %v894
    %v899 = vmul.f32 %v864, %v879
    %v900 = vmul.f32 %v866, %v880
    %v901 = vmul.f32 %v899, %v486
    %v902 = vmul.f32 %v900, %v491
    %905 = vrot.lane.b32.xlu0 %v901, 112
    %v906 = vpop.permute.xlu0 %905
    %907 = vrot.lane.b32.xlu0 %v902, 112
    %v908 = vpop.permute.xlu0 %907
    %v911 = vadd.f32 %v897, %v906
    %v912 = vadd.f32 %v898, %v908
    %v913 = vmul.f32 %v870, %v879
    %v914 = vmul.f32 %v872, %v880
    %v915 = vmul.f32 %v913, %v486
    %v916 = vmul.f32 %v914, %v491
    %919 = vrot.lane.b32.xlu0 %v915, 104
    %v920 = vpop.permute.xlu0 %919
    %921 = vrot.lane.b32.xlu0 %v916, 104
    %v922 = vpop.permute.xlu0 %921
    %v925 = vadd.f32 %v911, %v920
    %v926 = vadd.f32 %v912, %v922
    %927 = vrot.lane.b32.xlu0 %v486, 120
    %v928 = vpop.permute.xlu0 %927
    %929 = vrot.lane.b32.xlu0 %v491, 120
    %v930 = vpop.permute.xlu0 %929
    %v933 = vmul.f32 %v486, %v928
    %v934 = vmul.f32 %v491, %v930
    %937 = vrot.lane.b32.xlu0 %v933, 104
    %v938 = vpop.permute.xlu0 %937
    %939 = vrot.lane.b32.xlu0 %v934, 104
    %v940 = vpop.permute.xlu0 %939
    %v943 = vsel %vm504, %v938, 0.0
    %944 = vadd.xlane.f32.xlu0 %v943
    %v945 = vpop.xlane.xlu0 %944
    %v946 = vsel %vm504, %v940, 0.0
    %947 = vadd.xlane.f32.xlu0 %v946
    %v948 = vpop.xlane.xlu0 %947
    %949 = vrot.lane.b32.xlu0 %v791, 104
    %v950 = vpop.permute.xlu0 %949
    %951 = vrot.lane.b32.xlu0 %v792, 104
    %v952 = vpop.permute.xlu0 %951
    %v955 = vsel %vm504, %v950, 0.0
    %956 = vadd.xlane.f32.xlu0 %v955
    %v957 = vpop.xlane.xlu0 %956
    %v958 = vsel %vm504, %v952, 0.0
    %959 = vadd.xlane.f32.xlu0 %v958
    %v960 = vpop.xlane.xlu0 %959
    %961 = vrot.lane.b32.xlu0 %v643, 104
    %v962 = vpop.permute.xlu0 %961
    %963 = vrot.lane.b32.xlu0 %v644, 104
    %v964 = vpop.permute.xlu0 %963
    %v967 = vsel %vm504, %v962, 0.0
    %968 = vadd.xlane.f32.xlu0 %v967
    %v969 = vpop.xlane.xlu0 %968
    %v970 = vsel %vm504, %v964, 0.0
    %971 = vadd.xlane.f32.xlu0 %v970
    %v972 = vpop.xlane.xlu0 %971
    %973 = vrot.lane.b32.xlu0 %v502, 104
    %v974 = vpop.permute.xlu0 %973
    %975 = vrot.lane.b32.xlu0 %v503, 104
    %v976 = vpop.permute.xlu0 %975
    %v979 = vsel %vm504, %v974, 0.0
    %980 = vadd.xlane.f32.xlu0 %v979
    %v981 = vpop.xlane.xlu0 %980
    %v982 = vsel %vm504, %v976, 0.0
    %983 = vadd.xlane.f32.xlu0 %v982
    %v984 = vpop.xlane.xlu0 %983
    %v985 = vmax.f32 %v945, %v957
    %v986 = vmax.f32 %v948, %v960
    %v987 = vmax.f32 %v985, %v969
    %v988 = vmax.f32 %v986, %v972
    %v989 = vmax.f32 %v987, %v981
    %v990 = vmax.f32 %v988, %v984
    %v991 = vsub.f32 %v945, %v989
    %v992 = vsub.f32 %v948, %v990
    %v993 = vmul.f32 %v991, 1.442695
    %v994 = vpow.pop %v993
    %v995 = vmul.f32 %v992, 1.442695
    %v996 = vpow.pop %v995
    %v997 = vsub.f32 %v957, %v989
    %v998 = vsub.f32 %v960, %v990
    %v999 = vmul.f32 %v997, 1.442695
    %v1000 = vpow.pop %v999
    %v1001 = vmul.f32 %v998, 1.442695
    %v1002 = vpow.pop %v1001
    %v1003 = vsub.f32 %v969, %v989
    %v1004 = vsub.f32 %v972, %v990
    %v1005 = vmul.f32 %v1003, 1.442695
    %v1006 = vpow.pop %v1005
    %v1007 = vmul.f32 %v1004, 1.442695
    %v1008 = vpow.pop %v1007
    %v1009 = vsub.f32 %v981, %v989
    %v1010 = vsub.f32 %v984, %v990
    %v1011 = vmul.f32 %v1009, 1.442695
    %v1012 = vpow.pop %v1011
    %v1013 = vmul.f32 %v1010, 1.442695
    %v1014 = vpow.pop %v1013
    %v1015 = vadd.f32 %v994, %v1000
    %v1016 = vadd.f32 %v996, %v1002
    %v1017 = vadd.f32 %v1015, %v1006
    %v1018 = vadd.f32 %v1016, %v1008
    %v1019 = vadd.f32 %v1017, %v1012
    %v1020 = vadd.f32 %v1018, %v1014
    %v1021 = vrcp.pop %v1019
    %v1022 = vrcp.pop %v1020
    %v1023 = vmul.f32 %v994, %v1021
    %v1024 = vmul.f32 %v996, %v1022
    %v1025 = vmul.f32 %v1023, %v486
    %v1026 = vmul.f32 %v1024, %v491
    %v1027 = vmul.f32 %v1000, %v1021
    %v1028 = vmul.f32 %v1002, %v1022
    %v1029 = vmul.f32 %v1027, %v486
    %v1030 = vmul.f32 %v1028, %v491
    %1033 = vrot.lane.b32.xlu0 %v1029, 120
    %v1034 = vpop.permute.xlu0 %1033
    %1035 = vrot.lane.b32.xlu0 %v1030, 120
    %v1036 = vpop.permute.xlu0 %1035
    %v1039 = vadd.f32 %v1025, %v1034
    %v1040 = vadd.f32 %v1026, %v1036
    %v1041 = vmul.f32 %v1006, %v1021
    %v1042 = vmul.f32 %v1008, %v1022
    %v1043 = vmul.f32 %v1041, %v486
    %v1044 = vmul.f32 %v1042, %v491
    %1047 = vrot.lane.b32.xlu0 %v1043, 112
    %v1048 = vpop.permute.xlu0 %1047
    %1049 = vrot.lane.b32.xlu0 %v1044, 112
    %v1050 = vpop.permute.xlu0 %1049
    %v1053 = vadd.f32 %v1039, %v1048
    %v1054 = vadd.f32 %v1040, %v1050
    %v1055 = vmul.f32 %v1012, %v1021
    %v1056 = vmul.f32 %v1014, %v1022
    %v1057 = vmul.f32 %v1055, %v486
    %v1058 = vmul.f32 %v1056, %v491
    %1061 = vrot.lane.b32.xlu0 %v1057, 104
    %v1062 = vpop.permute.xlu0 %1061
    %1063 = vrot.lane.b32.xlu0 %v1058, 104
    %v1064 = vpop.permute.xlu0 %1063
    %v1067 = vadd.f32 %v1053, %v1062
    %v1068 = vadd.f32 %v1054, %v1064
    %1071 = vrot.lane.b32.xlu0 %v635, 64
    %v1072 = vpop.permute.xlu0 %1071
    %1073 = vrot.lane.b32.xlu0 %v636, 64
    %v1074 = vpop.permute.xlu0 %1073
    %1079 = vrot.lane.b32.xlu0 %v783, 72
    %v1080 = vpop.permute.xlu0 %1079
    %1081 = vrot.lane.b32.xlu0 %v784, 72
    %v1082 = vpop.permute.xlu0 %1081
    %1087 = vrot.lane.b32.xlu0 %v925, 80
    %v1088 = vpop.permute.xlu0 %1087
    %1089 = vrot.lane.b32.xlu0 %v926, 80
    %v1090 = vpop.permute.xlu0 %1089
    %1095 = vrot.lane.b32.xlu0 %v1067, 88
    %v1096 = vpop.permute.xlu0 %1095
    %1097 = vrot.lane.b32.xlu0 %v1068, 88
    %v1098 = vpop.permute.xlu0 %1097
    %v1101 = vsel %vm504, %v1072, %v1080
    %v1102 = vsel %vm504, %v1074, %v1082
    %vm1103 = vcmask 130048
    %v1104 = vsel %vm1103, %v1101, %v1088
    %v1105 = vsel %vm1103, %v1102, %v1090
    %vm1106 = vcmask 195584
    %v1107 = vsel %vm1106, %v1104, %v1096
    %v1108 = vsel %vm1106, %v1105, %v1098
    %v1110 = vsel %vm379, %v1107, 0
    %v1113 = vsel %vm379, %v1108, 0
    %1115 = vmatprep.subr.mxu0 0.0
    %1116 = vmatpush1.msra.mxu0 %v375
    %1117 = vmatprep.subr.mxu0 0.0
    %1118 = vmatpush1.msra.mxu0 %v376
    %1119 = vmatprep.subr.mxu0 0.0
    %1120 = vmatpush1.msra.mxu0 %v377
    %1121 = vmatprep.subr.mxu0 0.0
    %1122 = vmatpush1.msra.mxu0 %v378
    %1123 = vmatprep.subr.mxu0 0.0
    %1124 = vmatpush1.msra.mxu0 0.0
    %1125 = vmatprep.subr.mxu0 0.0
    %1126 = vmatpush1.msra.mxu0 0.0
    %1127 = vmatprep.subr.mxu0 0.0
    %1128 = vmatpush1.msra.mxu0 0.0
    %1129 = vmatprep.subr.mxu0 0.0
    %1130 = vmatpush1.msra.mxu0 0.0
    %1131 = vmatprep.subr.mxu0 0.0
    %1132 = vmatpush1.msra.mxu0 0.0
    %1133 = vmatprep.subr.mxu0 0.0
    %1134 = vmatpush1.msra.mxu0 0.0
    %1135 = vmatprep.subr.mxu0 0.0
    %1136 = vmatpush1.msra.mxu0 0.0
    %1137 = vmatprep.subr.mxu0 0.0
    %1138 = vmatpush1.msra.mxu0 0.0
    %1139 = vmatprep.subr.mxu0 0.0
    %1140 = vmatpush1.msra.mxu0 0.0
    %1141 = vmatprep.subr.mxu0 0.0
    %1142 = vmatpush1.msra.mxu0 0.0
    %1143 = vmatprep.subr.mxu0 0.0
    %1144 = vmatpush1.msra.mxu0 0.0
    %1145 = vmatprep.subr.mxu0 0.0
    %1146 = vmatpush1.msra.mxu0 0.0
    %1147 = vmatprep.subr.mxu0 0.0
    %1148 = vmatpush1.msra.mxu0 0.0
    %1149 = vmatprep.subr.mxu0 0.0
    %1150 = vmatpush1.msra.mxu0 0.0
    %1151 = vmatprep.subr.mxu0 0.0
    %1152 = vmatpush1.msra.mxu0 0.0
    %1153 = vmatprep.subr.mxu0 0.0
    %1154 = vmatpush1.msra.mxu0 0.0
    %1155 = vmatprep.subr.mxu0 0.0
    %1156 = vmatpush1.msra.mxu0 0.0
    %1157 = vmatprep.subr.mxu0 0.0
    %1158 = vmatpush1.msra.mxu0 0.0
    %1159 = vmatprep.subr.mxu0 0.0
    %1160 = vmatpush1.msra.mxu0 0.0
    %1161 = vmatprep.subr.mxu0 0.0
    %1162 = vmatpush1.msra.mxu0 0.0
    %1163 = vmatprep.subr.mxu0 0.0
    %1164 = vmatpush1.msra.mxu0 0.0
    %1165 = vmatprep.subr.mxu0 0.0
    %1166 = vmatpush1.msra.mxu0 0.0
    %1167 = vmatprep.subr.mxu0 0.0
    %1168 = vmatpush1.msra.mxu0 0.0
    %1169 = vmatprep.subr.mxu0 0.0
    %1170 = vmatpush1.msra.mxu0 0.0
    %1171 = vmatprep.subr.mxu0 0.0
    %1172 = vmatpush1.msra.mxu0 0.0
    %1173 = vmatprep.subr.mxu0 0.0
    %1174 = vmatpush1.msra.mxu0 0.0
    %1175 = vmatprep.subr.mxu0 0.0
    %1176 = vmatpush1.msra.mxu0 0.0
    %1177 = vmatprep.subr.mxu0 0.0
    %1178 = vmatpush1.msra.mxu0 0.0
    %1179 = vmatprep.mubr.f32.mxu0 0.0
    %1180 = vmatmul.mubr.f32.gmra.mrb[0].mxu0 %v1110
    %v1181 = vpop.f32.mrb[0].mxu0
    %v1182 = vadd.f32 0.0, %v1181
    %v1183 = vpop.f32.mrb[0].mxu0
    %1184 = vmatprep.mubr.f32.mxu0 0.0
    %1185 = vmatmul.mubr.f32.gmra.mrb[0].mxu0 %v1113
    %v1186 = vpop.f32.mrb[0].mxu0
    %v1187 = vadd.f32 0.0, %v1186
    %v1188 = vpop.f32.mrb[0].mxu0
    %1189 = vdwg.mxu0
    %v1190 = vadd.f32 %v368, %v1182
    %v1191 = vadd.f32 %v369, %v1187
    %v1192 = vld [vmem:[#allocation10] sm:$0xff]
    %v1193 = vld [vmem:[#allocation10 + $0x8] sm:$0xff]
    %v1194 = vld [vmem:[#allocation10 + $0x10] sm:$0xff]
    %v1195 = vld [vmem:[#allocation10 + $0x18] sm:$0xff]
    %v1196 = vld [vmem:[#allocation11] sm:$0x1]
    %v1197 = vld [vmem:[#allocation13] sm:$0xff]
    %v1198 = vld [vmem:[#allocation13 + $0x8] sm:$0xff]
    %v1199 = vld [vmem:[#allocation13 + $0x10] sm:$0xff]
    %v1200 = vld [vmem:[#allocation13 + $0x18] sm:$0xff]
    %v1201 = vld [vmem:[#allocation14] sm:$0x1]
    %v1202 = vld [vmem:[#allocation16] sm:$0xff]
    %v1203 = vld [vmem:[#allocation16 + $0x8] sm:$0xff]
    %v1204 = vld [vmem:[#allocation16 + $0x10] sm:$0xff]
    %v1205 = vld [vmem:[#allocation16 + $0x18] sm:$0xff]
    %v1206 = vld [vmem:[#allocation16 + $0x20] sm:$0xff]
    %v1207 = vld [vmem:[#allocation16 + $0x28] sm:$0xff]
    %v1208 = vld [vmem:[#allocation16 + $0x30] sm:$0xff]
    %v1209 = vld [vmem:[#allocation16 + $0x38] sm:$0xff]
    %v1210 = vld [vmem:[#allocation17] sm:$0x1]
    %v1211 = vld [vmem:[#allocation19] sm:$0xff]
    %v1212 = vld [vmem:[#allocation19 + $0x8] sm:$0xff]
    %v1213 = vld [vmem:[#allocation19 + $0x10] sm:$0xff]
    %v1214 = vld [vmem:[#allocation19 + $0x18] sm:$0xff]
    %v1215 = vld [vmem:[#allocation20] sm:$0x1]
    %v1216 = vsel %vm379, %v1190, 0.0
    %1217 = vadd.xlane.f32.xlu0 %v1216
    %v1218 = vpop.xlane.xlu0 %1217
    %v1219 = vsel %vm379, %v1191, 0.0
    %1220 = vadd.xlane.f32.xlu0 %v1219
    %v1221 = vpop.xlane.xlu0 %1220
    %v1222 = vmul.f32 %v1218, %v386
    %v1223 = vmul.f32 %v1221, %v386
    %v1224 = vsub.f32 %v1190, %v1222
    %v1225 = vsub.f32 %v1191, %v1223
    %v1226 = vmul.f32 %v1224, %v1224
    %v1227 = vmul.f32 %v1225, %v1225
    %v1228 = vsel %vm379, %v1226, 0.0
    %1229 = vadd.xlane.f32.xlu0 %v1228
    %v1230 = vpop.xlane.xlu0 %1229
    %v1231 = vsel %vm379, %v1227, 0.0
    %1232 = vadd.xlane.f32.xlu0 %v1231
    %v1233 = vpop.xlane.xlu0 %1232
    %v1234 = vmul.f32 %v1230, %v386
    %v1235 = vmul.f32 %v1233, %v386
    %v1236 = vadd.f32 %v1234, 1e-05
    %v1237 = vadd.f32 %v1235, 1e-05
    %v1238 = vrsqrt.pop %v1236
    %v1239 = vrsqrt.pop %v1237
    %v1240 = vmul.f32 %v1224, %v1238
    %v1241 = vmul.f32 %v1225, %v1239
    %v1243 = vlaneseq
    %v1244 = vshrl.u32 %v1243, 7
    %v1245 = vsub.s32 0, %v1244
    %v1246 = vrot.slane %v1196, %v1245
    %v1249 = vsel %vm379, %v1240, 0
    %v1252 = vsel %vm379, %v1241, 0
    %1254 = vmatprep.subr.mxu0 0.0
    %1255 = vmatpush1.msra.mxu0 %v1192
    %1256 = vmatprep.subr.mxu0 0.0
    %1257 = vmatpush1.msra.mxu0 %v1193
    %1258 = vmatprep.subr.mxu0 0.0
    %1259 = vmatpush1.msra.mxu0 %v1194
    %1260 = vmatprep.subr.mxu0 0.0
    %1261 = vmatpush1.msra.mxu0 %v1195
    %1262 = vmatprep.subr.mxu0 0.0
    %1263 = vmatpush1.msra.mxu0 0.0
    %1264 = vmatprep.subr.mxu0 0.0
    %1265 = vmatpush1.msra.mxu0 0.0
    %1266 = vmatprep.subr.mxu0 0.0
    %1267 = vmatpush1.msra.mxu0 0.0
    %1268 = vmatprep.subr.mxu0 0.0
    %1269 = vmatpush1.msra.mxu0 0.0
    %1270 = vmatprep.subr.mxu0 0.0
    %1271 = vmatpush1.msra.mxu0 0.0
    %1272 = vmatprep.subr.mxu0 0.0
    %1273 = vmatpush1.msra.mxu0 0.0
    %1274 = vmatprep.subr.mxu0 0.0
    %1275 = vmatpush1.msra.mxu0 0.0
    %1276 = vmatprep.subr.mxu0 0.0
    %1277 = vmatpush1.msra.mxu0 0.0
    %1278 = vmatprep.subr.mxu0 0.0
    %1279 = vmatpush1.msra.mxu0 0.0
    %1280 = vmatprep.subr.mxu0 0.0
    %1281 = vmatpush1.msra.mxu0 0.0
    %1282 = vmatprep.subr.mxu0 0.0
    %1283 = vmatpush1.msra.mxu0 0.0
    %1284 = vmatprep.subr.mxu0 0.0
    %1285 = vmatpush1.msra.mxu0 0.0
    %1286 = vmatprep.subr.mxu0 0.0
    %1287 = vmatpush1.msra.mxu0 0.0
    %1288 = vmatprep.subr.mxu0 0.0
    %1289 = vmatpush1.msra.mxu0 0.0
    %1290 = vmatprep.subr.mxu0 0.0
    %1291 = vmatpush1.msra.mxu0 0.0
    %1292 = vmatprep.subr.mxu0 0.0
    %1293 = vmatpush1.msra.mxu0 0.0
    %1294 = vmatprep.subr.mxu0 0.0
    %1295 = vmatpush1.msra.mxu0 0.0
    %1296 = vmatprep.subr.mxu0 0.0
    %1297 = vmatpush1.msra.mxu0 0.0
    %1298 = vmatprep.subr.mxu0 0.0
    %1299 = vmatpush1.msra.mxu0 0.0
    %1300 = vmatprep.subr.mxu0 0.0
    %1301 = vmatpush1.msra.mxu0 0.0
    %1302 = vmatprep.subr.mxu0 0.0
    %1303 = vmatpush1.msra.mxu0 0.0
    %1304 = vmatprep.subr.mxu0 0.0
    %1305 = vmatpush1.msra.mxu0 0.0
    %1306 = vmatprep.subr.mxu0 0.0
    %1307 = vmatpush1.msra.mxu0 0.0
    %1308 = vmatprep.subr.mxu0 0.0
    %1309 = vmatpush1.msra.mxu0 0.0
    %1310 = vmatprep.subr.mxu0 0.0
    %1311 = vmatpush1.msra.mxu0 0.0
    %1312 = vmatprep.subr.mxu0 0.0
    %1313 = vmatpush1.msra.mxu0 0.0
    %1314 = vmatprep.subr.mxu0 0.0
    %1315 = vmatpush1.msra.mxu0 0.0
    %1316 = vmatprep.subr.mxu0 0.0
    %1317 = vmatpush1.msra.mxu0 0.0
    %1318 = vmatprep.mubr.f32.mxu0 0.0
    %1319 = vmatmul.mubr.f32.gmra.mrb[0].mxu0 %v1249
    %v1320 = vpop.f32.mrb[0].mxu0
    %v1321 = vadd.f32 %v1246, %v1320
    %v1322 = vpop.f32.mrb[0].mxu0
    %1323 = vmatprep.mubr.f32.mxu0 0.0
    %1324 = vmatmul.mubr.f32.gmra.mrb[0].mxu0 %v1252
    %v1325 = vpop.f32.mrb[0].mxu0
    %v1326 = vadd.f32 %v1246, %v1325
    %v1327 = vpop.f32.mrb[0].mxu0
    %1328 = vdwg.mxu0
    %v1330 = vlaneseq
    %v1331 = vshrl.u32 %v1330, 7
    %v1332 = vsub.s32 0, %v1331
    %v1333 = vrot.slane %v1201, %v1332
    %v1336 = vsel %vm379, %v1321, 0
    %v1339 = vsel %vm379, %v1326, 0
    %1341 = vmatprep.subr.mxu0 0.0
    %1342 = vmatpush1.msra.mxu0 %v1197
    %1343 = vmatprep.subr.mxu0 0.0
    %1344 = vmatpush1.msra.mxu0 %v1198
    %1345 = vmatprep.subr.mxu0 0.0
    %1346 = vmatpush1.msra.mxu0 %v1199
    %1347 = vmatprep.subr.mxu0 0.0
    %1348 = vmatpush1.msra.mxu0 %v1200
    %1349 = vmatprep.subr.mxu0 0.0
    %1350 = vmatpush1.msra.mxu0 0.0
    %1351 = vmatprep.subr.mxu0 0.0
    %1352 = vmatpush1.msra.mxu0 0.0
    %1353 = vmatprep.subr.mxu0 0.0
    %1354 = vmatpush1.msra.mxu0 0.0
    %1355 = vmatprep.subr.mxu0 0.0
    %1356 = vmatpush1.msra.mxu0 0.0
    %1357 = vmatprep.subr.mxu0 0.0
    %1358 = vmatpush1.msra.mxu0 0.0
    %1359 = vmatprep.subr.mxu0 0.0
    %1360 = vmatpush1.msra.mxu0 0.0
    %1361 = vmatprep.subr.mxu0 0.0
    %1362 = vmatpush1.msra.mxu0 0.0
    %1363 = vmatprep.subr.mxu0 0.0
    %1364 = vmatpush1.msra.mxu0 0.0
    %1365 = vmatprep.subr.mxu0 0.0
    %1366 = vmatpush1.msra.mxu0 0.0
    %1367 = vmatprep.subr.mxu0 0.0
    %1368 = vmatpush1.msra.mxu0 0.0
    %1369 = vmatprep.subr.mxu0 0.0
    %1370 = vmatpush1.msra.mxu0 0.0
    %1371 = vmatprep.subr.mxu0 0.0
    %1372 = vmatpush1.msra.mxu0 0.0
    %1373 = vmatprep.subr.mxu0 0.0
    %1374 = vmatpush1.msra.mxu0 0.0
    %1375 = vmatprep.subr.mxu0 0.0
    %1376 = vmatpush1.msra.mxu0 0.0
    %1377 = vmatprep.subr.mxu0 0.0
    %1378 = vmatpush1.msra.mxu0 0.0
    %1379 = vmatprep.subr.mxu0 0.0
    %1380 = vmatpush1.msra.mxu0 0.0
    %1381 = vmatprep.subr.mxu0 0.0
    %1382 = vmatpush1.msra.mxu0 0.0
    %1383 = vmatprep.subr.mxu0 0.0
    %1384 = vmatpush1.msra.mxu0 0.0
    %1385 = vmatprep.subr.mxu0 0.0
    %1386 = vmatpush1.msra.mxu0 0.0
    %1387 = vmatprep.subr.mxu0 0.0
    %1388 = vmatpush1.msra.mxu0 0.0
    %1389 = vmatprep.subr.mxu0 0.0
    %1390 = vmatpush1.msra.mxu0 0.0
    %1391 = vmatprep.subr.mxu0 0.0
    %1392 = vmatpush1.msra.mxu0 0.0
    %1393 = vmatprep.subr.mxu0 0.0
    %1394 = vmatpush1.msra.mxu0 0.0
    %1395 = vmatprep.subr.mxu0 0.0
    %1396 = vmatpush1.msra.mxu0 0.0
    %1397 = vmatprep.subr.mxu0 0.0
    %1398 = vmatpush1.msra.mxu0 0.0
    %1399 = vmatprep.subr.mxu0 0.0
    %1400 = vmatpush1.msra.mxu0 0.0
    %1401 = vmatprep.subr.mxu0 0.0
    %1402 = vmatpush1.msra.mxu0 0.0
    %1403 = vmatprep.subr.mxu0 0.0
    %1404 = vmatpush1.msra.mxu0 0.0
    %1405 = vmatprep.mubr.f32.mxu0 0.0
    %1406 = vmatmul.mubr.f32.gmra.mrb[0].mxu0 %v1336
    %v1407 = vpop.f32.mrb[0].mxu0
    %v1408 = vadd.f32 %v1333, %v1407
    %v1409 = vpop.f32.mrb[0].mxu0
    %1410 = vmatprep.mubr.f32.mxu0 0.0
    %1411 = vmatmul.mubr.f32.gmra.mrb[0].mxu0 %v1339
    %v1412 = vpop.f32.mrb[0].mxu0
    %v1413 = vadd.f32 %v1333, %v1412
    %v1414 = vpop.f32.mrb[0].mxu0
    %1415 = vdwg.mxu0
    %v1416 = vmul.f32 %v1408, 0.5
    %v1417 = vmul.f32 %v1413, 0.5
    %v1418 = vmul.f32 %v1408, 0.044715
    %v1419 = vmul.f32 %v1413, 0.044715
    %v1420 = vmul.f32 %v1418, %v1408
    %v1421 = vmul.f32 %v1419, %v1413
    %v1422 = vmul.f32 %v1420, %v1408
    %v1423 = vmul.f32 %v1421, %v1413
    %v1424 = vadd.f32 %v1408, %v1422
    %v1425 = vadd.f32 %v1413, %v1423
    %v1426 = vmul.f32 %v1424, 0.7978846
    %v1427 = vmul.f32 %v1425, 0.7978846
    %v1428 = vtanh.pop %v1426
    %v1429 = vtanh.pop %v1427
    %v1430 = vadd.f32 %v1428, 1.0
    %v1431 = vadd.f32 %v1429, 1.0
    %v1432 = vmul.f32 %v1416, %v1430
    %v1433 = vmul.f32 %v1417, %v1431
    %vm1434 = vcmask 523264
    %v1436 = vsel %vm1434, %v1432, 0
    %v1439 = vsel %vm1434, %v1433, 0
    %1441 = vmatprep.subr.mxu0 0.0
    %1442 = vmatpush1.msra.mxu0 %v1202
    %1443 = vmatprep.subr.mxu0 0.0
    %1444 = vmatpush1.msra.mxu0 %v1203
    %1445 = vmatprep.subr.mxu0 0.0
    %1446 = vmatpush1.msra.mxu0 %v1204
    %1447 = vmatprep.subr.mxu0 0.0
    %1448 = vmatpush1.msra.mxu0 %v1205
    %1449 = vmatprep.subr.mxu0 0.0
    %1450 = vmatpush1.msra.mxu0 %v1206
    %1451 = vmatprep.subr.mxu0 0.0
    %1452 = vmatpush1.msra.mxu0 %v1207
    %1453 = vmatprep.subr.mxu0 0.0
    %1454 = vmatpush1.msra.mxu0 %v1208
    %1455 = vmatprep.subr.mxu0 0.0
    %1456 = vmatpush1.msra.mxu0 %v1209
    %1457 = vmatprep.subr.mxu0 0.0
    %1458 = vmatpush1.msra.mxu0 0.0
    %1459 = vmatprep.subr.mxu0 0.0
    %1460 = vmatpush1.msra.mxu0 0.0
    %1461 = vmatprep.subr.mxu0 0.0
    %1462 = vmatpush1.msra.mxu0 0.0
    %1463 = vmatprep.subr.mxu0 0.0
    %1464 = vmatpush1.msra.mxu0 0.0
    %1465 = vmatprep.subr.mxu0 0.0
    %1466 = vmatpush1.msra.mxu0 0.0
    %1467 = vmatprep.subr.mxu0 0.0
    %1468 = vmatpush1.msra.mxu0 0.0
    %1469 = vmatprep.subr.mxu0 0.0
    %1470 = vmatpush1.msra.mxu0 0.0
    %1471 = vmatprep.subr.mxu0 0.0
    %1472 = vmatpush1.msra.mxu0 0.0
    %1473 = vmatprep.subr.mxu0 0.0
    %1474 = vmatpush1.msra.mxu0 0.0
    %1475 = vmatprep.subr.mxu0 0.0
    %1476 = vmatpush1.msra.mxu0 0.0
    %1477 = vmatprep.subr.mxu0 0.0
    %1478 = vmatpush1.msra.mxu0 0.0
    %1479 = vmatprep.subr.mxu0 0.0
    %1480 = vmatpush1.msra.mxu0 0.0
    %1481 = vmatprep.subr.mxu0 0.0
    %1482 = vmatpush1.msra.mxu0 0.0
    %1483 = vmatprep.subr.mxu0 0.0
    %1484 = vmatpush1.msra.mxu0 0.0
    %1485 = vmatprep.subr.mxu0 0.0
    %1486 = vmatpush1.msra.mxu0 0.0
    %1487 = vmatprep.subr.mxu0 0.0
    %1488 = vmatpush1.msra.mxu0 0.0
    %1489 = vmatprep.subr.mxu0 0.0
    %1490 = vmatpush1.msra.mxu0 0.0
    %1491 = vmatprep.subr.mxu0 0.0
    %1492 = vmatpush1.msra.mxu0 0.0
    %1493 = vmatprep.subr.mxu0 0.0
    %1494 = vmatpush1.msra.mxu0 0.0
    %1495 = vmatprep.subr.mxu0 0.0
    %1496 = vmatpush1.msra.mxu0 0.0
    %1497 = vmatprep.subr.mxu0 0.0
    %1498 = vmatpush1.msra.mxu0 0.0
    %1499 = vmatprep.subr.mxu0 0.0
    %1500 = vmatpush1.msra.mxu0 0.0
    %1501 = vmatprep.subr.mxu0 0.0
    %1502 = vmatpush1.msra.mxu0 0.0
    %1503 = vmatprep.subr.mxu0 0.0
    %1504 = vmatpush1.msra.mxu0 0.0
    %1505 = vmatprep.mubr.f32.mxu0 0.0
    %1506 = vmatmul.mubr.f32.gmra.mrb[0].mxu0 %v1436
    %v1507 = vpop.f32.mrb[0].mxu0
    %v1508 = vadd.f32 0.0, %v1507
    %v1509 = vpop.f32.mrb[0].mxu0
    %1510 = vmatprep.mubr.f32.mxu0 0.0
    %1511 = vmatmul.mubr.f32.gmra.mrb[0].mxu0 %v1439
    %v1512 = vpop.f32.mrb[0].mxu0
    %v1513 = vadd.f32 0.0, %v1512
    %v1514 = vpop.f32.mrb[0].mxu0
    %1515 = vdwg.mxu0
    %v1516 = vadd.f32 %v1321, %v1508
    %v1517 = vadd.f32 %v1326, %v1513
    %v1519 = vlaneseq
    %v1520 = vshrl.u32 %v1519, 7
    %v1521 = vsub.s32 0, %v1520
    %v1522 = vrot.slane %v1210, %v1521
    %v1524 = vadd.f32 %v1516, %v1522
    %v1525 = vadd.f32 %v1517, %v1522
    %v1527 = vsel %vm379, %v1524, 0
    %v1530 = vsel %vm379, %v1525, 0
    %1532 = vmatprep.subr.mxu0 0.0
    %1533 = vmatpush1.msra.mxu0 %v1211
    %1534 = vmatprep.subr.mxu0 0.0
    %1535 = vmatpush1.msra.mxu0 %v1212
    %1536 = vmatprep.subr.mxu0 0.0
    %1537 = vmatpush1.msra.mxu0 %v1213
    %1538 = vmatprep.subr.mxu0 0.0
    %1539 = vmatpush1.msra.mxu0 %v1214
    %1540 = vmatprep.subr.mxu0 0.0
    %1541 = vmatpush1.msra.mxu0 0.0
    %1542 = vmatprep.subr.mxu0 0.0
    %1543 = vmatpush1.msra.mxu0 0.0
    %1544 = vmatprep.subr.mxu0 0.0
    %1545 = vmatpush1.msra.mxu0 0.0
    %1546 = vmatprep.subr.mxu0 0.0
    %1547 = vmatpush1.msra.mxu0 0.0
    %1548 = vmatprep.subr.mxu0 0.0
    %1549 = vmatpush1.msra.mxu0 0.0
    %1550 = vmatprep.subr.mxu0 0.0
    %1551 = vmatpush1.msra.mxu0 0.0
    %1552 = vmatprep.subr.mxu0 0.0
    %1553 = vmatpush1.msra.mxu0 0.0
    %1554 = vmatprep.subr.mxu0 0.0
    %1555 = vmatpush1.msra.mxu0 0.0
    %1556 = vmatprep.subr.mxu0 0.0
    %1557 = vmatpush1.msra.mxu0 0.0
    %1558 = vmatprep.subr.mxu0 0.0
    %1559 = vmatpush1.msra.mxu0 0.0
    %1560 = vmatprep.subr.mxu0 0.0
    %1561 = vmatpush1.msra.mxu0 0.0
    %1562 = vmatprep.subr.mxu0 0.0
    %1563 = vmatpush1.msra.mxu0 0.0
    %1564 = vmatprep.subr.mxu0 0.0
    %1565 = vmatpush1.msra.mxu0 0.0
    %1566 = vmatprep.subr.mxu0 0.0
    %1567 = vmatpush1.msra.mxu0 0.0
    %1568 = vmatprep.subr.mxu0 0.0
    %1569 = vmatpush1.msra.mxu0 0.0
    %1570 = vmatprep.subr.mxu0 0.0
    %1571 = vmatpush1.msra.mxu0 0.0
    %1572 = vmatprep.subr.mxu0 0.0
    %1573 = vmatpush1.msra.mxu0 0.0
    %1574 = vmatprep.subr.mxu0 0.0
    %1575 = vmatpush1.msra.mxu0 0.0
    %1576 = vmatprep.subr.mxu0 0.0
    %1577 = vmatpush1.msra.mxu0 0.0
    %1578 = vmatprep.subr.mxu0 0.0
    %1579 = vmatpush1.msra.mxu0 0.0
    %1580 = vmatprep.subr.mxu0 0.0
    %1581 = vmatpush1.msra.mxu0 0.0
    %1582 = vmatprep.subr.mxu0 0.0
    %1583 = vmatpush1.msra.mxu0 0.0
    %1584 = vmatprep.subr.mxu0 0.0
    %1585 = vmatpush1.msra.mxu0 0.0
    %1586 = vmatprep.subr.mxu0 0.0
    %1587 = vmatpush1.msra.mxu0 0.0
    %1588 = vmatprep.subr.mxu0 0.0
    %1589 = vmatpush1.msra.mxu0 0.0
    %1590 = vmatprep.subr.mxu0 0.0
    %1591 = vmatpush1.msra.mxu0 0.0
    %1592 = vmatprep.subr.mxu0 0.0
    %1593 = vmatpush1.msra.mxu0 0.0
    %1594 = vmatprep.subr.mxu0 0.0
    %1595 = vmatpush1.msra.mxu0 0.0
    %1596 = vmatprep.mubr.f32.mxu0 0.0
    %1597 = vmatmul.mubr.f32.gmra.mrb[0].mxu0 %v1527
    %v1598 = vpop.f32.mrb[0].mxu0
    %v1599 = vadd.f32 0.0, %v1598
    %v1600 = vpop.f32.mrb[0].mxu0
    %1601 = vmatprep.mubr.f32.mxu0 0.0
    %1602 = vmatmul.mubr.f32.gmra.mrb[0].mxu0 %v1530
    %v1603 = vpop.f32.mrb[0].mxu0
    %v1604 = vadd.f32 0.0, %v1603
    %v1605 = vpop.f32.mrb[0].mxu0
    %1606 = vdwg.mxu0
    %v1607 = vadd.f32 %v1190, %v1599
    %v1608 = vadd.f32 %v1191, %v1604
    %v1610 = vlaneseq
    %v1611 = vshrl.u32 %v1610, 7
    %v1612 = vsub.s32 0, %v1611
    %v1613 = vrot.slane %v1215, %v1612
    %v1615 = vadd.f32 %v1607, %v1613
    %v1616 = vadd.f32 %v1608, %v1613
    %v1617 = vld [vmem:[#allocation22] sm:$0xff]
    %v1618 = vld [vmem:[#allocation22 + $0x8] sm:$0xff]
    %v1619 = vld [vmem:[#allocation22 + $0x10] sm:$0xff]
    %v1620 = vld [vmem:[#allocation22 + $0x18] sm:$0xff]
    %v1621 = vld [vmem:[#allocation23] sm:$0x1]
    %v1622 = vld [vmem:[#allocation25] sm:$0xff]
    %v1623 = vld [vmem:[#allocation25 + $0x8] sm:$0xff]
    %v1624 = vld [vmem:[#allocation25 + $0x10] sm:$0xff]
    %v1625 = vld [vmem:[#allocation25 + $0x18] sm:$0xff]
    %v1626 = vsel %vm379, %v1615, 0.0
    %1627 = vadd.xlane.f32.xlu0 %v1626
    %v1628 = vpop.xlane.xlu0 %1627
    %v1629 = vsel %vm379, %v1616, 0.0
    %1630 = vadd.xlane.f32.xlu0 %v1629
    %v1631 = vpop.xlane.xlu0 %1630
    %v1632 = vmul.f32 %v1628, %v386
    %v1633 = vmul.f32 %v1631, %v386
    %v1634 = vsub.f32 %v1615, %v1632
    %v1635 = vsub.f32 %v1616, %v1633
    %v1636 = vmul.f32 %v1634, %v1634
    %v1637 = vmul.f32 %v1635, %v1635
    %v1638 = vsel %vm379, %v1636, 0.0
    %1639 = vadd.xlane.f32.xlu0 %v1638
    %v1640 = vpop.xlane.xlu0 %1639
    %v1641 = vsel %vm379, %v1637, 0.0
    %1642 = vadd.xlane.f32.xlu0 %v1641
    %v1643 = vpop.xlane.xlu0 %1642
    %v1644 = vmul.f32 %v1640, %v386
    %v1645 = vmul.f32 %v1643, %v386
    %v1646 = vadd.f32 %v1644, 1e-05
    %v1647 = vadd.f32 %v1645, 1e-05
    %v1648 = vrsqrt.pop %v1646
    %v1649 = vrsqrt.pop %v1647
    %v1650 = vmul.f32 %v1634, %v1648
    %v1651 = vmul.f32 %v1635, %v1649
    %v1653 = vlaneseq
    %v1654 = vshrl.u32 %v1653, 7
    %v1655 = vsub.s32 0, %v1654
    %v1656 = vrot.slane %v1621, %v1655
    %v1659 = vsel %vm379, %v1650, 0
    %v1662 = vsel %vm379, %v1651, 0
    %1664 = vmatprep.subr.mxu0 0.0
    %1665 = vmatpush1.msra.mxu0 %v1617
    %1666 = vmatprep.subr.mxu0 0.0
    %1667 = vmatpush1.msra.mxu0 %v1618
    %1668 = vmatprep.subr.mxu0 0.0
    %1669 = vmatpush1.msra.mxu0 %v1619
    %1670 = vmatprep.subr.mxu0 0.0
    %1671 = vmatpush1.msra.mxu0 %v1620
    %1672 = vmatprep.subr.mxu0 0.0
    %1673 = vmatpush1.msra.mxu0 0.0
    %1674 = vmatprep.subr.mxu0 0.0
    %1675 = vmatpush1.msra.mxu0 0.0
    %1676 = vmatprep.subr.mxu0 0.0
    %1677 = vmatpush1.msra.mxu0 0.0
    %1678 = vmatprep.subr.mxu0 0.0
    %1679 = vmatpush1.msra.mxu0 0.0
    %1680 = vmatprep.subr.mxu0 0.0
    %1681 = vmatpush1.msra.mxu0 0.0
    %1682 = vmatprep.subr.mxu0 0.0
    %1683 = vmatpush1.msra.mxu0 0.0
    %1684 = vmatprep.subr.mxu0 0.0
    %1685 = vmatpush1.msra.mxu0 0.0
    %1686 = vmatprep.subr.mxu0 0.0
    %1687 = vmatpush1.msra.mxu0 0.0
    %1688 = vmatprep.subr.mxu0 0.0
    %1689 = vmatpush1.msra.mxu0 0.0
    %1690 = vmatprep.subr.mxu0 0.0
    %1691 = vmatpush1.msra.mxu0 0.0
    %1692 = vmatprep.subr.mxu0 0.0
    %1693 = vmatpush1.msra.mxu0 0.0
    %1694 = vmatprep.subr.mxu0 0.0
    %1695 = vmatpush1.msra.mxu0 0.0
    %1696 = vmatprep.subr.mxu0 0.0
    %1697 = vmatpush1.msra.mxu0 0.0
    %1698 = vmatprep.subr.mxu0 0.0
    %1699 = vmatpush1.msra.mxu0 0.0
    %1700 = vmatprep.subr.mxu0 0.0
    %1701 = vmatpush1.msra.mxu0 0.0
    %1702 = vmatprep.subr.mxu0 0.0
    %1703 = vmatpush1.msra.mxu0 0.0
    %1704 = vmatprep.subr.mxu0 0.0
    %1705 = vmatpush1.msra.mxu0 0.0
    %1706 = vmatprep.subr.mxu0 0.0
    %1707 = vmatpush1.msra.mxu0 0.0
    %1708 = vmatprep.subr.mxu0 0.0
    %1709 = vmatpush1.msra.mxu0 0.0
    %1710 = vmatprep.subr.mxu0 0.0
    %1711 = vmatpush1.msra.mxu0 0.0
    %1712 = vmatprep.subr.mxu0 0.0
    %1713 = vmatpush1.msra.mxu0 0.0
    %1714 = vmatprep.subr.mxu0 0.0
    %1715 = vmatpush1.msra.mxu0 0.0
    %1716 = vmatprep.subr.mxu0 0.0
    %1717 = vmatpush1.msra.mxu0 0.0
    %1718 = vmatprep.subr.mxu0 0.0
    %1719 = vmatpush1.msra.mxu0 0.0
    %1720 = vmatprep.subr.mxu0 0.0
    %1721 = vmatpush1.msra.mxu0 0.0
    %1722 = vmatprep.subr.mxu0 0.0
    %1723 = vmatpush1.msra.mxu0 0.0
    %1724 = vmatprep.subr.mxu0 0.0
    %1725 = vmatpush1.msra.mxu0 0.0
    %1726 = vmatprep.subr.mxu0 0.0
    %1727 = vmatpush1.msra.mxu0 0.0
    %1728 = vmatprep.mubr.f32.mxu0 0.0
    %1729 = vmatmul.mubr.f32.gmra.mrb[0].mxu0 %v1659
    %v1730 = vpop.f32.mrb[0].mxu0
    %v1731 = vadd.f32 %v1656, %v1730
    %v1732 = vpop.f32.mrb[0].mxu0
    %1733 = vmatprep.mubr.f32.mxu0 0.0
    %1734 = vmatmul.mubr.f32.gmra.mrb[0].mxu0 %v1662
    %v1735 = vpop.f32.mrb[0].mxu0
    %v1736 = vadd.f32 %v1656, %v1735
    %v1737 = vpop.f32.mrb[0].mxu0
    %1738 = vdwg.mxu0
    %1741 = vrot.lane.b32.xlu0 %v1731, 96
    %v1742 = vpop.permute.xlu0 %1741
    %1743 = vrot.lane.b32.xlu0 %v1736, 96
    %v1744 = vpop.permute.xlu0 %1743
    %v1747 = vmul.f32 %v1731, %v1742
    %v1748 = vmul.f32 %v1736, %v1744
    %v1749 = vsel %vm504, %v1747, 0.0
    %1750 = vadd.xlane.f32.xlu0 %v1749
    %v1751 = vpop.xlane.xlu0 %1750
    %v1752 = vsel %vm504, %v1748, 0.0
    %1753 = vadd.xlane.f32.xlu0 %v1752
    %v1754 = vpop.xlane.xlu0 %1753
    %1755 = vrot.lane.b32.xlu0 %v1731, 88
    %v1756 = vpop.permute.xlu0 %1755
    %1757 = vrot.lane.b32.xlu0 %v1736, 88
    %v1758 = vpop.permute.xlu0 %1757
    %v1761 = vmul.f32 %v1731, %v1756
    %v1762 = vmul.f32 %v1736, %v1758
    %v1763 = vsel %vm504, %v1761, 0.0
    %1764 = vadd.xlane.f32.xlu0 %v1763
    %v1765 = vpop.xlane.xlu0 %1764
    %v1766 = vsel %vm504, %v1762, 0.0
    %1767 = vadd.xlane.f32.xlu0 %v1766
    %v1768 = vpop.xlane.xlu0 %1767
    %1769 = vrot.lane.b32.xlu0 %v1731, 80
    %v1770 = vpop.permute.xlu0 %1769
    %1771 = vrot.lane.b32.xlu0 %v1736, 80
    %v1772 = vpop.permute.xlu0 %1771
    %v1775 = vmul.f32 %v1731, %v1770
    %v1776 = vmul.f32 %v1736, %v1772
    %v1777 = vsel %vm504, %v1775, 0.0
    %1778 = vadd.xlane.f32.xlu0 %v1777
    %v1779 = vpop.xlane.xlu0 %1778
    %v1780 = vsel %vm504, %v1776, 0.0
    %1781 = vadd.xlane.f32.xlu0 %v1780
    %v1782 = vpop.xlane.xlu0 %1781
    %1783 = vrot.lane.b32.xlu0 %v1731, 72
    %v1784 = vpop.permute.xlu0 %1783
    %1785 = vrot.lane.b32.xlu0 %v1736, 72
    %v1786 = vpop.permute.xlu0 %1785
    %v1789 = vmul.f32 %v1731, %v1784
    %v1790 = vmul.f32 %v1736, %v1786
    %v1791 = vsel %vm504, %v1789, 0.0
    %1792 = vadd.xlane.f32.xlu0 %v1791
    %v1793 = vpop.xlane.xlu0 %1792
    %v1794 = vsel %vm504, %v1790, 0.0
    %1795 = vadd.xlane.f32.xlu0 %v1794
    %v1796 = vpop.xlane.xlu0 %1795
    %v1797 = vmax.f32 %v1751, %v1765
    %v1798 = vmax.f32 %v1754, %v1768
    %v1799 = vmax.f32 %v1797, %v1779
    %v1800 = vmax.f32 %v1798, %v1782
    %v1801 = vmax.f32 %v1799, %v1793
    %v1802 = vmax.f32 %v1800, %v1796
    %v1803 = vsub.f32 %v1751, %v1801
    %v1804 = vsub.f32 %v1754, %v1802
    %v1805 = vmul.f32 %v1803, 1.442695
    %v1806 = vpow.pop %v1805
    %v1807 = vmul.f32 %v1804, 1.442695
    %v1808 = vpow.pop %v1807
    %v1809 = vsub.f32 %v1765, %v1801
    %v1810 = vsub.f32 %v1768, %v1802
    %v1811 = vmul.f32 %v1809, 1.442695
    %v1812 = vpow.pop %v1811
    %v1813 = vmul.f32 %v1810, 1.442695
    %v1814 = vpow.pop %v1813
    %v1815 = vsub.f32 %v1779, %v1801
    %v1816 = vsub.f32 %v1782, %v1802
    %v1817 = vmul.f32 %v1815, 1.442695
    %v1818 = vpow.pop %v1817
    %v1819 = vmul.f32 %v1816, 1.442695
    %v1820 = vpow.pop %v1819
    %v1821 = vsub.f32 %v1793, %v1801
    %v1822 = vsub.f32 %v1796, %v1802
    %v1823 = vmul.f32 %v1821, 1.442695
    %v1824 = vpow.pop %v1823
    %v1825 = vmul.f32 %v1822, 1.442695
    %v1826 = vpow.pop %v1825
    %v1827 = vadd.f32 %v1806, %v1812
    %v1828 = vadd.f32 %v1808, %v1814
    %v1829 = vadd.f32 %v1827, %v1818
    %v1830 = vadd.f32 %v1828, %v1820
    %v1831 = vadd.f32 %v1829, %v1824
    %v1832 = vadd.f32 %v1830, %v1826
    %v1833 = vrcp.pop %v1831
    %v1834 = vrcp.pop %v1832
    %v1835 = vmul.f32 %v1806, %v1833
    %v1836 = vmul.f32 %v1808, %v1834
    %v1837 = vmul.f32 %v1835, %v1731
    %v1838 = vmul.f32 %v1836, %v1736
    %v1839 = vmul.f32 %v1812, %v1833
    %v1840 = vmul.f32 %v1814, %v1834
    %v1841 = vmul.f32 %v1839, %v1731
    %v1842 = vmul.f32 %v1840, %v1736
    %1845 = vrot.lane.b32.xlu0 %v1841, 120
    %v1846 = vpop.permute.xlu0 %1845
    %1847 = vrot.lane.b32.xlu0 %v1842, 120
    %v1848 = vpop.permute.xlu0 %1847
    %v1851 = vadd.f32 %v1837, %v1846
    %v1852 = vadd.f32 %v1838, %v1848
    %v1853 = vmul.f32 %v1818, %v1833
    %v1854 = vmul.f32 %v1820, %v1834
    %v1855 = vmul.f32 %v1853, %v1731
    %v1856 = vmul.f32 %v1854, %v1736
    %1859 = vrot.lane.b32.xlu0 %v1855, 112
    %v1860 = vpop.permute.xlu0 %1859
    %1861 = vrot.lane.b32.xlu0 %v1856, 112
    %v1862 = vpop.permute.xlu0 %1861
    %v1865 = vadd.f32 %v1851, %v1860
    %v1866 = vadd.f32 %v1852, %v1862
    %v1867 = vmul.f32 %v1824, %v1833
    %v1868 = vmul.f32 %v1826, %v1834
    %v1869 = vmul.f32 %v1867, %v1731
    %v1870 = vmul.f32 %v1868, %v1736
    %1873 = vrot.lane.b32.xlu0 %v1869, 104
    %v1874 = vpop.permute.xlu0 %1873
    %1875 = vrot.lane.b32.xlu0 %v1870, 104
    %v1876 = vpop.permute.xlu0 %1875
    %v1879 = vadd.f32 %v1865, %v1874
    %v1880 = vadd.f32 %v1866, %v1876
    %1881 = vrot.lane.b32.xlu0 %v1731, 104
    %v1882 = vpop.permute.xlu0 %1881
    %1883 = vrot.lane.b32.xlu0 %v1736, 104
    %v1884 = vpop.permute.xlu0 %1883
    %v1887 = vmul.f32 %v1731, %v1882
    %v1888 = vmul.f32 %v1736, %v1884
    %1891 = vrot.lane.b32.xlu0 %v1887, 120
    %v1892 = vpop.permute.xlu0 %1891
    %1893 = vrot.lane.b32.xlu0 %v1888, 120
    %v1894 = vpop.permute.xlu0 %1893
    %v1897 = vsel %vm504, %v1892, 0.0
    %1898 = vadd.xlane.f32.xlu0 %v1897
    %v1899 = vpop.xlane.xlu0 %1898
    %v1900 = vsel %vm504, %v1894, 0.0
    %1901 = vadd.xlane.f32.xlu0 %v1900
    %v1902 = vpop.xlane.xlu0 %1901
    %1905 = vrot.lane.b32.xlu0 %v1747, 120
    %v1906 = vpop.permute.xlu0 %1905
    %1907 = vrot.lane.b32.xlu0 %v1748, 120
    %v1908 = vpop.permute.xlu0 %1907
    %v1911 = vsel %vm504, %v1906, 0.0
    %1912 = vadd.xlane.f32.xlu0 %v1911
    %v1913 = vpop.xlane.xlu0 %1912
    %v1914 = vsel %vm504, %v1908, 0.0
    %1915 = vadd.xlane.f32.xlu0 %v1914
    %v1916 = vpop.xlane.xlu0 %1915
    %1919 = vrot.lane.b32.xlu0 %v1761, 120
    %v1920 = vpop.permute.xlu0 %1919
    %1921 = vrot.lane.b32.xlu0 %v1762, 120
    %v1922 = vpop.permute.xlu0 %1921
    %v1925 = vsel %vm504, %v1920, 0.0
    %1926 = vadd.xlane.f32.xlu0 %v1925
    %v1927 = vpop.xlane.xlu0 %1926
    %v1928 = vsel %vm504, %v1922, 0.0
    %1929 = vadd.xlane.f32.xlu0 %v1928
    %v1930 = vpop.xlane.xlu0 %1929
    %1933 = vrot.lane.b32.xlu0 %v1775, 120
    %v1934 = vpop.permute.xlu0 %1933
    %1935 = vrot.lane.b32.xlu0 %v1776, 120
    %v1936 = vpop.permute.xlu0 %1935
    %v1939 = vsel %vm504, %v1934, 0.0
    %1940 = vadd.xlane.f32.xlu0 %v1939
    %v1941 = vpop.xlane.xlu0 %1940
    %v1942 = vsel %vm504, %v1936, 0.0
    %1943 = vadd.xlane.f32.xlu0 %v1942
    %v1944 = vpop.xlane.xlu0 %1943
    %v1945 = vmax.f32 %v1899, %v1913
    %v1946 = vmax.f32 %v1902, %v1916
    %v1947 = vmax.f32 %v1945, %v1927
    %v1948 = vmax.f32 %v1946, %v1930
    %v1949 = vmax.f32 %v1947, %v1941
    %v1950 = vmax.f32 %v1948, %v1944
    %v1951 = vsub.f32 %v1899, %v1949
    %v1952 = vsub.f32 %v1902, %v1950
    %v1953 = vmul.f32 %v1951, 1.442695
    %v1954 = vpow.pop %v1953
    %v1955 = vmul.f32 %v1952, 1.442695
    %v1956 = vpow.pop %v1955
    %v1957 = vsub.f32 %v1913, %v1949
    %v1958 = vsub.f32 %v1916, %v1950
    %v1959 = vmul.f32 %v1957, 1.442695
    %v1960 = vpow.pop %v1959
    %v1961 = vmul.f32 %v1958, 1.442695
    %v1962 = vpow.pop %v1961
    %v1963 = vsub.f32 %v1927, %v1949
    %v1964 = vsub.f32 %v1930, %v1950
    %v1965 = vmul.f32 %v1963, 1.442695
    %v1966 = vpow.pop %v1965
    %v1967 = vmul.f32 %v1964, 1.442695
    %v1968 = vpow.pop %v1967
    %v1969 = vsub.f32 %v1941, %v1949
    %v1970 = vsub.f32 %v1944, %v1950
    %v1971 = vmul.f32 %v1969, 1.442695
    %v1972 = vpow.pop %v1971
    %v1973 = vmul.f32 %v1970, 1.442695
    %v1974 = vpow.pop %v1973
    %v1975 = vadd.f32 %v1954, %v1960
    %v1976 = vadd.f32 %v1956, %v1962
    %v1977 = vadd.f32 %v1975, %v1966
    %v1978 = vadd.f32 %v1976, %v1968
    %v1979 = vadd.f32 %v1977, %v1972
    %v1980 = vadd.f32 %v1978, %v1974
    %v1981 = vrcp.pop %v1979
    %v1982 = vrcp.pop %v1980
    %v1983 = vmul.f32 %v1954, %v1981
    %v1984 = vmul.f32 %v1956, %v1982
    %v1985 = vmul.f32 %v1983, %v1731
    %v1986 = vmul.f32 %v1984, %v1736
    %v1987 = vmul.f32 %v1960, %v1981
    %v1988 = vmul.f32 %v1962, %v1982
    %v1989 = vmul.f32 %v1987, %v1731
    %v1990 = vmul.f32 %v1988, %v1736
    %1993 = vrot.lane.b32.xlu0 %v1989, 120
    %v1994 = vpop.permute.xlu0 %1993
    %1995 = vrot.lane.b32.xlu0 %v1990, 120
    %v1996 = vpop.permute.xlu0 %1995
    %v1999 = vadd.f32 %v1985, %v1994
    %v2000 = vadd.f32 %v1986, %v1996
    %v2001 = vmul.f32 %v1966, %v1981
    %v2002 = vmul.f32 %v1968, %v1982
    %v2003 = vmul.f32 %v2001, %v1731
    %v2004 = vmul.f32 %v2002, %v1736
    %2007 = vrot.lane.b32.xlu0 %v2003, 112
    %v2008 = vpop.permute.xlu0 %2007
    %2009 = vrot.lane.b32.xlu0 %v2004, 112
    %v2010 = vpop.permute.xlu0 %2009
    %v2013 = vadd.f32 %v1999, %v2008
    %v2014 = vadd.f32 %v2000, %v2010
    %v2015 = vmul.f32 %v1972, %v1981
    %v2016 = vmul.f32 %v1974, %v1982
    %v2017 = vmul.f32 %v2015, %v1731
    %v2018 = vmul.f32 %v2016, %v1736
    %2021 = vrot.lane.b32.xlu0 %v2017, 104
    %v2022 = vpop.permute.xlu0 %2021
    %2023 = vrot.lane.b32.xlu0 %v2018, 104
    %v2024 = vpop.permute.xlu0 %2023
    %v2027 = vadd.f32 %v2013, %v2022
    %v2028 = vadd.f32 %v2014, %v2024
    %2029 = vrot.lane.b32.xlu0 %v1731, 112
    %v2030 = vpop.permute.xlu0 %2029
    %2031 = vrot.lane.b32.xlu0 %v1736, 112
    %v2032 = vpop.permute.xlu0 %2031
    %v2035 = vmul.f32 %v1731, %v2030
    %v2036 = vmul.f32 %v1736, %v2032
    %2039 = vrot.lane.b32.xlu0 %v2035, 112
    %v2040 = vpop.permute.xlu0 %2039
    %2041 = vrot.lane.b32.xlu0 %v2036, 112
    %v2042 = vpop.permute.xlu0 %2041
    %v2045 = vsel %vm504, %v2040, 0.0
    %2046 = vadd.xlane.f32.xlu0 %v2045
    %v2047 = vpop.xlane.xlu0 %2046
    %v2048 = vsel %vm504, %v2042, 0.0
    %2049 = vadd.xlane.f32.xlu0 %v2048
    %v2050 = vpop.xlane.xlu0 %2049
    %2051 = vrot.lane.b32.xlu0 %v1887, 112
    %v2052 = vpop.permute.xlu0 %2051
    %2053 = vrot.lane.b32.xlu0 %v1888, 112
    %v2054 = vpop.permute.xlu0 %2053
    %v2057 = vsel %vm504, %v2052, 0.0
    %2058 = vadd.xlane.f32.xlu0 %v2057
    %v2059 = vpop.xlane.xlu0 %2058
    %v2060 = vsel %vm504, %v2054, 0.0
    %2061 = vadd.xlane.f32.xlu0 %v2060
    %v2062 = vpop.xlane.xlu0 %2061
    %2063 = vrot.lane.b32.xlu0 %v1747, 112
    %v2064 = vpop.permute.xlu0 %2063
    %2065 = vrot.lane.b32.xlu0 %v1748, 112
    %v2066 = vpop.permute.xlu0 %2065
    %v2069 = vsel %vm504, %v2064, 0.0
    %2070 = vadd.xlane.f32.xlu0 %v2069
    %v2071 = vpop.xlane.xlu0 %2070
    %v2072 = vsel %vm504, %v2066, 0.0
    %2073 = vadd.xlane.f32.xlu0 %v2072
    %v2074 = vpop.xlane.xlu0 %2073
    %2075 = vrot.lane.b32.xlu0 %v1761, 112
    %v2076 = vpop.permute.xlu0 %2075
    %2077 = vrot.lane.b32.xlu0 %v1762, 112
    %v2078 = vpop.permute.xlu0 %2077
    %v2081 = vsel %vm504, %v2076, 0.0
    %2082 = vadd.xlane.f32.xlu0 %v2081
    %v2083 = vpop.xlane.xlu0 %2082
    %v2084 = vsel %vm504, %v2078, 0.0
    %2085 = vadd.xlane.f32.xlu0 %v2084
    %v2086 = vpop.xlane.xlu0 %2085
    %v2087 = vmax.f32 %v2047, %v2059
    %v2088 = vmax.f32 %v2050, %v2062
    %v2089 = vmax.f32 %v2087, %v2071
    %v2090 = vmax.f32 %v2088, %v2074
    %v2091 = vmax.f32 %v2089, %v2083
    %v2092 = vmax.f32 %v2090, %v2086
    %v2093 = vsub.f32 %v2047, %v2091
    %v2094 = vsub.f32 %v2050, %v2092
    %v2095 = vmul.f32 %v2093, 1.442695
    %v2096 = vpow.pop %v2095
    %v2097 = vmul.f32 %v2094, 1.442695
    %v2098 = vpow.pop %v2097
    %v2099 = vsub.f32 %v2059, %v2091
    %v2100 = vsub.f32 %v2062, %v2092
    %v2101 = vmul.f32 %v2099, 1.442695
    %v2102 = vpow.pop %v2101
    %v2103 = vmul.f32 %v2100, 1.442695
    %v2104 = vpow.pop %v2103
    %v2105 = vsub.f32 %v2071, %v2091
    %v2106 = vsub.f32 %v2074, %v2092
    %v2107 = vmul.f32 %v2105, 1.442695
    %v2108 = vpow.pop %v2107
    %v2109 = vmul.f32 %v2106, 1.442695
    %v2110 = vpow.pop %v2109
    %v2111 = vsub.f32 %v2083, %v2091
    %v2112 = vsub.f32 %v2086, %v2092
    %v2113 = vmul.f32 %v2111, 1.442695
    %v2114 = vpow.pop %v2113
    %v2115 = vmul.f32 %v2112, 1.442695
    %v2116 = vpow.pop %v2115
    %v2117 = vadd.f32 %v2096, %v2102
    %v2118 = vadd.f32 %v2098, %v2104
    %v2119 = vadd.f32 %v2117, %v2108
    %v2120 = vadd.f32 %v2118, %v2110
    %v2121 = vadd.f32 %v2119, %v2114
    %v2122 = vadd.f32 %v2120, %v2116
    %v2123 = vrcp.pop %v2121
    %v2124 = vrcp.pop %v2122
    %v2125 = vmul.f32 %v2096, %v2123
    %v2126 = vmul.f32 %v2098, %v2124
    %v2127 = vmul.f32 %v2125, %v1731
    %v2128 = vmul.f32 %v2126, %v1736
    %v2129 = vmul.f32 %v2102, %v2123
    %v2130 = vmul.f32 %v2104, %v2124
    %v2131 = vmul.f32 %v2129, %v1731
    %v2132 = vmul.f32 %v2130, %v1736
    %2135 = vrot.lane.b32.xlu0 %v2131, 120
    %v2136 = vpop.permute.xlu0 %2135
    %2137 = vrot.lane.b32.xlu0 %v2132, 120
    %v2138 = vpop.permute.xlu0 %2137
    %v2141 = vadd.f32 %v2127, %v2136
    %v2142 = vadd.f32 %v2128, %v2138
    %v2143 = vmul.f32 %v2108, %v2123
    %v2144 = vmul.f32 %v2110, %v2124
    %v2145 = vmul.f32 %v2143, %v1731
    %v2146 = vmul.f32 %v2144, %v1736
    %2149 = vrot.lane.b32.xlu0 %v2145, 112
    %v2150 = vpop.permute.xlu0 %2149
    %2151 = vrot.lane.b32.xlu0 %v2146, 112
    %v2152 = vpop.permute.xlu0 %2151
    %v2155 = vadd.f32 %v2141, %v2150
    %v2156 = vadd.f32 %v2142, %v2152
    %v2157 = vmul.f32 %v2114, %v2123
    %v2158 = vmul.f32 %v2116, %v2124
    %v2159 = vmul.f32 %v2157, %v1731
    %v2160 = vmul.f32 %v2158, %v1736
    %2163 = vrot.lane.b32.xlu0 %v2159, 104
    %v2164 = vpop.permute.xlu0 %2163
    %2165 = vrot.lane.b32.xlu0 %v2160, 104
    %v2166 = vpop.permute.xlu0 %2165
    %v2169 = vadd.f32 %v2155, %v2164
    %v2170 = vadd.f32 %v2156, %v2166
    %2171 = vrot.lane.b32.xlu0 %v1731, 120
    %v2172 = vpop.permute.xlu0 %2171
    %2173 = vrot.lane.b32.xlu0 %v1736, 120
    %v2174 = vpop.permute.xlu0 %2173
    %v2177 = vmul.f32 %v1731, %v2172
    %v2178 = vmul.f32 %v1736, %v2174
    %2181 = vrot.lane.b32.xlu0 %v2177, 104
    %v2182 = vpop.permute.xlu0 %2181
    %2183 = vrot.lane.b32.xlu0 %v2178, 104
    %v2184 = vpop.permute.xlu0 %2183
    %v2187 = vsel %vm504, %v2182, 0.0
    %2188 = vadd.xlane.f32.xlu0 %v2187
    %v2189 = vpop.xlane.xlu0 %2188
    %v2190 = vsel %vm504, %v2184, 0.0
    %2191 = vadd.xlane.f32.xlu0 %v2190
    %v2192 = vpop.xlane.xlu0 %2191
    %2193 = vrot.lane.b32.xlu0 %v2035, 104
    %v2194 = vpop.permute.xlu0 %2193
    %2195 = vrot.lane.b32.xlu0 %v2036, 104
    %v2196 = vpop.permute.xlu0 %2195
    %v2199 = vsel %vm504, %v2194, 0.0
    %2200 = vadd.xlane.f32.xlu0 %v2199
    %v2201 = vpop.xlane.xlu0 %2200
    %v2202 = vsel %vm504, %v2196, 0.0
    %2203 = vadd.xlane.f32.xlu0 %v2202
    %v2204 = vpop.xlane.xlu0 %2203
    %2205 = vrot.lane.b32.xlu0 %v1887, 104
    %v2206 = vpop.permute.xlu0 %2205
    %2207 = vrot.lane.b32.xlu0 %v1888, 104
    %v2208 = vpop.permute.xlu0 %2207
    %v2211 = vsel %vm504, %v2206, 0.0
    %2212 = vadd.xlane.f32.xlu0 %v2211
    %v2213 = vpop.xlane.xlu0 %2212
    %v2214 = vsel %vm504, %v2208, 0.0
    %2215 = vadd.xlane.f32.xlu0 %v2214
    %v2216 = vpop.xlane.xlu0 %2215
    %2217 = vrot.lane.b32.xlu0 %v1747, 104
    %v2218 = vpop.permute.xlu0 %2217
    %2219 = vrot.lane.b32.xlu0 %v1748, 104
    %v2220 = vpop.permute.xlu0 %2219
    %v2223 = vsel %vm504, %v2218, 0.0
    %2224 = vadd.xlane.f32.xlu0 %v2223
    %v2225 = vpop.xlane.xlu0 %2224
    %v2226 = vsel %vm504, %v2220, 0.0
    %2227 = vadd.xlane.f32.xlu0 %v2226
    %v2228 = vpop.xlane.xlu0 %2227
    %v2229 = vmax.f32 %v2189, %v2201
    %v2230 = vmax.f32 %v2192, %v2204
    %v2231 = vmax.f32 %v2229, %v2213
    %v2232 = vmax.f32 %v2230, %v2216
    %v2233 = vmax.f32 %v2231, %v2225
    %v2234 = vmax.f32 %v2232, %v2228
    %v2235 = vsub.f32 %v2189, %v2233
    %v2236 = vsub.f32 %v2192, %v2234
    %v2237 = vmul.f32 %v2235, 1.442695
    %v2238 = vpow.pop %v2237
    %v2239 = vmul.f32 %v2236, 1.442695
    %v2240 = vpow.pop %v2239
    %v2241 = vsub.f32 %v2201, %v2233
    %v2242 = vsub.f32 %v2204, %v2234
    %v2243 = vmul.f32 %v2241, 1.442695
    %v2244 = vpow.pop %v2243
    %v2245 = vmul.f32 %v2242, 1.442695
    %v2246 = vpow.pop %v2245
    %v2247 = vsub.f32 %v2213, %v2233
    %v2248 = vsub.f32 %v2216, %v2234
    %v2249 = vmul.f32 %v2247, 1.442695
    %v2250 = vpow.pop %v2249
    %v2251 = vmul.f32 %v2248, 1.442695
    %v2252 = vpow.pop %v2251
    %v2253 = vsub.f32 %v2225, %v2233
    %v2254 = vsub.f32 %v2228, %v2234
    %v2255 = vmul.f32 %v2253, 1.442695
    %v2256 = vpow.pop %v2255
    %v2257 = vmul.f32 %v2254, 1.442695
    %v2258 = vpow.pop %v2257
    %v2259 = vadd.f32 %v2238, %v2244
    %v2260 = vadd.f32 %v2240, %v2246
    %v2261 = vadd.f32 %v2259, %v2250
    %v2262 = vadd.f32 %v2260, %v2252
    %v2263 = vadd.f32 %v2261, %v2256
    %v2264 = vadd.f32 %v2262, %v2258
    %v2265 = vrcp.pop %v2263
    %v2266 = vrcp.pop %v2264
    %v2267 = vmul.f32 %v2238, %v2265
    %v2268 = vmul.f32 %v2240, %v2266
    %v2269 = vmul.f32 %v2267, %v1731
    %v2270 = vmul.f32 %v2268, %v1736
    %v2271 = vmul.f32 %v2244, %v2265
    %v2272 = vmul.f32 %v2246, %v2266
    %v2273 = vmul.f32 %v2271, %v1731
    %v2274 = vmul.f32 %v2272, %v1736
    %2277 = vrot.lane.b32.xlu0 %v2273, 120
    %v2278 = vpop.permute.xlu0 %2277
    %2279 = vrot.lane.b32.xlu0 %v2274, 120
    %v2280 = vpop.permute.xlu0 %2279
    %v2283 = vadd.f32 %v2269, %v2278
    %v2284 = vadd.f32 %v2270, %v2280
    %v2285 = vmul.f32 %v2250, %v2265
    %v2286 = vmul.f32 %v2252, %v2266
    %v2287 = vmul.f32 %v2285, %v1731
    %v2288 = vmul.f32 %v2286, %v1736
    %2291 = vrot.lane.b32.xlu0 %v2287, 112
    %v2292 = vpop.permute.xlu0 %2291
    %2293 = vrot.lane.b32.xlu0 %v2288, 112
    %v2294 = vpop.permute.xlu0 %2293
    %v2297 = vadd.f32 %v2283, %v2292
    %v2298 = vadd.f32 %v2284, %v2294
    %v2299 = vmul.f32 %v2256, %v2265
    %v2300 = vmul.f32 %v2258, %v2266
    %v2301 = vmul.f32 %v2299, %v1731
    %v2302 = vmul.f32 %v2300, %v1736
    %2305 = vrot.lane.b32.xlu0 %v2301, 104
    %v2306 = vpop.permute.xlu0 %2305
    %2307 = vrot.lane.b32.xlu0 %v2302, 104
    %v2308 = vpop.permute.xlu0 %2307
    %v2311 = vadd.f32 %v2297, %v2306
    %v2312 = vadd.f32 %v2298, %v2308
    %2315 = vrot.lane.b32.xlu0 %v1879, 64
    %v2316 = vpop.permute.xlu0 %2315
    %2317 = vrot.lane.b32.xlu0 %v1880, 64
    %v2318 = vpop.permute.xlu0 %2317
    %2323 = vrot.lane.b32.xlu0 %v2027, 72
    %v2324 = vpop.permute.xlu0 %2323
    %2325 = vrot.lane.b32.xlu0 %v2028, 72
    %v2326 = vpop.permute.xlu0 %2325
    %2331 = vrot.lane.b32.xlu0 %v2169, 80
    %v2332 = vpop.permute.xlu0 %2331
    %2333 = vrot.lane.b32.xlu0 %v2170, 80
    %v2334 = vpop.permute.xlu0 %2333
    %2339 = vrot.lane.b32.xlu0 %v2311, 88
    %v2340 = vpop.permute.xlu0 %2339
    %2341 = vrot.lane.b32.xlu0 %v2312, 88
    %v2342 = vpop.permute.xlu0 %2341
    %v2345 = vsel %vm504, %v2316, %v2324
    %v2346 = vsel %vm504, %v2318, %v2326
    %v2347 = vsel %vm1103, %v2345, %v2332
    %v2348 = vsel %vm1103, %v2346, %v2334
    %v2349 = vsel %vm1106, %v2347, %v2340
    %v2350 = vsel %vm1106, %v2348, %v2342
    %v2352 = vsel %vm379, %v2349, 0
    %v2355 = vsel %vm379, %v2350, 0
    %2357 = vmatprep.subr.mxu0 0.0
    %2358 = vmatpush1.msra.mxu0 %v1622
    %2359 = vmatprep.subr.mxu0 0.0
    %2360 = vmatpush1.msra.mxu0 %v1623
    %2361 = vmatprep.subr.mxu0 0.0
    %2362 = vmatpush1.msra.mxu0 %v1624
    %2363 = vmatprep.subr.mxu0 0.0
    %2364 = vmatpush1.msra.mxu0 %v1625
    %2365 = vmatprep.subr.mxu0 0.0
    %2366 = vmatpush1.msra.mxu0 0.0
    %2367 = vmatprep.subr.mxu0 0.0
    %2368 = vmatpush1.msra.mxu0 0.0
    %2369 = vmatprep.subr.mxu0 0.0
    %2370 = vmatpush1.msra.mxu0 0.0
    %2371 = vmatprep.subr.mxu0 0.0
    %2372 = vmatpush1.msra.mxu0 0.0
    %2373 = vmatprep.subr.mxu0 0.0
    %2374 = vmatpush1.msra.mxu0 0.0
    %2375 = vmatprep.subr.mxu0 0.0
    %2376 = vmatpush1.msra.mxu0 0.0
    %2377 = vmatprep.subr.mxu0 0.0
    %2378 = vmatpush1.msra.mxu0 0.0
    %2379 = vmatprep.subr.mxu0 0.0
    %2380 = vmatpush1.msra.mxu0 0.0
    %2381 = vmatprep.subr.mxu0 0.0
    %2382 = vmatpush1.msra.mxu0 0.0
    %2383 = vmatprep.subr.mxu0 0.0
    %2384 = vmatpush1.msra.mxu0 0.0
    %2385 = vmatprep.subr.mxu0 0.0
    %2386 = vmatpush1.msra.mxu0 0.0
    %2387 = vmatprep.subr.mxu0 0.0
    %2388 = vmatpush1.msra.mxu0 0.0
    %2389 = vmatprep.subr.mxu0 0.0
    %2390 = vmatpush1.msra.mxu0 0.0
    %2391 = vmatprep.subr.mxu0 0.0
    %2392 = vmatpush1.msra.mxu0 0.0
    %2393 = vmatprep.subr.mxu0 0.0
    %2394 = vmatpush1.msra.mxu0 0.0
    %2395 = vmatprep.subr.mxu0 0.0
    %2396 = vmatpush1.msra.mxu0 0.0
    %2397 = vmatprep.subr.mxu0 0.0
    %2398 = vmatpush1.msra.mxu0 0.0
    %2399 = vmatprep.subr.mxu0 0.0
    %2400 = vmatpush1.msra.mxu0 0.0
    %2401 = vmatprep.subr.mxu0 0.0
    %2402 = vmatpush1.msra.mxu0 0.0
    %2403 = vmatprep.subr.mxu0 0.0
    %2404 = vmatpush1.msra.mxu0 0.0
    %2405 = vmatprep.subr.mxu0 0.0
    %2406 = vmatpush1.msra.mxu0 0.0
    %2407 = vmatprep.subr.mxu0 0.0
    %2408 = vmatpush1.msra.mxu0 0.0
    %2409 = vmatprep.subr.mxu0 0.0
    %2410 = vmatpush1.msra.mxu0 0.0
    %2411 = vmatprep.subr.mxu0 0.0
    %2412 = vmatpush1.msra.mxu0 0.0
    %2413 = vmatprep.subr.mxu0 0.0
    %2414 = vmatpush1.msra.mxu0 0.0
    %2415 = vmatprep.subr.mxu0 0.0
    %2416 = vmatpush1.msra.mxu0 0.0
    %2417 = vmatprep.subr.mxu0 0.0
    %2418 = vmatpush1.msra.mxu0 0.0
    %2419 = vmatprep.subr.mxu0 0.0
    %2420 = vmatpush1.msra.mxu0 0.0
    %2421 = vmatprep.mubr.f32.mxu0 0.0
    %2422 = vmatmul.mubr.f32.gmra.mrb[0].mxu0 %v2352
    %v2423 = vpop.f32.mrb[0].mxu0
    %v2424 = vadd.f32 0.0, %v2423
    %v2425 = vpop.f32.mrb[0].mxu0
    %2426 = vmatprep.mubr.f32.mxu0 0.0
    %2427 = vmatmul.mubr.f32.gmra.mrb[0].mxu0 %v2355
    %v2428 = vpop.f32.mrb[0].mxu0
    %v2429 = vadd.f32 0.0, %v2428
    %v2430 = vpop.f32.mrb[0].mxu0
    %2431 = vdwg.mxu0
    %v2432 = vadd.f32 %v1615, %v2424
    %v2433 = vadd.f32 %v1616, %v2429
    %v2434 = vld [vmem:[#allocation26] sm:$0xff]
    %v2435 = vld [vmem:[#allocation26 + $0x8] sm:$0xff]
    %v2436 = vld [vmem:[#allocation26 + $0x10] sm:$0xff]
    %v2437 = vld [vmem:[#allocation26 + $0x18] sm:$0xff]
    %v2438 = vld [vmem:[#allocation28] sm:$0x1]
    %v2439 = vld [vmem:[#allocation29] sm:$0xff]
    %v2440 = vld [vmem:[#allocation29 + $0x8] sm:$0xff]
    %v2441 = vld [vmem:[#allocation29 + $0x10] sm:$0xff]
    %v2442 = vld [vmem:[#allocation29 + $0x18] sm:$0xff]
    %v2443 = vld [vmem:[#allocation31] sm:$0x1]
    %v2444 = vld [vmem:[#allocation32] sm:$0xff]
    %v2445 = vld [vmem:[#allocation32 + $0x8] sm:$0xff]
    %v2446 = vld [vmem:[#allocation32 + $0x10] sm:$0xff]
    %v2447 = vld [vmem:[#allocation32 + $0x18] sm:$0xff]
    %v2448 = vld [vmem:[#allocation32 + $0x20] sm:$0xff]
    %v2449 = vld [vmem:[#allocation32 + $0x28] sm:$0xff]
    %v2450 = vld [vmem:[#allocation32 + $0x30] sm:$0xff]
    %v2451 = vld [vmem:[#allocation32 + $0x38] sm:$0xff]
    %v2452 = vld [vmem:[#allocation34] sm:$0x1]
    %v2453 = vld [vmem:[#allocation35] sm:$0xff]
    %v2454 = vld [vmem:[#allocation35 + $0x8] sm:$0xff]
    %v2455 = vld [vmem:[#allocation35 + $0x10] sm:$0xff]
    %v2456 = vld [vmem:[#allocation35 + $0x18] sm:$0xff]
    %v2457 = vld [vmem:[#allocation37] sm:$0x1]
    %v2458 = vsel %vm379, %v2432, 0.0
    %2459 = vadd.xlane.f32.xlu0 %v2458
    %v2460 = vpop.xlane.xlu0 %2459
    %v2461 = vsel %vm379, %v2433, 0.0
    %2462 = vadd.xlane.f32.xlu0 %v2461
    %v2463 = vpop.xlane.xlu0 %2462
    %v2464 = vmul.f32 %v2460, %v386
    %v2465 = vmul.f32 %v2463, %v386
    %v2466 = vsub.f32 %v2432, %v2464
    %v2467 = vsub.f32 %v2433, %v2465
    %v2468 = vmul.f32 %v2466, %v2466
    %v2469 = vmul.f32 %v2467, %v2467
    %v2470 = vsel %vm379, %v2468, 0.0
    %2471 = vadd.xlane.f32.xlu0 %v2470
    %v2472 = vpop.xlane.xlu0 %2471
    %v2473 = vsel %vm379, %v2469, 0.0
    %2474 = vadd.xlane.f32.xlu0 %v2473
    %v2475 = vpop.xlane.xlu0 %2474
    %v2476 = vmul.f32 %v2472, %v386
    %v2477 = vmul.f32 %v2475, %v386
    %v2478 = vadd.f32 %v2476, 1e-05
    %v2479 = vadd.f32 %v2477, 1e-05
    %v2480 = vrsqrt.pop %v2478
    %v2481 = vrsqrt.pop %v2479
    %v2482 = vmul.f32 %v2466, %v2480
    %v2483 = vmul.f32 %v2467, %v2481
    %v2485 = vlaneseq
    %v2486 = vshrl.u32 %v2485, 7
    %v2487 = vsub.s32 0, %v2486
    %v2488 = vrot.slane %v2438, %v2487
    %v2491 = vsel %vm379, %v2482, 0
    %v2494 = vsel %vm379, %v2483, 0
    %2496 = vmatprep.subr.mxu0 0.0
    %2497 = vmatpush1.msra.mxu0 %v2434
    %2498 = vmatprep.subr.mxu0 0.0
    %2499 = vmatpush1.msra.mxu0 %v2435
    %2500 = vmatprep.subr.mxu0 0.0
    %2501 = vmatpush1.msra.mxu0 %v2436
    %2502 = vmatprep.subr.mxu0 0.0
    %2503 = vmatpush1.msra.mxu0 %v2437
    %2504 = vmatprep.subr.mxu0 0.0
    %2505 = vmatpush1.msra.mxu0 0.0
    %2506 = vmatprep.subr.mxu0 0.0
    %2507 = vmatpush1.msra.mxu0 0.0
    %2508 = vmatprep.subr.mxu0 0.0
    %2509 = vmatpush1.msra.mxu0 0.0
    %2510 = vmatprep.subr.mxu0 0.0
    %2511 = vmatpush1.msra.mxu0 0.0
    %2512 = vmatprep.subr.mxu0 0.0
    %2513 = vmatpush1.msra.mxu0 0.0
    %2514 = vmatprep.subr.mxu0 0.0
    %2515 = vmatpush1.msra.mxu0 0.0
    %2516 = vmatprep.subr.mxu0 0.0
    %2517 = vmatpush1.msra.mxu0 0.0
    %2518 = vmatprep.subr.mxu0 0.0
    %2519 = vmatpush1.msra.mxu0 0.0
    %2520 = vmatprep.subr.mxu0 0.0
    %2521 = vmatpush1.msra.mxu0 0.0
    %2522 = vmatprep.subr.mxu0 0.0
    %2523 = vmatpush1.msra.mxu0 0.0
    %2524 = vmatprep.subr.mxu0 0.0
    %2525 = vmatpush1.msra.mxu0 0.0
    %2526 = vmatprep.subr.mxu0 0.0
    %2527 = vmatpush1.msra.mxu0 0.0
    %2528 = vmatprep.subr.mxu0 0.0
    %2529 = vmatpush1.msra.mxu0 0.0
    %2530 = vmatprep.subr.mxu0 0.0
    %2531 = vmatpush1.msra.mxu0 0.0
    %2532 = vmatprep.subr.mxu0 0.0
    %2533 = vmatpush1.msra.mxu0 0.0
    %2534 = vmatprep.subr.mxu0 0.0
    %2535 = vmatpush1.msra.mxu0 0.0
    %2536 = vmatprep.subr.mxu0 0.0
    %2537 = vmatpush1.msra.mxu0 0.0
    %2538 = vmatprep.subr.mxu0 0.0
    %2539 = vmatpush1.msra.mxu0 0.0
    %2540 = vmatprep.subr.mxu0 0.0
    %2541 = vmatpush1.msra.mxu0 0.0
    %2542 = vmatprep.subr.mxu0 0.0
    %2543 = vmatpush1.msra.mxu0 0.0
    %2544 = vmatprep.subr.mxu0 0.0
    %2545 = vmatpush1.msra.mxu0 0.0
    %2546 = vmatprep.subr.mxu0 0.0
    %2547 = vmatpush1.msra.mxu0 0.0
    %2548 = vmatprep.subr.mxu0 0.0
    %2549 = vmatpush1.msra.mxu0 0.0
    %2550 = vmatprep.subr.mxu0 0.0
    %2551 = vmatpush1.msra.mxu0 0.0
    %2552 = vmatprep.subr.mxu0 0.0
    %2553 = vmatpush1.msra.mxu0 0.0
    %2554 = vmatprep.subr.mxu0 0.0
    %2555 = vmatpush1.msra.mxu0 0.0
    %2556 = vmatprep.subr.mxu0 0.0
    %2557 = vmatpush1.msra.mxu0 0.0
    %2558 = vmatprep.subr.mxu0 0.0
    %2559 = vmatpush1.msra.mxu0 0.0
    %2560 = vmatprep.mubr.f32.mxu0 0.0
    %2561 = vmatmul.mubr.f32.gmra.mrb[0].mxu0 %v2491
    %v2562 = vpop.f32.mrb[0].mxu0
    %v2563 = vadd.f32 %v2488, %v2562
    %v2564 = vpop.f32.mrb[0].mxu0
    %2565 = vmatprep.mubr.f32.mxu0 0.0
    %2566 = vmatmul.mubr.f32.gmra.mrb[0].mxu0 %v2494
    %v2567 = vpop.f32.mrb[0].mxu0
    %v2568 = vadd.f32 %v2488, %v2567
    %v2569 = vpop.f32.mrb[0].mxu0
    %2570 = vdwg.mxu0
    %v2572 = vlaneseq
    %v2573 = vshrl.u32 %v2572, 7
    %v2574 = vsub.s32 0, %v2573
    %v2575 = vrot.slane %v2443, %v2574
    %v2578 = vsel %vm379, %v2563, 0
    %v2581 = vsel %vm379, %v2568, 0
    %2583 = vmatprep.subr.mxu0 0.0
    %2584 = vmatpush1.msra.mxu0 %v2439
    %2585 = vmatprep.subr.mxu0 0.0
    %2586 = vmatpush1.msra.mxu0 %v2440
    %2587 = vmatprep.subr.mxu0 0.0
    %2588 = vmatpush1.msra.mxu0 %v2441
    %2589 = vmatprep.subr.mxu0 0.0
    %2590 = vmatpush1.msra.mxu0 %v2442
    %2591 = vmatprep.subr.mxu0 0.0
    %2592 = vmatpush1.msra.mxu0 0.0
    %2593 = vmatprep.subr.mxu0 0.0
    %2594 = vmatpush1.msra.mxu0 0.0
    %2595 = vmatprep.subr.mxu0 0.0
    %2596 = vmatpush1.msra.mxu0 0.0
    %2597 = vmatprep.subr.mxu0 0.0
    %2598 = vmatpush1.msra.mxu0 0.0
    %2599 = vmatprep.subr.mxu0 0.0
    %2600 = vmatpush1.msra.mxu0 0.0
    %2601 = vmatprep.subr.mxu0 0.0
    %2602 = vmatpush1.msra.mxu0 0.0
    %2603 = vmatprep.subr.mxu0 0.0
    %2604 = vmatpush1.msra.mxu0 0.0
    %2605 = vmatprep.subr.mxu0 0.0
    %2606 = vmatpush1.msra.mxu0 0.0
    %2607 = vmatprep.subr.mxu0 0.0
    %2608 = vmatpush1.msra.mxu0 0.0
    %2609 = vmatprep.subr.mxu0 0.0
    %2610 = vmatpush1.msra.mxu0 0.0
    %2611 = vmatprep.subr.mxu0 0.0
    %2612 = vmatpush1.msra.mxu0 0.0
    %2613 = vmatprep.subr.mxu0 0.0
    %2614 = vmatpush1.msra.mxu0 0.0
    %2615 = vmatprep.subr.mxu0 0.0
    %2616 = vmatpush1.msra.mxu0 0.0
    %2617 = vmatprep.subr.mxu0 0.0
    %2618 = vmatpush1.msra.mxu0 0.0
    %2619 = vmatprep.subr.mxu0 0.0
    %2620 = vmatpush1.msra.mxu0 0.0
    %2621 = vmatprep.subr.mxu0 0.0
    %2622 = vmatpush1.msra.mxu0 0.0
    %2623 = vmatprep.subr.mxu0 0.0
    %2624 = vmatpush1.msra.mxu0 0.0
    %2625 = vmatprep.subr.mxu0 0.0
    %2626 = vmatpush1.msra.mxu0 0.0
    %2627 = vmatprep.subr.mxu0 0.0
    %2628 = vmatpush1.msra.mxu0 0.0
    %2629 = vmatprep.subr.mxu0 0.0
    %2630 = vmatpush1.msra.mxu0 0.0
    %2631 = vmatprep.subr.mxu0 0.0
    %2632 = vmatpush1.msra.mxu0 0.0
    %2633 = vmatprep.subr.mxu0 0.0
    %2634 = vmatpush1.msra.mxu0 0.0
    %2635 = vmatprep.subr.mxu0 0.0
    %2636 = vmatpush1.msra.mxu0 0.0
    %2637 = vmatprep.subr.mxu0 0.0
    %2638 = vmatpush1.msra.mxu0 0.0
    %2639 = vmatprep.subr.mxu0 0.0
    %2640 = vmatpush1.msra.mxu0 0.0
    %2641 = vmatprep.subr.mxu0 0.0
    %2642 = vmatpush1.msra.mxu0 0.0
    %2643 = vmatprep.subr.mxu0 0.0
    %2644 = vmatpush1.msra.mxu0 0.0
    %2645 = vmatprep.subr.mxu0 0.0
    %2646 = vmatpush1.msra.mxu0 0.0
    %2647 = vmatprep.mubr.f32.mxu0 0.0
    %2648 = vmatmul.mubr.f32.gmra.mrb[0].mxu0 %v2578
    %v2649 = vpop.f32.mrb[0].mxu0
    %v2650 = vadd.f32 %v2575, %v2649
    %v2651 = vpop.f32.mrb[0].mxu0
    %2652 = vmatprep.mubr.f32.mxu0 0.0
    %2653 = vmatmul.mubr.f32.gmra.mrb[0].mxu0 %v2581
    %v2654 = vpop.f32.mrb[0].mxu0
    %v2655 = vadd.f32 %v2575, %v2654
    %v2656 = vpop.f32.mrb[0].mxu0
    %2657 = vdwg.mxu0
    %v2658 = vmul.f32 %v2650, 0.5
    %v2659 = vmul.f32 %v2655, 0.5
    %v2660 = vmul.f32 %v2650, 0.044715
    %v2661 = vmul.f32 %v2655, 0.044715
    %v2662 = vmul.f32 %v2660, %v2650
    %v2663 = vmul.f32 %v2661, %v2655
    %v2664 = vmul.f32 %v2662, %v2650
    %v2665 = vmul.f32 %v2663, %v2655
    %v2666 = vadd.f32 %v2650, %v2664
    %v2667 = vadd.f32 %v2655, %v2665
    %v2668 = vmul.f32 %v2666, 0.7978846
    %v2669 = vmul.f32 %v2667, 0.7978846
    %v2670 = vtanh.pop %v2668
    %v2671 = vtanh.pop %v2669
    %v2672 = vadd.f32 %v2670, 1.0
    %v2673 = vadd.f32 %v2671, 1.0
    %v2674 = vmul.f32 %v2658, %v2672
    %v2675 = vmul.f32 %v2659, %v2673
    %v2677 = vsel %vm1434, %v2674, 0
    %v2680 = vsel %vm1434, %v2675, 0
    %2682 = vmatprep.subr.mxu0 0.0
    %2683 = vmatpush1.msra.mxu0 %v2444
    %2684 = vmatprep.subr.mxu0 0.0
    %2685 = vmatpush1.msra.mxu0 %v2445
    %2686 = vmatprep.subr.mxu0 0.0
    %2687 = vmatpush1.msra.mxu0 %v2446
    %2688 = vmatprep.subr.mxu0 0.0
    %2689 = vmatpush1.msra.mxu0 %v2447
    %2690 = vmatprep.subr.mxu0 0.0
    %2691 = vmatpush1.msra.mxu0 %v2448
    %2692 = vmatprep.subr.mxu0 0.0
    %2693 = vmatpush1.msra.mxu0 %v2449
    %2694 = vmatprep.subr.mxu0 0.0
    %2695 = vmatpush1.msra.mxu0 %v2450
    %2696 = vmatprep.subr.mxu0 0.0
    %2697 = vmatpush1.msra.mxu0 %v2451
    %2698 = vmatprep.subr.mxu0 0.0
    %2699 = vmatpush1.msra.mxu0 0.0
    %2700 = vmatprep.subr.mxu0 0.0
    %2701 = vmatpush1.msra.mxu0 0.0
    %2702 = vmatprep.subr.mxu0 0.0
    %2703 = vmatpush1.msra.mxu0 0.0
    %2704 = vmatprep.subr.mxu0 0.0
    %2705 = vmatpush1.msra.mxu0 0.0
    %2706 = vmatprep.subr.mxu0 0.0
    %2707 = vmatpush1.msra.mxu0 0.0
    %2708 = vmatprep.subr.mxu0 0.0
    %2709 = vmatpush1.msra.mxu0 0.0
    %2710 = vmatprep.subr.mxu0 0.0
    %2711 = vmatpush1.msra.mxu0 0.0
    %2712 = vmatprep.subr.mxu0 0.0
    %2713 = vmatpush1.msra.mxu0 0.0
    %2714 = vmatprep.subr.mxu0 0.0
    %2715 = vmatpush1.msra.mxu0 0.0
    %2716 = vmatprep.subr.mxu0 0.0
    %2717 = vmatpush1.msra.mxu0 0.0
    %2718 = vmatprep.subr.mxu0 0.0
    %2719 = vmatpush1.msra.mxu0 0.0
    %2720 = vmatprep.subr.mxu0 0.0
    %2721 = vmatpush1.msra.mxu0 0.0
    %2722 = vmatprep.subr.mxu0 0.0
    %2723 = vmatpush1.msra.mxu0 0.0
    %2724 = vmatprep.subr.mxu0 0.0
    %2725 = vmatpush1.msra.mxu0 0.0
    %2726 = vmatprep.subr.mxu0 0.0
    %2727 = vmatpush1.msra.mxu0 0.0
    %2728 = vmatprep.subr.mxu0 0.0
    %2729 = vmatpush1.msra.mxu0 0.0
    %2730 = vmatprep.subr.mxu0 0.0
    %2731 = vmatpush1.msra.mxu0 0.0
    %2732 = vmatprep.subr.mxu0 0.0
    %2733 = vmatpush1.msra.mxu0 0.0
    %2734 = vmatprep.subr.mxu0 0.0
    %2735 = vmatpush1.msra.mxu0 0.0
    %2736 = vmatprep.subr.mxu0 0.0
    %2737 = vmatpush1.msra.mxu0 0.0
    %2738 = vmatprep.subr.mxu0 0.0
    %2739 = vmatpush1.msra.mxu0 0.0
    %2740 = vmatprep.subr.mxu0 0.0
    %2741 = vmatpush1.msra.mxu0 0.0
    %2742 = vmatprep.subr.mxu0 0.0
    %2743 = vmatpush1.msra.mxu0 0.0
    %2744 = vmatprep.subr.mxu0 0.0
    %2745 = vmatpush1.msra.mxu0 0.0
    %2746 = vmatprep.mubr.f32.mxu0 0.0
    %2747 = vmatmul.mubr.f32.gmra.mrb[0].mxu0 %v2677
    %v2748 = vpop.f32.mrb[0].mxu0
    %v2749 = vadd.f32 0.0, %v2748
    %v2750 = vpop.f32.mrb[0].mxu0
    %2751 = vmatprep.mubr.f32.mxu0 0.0
    %2752 = vmatmul.mubr.f32.gmra.mrb[0].mxu0 %v2680
    %v2753 = vpop.f32.mrb[0].mxu0
    %v2754 = vadd.f32 0.0, %v2753
    %v2755 = vpop.f32.mrb[0].mxu0
    %2756 = vdwg.mxu0
    %v2757 = vadd.f32 %v2563, %v2749
    %v2758 = vadd.f32 %v2568, %v2754
    %v2760 = vlaneseq
    %v2761 = vshrl.u32 %v2760, 7
    %v2762 = vsub.s32 0, %v2761
    %v2763 = vrot.slane %v2452, %v2762
    %v2765 = vadd.f32 %v2757, %v2763
    %v2766 = vadd.f32 %v2758, %v2763
    %v2768 = vsel %vm379, %v2765, 0
    %v2771 = vsel %vm379, %v2766, 0
    %2773 = vmatprep.subr.mxu0 0.0
    %2774 = vmatpush1.msra.mxu0 %v2453
    %2775 = vmatprep.subr.mxu0 0.0
    %2776 = vmatpush1.msra.mxu0 %v2454
    %2777 = vmatprep.subr.mxu0 0.0
    %2778 = vmatpush1.msra.mxu0 %v2455
    %2779 = vmatprep.subr.mxu0 0.0
    %2780 = vmatpush1.msra.mxu0 %v2456
    %2781 = vmatprep.subr.mxu0 0.0
    %2782 = vmatpush1.msra.mxu0 0.0
    %2783 = vmatprep.subr.mxu0 0.0
    %2784 = vmatpush1.msra.mxu0 0.0
    %2785 = vmatprep.subr.mxu0 0.0
    %2786 = vmatpush1.msra.mxu0 0.0
    %2787 = vmatprep.subr.mxu0 0.0
    %2788 = vmatpush1.msra.mxu0 0.0
    %2789 = vmatprep.subr.mxu0 0.0
    %2790 = vmatpush1.msra.mxu0 0.0
    %2791 = vmatprep.subr.mxu0 0.0
    %2792 = vmatpush1.msra.mxu0 0.0
    %2793 = vmatprep.subr.mxu0 0.0
    %2794 = vmatpush1.msra.mxu0 0.0
    %2795 = vmatprep.subr.mxu0 0.0
    %2796 = vmatpush1.msra.mxu0 0.0
    %2797 = vmatprep.subr.mxu0 0.0
    %2798 = vmatpush1.msra.mxu0 0.0
    %2799 = vmatprep.subr.mxu0 0.0
    %2800 = vmatpush1.msra.mxu0 0.0
    %2801 = vmatprep.subr.mxu0 0.0
    %2802 = vmatpush1.msra.mxu0 0.0
    %2803 = vmatprep.subr.mxu0 0.0
    %2804 = vmatpush1.msra.mxu0 0.0
    %2805 = vmatprep.subr.mxu0 0.0
    %2806 = vmatpush1.msra.mxu0 0.0
    %2807 = vmatprep.subr.mxu0 0.0
    %2808 = vmatpush1.msra.mxu0 0.0
    %2809 = vmatprep.subr.mxu0 0.0
    %2810 = vmatpush1.msra.mxu0 0.0
    %2811 = vmatprep.subr.mxu0 0.0
    %2812 = vmatpush1.msra.mxu0 0.0
    %2813 = vmatprep.subr.mxu0 0.0
    %2814 = vmatpush1.msra.mxu0 0.0
    %2815 = vmatprep.subr.mxu0 0.0
    %2816 = vmatpush1.msra.mxu0 0.0
    %2817 = vmatprep.subr.mxu0 0.0
    %2818 = vmatpush1.msra.mxu0 0.0
    %2819 = vmatprep.subr.mxu0 0.0
    %2820 = vmatpush1.msra.mxu0 0.0
    %2821 = vmatprep.subr.mxu0 0.0
    %2822 = vmatpush1.msra.mxu0 0.0
    %2823 = vmatprep.subr.mxu0 0.0
    %2824 = vmatpush1.msra.mxu0 0.0
    %2825 = vmatprep.subr.mxu0 0.0
    %2826 = vmatpush1.msra.mxu0 0.0
    %2827 = vmatprep.subr.mxu0 0.0
    %2828 = vmatpush1.msra.mxu0 0.0
    %2829 = vmatprep.subr.mxu0 0.0
    %2830 = vmatpush1.msra.mxu0 0.0
    %2831 = vmatprep.subr.mxu0 0.0
    %2832 = vmatpush1.msra.mxu0 0.0
    %2833 = vmatprep.subr.mxu0 0.0
    %2834 = vmatpush1.msra.mxu0 0.0
    %2835 = vmatprep.subr.mxu0 0.0
    %2836 = vmatpush1.msra.mxu0 0.0
    %2837 = vmatprep.mubr.f32.mxu0 0.0
    %2838 = vmatmul.mubr.f32.gmra.mrb[0].mxu0 %v2768
    %v2839 = vpop.f32.mrb[0].mxu0
    %v2840 = vadd.f32 0.0, %v2839
    %v2841 = vpop.f32.mrb[0].mxu0
    %2842 = vmatprep.mubr.f32.mxu0 0.0
    %2843 = vmatmul.mubr.f32.gmra.mrb[0].mxu0 %v2771
    %v2844 = vpop.f32.mrb[0].mxu0
    %v2845 = vadd.f32 0.0, %v2844
    %v2846 = vpop.f32.mrb[0].mxu0
    %2847 = vdwg.mxu0
    %v2848 = vadd.f32 %v2432, %v2840
    %v2849 = vadd.f32 %v2433, %v2845
    %v2851 = vlaneseq
    %v2852 = vshrl.u32 %v2851, 7
    %v2853 = vsub.s32 0, %v2852
    %v2854 = vrot.slane %v2457, %v2853
    %v2856 = vadd.f32 %v2848, %v2854
    %v2857 = vadd.f32 %v2849, %v2854
    %v2858 = vpack.c.bf16 %v2857, %v2856
    %v2860 = vunpack.c.l.b16 %v2858
    %v2861 = vunpack.c.h.b16 %v2858
    %v2862 = vpack.c.b16 %v2860, %v2860
    %v2863 = vpack.c.b16 %v2861, %v2861
    %vm2866 = vcmask 257024
    %2867 = vst.msk [vmem:[#allocation38] sm:$0xf] %vm2866, %v2862
    %2868 = vst.msk [vmem:[#allocation38 + $0x4] sm:$0xf] %vm2866, %v2863
    // Predicated region
    $region186: #{_lambda_.6} parent=1 // pred_check
      _
    $region187: #{_lambda_.6} parent=1 // pred_check_branch
      %2870 = sbr.rel (0) target = $region189
    $region188: #{_lambda_.6} parent=1 // pred_region
      %s2872 = ssub.s32 128, 128
      %2873 = vsyncadd [#allocation4], %s2872
      %s2874 = sshll.u32 [#allocation38], 4
      %s2875 = int_to_ptr.vmem [resolvable:$true] %s2874
      %2880 = dma.vmem_to_hbm [thread:$0]  %s2875, 128, %s23, [#allocation4], 64, 64, 4
    $region189: #{_lambda_.6} parent=1 // pred_fallthru
      _
    // Predicated region
    $region190: #{_lambda_.6} parent=1 // pred_check
      _
    $region191: #{_lambda_.6} parent=1 // pred_check_branch
      %2882 = sbr.rel (0) target = $region193
    $region192: #{_lambda_.6} parent=1 // pred_region
      %2883 = dma.done [#allocation4], 128
    $region193: #{_lambda_.6} parent=1 // pred_fallthru
      _
    %2884 = vsyncpa [#allocation3], 1
    %2885 = vsyncpa [#allocation6], 1
    %2886 = vsyncpa [#allocation9], 1
    %2887 = vsyncpa [#allocation12], 1
    %2888 = vsyncpa [#allocation15], 1
    %2889 = vsyncpa [#allocation18], 1
    %2890 = vsyncpa [#allocation21], 1
    %2891 = vsyncpa [#allocation24], 1
    %2892 = vsyncpa [#allocation27], 1
    %2893 = vsyncpa [#allocation30], 1
    %2894 = vsyncpa [#allocation33], 1
    %2895 = vsyncpa [#allocation36], 1
    %2896 = vsyncpa [#allocation4], 1

</llo_original>
